<compile_context>
chip_gen: v6e
topology: v6e:2x2x1
jax: 0.10.0
libtpu: 0.0.40
codegen_flags: <defaults>
</compile_context>

<pallas_src>
import functools
import numpy as np
import jax
import jax.numpy as jnp
from jax.experimental import pallas as pl
from jax.experimental.pallas import tpu as pltpu

AUDIO_CHANNELS = 1
CLASSES = 10
BN_EPS = 1e-5

# Layer-1 (strided conv) constants.
L1_K, L1_STRIDE, L1_PAD, L1_COUT = 79, 4, 39, 64
L1_KDIM = 128  # im2col contraction: ceil(79/4)*4 = 80 taps, padded to 128 lanes.

# k=3 stack: (name, cin, cout, maxpool(4,4) after).
K3_LAYERS = [
    ("2a", 64, 64, False), ("2b", 64, 64, True),
    ("3a", 64, 64, False), ("3b", 64, 64, True),
    ("4a", 64, 128, False), ("4b", 128, 128, True),
    ("5a", 128, 256, False), ("5b", 256, 256, False),
]


# ----------------------------- fused Pallas kernel -------------------------

def _m5_fused_kernel(*refs, layer_pools):
    # refs layout (one grid step == one batch element):
    #   [0] x_win  (1, L1_out, 128)  im2col'd layer-1 windows
    #   [1] w1     (128, 64)         layer-1 weight, taps packed on contraction dim
    #   [2] s1, [3] b1               (1, 64)  folded BN scale / bias
    #   [4+3i .. 6+3i]               k=3 layer i: w (3, Cin, Cout), s (1, Cout), b (1, Cout)
    #   [4+3n]  w_fc (256, CLASSES), [5+3n] b_fc (1, CLASSES)
    #   [6+3n]  o_ref (1, 1, CLASSES)   (output)
    n_k3 = len(layer_pools)
    x_ref, w1_ref, s1_ref, b1_ref = refs[:4]
    wfc_ref = refs[4 + 3 * n_k3]
    bfc_ref = refs[5 + 3 * n_k3]
    o_ref = refs[6 + 3 * n_k3]

    def pool4(y):  # MaxPool1d(4, 4), floor mode, along time (sublane) axis
        lp = y.shape[0] // 4
        return jnp.max(y[: lp * 4].reshape(lp, 4, y.shape[1]), axis=1)

    # ---- conv_block1: one well-shaped MXU matmul + BN + ReLU + MaxPool(4,4) ----
    y = jnp.dot(x_ref[0], w1_ref[...], preferred_element_type=jnp.float32)
    y = jnp.maximum(y * s1_ref[...] + b1_ref[...], 0.0)
    x = pool4(y)                                   # (L1_out/4, 64), VMEM resident

    # ---- conv_blocks 2..5: Conv1d(k=3, p=1) + BN + ReLU (+ MaxPool(4,4)) ------
    for i, pool in enumerate(layer_pools):
        w_ref = refs[4 + 3 * i]
        s_ref = refs[5 + 3 * i]
        b_ref = refs[6 + 3 * i]
        L, cin = x.shape
        zrow = jnp.zeros((1, cin), jnp.float32)
        xp = jnp.concatenate([zrow, x, zrow], axis=0)   # in-register halo pad (L+2, cin)
        acc = jnp.dot(xp[0:L], w_ref[0], preferred_element_type=jnp.float32)
        acc = acc + jnp.dot(xp[1:L + 1], w_ref[1], preferred_element_type=jnp.float32)
        acc = acc + jnp.dot(xp[2:L + 2], w_ref[2], preferred_element_type=jnp.float32)
        y = jnp.maximum(acc * s_ref[...] + b_ref[...], 0.0)
        x = pool4(y) if pool else y

    # ---- head: mean over time + Linear(256, CLASSES) ---------------------------
    xm = jnp.mean(x, axis=0, keepdims=True)             # (1, 256)
    logits = jnp.dot(xm, wfc_ref[...], preferred_element_type=jnp.float32) + bfc_ref[...]
    o_ref[0] = logits.astype(o_ref.dtype)


# ------------------------------- JAX wrapper --------------------------------

def _im2col_layer1(x):
    """Re-express Conv1d(k=79, s=4, p=39) on a 1-channel signal as one matmul.

    x: (B, L) raw waveform -> windows (B, L_out, 128) with
    windows[b, t, j] = x_padded[b, 4*t + j] for j in [0, 80); lanes 80..127 zero.
    """
    B, L = x.shape
    L_out = (L + 2 * L1_PAD - L1_K) // L1_STRIDE + 1
    kp = pl.cdiv(L1_K, L1_STRIDE)                 # 20 stride-groups per output window
    need = L1_STRIDE * (L_out - 1 + kp)           # padded samples actually read
    xp = jnp.pad(x, ((0, 0), (L1_PAD, 0)))
    # Right side: pad/truncate to exactly `need` samples.  Truncation is safe
    # (max index read = 4*(L_out-1)+K-1 < need) and any right zero-padding added
    # here is <= the conv's own right padding by the output-length formula.
    if need > xp.shape[1]:
        xp = jnp.pad(xp, ((0, 0), (0, need - xp.shape[1])))
    else:
        xp = xp[:, :need]
    xr = xp.reshape(B, need // L1_STRIDE, L1_STRIDE)
    win = jnp.concatenate([xr[:, s:s + L_out, :] for s in range(kp)], axis=-1)
    return jnp.pad(win, ((0, 0), (0, 0), (0, L1_KDIM - kp * L1_STRIDE)))


def m5_forward(x_ncw, p):
    """x_ncw: (B, 1, L) float32, PyTorch NCW layout.  Returns (B, CLASSES)."""
    B = x_ncw.shape[0]
    x_win = _im2col_layer1(x_ncw[:, 0, :].astype(jnp.float32))   # (B, L1_out, 128)
    L1_out = x_win.shape[1]

    # Layer-1 weight: (79, 1, 64) -> taps packed on the contraction dim, padded to 128.
    w1p = jnp.zeros((L1_KDIM, L1_COUT), jnp.float32).at[:L1_K].set(
        p["w1"].reshape(L1_K, L1_COUT))

    args = [x_win, w1p, p["s1"].reshape(1, L1_COUT), p["b1"].reshape(1, L1_COUT)]
    in_specs = [
        # NOTE: for much larger L this input should get an L-tile grid axis with
        # a halo-aware index_map (v7x VMEM guard); at L=4096 the full block is tiny.
        pl.BlockSpec((1, L1_out, L1_KDIM), lambda b: (b, 0, 0)),
        pl.BlockSpec((L1_KDIM, L1_COUT), lambda b: (0, 0)),
        pl.BlockSpec((1, L1_COUT), lambda b: (0, 0)),
        pl.BlockSpec((1, L1_COUT), lambda b: (0, 0)),
    ]
    for (name, cin, cout, _pool) in K3_LAYERS:
        args += [p["w" + name], p["s" + name].reshape(1, cout),
                 p["b" + name].reshape(1, cout)]
        in_specs += [
            pl.BlockSpec((3, cin, cout), lambda b: (0, 0, 0)),
            pl.BlockSpec((1, cout), lambda b: (0, 0)),
            pl.BlockSpec((1, cout), lambda b: (0, 0)),
        ]
    args += [p["w_fc"], p["b_fc"].reshape(1, CLASSES)]
    in_specs += [
        pl.BlockSpec((256, CLASSES), lambda b: (0, 0)),
        pl.BlockSpec((1, CLASSES), lambda b: (0, 0)),
    ]

    kernel = functools.partial(
        _m5_fused_kernel,
        layer_pools=tuple(pool for (_, _, _, pool) in K3_LAYERS))

    out = pl.pallas_call(
        kernel,
        out_shape=jax.ShapeDtypeStruct((B, 1, CLASSES), jnp.float32),
        grid=(B,),
        in_specs=in_specs,
        out_specs=pl.BlockSpec((1, 1, CLASSES), lambda b: (b, 0, 0)),
        compiler_params=pltpu.CompilerParams(dimension_semantics=("parallel",)),
    )(*args)
    return out[:, 0, :]


# ------------------------------ parameters ----------------------------------

def init_params(key):
    # Deterministic synthetic parameters.  Conv bias + BatchNorm (running stats)
    # are folded into per-channel scale/bias.
    # TODO(synk): PyTorch default training-mode BN (batch statistics) is not
    # reproduced; BN is implemented in eval mode with running statistics.
    params = {}
    specs = [("1", AUDIO_CHANNELS, 64, 79)] + [
        (name, cin, cout, 3) for (name, cin, cout, _p) in K3_LAYERS]
    for name, cin, cout, k in specs:
        key, kw, kb, kbn = jax.random.split(key, 4)
        bound = 1.0 / np.sqrt(cin * k)
        w = jax.random.uniform(kw, (k, cin, cout), jnp.float32, -bound, bound)
        cb = jax.random.uniform(kb, (cout,), jnp.float32, -bound, bound)
        g1, g2, g3, g4 = jax.random.split(kbn, 4)
        gamma = jax.random.uniform(g1, (cout,), jnp.float32, 0.8, 1.2)
        beta = jax.random.uniform(g2, (cout,), jnp.float32, -0.1, 0.1)
        mean = jax.random.uniform(g3, (cout,), jnp.float32, -0.05, 0.05)
        var = jax.random.uniform(g4, (cout,), jnp.float32, 0.5, 1.5)
        scale = gamma / jnp.sqrt(var + BN_EPS)
        bias = (cb - mean) * scale + beta
        params["w" + name] = w
        params["s" + name] = scale
        params["b" + name] = bias
    key, kfw, kfb = jax.random.split(key, 3)
    bound = 1.0 / np.sqrt(256)
    params["w_fc"] = jax.random.uniform(kfw, (256, CLASSES), jnp.float32, -bound, bound)
    params["b_fc"] = jax.random.uniform(kfb, (CLASSES,), jnp.float32, -bound, bound)
    return params


# --------------------------- pure-JAX reference ------------------------------

def _conv_bn_relu_ref(x, w, scale, bias, stride, pad):
    # x: (B, Cin, L) NCW; w: (K, Cin, Cout) -> (B, Cout, L_out)
    rhs = jnp.transpose(w, (2, 1, 0))                      # (Cout, Cin, K)
    y = jax.lax.conv_general_dilated(
        x, rhs, window_strides=(stride,), padding=[(pad, pad)],
        dimension_numbers=("NCH", "OIH", "NCH"),
        precision=jax.lax.Precision.HIGHEST)
    return jnp.maximum(y * scale[None, :, None] + bias[None, :, None], 0.0)


def _maxpool4_ref(x):
    B, C, L = x.shape
    lp = L // 4
    return jnp.max(x[:, :, :lp * 4].reshape(B, C, lp, 4), axis=-1)


def m5_reference(x_ncw, p):
    x = x_ncw.astype(jnp.float32)
    x = _maxpool4_ref(_conv_bn_relu_ref(x, p["w1"], p["s1"], p["b1"], L1_STRIDE, L1_PAD))
    for (name, _cin, _cout, pool) in K3_LAYERS:
        x = _conv_bn_relu_ref(x, p["w" + name], p["s" + name], p["b" + name], 1, 1)
        if pool:
            x = _maxpool4_ref(x)
    xm = jnp.mean(x, axis=2)
    return jnp.dot(xm, p["w_fc"], precision=jax.lax.Precision.HIGHEST) + p["b_fc"]


# ---------------------------------- main -------------------------------------

if __name__ == "__main__":
    key = jax.random.PRNGKey(0)
    kparams, kx = jax.random.split(key)
    params = init_params(kparams)

    B, L = 2, 4096   # 4096 raw samples -> time length 4 before global mean pooling
    x = jax.random.normal(kx, (B, AUDIO_CHANNELS, L), jnp.float32)

    fwd = jax.jit(m5_forward)
    out = jax.block_until_ready(fwd(x, params))
    assert out.shape == (B, CLASSES), out.shape
    assert bool(jnp.all(jnp.isfinite(out)))

    ref = jax.block_until_ready(jax.jit(m5_reference)(x, params))
    max_err = float(jnp.max(jnp.abs(out - ref)))
    assert max_err < 5e-2, f"mismatch vs reference conv: max|diff|={max_err}"

    print("KERNEL_OK")
</pallas_src>

<mosaic_0001>
module attributes {stable_mosaic.version = 11 : i64} {
  func.func @_m5_fused_kernel(%arg0: i32, %arg1: memref<1x1024x128xf32, #tpu.memory_space<vmem>>, %arg2: memref<128x64xf32, #tpu.memory_space<vmem>>, %arg3: memref<1x64xf32, #tpu.memory_space<vmem>>, %arg4: memref<1x64xf32, #tpu.memory_space<vmem>>, %arg5: memref<3x64x64xf32, #tpu.memory_space<vmem>>, %arg6: memref<1x64xf32, #tpu.memory_space<vmem>>, %arg7: memref<1x64xf32, #tpu.memory_space<vmem>>, %arg8: memref<3x64x64xf32, #tpu.memory_space<vmem>>, %arg9: memref<1x64xf32, #tpu.memory_space<vmem>>, %arg10: memref<1x64xf32, #tpu.memory_space<vmem>>, %arg11: memref<3x64x64xf32, #tpu.memory_space<vmem>>, %arg12: memref<1x64xf32, #tpu.memory_space<vmem>>, %arg13: memref<1x64xf32, #tpu.memory_space<vmem>>, %arg14: memref<3x64x64xf32, #tpu.memory_space<vmem>>, %arg15: memref<1x64xf32, #tpu.memory_space<vmem>>, %arg16: memref<1x64xf32, #tpu.memory_space<vmem>>, %arg17: memref<3x64x128xf32, #tpu.memory_space<vmem>>, %arg18: memref<1x128xf32, #tpu.memory_space<vmem>>, %arg19: memref<1x128xf32, #tpu.memory_space<vmem>>, %arg20: memref<3x128x128xf32, #tpu.memory_space<vmem>>, %arg21: memref<1x128xf32, #tpu.memory_space<vmem>>, %arg22: memref<1x128xf32, #tpu.memory_space<vmem>>, %arg23: memref<3x128x256xf32, #tpu.memory_space<vmem>>, %arg24: memref<1x256xf32, #tpu.memory_space<vmem>>, %arg25: memref<1x256xf32, #tpu.memory_space<vmem>>, %arg26: memref<3x256x256xf32, #tpu.memory_space<vmem>>, %arg27: memref<1x256xf32, #tpu.memory_space<vmem>>, %arg28: memref<1x256xf32, #tpu.memory_space<vmem>>, %arg29: memref<256x10xf32, #tpu.memory_space<vmem>>, %arg30: memref<1x10xf32, #tpu.memory_space<vmem>>, %arg31: memref<1x1x10xf32, #tpu.memory_space<vmem>>) attributes {dimension_semantics = [#tpu.dimension_semantics<parallel>], iteration_bounds = array<i64: 2>, scalar_prefetch = 0 : i64, scratch_operands = 0 : i64, tpu.core_type = #tpu.core_type<tc>, window_params = [{transform_indices = @transform_0, window_bounds = array<i64: 1, 1024, 128>}, {pipeline_mode = #tpu.pipeline_mode<synchronous>, transform_indices = @transform_1, window_bounds = array<i64: 128, 64>}, {pipeline_mode = #tpu.pipeline_mode<synchronous>, transform_indices = @transform_2, window_bounds = array<i64: 1, 64>}, {pipeline_mode = #tpu.pipeline_mode<synchronous>, transform_indices = @transform_3, window_bounds = array<i64: 1, 64>}, {pipeline_mode = #tpu.pipeline_mode<synchronous>, transform_indices = @transform_4, window_bounds = array<i64: 3, 64, 64>}, {pipeline_mode = #tpu.pipeline_mode<synchronous>, transform_indices = @transform_5, window_bounds = array<i64: 1, 64>}, {pipeline_mode = #tpu.pipeline_mode<synchronous>, transform_indices = @transform_6, window_bounds = array<i64: 1, 64>}, {pipeline_mode = #tpu.pipeline_mode<synchronous>, transform_indices = @transform_7, window_bounds = array<i64: 3, 64, 64>}, {pipeline_mode = #tpu.pipeline_mode<synchronous>, transform_indices = @transform_8, window_bounds = array<i64: 1, 64>}, {pipeline_mode = #tpu.pipeline_mode<synchronous>, transform_indices = @transform_9, window_bounds = array<i64: 1, 64>}, {pipeline_mode = #tpu.pipeline_mode<synchronous>, transform_indices = @transform_10, window_bounds = array<i64: 3, 64, 64>}, {pipeline_mode = #tpu.pipeline_mode<synchronous>, transform_indices = @transform_11, window_bounds = array<i64: 1, 64>}, {pipeline_mode = #tpu.pipeline_mode<synchronous>, transform_indices = @transform_12, window_bounds = array<i64: 1, 64>}, {pipeline_mode = #tpu.pipeline_mode<synchronous>, transform_indices = @transform_13, window_bounds = array<i64: 3, 64, 64>}, {pipeline_mode = #tpu.pipeline_mode<synchronous>, transform_indices = @transform_14, window_bounds = array<i64: 1, 64>}, {pipeline_mode = #tpu.pipeline_mode<synchronous>, transform_indices = @transform_15, window_bounds = array<i64: 1, 64>}, {pipeline_mode = #tpu.pipeline_mode<synchronous>, transform_indices = @transform_16, window_bounds = array<i64: 3, 64, 128>}, {pipeline_mode = #tpu.pipeline_mode<synchronous>, transform_indices = @transform_17, window_bounds = array<i64: 1, 128>}, {pipeline_mode = #tpu.pipeline_mode<synchronous>, transform_indices = @transform_18, window_bounds = array<i64: 1, 128>}, {pipeline_mode = #tpu.pipeline_mode<synchronous>, transform_indices = @transform_19, window_bounds = array<i64: 3, 128, 128>}, {pipeline_mode = #tpu.pipeline_mode<synchronous>, transform_indices = @transform_20, window_bounds = array<i64: 1, 128>}, {pipeline_mode = #tpu.pipeline_mode<synchronous>, transform_indices = @transform_21, window_bounds = array<i64: 1, 128>}, {pipeline_mode = #tpu.pipeline_mode<synchronous>, transform_indices = @transform_22, window_bounds = array<i64: 3, 128, 256>}, {pipeline_mode = #tpu.pipeline_mode<synchronous>, transform_indices = @transform_23, window_bounds = array<i64: 1, 256>}, {pipeline_mode = #tpu.pipeline_mode<synchronous>, transform_indices = @transform_24, window_bounds = array<i64: 1, 256>}, {pipeline_mode = #tpu.pipeline_mode<synchronous>, transform_indices = @transform_25, window_bounds = array<i64: 3, 256, 256>}, {pipeline_mode = #tpu.pipeline_mode<synchronous>, transform_indices = @transform_26, window_bounds = array<i64: 1, 256>}, {pipeline_mode = #tpu.pipeline_mode<synchronous>, transform_indices = @transform_27, window_bounds = array<i64: 1, 256>}, {pipeline_mode = #tpu.pipeline_mode<synchronous>, transform_indices = @transform_28, window_bounds = array<i64: 256, 10>}, {pipeline_mode = #tpu.pipeline_mode<synchronous>, transform_indices = @transform_29, window_bounds = array<i64: 1, 10>}, {transform_indices = @transform_30, window_bounds = array<i64: 1, 1, 10>}]} {
    %c0 = arith.constant 0 : index
    %c0_0 = arith.constant 0 : index
    %c0_1 = arith.constant 0 : index
    %0 = vector.load %arg1[%c0, %c0_0, %c0_1] : memref<1x1024x128xf32, #tpu.memory_space<vmem>>, vector<1x1024x128xf32>
    %1 = vector.shape_cast %0 : vector<1x1024x128xf32> to vector<1024x128xf32>
    %c0_2 = arith.constant 0 : index
    %c0_3 = arith.constant 0 : index
    %2 = vector.load %arg2[%c0_2, %c0_3] : memref<128x64xf32, #tpu.memory_space<vmem>>, vector<128x64xf32>
    %cst = arith.constant dense<0.000000e+00> : vector<1024x64xf32>
    %3 = tpu.matmul %1, %2, %cst {dimension_numbers = #tpu.dot_dimension_numbers<[1], [0], [0], [1], [0, 0, 1, 1], [], []>} : vector<1024x128xf32>, vector<128x64xf32>, vector<1024x64xf32> -> vector<1024x64xf32>
    %c0_4 = arith.constant 0 : index
    %c0_5 = arith.constant 0 : index
    %4 = vector.load %arg3[%c0_4, %c0_5] : memref<1x64xf32, #tpu.memory_space<vmem>>, vector<1x64xf32>
    %5 = vector.broadcast %4 : vector<1x64xf32> to vector<1024x64xf32>
    %6 = arith.mulf %3, %5 : vector<1024x64xf32>
    %c0_6 = arith.constant 0 : index
    %c0_7 = arith.constant 0 : index
    %7 = vector.load %arg4[%c0_6, %c0_7] : memref<1x64xf32, #tpu.memory_space<vmem>>, vector<1x64xf32>
    %8 = vector.broadcast %7 : vector<1x64xf32> to vector<1024x64xf32>
    %9 = arith.addf %6, %8 : vector<1024x64xf32>
    %cst_8 = arith.constant 0.000000e+00 : f32
    %10 = vector.broadcast %cst_8 : f32 to vector<1024x64xf32>
    %11 = arith.maximumf %9, %10 : vector<1024x64xf32>
    %12 = vector.shape_cast %11 : vector<1024x64xf32> to vector<256x4x64xf32>
    %cst_9 = arith.constant dense<0xFF800000> : vector<256x64xf32>
    %13 = vector.multi_reduction <maximumf>, %12, %cst_9 [1] : vector<256x4x64xf32> to vector<256x64xf32>
    %cst_10 = arith.constant 0.000000e+00 : f32
    %14 = vector.broadcast %cst_10 : f32 to vector<1x64xf32>
    %15 = tpu.concatenate %14, %13, %14 in 0 : vector<1x64xf32>, vector<256x64xf32>, vector<1x64xf32> -> vector<258x64xf32>
    %16 = vector.extract_strided_slice %15 {offsets = [0, 0], sizes = [256, 64], strides = [1, 1]} : vector<258x64xf32> to vector<256x64xf32>
    %c0_11 = arith.constant 0 : index
    %c0_12 = arith.constant 0 : index
    %c0_13 = arith.constant 0 : index
    %17 = vector.load %arg5[%c0_11, %c0_12, %c0_13] : memref<3x64x64xf32, #tpu.memory_space<vmem>>, vector<1x64x64xf32>
    %18 = vector.shape_cast %17 : vector<1x64x64xf32> to vector<64x64xf32>
    %cst_14 = arith.constant dense<0.000000e+00> : vector<256x64xf32>
    %19 = tpu.matmul %16, %18, %cst_14 {dimension_numbers = #tpu.dot_dimension_numbers<[1], [0], [0], [1], [0, 0, 1, 1], [], []>} : vector<256x64xf32>, vector<64x64xf32>, vector<256x64xf32> -> vector<256x64xf32>
    %20 = vector.extract_strided_slice %15 {offsets = [1, 0], sizes = [256, 64], strides = [1, 1]} : vector<258x64xf32> to vector<256x64xf32>
    %c1 = arith.constant 1 : index
    %c0_15 = arith.constant 0 : index
    %c0_16 = arith.constant 0 : index
    %21 = vector.load %arg5[%c1, %c0_15, %c0_16] : memref<3x64x64xf32, #tpu.memory_space<vmem>>, vector<1x64x64xf32>
    %22 = vector.shape_cast %21 : vector<1x64x64xf32> to vector<64x64xf32>
    %cst_17 = arith.constant dense<0.000000e+00> : vector<256x64xf32>
    %23 = tpu.matmul %20, %22, %cst_17 {dimension_numbers = #tpu.dot_dimension_numbers<[1], [0], [0], [1], [0, 0, 1, 1], [], []>} : vector<256x64xf32>, vector<64x64xf32>, vector<256x64xf32> -> vector<256x64xf32>
    %24 = arith.addf %19, %23 : vector<256x64xf32>
    %25 = vector.extract_strided_slice %15 {offsets = [2, 0], sizes = [256, 64], strides = [1, 1]} : vector<258x64xf32> to vector<256x64xf32>
    %c2 = arith.constant 2 : index
    %c0_18 = arith.constant 0 : index
    %c0_19 = arith.constant 0 : index
    %26 = vector.load %arg5[%c2, %c0_18, %c0_19] : memref<3x64x64xf32, #tpu.memory_space<vmem>>, vector<1x64x64xf32>
    %27 = vector.shape_cast %26 : vector<1x64x64xf32> to vector<64x64xf32>
    %cst_20 = arith.constant dense<0.000000e+00> : vector<256x64xf32>
    %28 = tpu.matmul %25, %27, %cst_20 {dimension_numbers = #tpu.dot_dimension_numbers<[1], [0], [0], [1], [0, 0, 1, 1], [], []>} : vector<256x64xf32>, vector<64x64xf32>, vector<256x64xf32> -> vector<256x64xf32>
    %29 = arith.addf %24, %28 : vector<256x64xf32>
    %c0_21 = arith.constant 0 : index
    %c0_22 = arith.constant 0 : index
    %30 = vector.load %arg6[%c0_21, %c0_22] : memref<1x64xf32, #tpu.memory_space<vmem>>, vector<1x64xf32>
    %31 = vector.broadcast %30 : vector<1x64xf32> to vector<256x64xf32>
    %32 = arith.mulf %29, %31 : vector<256x64xf32>
    %c0_23 = arith.constant 0 : index
    %c0_24 = arith.constant 0 : index
    %33 = vector.load %arg7[%c0_23, %c0_24] : memref<1x64xf32, #tpu.memory_space<vmem>>, vector<1x64xf32>
    %34 = vector.broadcast %33 : vector<1x64xf32> to vector<256x64xf32>
    %35 = arith.addf %32, %34 : vector<256x64xf32>
    %cst_25 = arith.constant 0.000000e+00 : f32
    %36 = vector.broadcast %cst_25 : f32 to vector<256x64xf32>
    %37 = arith.maximumf %35, %36 : vector<256x64xf32>
    %cst_26 = arith.constant 0.000000e+00 : f32
    %38 = vector.broadcast %cst_26 : f32 to vector<1x64xf32>
    %39 = tpu.concatenate %38, %37, %38 in 0 : vector<1x64xf32>, vector<256x64xf32>, vector<1x64xf32> -> vector<258x64xf32>
    %40 = vector.extract_strided_slice %39 {offsets = [0, 0], sizes = [256, 64], strides = [1, 1]} : vector<258x64xf32> to vector<256x64xf32>
    %c0_27 = arith.constant 0 : index
    %c0_28 = arith.constant 0 : index
    %c0_29 = arith.constant 0 : index
    %41 = vector.load %arg8[%c0_27, %c0_28, %c0_29] : memref<3x64x64xf32, #tpu.memory_space<vmem>>, vector<1x64x64xf32>
    %42 = vector.shape_cast %41 : vector<1x64x64xf32> to vector<64x64xf32>
    %cst_30 = arith.constant dense<0.000000e+00> : vector<256x64xf32>
    %43 = tpu.matmul %40, %42, %cst_30 {dimension_numbers = #tpu.dot_dimension_numbers<[1], [0], [0], [1], [0, 0, 1, 1], [], []>} : vector<256x64xf32>, vector<64x64xf32>, vector<256x64xf32> -> vector<256x64xf32>
    %44 = vector.extract_strided_slice %39 {offsets = [1, 0], sizes = [256, 64], strides = [1, 1]} : vector<258x64xf32> to vector<256x64xf32>
    %c1_31 = arith.constant 1 : index
    %c0_32 = arith.constant 0 : index
    %c0_33 = arith.constant 0 : index
    %45 = vector.load %arg8[%c1_31, %c0_32, %c0_33] : memref<3x64x64xf32, #tpu.memory_space<vmem>>, vector<1x64x64xf32>
    %46 = vector.shape_cast %45 : vector<1x64x64xf32> to vector<64x64xf32>
    %cst_34 = arith.constant dense<0.000000e+00> : vector<256x64xf32>
    %47 = tpu.matmul %44, %46, %cst_34 {dimension_numbers = #tpu.dot_dimension_numbers<[1], [0], [0], [1], [0, 0, 1, 1], [], []>} : vector<256x64xf32>, vector<64x64xf32>, vector<256x64xf32> -> vector<256x64xf32>
    %48 = arith.addf %43, %47 : vector<256x64xf32>
    %49 = vector.extract_strided_slice %39 {offsets = [2, 0], sizes = [256, 64], strides = [1, 1]} : vector<258x64xf32> to vector<256x64xf32>
    %c2_35 = arith.constant 2 : index
    %c0_36 = arith.constant 0 : index
    %c0_37 = arith.constant 0 : index
    %50 = vector.load %arg8[%c2_35, %c0_36, %c0_37] : memref<3x64x64xf32, #tpu.memory_space<vmem>>, vector<1x64x64xf32>
    %51 = vector.shape_cast %50 : vector<1x64x64xf32> to vector<64x64xf32>
    %cst_38 = arith.constant dense<0.000000e+00> : vector<256x64xf32>
    %52 = tpu.matmul %49, %51, %cst_38 {dimension_numbers = #tpu.dot_dimension_numbers<[1], [0], [0], [1], [0, 0, 1, 1], [], []>} : vector<256x64xf32>, vector<64x64xf32>, vector<256x64xf32> -> vector<256x64xf32>
    %53 = arith.addf %48, %52 : vector<256x64xf32>
    %c0_39 = arith.constant 0 : index
    %c0_40 = arith.constant 0 : index
    %54 = vector.load %arg9[%c0_39, %c0_40] : memref<1x64xf32, #tpu.memory_space<vmem>>, vector<1x64xf32>
    %55 = vector.broadcast %54 : vector<1x64xf32> to vector<256x64xf32>
    %56 = arith.mulf %53, %55 : vector<256x64xf32>
    %c0_41 = arith.constant 0 : index
    %c0_42 = arith.constant 0 : index
    %57 = vector.load %arg10[%c0_41, %c0_42] : memref<1x64xf32, #tpu.memory_space<vmem>>, vector<1x64xf32>
    %58 = vector.broadcast %57 : vector<1x64xf32> to vector<256x64xf32>
    %59 = arith.addf %56, %58 : vector<256x64xf32>
    %cst_43 = arith.constant 0.000000e+00 : f32
    %60 = vector.broadcast %cst_43 : f32 to vector<256x64xf32>
    %61 = arith.maximumf %59, %60 : vector<256x64xf32>
    %62 = vector.shape_cast %61 : vector<256x64xf32> to vector<64x4x64xf32>
    %cst_44 = arith.constant dense<0xFF800000> : vector<64x64xf32>
    %63 = vector.multi_reduction <maximumf>, %62, %cst_44 [1] : vector<64x4x64xf32> to vector<64x64xf32>
    %cst_45 = arith.constant 0.000000e+00 : f32
    %64 = vector.broadcast %cst_45 : f32 to vector<1x64xf32>
    %65 = tpu.concatenate %64, %63, %64 in 0 : vector<1x64xf32>, vector<64x64xf32>, vector<1x64xf32> -> vector<66x64xf32>
    %66 = vector.extract_strided_slice %65 {offsets = [0, 0], sizes = [64, 64], strides = [1, 1]} : vector<66x64xf32> to vector<64x64xf32>
    %c0_46 = arith.constant 0 : index
    %c0_47 = arith.constant 0 : index
    %c0_48 = arith.constant 0 : index
    %67 = vector.load %arg11[%c0_46, %c0_47, %c0_48] : memref<3x64x64xf32, #tpu.memory_space<vmem>>, vector<1x64x64xf32>
    %68 = vector.shape_cast %67 : vector<1x64x64xf32> to vector<64x64xf32>
    %cst_49 = arith.constant dense<0.000000e+00> : vector<64x64xf32>
    %69 = tpu.matmul %66, %68, %cst_49 {dimension_numbers = #tpu.dot_dimension_numbers<[1], [0], [0], [1], [0, 0, 1, 1], [], []>} : vector<64x64xf32>, vector<64x64xf32>, vector<64x64xf32> -> vector<64x64xf32>
    %70 = vector.extract_strided_slice %65 {offsets = [1, 0], sizes = [64, 64], strides = [1, 1]} : vector<66x64xf32> to vector<64x64xf32>
    %c1_50 = arith.constant 1 : index
    %c0_51 = arith.constant 0 : index
    %c0_52 = arith.constant 0 : index
    %71 = vector.load %arg11[%c1_50, %c0_51, %c0_52] : memref<3x64x64xf32, #tpu.memory_space<vmem>>, vector<1x64x64xf32>
    %72 = vector.shape_cast %71 : vector<1x64x64xf32> to vector<64x64xf32>
    %cst_53 = arith.constant dense<0.000000e+00> : vector<64x64xf32>
    %73 = tpu.matmul %70, %72, %cst_53 {dimension_numbers = #tpu.dot_dimension_numbers<[1], [0], [0], [1], [0, 0, 1, 1], [], []>} : vector<64x64xf32>, vector<64x64xf32>, vector<64x64xf32> -> vector<64x64xf32>
    %74 = arith.addf %69, %73 : vector<64x64xf32>
    %75 = vector.extract_strided_slice %65 {offsets = [2, 0], sizes = [64, 64], strides = [1, 1]} : vector<66x64xf32> to vector<64x64xf32>
    %c2_54 = arith.constant 2 : index
    %c0_55 = arith.constant 0 : index
    %c0_56 = arith.constant 0 : index
    %76 = vector.load %arg11[%c2_54, %c0_55, %c0_56] : memref<3x64x64xf32, #tpu.memory_space<vmem>>, vector<1x64x64xf32>
    %77 = vector.shape_cast %76 : vector<1x64x64xf32> to vector<64x64xf32>
    %cst_57 = arith.constant dense<0.000000e+00> : vector<64x64xf32>
    %78 = tpu.matmul %75, %77, %cst_57 {dimension_numbers = #tpu.dot_dimension_numbers<[1], [0], [0], [1], [0, 0, 1, 1], [], []>} : vector<64x64xf32>, vector<64x64xf32>, vector<64x64xf32> -> vector<64x64xf32>
    %79 = arith.addf %74, %78 : vector<64x64xf32>
    %c0_58 = arith.constant 0 : index
    %c0_59 = arith.constant 0 : index
    %80 = vector.load %arg12[%c0_58, %c0_59] : memref<1x64xf32, #tpu.memory_space<vmem>>, vector<1x64xf32>
    %81 = vector.broadcast %80 : vector<1x64xf32> to vector<64x64xf32>
    %82 = arith.mulf %79, %81 : vector<64x64xf32>
    %c0_60 = arith.constant 0 : index
    %c0_61 = arith.constant 0 : index
    %83 = vector.load %arg13[%c0_60, %c0_61] : memref<1x64xf32, #tpu.memory_space<vmem>>, vector<1x64xf32>
    %84 = vector.broadcast %83 : vector<1x64xf32> to vector<64x64xf32>
    %85 = arith.addf %82, %84 : vector<64x64xf32>
    %cst_62 = arith.constant 0.000000e+00 : f32
    %86 = vector.broadcast %cst_62 : f32 to vector<64x64xf32>
    %87 = arith.maximumf %85, %86 : vector<64x64xf32>
    %cst_63 = arith.constant 0.000000e+00 : f32
    %88 = vector.broadcast %cst_63 : f32 to vector<1x64xf32>
    %89 = tpu.concatenate %88, %87, %88 in 0 : vector<1x64xf32>, vector<64x64xf32>, vector<1x64xf32> -> vector<66x64xf32>
    %90 = vector.extract_strided_slice %89 {offsets = [0, 0], sizes = [64, 64], strides = [1, 1]} : vector<66x64xf32> to vector<64x64xf32>
    %c0_64 = arith.constant 0 : index
    %c0_65 = arith.constant 0 : index
    %c0_66 = arith.constant 0 : index
    %91 = vector.load %arg14[%c0_64, %c0_65, %c0_66] : memref<3x64x64xf32, #tpu.memory_space<vmem>>, vector<1x64x64xf32>
    %92 = vector.shape_cast %91 : vector<1x64x64xf32> to vector<64x64xf32>
    %cst_67 = arith.constant dense<0.000000e+00> : vector<64x64xf32>
    %93 = tpu.matmul %90, %92, %cst_67 {dimension_numbers = #tpu.dot_dimension_numbers<[1], [0], [0], [1], [0, 0, 1, 1], [], []>} : vector<64x64xf32>, vector<64x64xf32>, vector<64x64xf32> -> vector<64x64xf32>
    %94 = vector.extract_strided_slice %89 {offsets = [1, 0], sizes = [64, 64], strides = [1, 1]} : vector<66x64xf32> to vector<64x64xf32>
    %c1_68 = arith.constant 1 : index
    %c0_69 = arith.constant 0 : index
    %c0_70 = arith.constant 0 : index
    %95 = vector.load %arg14[%c1_68, %c0_69, %c0_70] : memref<3x64x64xf32, #tpu.memory_space<vmem>>, vector<1x64x64xf32>
    %96 = vector.shape_cast %95 : vector<1x64x64xf32> to vector<64x64xf32>
    %cst_71 = arith.constant dense<0.000000e+00> : vector<64x64xf32>
    %97 = tpu.matmul %94, %96, %cst_71 {dimension_numbers = #tpu.dot_dimension_numbers<[1], [0], [0], [1], [0, 0, 1, 1], [], []>} : vector<64x64xf32>, vector<64x64xf32>, vector<64x64xf32> -> vector<64x64xf32>
    %98 = arith.addf %93, %97 : vector<64x64xf32>
    %99 = vector.extract_strided_slice %89 {offsets = [2, 0], sizes = [64, 64], strides = [1, 1]} : vector<66x64xf32> to vector<64x64xf32>
    %c2_72 = arith.constant 2 : index
    %c0_73 = arith.constant 0 : index
    %c0_74 = arith.constant 0 : index
    %100 = vector.load %arg14[%c2_72, %c0_73, %c0_74] : memref<3x64x64xf32, #tpu.memory_space<vmem>>, vector<1x64x64xf32>
    %101 = vector.shape_cast %100 : vector<1x64x64xf32> to vector<64x64xf32>
    %cst_75 = arith.constant dense<0.000000e+00> : vector<64x64xf32>
    %102 = tpu.matmul %99, %101, %cst_75 {dimension_numbers = #tpu.dot_dimension_numbers<[1], [0], [0], [1], [0, 0, 1, 1], [], []>} : vector<64x64xf32>, vector<64x64xf32>, vector<64x64xf32> -> vector<64x64xf32>
    %103 = arith.addf %98, %102 : vector<64x64xf32>
    %c0_76 = arith.constant 0 : index
    %c0_77 = arith.constant 0 : index
    %104 = vector.load %arg15[%c0_76, %c0_77] : memref<1x64xf32, #tpu.memory_space<vmem>>, vector<1x64xf32>
    %105 = vector.broadcast %104 : vector<1x64xf32> to vector<64x64xf32>
    %106 = arith.mulf %103, %105 : vector<64x64xf32>
    %c0_78 = arith.constant 0 : index
    %c0_79 = arith.constant 0 : index
    %107 = vector.load %arg16[%c0_78, %c0_79] : memref<1x64xf32, #tpu.memory_space<vmem>>, vector<1x64xf32>
    %108 = vector.broadcast %107 : vector<1x64xf32> to vector<64x64xf32>
    %109 = arith.addf %106, %108 : vector<64x64xf32>
    %cst_80 = arith.constant 0.000000e+00 : f32
    %110 = vector.broadcast %cst_80 : f32 to vector<64x64xf32>
    %111 = arith.maximumf %109, %110 : vector<64x64xf32>
    %112 = vector.shape_cast %111 : vector<64x64xf32> to vector<16x4x64xf32>
    %cst_81 = arith.constant dense<0xFF800000> : vector<16x64xf32>
    %113 = vector.multi_reduction <maximumf>, %112, %cst_81 [1] : vector<16x4x64xf32> to vector<16x64xf32>
    %cst_82 = arith.constant 0.000000e+00 : f32
    %114 = vector.broadcast %cst_82 : f32 to vector<1x64xf32>
    %115 = tpu.concatenate %114, %113, %114 in 0 : vector<1x64xf32>, vector<16x64xf32>, vector<1x64xf32> -> vector<18x64xf32>
    %116 = vector.extract_strided_slice %115 {offsets = [0, 0], sizes = [16, 64], strides = [1, 1]} : vector<18x64xf32> to vector<16x64xf32>
    %c0_83 = arith.constant 0 : index
    %c0_84 = arith.constant 0 : index
    %c0_85 = arith.constant 0 : index
    %117 = vector.load %arg17[%c0_83, %c0_84, %c0_85] : memref<3x64x128xf32, #tpu.memory_space<vmem>>, vector<1x64x128xf32>
    %118 = vector.shape_cast %117 : vector<1x64x128xf32> to vector<64x128xf32>
    %cst_86 = arith.constant dense<0.000000e+00> : vector<16x128xf32>
    %119 = tpu.matmul %116, %118, %cst_86 {dimension_numbers = #tpu.dot_dimension_numbers<[1], [0], [0], [1], [0, 0, 1, 1], [], []>} : vector<16x64xf32>, vector<64x128xf32>, vector<16x128xf32> -> vector<16x128xf32>
    %120 = vector.extract_strided_slice %115 {offsets = [1, 0], sizes = [16, 64], strides = [1, 1]} : vector<18x64xf32> to vector<16x64xf32>
    %c1_87 = arith.constant 1 : index
    %c0_88 = arith.constant 0 : index
    %c0_89 = arith.constant 0 : index
    %121 = vector.load %arg17[%c1_87, %c0_88, %c0_89] : memref<3x64x128xf32, #tpu.memory_space<vmem>>, vector<1x64x128xf32>
    %122 = vector.shape_cast %121 : vector<1x64x128xf32> to vector<64x128xf32>
    %cst_90 = arith.constant dense<0.000000e+00> : vector<16x128xf32>
    %123 = tpu.matmul %120, %122, %cst_90 {dimension_numbers = #tpu.dot_dimension_numbers<[1], [0], [0], [1], [0, 0, 1, 1], [], []>} : vector<16x64xf32>, vector<64x128xf32>, vector<16x128xf32> -> vector<16x128xf32>
    %124 = arith.addf %119, %123 : vector<16x128xf32>
    %125 = vector.extract_strided_slice %115 {offsets = [2, 0], sizes = [16, 64], strides = [1, 1]} : vector<18x64xf32> to vector<16x64xf32>
    %c2_91 = arith.constant 2 : index
    %c0_92 = arith.constant 0 : index
    %c0_93 = arith.constant 0 : index
    %126 = vector.load %arg17[%c2_91, %c0_92, %c0_93] : memref<3x64x128xf32, #tpu.memory_space<vmem>>, vector<1x64x128xf32>
    %127 = vector.shape_cast %126 : vector<1x64x128xf32> to vector<64x128xf32>
    %cst_94 = arith.constant dense<0.000000e+00> : vector<16x128xf32>
    %128 = tpu.matmul %125, %127, %cst_94 {dimension_numbers = #tpu.dot_dimension_numbers<[1], [0], [0], [1], [0, 0, 1, 1], [], []>} : vector<16x64xf32>, vector<64x128xf32>, vector<16x128xf32> -> vector<16x128xf32>
    %129 = arith.addf %124, %128 : vector<16x128xf32>
    %c0_95 = arith.constant 0 : index
    %c0_96 = arith.constant 0 : index
    %130 = vector.load %arg18[%c0_95, %c0_96] : memref<1x128xf32, #tpu.memory_space<vmem>>, vector<1x128xf32>
    %131 = vector.broadcast %130 : vector<1x128xf32> to vector<16x128xf32>
    %132 = arith.mulf %129, %131 : vector<16x128xf32>
    %c0_97 = arith.constant 0 : index
    %c0_98 = arith.constant 0 : index
    %133 = vector.load %arg19[%c0_97, %c0_98] : memref<1x128xf32, #tpu.memory_space<vmem>>, vector<1x128xf32>
    %134 = vector.broadcast %133 : vector<1x128xf32> to vector<16x128xf32>
    %135 = arith.addf %132, %134 : vector<16x128xf32>
    %cst_99 = arith.constant 0.000000e+00 : f32
    %136 = vector.broadcast %cst_99 : f32 to vector<16x128xf32>
    %137 = arith.maximumf %135, %136 : vector<16x128xf32>
    %cst_100 = arith.constant 0.000000e+00 : f32
    %138 = vector.broadcast %cst_100 : f32 to vector<1x128xf32>
    %139 = tpu.concatenate %138, %137, %138 in 0 : vector<1x128xf32>, vector<16x128xf32>, vector<1x128xf32> -> vector<18x128xf32>
    %140 = vector.extract_strided_slice %139 {offsets = [0, 0], sizes = [16, 128], strides = [1, 1]} : vector<18x128xf32> to vector<16x128xf32>
    %c0_101 = arith.constant 0 : index
    %c0_102 = arith.constant 0 : index
    %c0_103 = arith.constant 0 : index
    %141 = vector.load %arg20[%c0_101, %c0_102, %c0_103] : memref<3x128x128xf32, #tpu.memory_space<vmem>>, vector<1x128x128xf32>
    %142 = vector.shape_cast %141 : vector<1x128x128xf32> to vector<128x128xf32>
    %cst_104 = arith.constant dense<0.000000e+00> : vector<16x128xf32>
    %143 = tpu.matmul %140, %142, %cst_104 {dimension_numbers = #tpu.dot_dimension_numbers<[1], [0], [0], [1], [0, 0, 1, 1], [], []>} : vector<16x128xf32>, vector<128x128xf32>, vector<16x128xf32> -> vector<16x128xf32>
    %144 = vector.extract_strided_slice %139 {offsets = [1, 0], sizes = [16, 128], strides = [1, 1]} : vector<18x128xf32> to vector<16x128xf32>
    %c1_105 = arith.constant 1 : index
    %c0_106 = arith.constant 0 : index
    %c0_107 = arith.constant 0 : index
    %145 = vector.load %arg20[%c1_105, %c0_106, %c0_107] : memref<3x128x128xf32, #tpu.memory_space<vmem>>, vector<1x128x128xf32>
    %146 = vector.shape_cast %145 : vector<1x128x128xf32> to vector<128x128xf32>
    %cst_108 = arith.constant dense<0.000000e+00> : vector<16x128xf32>
    %147 = tpu.matmul %144, %146, %cst_108 {dimension_numbers = #tpu.dot_dimension_numbers<[1], [0], [0], [1], [0, 0, 1, 1], [], []>} : vector<16x128xf32>, vector<128x128xf32>, vector<16x128xf32> -> vector<16x128xf32>
    %148 = arith.addf %143, %147 : vector<16x128xf32>
    %149 = vector.extract_strided_slice %139 {offsets = [2, 0], sizes = [16, 128], strides = [1, 1]} : vector<18x128xf32> to vector<16x128xf32>
    %c2_109 = arith.constant 2 : index
    %c0_110 = arith.constant 0 : index
    %c0_111 = arith.constant 0 : index
    %150 = vector.load %arg20[%c2_109, %c0_110, %c0_111] : memref<3x128x128xf32, #tpu.memory_space<vmem>>, vector<1x128x128xf32>
    %151 = vector.shape_cast %150 : vector<1x128x128xf32> to vector<128x128xf32>
    %cst_112 = arith.constant dense<0.000000e+00> : vector<16x128xf32>
    %152 = tpu.matmul %149, %151, %cst_112 {dimension_numbers = #tpu.dot_dimension_numbers<[1], [0], [0], [1], [0, 0, 1, 1], [], []>} : vector<16x128xf32>, vector<128x128xf32>, vector<16x128xf32> -> vector<16x128xf32>
    %153 = arith.addf %148, %152 : vector<16x128xf32>
    %c0_113 = arith.constant 0 : index
    %c0_114 = arith.constant 0 : index
    %154 = vector.load %arg21[%c0_113, %c0_114] : memref<1x128xf32, #tpu.memory_space<vmem>>, vector<1x128xf32>
    %155 = vector.broadcast %154 : vector<1x128xf32> to vector<16x128xf32>
    %156 = arith.mulf %153, %155 : vector<16x128xf32>
    %c0_115 = arith.constant 0 : index
    %c0_116 = arith.constant 0 : index
    %157 = vector.load %arg22[%c0_115, %c0_116] : memref<1x128xf32, #tpu.memory_space<vmem>>, vector<1x128xf32>
    %158 = vector.broadcast %157 : vector<1x128xf32> to vector<16x128xf32>
    %159 = arith.addf %156, %158 : vector<16x128xf32>
    %cst_117 = arith.constant 0.000000e+00 : f32
    %160 = vector.broadcast %cst_117 : f32 to vector<16x128xf32>
    %161 = arith.maximumf %159, %160 : vector<16x128xf32>
    %162 = vector.shape_cast %161 : vector<16x128xf32> to vector<4x4x128xf32>
    %cst_118 = arith.constant dense<0xFF800000> : vector<4x128xf32>
    %163 = vector.multi_reduction <maximumf>, %162, %cst_118 [1] : vector<4x4x128xf32> to vector<4x128xf32>
    %cst_119 = arith.constant 0.000000e+00 : f32
    %164 = vector.broadcast %cst_119 : f32 to vector<1x128xf32>
    %165 = tpu.concatenate %164, %163, %164 in 0 : vector<1x128xf32>, vector<4x128xf32>, vector<1x128xf32> -> vector<6x128xf32>
    %166 = vector.extract_strided_slice %165 {offsets = [0, 0], sizes = [4, 128], strides = [1, 1]} : vector<6x128xf32> to vector<4x128xf32>
    %c0_120 = arith.constant 0 : index
    %c0_121 = arith.constant 0 : index
    %c0_122 = arith.constant 0 : index
    %167 = vector.load %arg23[%c0_120, %c0_121, %c0_122] : memref<3x128x256xf32, #tpu.memory_space<vmem>>, vector<1x128x256xf32>
    %168 = vector.shape_cast %167 : vector<1x128x256xf32> to vector<128x256xf32>
    %cst_123 = arith.constant dense<0.000000e+00> : vector<4x256xf32>
    %169 = tpu.matmul %166, %168, %cst_123 {dimension_numbers = #tpu.dot_dimension_numbers<[1], [0], [0], [1], [0, 0, 1, 1], [], []>} : vector<4x128xf32>, vector<128x256xf32>, vector<4x256xf32> -> vector<4x256xf32>
    %170 = vector.extract_strided_slice %165 {offsets = [1, 0], sizes = [4, 128], strides = [1, 1]} : vector<6x128xf32> to vector<4x128xf32>
    %c1_124 = arith.constant 1 : index
    %c0_125 = arith.constant 0 : index
    %c0_126 = arith.constant 0 : index
    %171 = vector.load %arg23[%c1_124, %c0_125, %c0_126] : memref<3x128x256xf32, #tpu.memory_space<vmem>>, vector<1x128x256xf32>
    %172 = vector.shape_cast %171 : vector<1x128x256xf32> to vector<128x256xf32>
    %cst_127 = arith.constant dense<0.000000e+00> : vector<4x256xf32>
    %173 = tpu.matmul %170, %172, %cst_127 {dimension_numbers = #tpu.dot_dimension_numbers<[1], [0], [0], [1], [0, 0, 1, 1], [], []>} : vector<4x128xf32>, vector<128x256xf32>, vector<4x256xf32> -> vector<4x256xf32>
    %174 = arith.addf %169, %173 : vector<4x256xf32>
    %175 = vector.extract_strided_slice %165 {offsets = [2, 0], sizes = [4, 128], strides = [1, 1]} : vector<6x128xf32> to vector<4x128xf32>
    %c2_128 = arith.constant 2 : index
    %c0_129 = arith.constant 0 : index
    %c0_130 = arith.constant 0 : index
    %176 = vector.load %arg23[%c2_128, %c0_129, %c0_130] : memref<3x128x256xf32, #tpu.memory_space<vmem>>, vector<1x128x256xf32>
    %177 = vector.shape_cast %176 : vector<1x128x256xf32> to vector<128x256xf32>
    %cst_131 = arith.constant dense<0.000000e+00> : vector<4x256xf32>
    %178 = tpu.matmul %175, %177, %cst_131 {dimension_numbers = #tpu.dot_dimension_numbers<[1], [0], [0], [1], [0, 0, 1, 1], [], []>} : vector<4x128xf32>, vector<128x256xf32>, vector<4x256xf32> -> vector<4x256xf32>
    %179 = arith.addf %174, %178 : vector<4x256xf32>
    %c0_132 = arith.constant 0 : index
    %c0_133 = arith.constant 0 : index
    %180 = vector.load %arg24[%c0_132, %c0_133] : memref<1x256xf32, #tpu.memory_space<vmem>>, vector<1x256xf32>
    %181 = vector.broadcast %180 : vector<1x256xf32> to vector<4x256xf32>
    %182 = arith.mulf %179, %181 : vector<4x256xf32>
    %c0_134 = arith.constant 0 : index
    %c0_135 = arith.constant 0 : index
    %183 = vector.load %arg25[%c0_134, %c0_135] : memref<1x256xf32, #tpu.memory_space<vmem>>, vector<1x256xf32>
    %184 = vector.broadcast %183 : vector<1x256xf32> to vector<4x256xf32>
    %185 = arith.addf %182, %184 : vector<4x256xf32>
    %cst_136 = arith.constant 0.000000e+00 : f32
    %186 = vector.broadcast %cst_136 : f32 to vector<4x256xf32>
    %187 = arith.maximumf %185, %186 : vector<4x256xf32>
    %cst_137 = arith.constant 0.000000e+00 : f32
    %188 = vector.broadcast %cst_137 : f32 to vector<1x256xf32>
    %189 = tpu.concatenate %188, %187, %188 in 0 : vector<1x256xf32>, vector<4x256xf32>, vector<1x256xf32> -> vector<6x256xf32>
    %190 = vector.extract_strided_slice %189 {offsets = [0, 0], sizes = [4, 256], strides = [1, 1]} : vector<6x256xf32> to vector<4x256xf32>
    %c0_138 = arith.constant 0 : index
    %c0_139 = arith.constant 0 : index
    %c0_140 = arith.constant 0 : index
    %191 = vector.load %arg26[%c0_138, %c0_139, %c0_140] : memref<3x256x256xf32, #tpu.memory_space<vmem>>, vector<1x256x256xf32>
    %192 = vector.shape_cast %191 : vector<1x256x256xf32> to vector<256x256xf32>
    %cst_141 = arith.constant dense<0.000000e+00> : vector<4x256xf32>
    %193 = tpu.matmul %190, %192, %cst_141 {dimension_numbers = #tpu.dot_dimension_numbers<[1], [0], [0], [1], [0, 0, 1, 1], [], []>} : vector<4x256xf32>, vector<256x256xf32>, vector<4x256xf32> -> vector<4x256xf32>
    %194 = vector.extract_strided_slice %189 {offsets = [1, 0], sizes = [4, 256], strides = [1, 1]} : vector<6x256xf32> to vector<4x256xf32>
    %c1_142 = arith.constant 1 : index
    %c0_143 = arith.constant 0 : index
    %c0_144 = arith.constant 0 : index
    %195 = vector.load %arg26[%c1_142, %c0_143, %c0_144] : memref<3x256x256xf32, #tpu.memory_space<vmem>>, vector<1x256x256xf32>
    %196 = vector.shape_cast %195 : vector<1x256x256xf32> to vector<256x256xf32>
    %cst_145 = arith.constant dense<0.000000e+00> : vector<4x256xf32>
    %197 = tpu.matmul %194, %196, %cst_145 {dimension_numbers = #tpu.dot_dimension_numbers<[1], [0], [0], [1], [0, 0, 1, 1], [], []>} : vector<4x256xf32>, vector<256x256xf32>, vector<4x256xf32> -> vector<4x256xf32>
    %198 = arith.addf %193, %197 : vector<4x256xf32>
    %199 = vector.extract_strided_slice %189 {offsets = [2, 0], sizes = [4, 256], strides = [1, 1]} : vector<6x256xf32> to vector<4x256xf32>
    %c2_146 = arith.constant 2 : index
    %c0_147 = arith.constant 0 : index
    %c0_148 = arith.constant 0 : index
    %200 = vector.load %arg26[%c2_146, %c0_147, %c0_148] : memref<3x256x256xf32, #tpu.memory_space<vmem>>, vector<1x256x256xf32>
    %201 = vector.shape_cast %200 : vector<1x256x256xf32> to vector<256x256xf32>
    %cst_149 = arith.constant dense<0.000000e+00> : vector<4x256xf32>
    %202 = tpu.matmul %199, %201, %cst_149 {dimension_numbers = #tpu.dot_dimension_numbers<[1], [0], [0], [1], [0, 0, 1, 1], [], []>} : vector<4x256xf32>, vector<256x256xf32>, vector<4x256xf32> -> vector<4x256xf32>
    %203 = arith.addf %198, %202 : vector<4x256xf32>
    %c0_150 = arith.constant 0 : index
    %c0_151 = arith.constant 0 : index
    %204 = vector.load %arg27[%c0_150, %c0_151] : memref<1x256xf32, #tpu.memory_space<vmem>>, vector<1x256xf32>
    %205 = vector.broadcast %204 : vector<1x256xf32> to vector<4x256xf32>
    %206 = arith.mulf %203, %205 : vector<4x256xf32>
    %c0_152 = arith.constant 0 : index
    %c0_153 = arith.constant 0 : index
    %207 = vector.load %arg28[%c0_152, %c0_153] : memref<1x256xf32, #tpu.memory_space<vmem>>, vector<1x256xf32>
    %208 = vector.broadcast %207 : vector<1x256xf32> to vector<4x256xf32>
    %209 = arith.addf %206, %208 : vector<4x256xf32>
    %cst_154 = arith.constant 0.000000e+00 : f32
    %210 = vector.broadcast %cst_154 : f32 to vector<4x256xf32>
    %211 = arith.maximumf %209, %210 : vector<4x256xf32>
    %cst_155 = arith.constant dense<0.000000e+00> : vector<256xf32>
    %212 = vector.multi_reduction <add>, %211, %cst_155 [0] : vector<4x256xf32> to vector<256xf32>
    %213 = vector.shape_cast %212 : vector<256xf32> to vector<1x256xf32>
    %cst_156 = arith.constant 4.000000e+00 : f32
    %214 = vector.broadcast %cst_156 : f32 to vector<1x256xf32>
    %215 = arith.divf %213, %214 : vector<1x256xf32>
    %c0_157 = arith.constant 0 : index
    %c0_158 = arith.constant 0 : index
    %216 = vector.load %arg29[%c0_157, %c0_158] : memref<256x10xf32, #tpu.memory_space<vmem>>, vector<256x10xf32>
    %cst_159 = arith.constant dense<0.000000e+00> : vector<1x10xf32>
    %217 = tpu.matmul %215, %216, %cst_159 {dimension_numbers = #tpu.dot_dimension_numbers<[1], [0], [0], [1], [0, 0, 1, 1], [], []>} : vector<1x256xf32>, vector<256x10xf32>, vector<1x10xf32> -> vector<1x10xf32>
    %c0_160 = arith.constant 0 : index
    %c0_161 = arith.constant 0 : index
    %218 = vector.load %arg30[%c0_160, %c0_161] : memref<1x10xf32, #tpu.memory_space<vmem>>, vector<1x10xf32>
    %219 = arith.addf %217, %218 : vector<1x10xf32>
    %c0_162 = arith.constant 0 : index
    %c0_163 = arith.constant 0 : index
    %c0_164 = arith.constant 0 : index
    %220 = vector.load %arg31[%c0_162, %c0_163, %c0_164] : memref<1x1x10xf32, #tpu.memory_space<vmem>>, vector<1x1x10xf32>
    %221 = vector.shape_cast %220 : vector<1x1x10xf32> to vector<1x10xf32>
    %222 = vector.shape_cast %219 : vector<1x10xf32> to vector<1x1x10xf32>
    tpu.vector_store %arg31[%c0_162, %c0_163, %c0_164], %222 {strides = array<i32>} : memref<1x1x10xf32, #tpu.memory_space<vmem>>, vector<1x1x10xf32>,
    return
  }
  func.func @transform_0(%arg0: i32) -> (i32, i32, i32) {
    %c0_i32 = arith.constant 0 : i32
    %c0_i32_0 = arith.constant 0 : i32
    %c0_i32_1 = arith.constant 0 : i32
    return %arg0, %c0_i32, %c0_i32_0 : i32, i32, i32
  }
  func.func @transform_1(%arg0: i32) -> (i32, i32) {
    %c0_i32 = arith.constant 0 : i32
    %c0_i32_0 = arith.constant 0 : i32
    %c0_i32_1 = arith.constant 0 : i32
    return %c0_i32, %c0_i32_0 : i32, i32
  }
  func.func @transform_2(%arg0: i32) -> (i32, i32) {
    %c0_i32 = arith.constant 0 : i32
    %c0_i32_0 = arith.constant 0 : i32
    %c0_i32_1 = arith.constant 0 : i32
    return %c0_i32, %c0_i32_0 : i32, i32
  }
  func.func @transform_3(%arg0: i32) -> (i32, i32) {
    %c0_i32 = arith.constant 0 : i32
    %c0_i32_0 = arith.constant 0 : i32
    %c0_i32_1 = arith.constant 0 : i32
    return %c0_i32, %c0_i32_0 : i32, i32
  }
  func.func @transform_4(%arg0: i32) -> (i32, i32, i32) {
    %c0_i32 = arith.constant 0 : i32
    %c0_i32_0 = arith.constant 0 : i32
    %c0_i32_1 = arith.constant 0 : i32
    %c0_i32_2 = arith.constant 0 : i32
    return %c0_i32, %c0_i32_0, %c0_i32_1 : i32, i32, i32
  }
  func.func @transform_5(%arg0: i32) -> (i32, i32) {
    %c0_i32 = arith.constant 0 : i32
    %c0_i32_0 = arith.constant 0 : i32
    %c0_i32_1 = arith.constant 0 : i32
    return %c0_i32, %c0_i32_0 : i32, i32
  }
  func.func @transform_6(%arg0: i32) -> (i32, i32) {
    %c0_i32 = arith.constant 0 : i32
    %c0_i32_0 = arith.constant 0 : i32
    %c0_i32_1 = arith.constant 0 : i32
    return %c0_i32, %c0_i32_0 : i32, i32
  }
  func.func @transform_7(%arg0: i32) -> (i32, i32, i32) {
    %c0_i32 = arith.constant 0 : i32
    %c0_i32_0 = arith.constant 0 : i32
    %c0_i32_1 = arith.constant 0 : i32
    %c0_i32_2 = arith.constant 0 : i32
    return %c0_i32, %c0_i32_0, %c0_i32_1 : i32, i32, i32
  }
  func.func @transform_8(%arg0: i32) -> (i32, i32) {
    %c0_i32 = arith.constant 0 : i32
    %c0_i32_0 = arith.constant 0 : i32
    %c0_i32_1 = arith.constant 0 : i32
    return %c0_i32, %c0_i32_0 : i32, i32
  }
  func.func @transform_9(%arg0: i32) -> (i32, i32) {
    %c0_i32 = arith.constant 0 : i32
    %c0_i32_0 = arith.constant 0 : i32
    %c0_i32_1 = arith.constant 0 : i32
    return %c0_i32, %c0_i32_0 : i32, i32
  }
  func.func @transform_10(%arg0: i32) -> (i32, i32, i32) {
    %c0_i32 = arith.constant 0 : i32
    %c0_i32_0 = arith.constant 0 : i32
    %c0_i32_1 = arith.constant 0 : i32
    %c0_i32_2 = arith.constant 0 : i32
    return %c0_i32, %c0_i32_0, %c0_i32_1 : i32, i32, i32
  }
  func.func @transform_11(%arg0: i32) -> (i32, i32) {
    %c0_i32 = arith.constant 0 : i32
    %c0_i32_0 = arith.constant 0 : i32
    %c0_i32_1 = arith.constant 0 : i32
    return %c0_i32, %c0_i32_0 : i32, i32
  }
  func.func @transform_12(%arg0: i32) -> (i32, i32) {
    %c0_i32 = arith.constant 0 : i32
    %c0_i32_0 = arith.constant 0 : i32
    %c0_i32_1 = arith.constant 0 : i32
    return %c0_i32, %c0_i32_0 : i32, i32
  }
  func.func @transform_13(%arg0: i32) -> (i32, i32, i32) {
    %c0_i32 = arith.constant 0 : i32
    %c0_i32_0 = arith.constant 0 : i32
    %c0_i32_1 = arith.constant 0 : i32
    %c0_i32_2 = arith.constant 0 : i32
    return %c0_i32, %c0_i32_0, %c0_i32_1 : i32, i32, i32
  }
  func.func @transform_14(%arg0: i32) -> (i32, i32) {
    %c0_i32 = arith.constant 0 : i32
    %c0_i32_0 = arith.constant 0 : i32
    %c0_i32_1 = arith.constant 0 : i32
    return %c0_i32, %c0_i32_0 : i32, i32
  }
  func.func @transform_15(%arg0: i32) -> (i32, i32) {
    %c0_i32 = arith.constant 0 : i32
    %c0_i32_0 = arith.constant 0 : i32
    %c0_i32_1 = arith.constant 0 : i32
    return %c0_i32, %c0_i32_0 : i32, i32
  }
  func.func @transform_16(%arg0: i32) -> (i32, i32, i32) {
    %c0_i32 = arith.constant 0 : i32
    %c0_i32_0 = arith.constant 0 : i32
    %c0_i32_1 = arith.constant 0 : i32
    %c0_i32_2 = arith.constant 0 : i32
    return %c0_i32, %c0_i32_0, %c0_i32_1 : i32, i32, i32
  }
  func.func @transform_17(%arg0: i32) -> (i32, i32) {
    %c0_i32 = arith.constant 0 : i32
    %c0_i32_0 = arith.constant 0 : i32
    %c0_i32_1 = arith.constant 0 : i32
    return %c0_i32, %c0_i32_0 : i32, i32
  }
  func.func @transform_18(%arg0: i32) -> (i32, i32) {
    %c0_i32 = arith.constant 0 : i32
    %c0_i32_0 = arith.constant 0 : i32
    %c0_i32_1 = arith.constant 0 : i32
    return %c0_i32, %c0_i32_0 : i32, i32
  }
  func.func @transform_19(%arg0: i32) -> (i32, i32, i32) {
    %c0_i32 = arith.constant 0 : i32
    %c0_i32_0 = arith.constant 0 : i32
    %c0_i32_1 = arith.constant 0 : i32
    %c0_i32_2 = arith.constant 0 : i32
    return %c0_i32, %c0_i32_0, %c0_i32_1 : i32, i32, i32
  }
  func.func @transform_20(%arg0: i32) -> (i32, i32) {
    %c0_i32 = arith.constant 0 : i32
    %c0_i32_0 = arith.constant 0 : i32
    %c0_i32_1 = arith.constant 0 : i32
    return %c0_i32, %c0_i32_0 : i32, i32
  }
  func.func @transform_21(%arg0: i32) -> (i32, i32) {
    %c0_i32 = arith.constant 0 : i32
    %c0_i32_0 = arith.constant 0 : i32
    %c0_i32_1 = arith.constant 0 : i32
    return %c0_i32, %c0_i32_0 : i32, i32
  }
  func.func @transform_22(%arg0: i32) -> (i32, i32, i32) {
    %c0_i32 = arith.constant 0 : i32
    %c0_i32_0 = arith.constant 0 : i32
    %c0_i32_1 = arith.constant 0 : i32
    %c0_i32_2 = arith.constant 0 : i32
    return %c0_i32, %c0_i32_0, %c0_i32_1 : i32, i32, i32
  }
  func.func @transform_23(%arg0: i32) -> (i32, i32) {
    %c0_i32 = arith.constant 0 : i32
    %c0_i32_0 = arith.constant 0 : i32
    %c0_i32_1 = arith.constant 0 : i32
    return %c0_i32, %c0_i32_0 : i32, i32
  }
  func.func @transform_24(%arg0: i32) -> (i32, i32) {
    %c0_i32 = arith.constant 0 : i32
    %c0_i32_0 = arith.constant 0 : i32
    %c0_i32_1 = arith.constant 0 : i32
    return %c0_i32, %c0_i32_0 : i32, i32
  }
  func.func @transform_25(%arg0: i32) -> (i32, i32, i32) {
    %c0_i32 = arith.constant 0 : i32
    %c0_i32_0 = arith.constant 0 : i32
    %c0_i32_1 = arith.constant 0 : i32
    %c0_i32_2 = arith.constant 0 : i32
    return %c0_i32, %c0_i32_0, %c0_i32_1 : i32, i32, i32
  }
  func.func @transform_26(%arg0: i32) -> (i32, i32) {
    %c0_i32 = arith.constant 0 : i32
    %c0_i32_0 = arith.constant 0 : i32
    %c0_i32_1 = arith.constant 0 : i32
    return %c0_i32, %c0_i32_0 : i32, i32
  }
  func.func @transform_27(%arg0: i32) -> (i32, i32) {
    %c0_i32 = arith.constant 0 : i32
    %c0_i32_0 = arith.constant 0 : i32
    %c0_i32_1 = arith.constant 0 : i32
    return %c0_i32, %c0_i32_0 : i32, i32
  }
  func.func @transform_28(%arg0: i32) -> (i32, i32) {
    %c0_i32 = arith.constant 0 : i32
    %c0_i32_0 = arith.constant 0 : i32
    %c0_i32_1 = arith.constant 0 : i32
    return %c0_i32, %c0_i32_0 : i32, i32
  }
  func.func @transform_29(%arg0: i32) -> (i32, i32) {
    %c0_i32 = arith.constant 0 : i32
    %c0_i32_0 = arith.constant 0 : i32
    %c0_i32_1 = arith.constant 0 : i32
    return %c0_i32, %c0_i32_0 : i32, i32
  }
  func.func @transform_30(%arg0: i32) -> (i32, i32, i32) {
    %c0_i32 = arith.constant 0 : i32
    %c0_i32_0 = arith.constant 0 : i32
    %c0_i32_1 = arith.constant 0 : i32
    return %arg0, %c0_i32, %c0_i32_0 : i32, i32, i32
  }
}

</mosaic_0001>

<llo_original>
// kernel: m5_forward.1
$region0: #{m5_forward.1}
  #allocation0 [shape = 'u32[]', space=smem, size = 0x4, offset = 0x4, fixed_abs, tag = 'smem constant byte address 0x4 - core index']
  #allocation1 [shape = 'u32[144,128]{1,0:T(1,128)}', space=vmem, size = 0x12000, scoped, tag = 'internal scratch']
  %s0 = inlined_call_operand.smem [shape: u32[31], index: -1, kind: input, shape index: {}]
  %s1 = sld [smem:[%s0]]
  %s2 = scalar_lea.smem %s0, 1
  %s3 = sld [smem:[%s2]]
  %s4 = scalar_lea.smem %s0, 2
  %s5 = sld [smem:[%s4]]
  %s6 = scalar_lea.smem %s0, 3
  %s7 = sld [smem:[%s6]]
  %s8 = scalar_lea.smem %s0, 4
  %s9 = sld [smem:[%s8]]
  %s10 = scalar_lea.smem %s0, 5
  %s11 = sld [smem:[%s10]]
  %s12 = scalar_lea.smem %s0, 6
  %s13 = sld [smem:[%s12]]
  %s14 = scalar_lea.smem %s0, 7
  %s15 = sld [smem:[%s14]]
  %s16 = scalar_lea.smem %s0, 8
  %s17 = sld [smem:[%s16]]
  %s18 = scalar_lea.smem %s0, 9
  %s19 = sld [smem:[%s18]]
  %s20 = scalar_lea.smem %s0, 10
  %s21 = sld [smem:[%s20]]
  %s22 = scalar_lea.smem %s0, 11
  %s23 = sld [smem:[%s22]]
  %s24 = scalar_lea.smem %s0, 12
  %s25 = sld [smem:[%s24]]
  %s26 = scalar_lea.smem %s0, 13
  %s27 = sld [smem:[%s26]]
  %s28 = scalar_lea.smem %s0, 14
  %s29 = sld [smem:[%s28]]
  %s30 = scalar_lea.smem %s0, 15
  %s31 = sld [smem:[%s30]]
  %s32 = scalar_lea.smem %s0, 16
  %s33 = sld [smem:[%s32]]
  %s34 = scalar_lea.smem %s0, 17
  %s35 = sld [smem:[%s34]]
  %s36 = scalar_lea.smem %s0, 18
  %s37 = sld [smem:[%s36]]
  %s38 = scalar_lea.smem %s0, 19
  %s39 = sld [smem:[%s38]]
  %s40 = scalar_lea.smem %s0, 20
  %s41 = sld [smem:[%s40]]
  %s42 = scalar_lea.smem %s0, 21
  %s43 = sld [smem:[%s42]]
  %s44 = scalar_lea.smem %s0, 22
  %s45 = sld [smem:[%s44]]
  %s46 = scalar_lea.smem %s0, 23
  %s47 = sld [smem:[%s46]]
  %s48 = scalar_lea.smem %s0, 24
  %s49 = sld [smem:[%s48]]
  %s50 = scalar_lea.smem %s0, 25
  %s51 = sld [smem:[%s50]]
  %s52 = scalar_lea.smem %s0, 26
  %s53 = sld [smem:[%s52]]
  %s54 = scalar_lea.smem %s0, 27
  %s55 = sld [smem:[%s54]]
  %s56 = scalar_lea.smem %s0, 28
  %s57 = sld [smem:[%s56]]
  %s58 = scalar_lea.smem %s0, 29
  %s59 = sld [smem:[%s58]]
  %s60 = scalar_lea.smem %s0, 30
  %s61 = sld [smem:[%s60]]
  %s62 = sld [smem:[#allocation0]]
  $region153: #{m5_forward.1} parent=0
    _
  %s64 = ssub.s32 1, %s62
  %s65 = scalar_select 0, %s64, %s62
  $region1: #{m5_forward.1} parent=0
    #allocation2 [shape = 'u8[1024]{0}', space=vmem, size = 0x400, scoped, tag = 'output window, operand 0']
    #allocation3 [shape = 's32[2]{0}', space=sflag, size = 0x8, scoped, tag = 'scoped memory for m5_forward.1']
    %66 = vsyncpa [#allocation3], 0
    %s67 = scalar_lea.sflag [#allocation3], 1
    %68 = vsyncpa %s67, 0
    loop: start=0, step=1, limit=4
    $region2: #{m5_forward.1} parent=1 // loop_pre_header
      _
    $region3: #{m5_forward.1} parent=1 // loop_header
      %s70 = sphi 0, %s74
      %p71 = scmp.ge.s32.totalorder %s70, 4
      %s80 = sphi 0, %s82
      %s83 = sphi 0, %s80
      %s84 = sphi 0, %s83
      %s100 = sphi 0, %s84
      %s104 = sphi 0, %s104
      %s106 = sphi 0, %s104
      %s107 = sphi 0, %s106
      %s121 = sphi 0, %s107
      %s125 = sphi 0, %s125
      %s127 = sphi 0, %s125
      %s128 = sphi 0, %s127
      %s142 = sphi 0, %s128
      %s146 = sphi 0, %s146
      %s148 = sphi 0, %s146
      %s149 = sphi 0, %s148
      %s163 = sphi 0, %s149
      %s167 = sphi 0, %s167
      %s169 = sphi 0, %s167
      %s170 = sphi 0, %s169
      %s184 = sphi 0, %s170
      %s188 = sphi 0, %s188
      %s190 = sphi 0, %s188
      %s191 = sphi 0, %s190
      %s205 = sphi 0, %s191
      %s209 = sphi 0, %s209
      %s211 = sphi 0, %s209
      %s212 = sphi 0, %s211
      %s226 = sphi 0, %s212
      %s230 = sphi 0, %s230
      %s232 = sphi 0, %s230
      %s233 = sphi 0, %s232
      %s247 = sphi 0, %s233
      %s251 = sphi 0, %s251
      %s253 = sphi 0, %s251
      %s254 = sphi 0, %s253
      %s268 = sphi 0, %s254
      %s272 = sphi 0, %s272
      %s274 = sphi 0, %s272
      %s275 = sphi 0, %s274
      %s289 = sphi 0, %s275
      %s293 = sphi 0, %s293
      %s295 = sphi 0, %s293
      %s296 = sphi 0, %s295
      %s310 = sphi 0, %s296
      %s314 = sphi 0, %s314
      %s316 = sphi 0, %s314
      %s317 = sphi 0, %s316
      %s331 = sphi 0, %s317
      %s335 = sphi 0, %s335
      %s337 = sphi 0, %s335
      %s338 = sphi 0, %s337
      %s352 = sphi 0, %s338
      %s356 = sphi 0, %s356
      %s358 = sphi 0, %s356
      %s359 = sphi 0, %s358
      %s373 = sphi 0, %s359
      %s377 = sphi 0, %s377
      %s379 = sphi 0, %s377
      %s380 = sphi 0, %s379
      %s394 = sphi 0, %s380
      %s398 = sphi 0, %s398
      %s400 = sphi 0, %s398
      %s401 = sphi 0, %s400
      %s415 = sphi 0, %s401
      %s419 = sphi 0, %s419
      %s421 = sphi 0, %s419
      %s422 = sphi 0, %s421
      %s436 = sphi 0, %s422
      %s440 = sphi 0, %s440
      %s442 = sphi 0, %s440
      %s443 = sphi 0, %s442
      %s457 = sphi 0, %s443
      %s461 = sphi 0, %s461
      %s463 = sphi 0, %s461
      %s464 = sphi 0, %s463
      %s478 = sphi 0, %s464
      %s482 = sphi 0, %s482
      %s484 = sphi 0, %s482
      %s485 = sphi 0, %s484
      %s499 = sphi 0, %s485
      %s503 = sphi 0, %s503
      %s505 = sphi 0, %s503
      %s506 = sphi 0, %s505
      %s520 = sphi 0, %s506
      %s524 = sphi 0, %s524
      %s526 = sphi 0, %s524
      %s527 = sphi 0, %s526
      %s541 = sphi 0, %s527
      %s545 = sphi 0, %s545
      %s547 = sphi 0, %s545
      %s548 = sphi 0, %s547
      %s562 = sphi 0, %s548
      %s566 = sphi 0, %s566
      %s568 = sphi 0, %s566
      %s569 = sphi 0, %s568
      %s583 = sphi 0, %s569
      %s587 = sphi 0, %s587
      %s589 = sphi 0, %s587
      %s590 = sphi 0, %s589
      %s604 = sphi 0, %s590
      %s608 = sphi 0, %s608
      %s610 = sphi 0, %s608
      %s611 = sphi 0, %s610
      %s625 = sphi 0, %s611
      %s629 = sphi 0, %s629
      %s631 = sphi 0, %s629
      %s632 = sphi 0, %s631
      %s646 = sphi 0, %s632
      %s650 = sphi 0, %s650
      %s652 = sphi 0, %s650
      %s653 = sphi 0, %s652
      %s667 = sphi 0, %s653
      %s671 = sphi 0, %s671
      %s673 = sphi 0, %s671
      %s674 = sphi 0, %s673
      %s688 = sphi 0, %s674
      %s692 = sphi 0, %s692
      %s694 = sphi 0, %s692
      %s695 = sphi 0, %s694
      %s709 = sphi 0, %s695
      %s715 = sphi 0, %s717
      %s718 = sphi 0, %s715
      %s719 = sphi 0, %s718
      %s735 = sphi 0, %s719
    $region4: #{m5_forward.1} parent=1 // loop_header_branch
      %73 = sbr.rel (%p71) target = $region8
    $region5: #{m5_forward.1} parent=1 // loop_body
      %s75 = ssub.s32 %s70, 1
      %s76 = ssub.s32 %s70, 2
      %s77 = sadd.s32 %s70, 1
      %s78 = ssub.s32 %s70, %s77
      %p79 = scmp.eq.s32.totalorder %s78, 0
      %s81 = sadd.s32 %s80, 1
      %s82 = scalar_select %p79, %s80, %s81
      %p85 = pneg %p79
      %p86 = scmp.eq.s32.totalorder %s70, 1
      %p87 = por %p85, %p86
      %p88 = scmp.ne.s32.totalorder %s80, %s83
      %p89 = scmp.eq.s32.totalorder %s70, 0
      %p90 = por %p88, %p89
      %p91 = scmp.ne.s32.totalorder %s80, %s83
      %p92 = scmp.eq.s32.totalorder %s75, 1
      %p93 = por %p91, %p92
      %p94 = scmp.ne.s32.totalorder %s83, %s84
      %p95 = scmp.eq.s32.totalorder %s75, 0
      %p96 = por %p94, %p95
      %p97 = scmp.ne.s32.totalorder %s83, %s84
      %p98 = scmp.eq.s32.totalorder %s76, 1
      %p99 = por %p97, %p98
      %p101 = scmp.ne.s32.totalorder %s84, %s100
      %p102 = scmp.eq.s32.totalorder %s76, 0
      %p103 = por %p101, %p102
      %s105 = sadd.s32 %s104, 1
      %p108 = scmp.eq.s32.totalorder %s70, 1
      %p109 = scmp.ne.s32.totalorder %s104, %s106
      %p110 = scmp.eq.s32.totalorder %s70, 0
      %p111 = por %p109, %p110
      %p112 = scmp.ne.s32.totalorder %s104, %s106
      %p113 = scmp.eq.s32.totalorder %s75, 1
      %p114 = por %p112, %p113
      %p115 = scmp.ne.s32.totalorder %s106, %s107
      %p116 = scmp.eq.s32.totalorder %s75, 0
      %p117 = por %p115, %p116
      %p118 = scmp.ne.s32.totalorder %s106, %s107
      %p119 = scmp.eq.s32.totalorder %s76, 1
      %p120 = por %p118, %p119
      %p122 = scmp.ne.s32.totalorder %s107, %s121
      %p123 = scmp.eq.s32.totalorder %s76, 0
      %p124 = por %p122, %p123
      %s126 = sadd.s32 %s125, 1
      %p129 = scmp.eq.s32.totalorder %s70, 1
      %p130 = scmp.ne.s32.totalorder %s125, %s127
      %p131 = scmp.eq.s32.totalorder %s70, 0
      %p132 = por %p130, %p131
      %p133 = scmp.ne.s32.totalorder %s125, %s127
      %p134 = scmp.eq.s32.totalorder %s75, 1
      %p135 = por %p133, %p134
      %p136 = scmp.ne.s32.totalorder %s127, %s128
      %p137 = scmp.eq.s32.totalorder %s75, 0
      %p138 = por %p136, %p137
      %p139 = scmp.ne.s32.totalorder %s127, %s128
      %p140 = scmp.eq.s32.totalorder %s76, 1
      %p141 = por %p139, %p140
      %p143 = scmp.ne.s32.totalorder %s128, %s142
      %p144 = scmp.eq.s32.totalorder %s76, 0
      %p145 = por %p143, %p144
      %s147 = sadd.s32 %s146, 1
      %p150 = scmp.eq.s32.totalorder %s70, 1
      %p151 = scmp.ne.s32.totalorder %s146, %s148
      %p152 = scmp.eq.s32.totalorder %s70, 0
      %p153 = por %p151, %p152
      %p154 = scmp.ne.s32.totalorder %s146, %s148
      %p155 = scmp.eq.s32.totalorder %s75, 1
      %p156 = por %p154, %p155
      %p157 = scmp.ne.s32.totalorder %s148, %s149
      %p158 = scmp.eq.s32.totalorder %s75, 0
      %p159 = por %p157, %p158
      %p160 = scmp.ne.s32.totalorder %s148, %s149
      %p161 = scmp.eq.s32.totalorder %s76, 1
      %p162 = por %p160, %p161
      %p164 = scmp.ne.s32.totalorder %s149, %s163
      %p165 = scmp.eq.s32.totalorder %s76, 0
      %p166 = por %p164, %p165
      %s168 = sadd.s32 %s167, 1
      %p171 = scmp.eq.s32.totalorder %s70, 1
      %p172 = scmp.ne.s32.totalorder %s167, %s169
      %p173 = scmp.eq.s32.totalorder %s70, 0
      %p174 = por %p172, %p173
      %p175 = scmp.ne.s32.totalorder %s167, %s169
      %p176 = scmp.eq.s32.totalorder %s75, 1
      %p177 = por %p175, %p176
      %p178 = scmp.ne.s32.totalorder %s169, %s170
      %p179 = scmp.eq.s32.totalorder %s75, 0
      %p180 = por %p178, %p179
      %p181 = scmp.ne.s32.totalorder %s169, %s170
      %p182 = scmp.eq.s32.totalorder %s76, 1
      %p183 = por %p181, %p182
      %p185 = scmp.ne.s32.totalorder %s170, %s184
      %p186 = scmp.eq.s32.totalorder %s76, 0
      %p187 = por %p185, %p186
      %s189 = sadd.s32 %s188, 1
      %p192 = scmp.eq.s32.totalorder %s70, 1
      %p193 = scmp.ne.s32.totalorder %s188, %s190
      %p194 = scmp.eq.s32.totalorder %s70, 0
      %p195 = por %p193, %p194
      %p196 = scmp.ne.s32.totalorder %s188, %s190
      %p197 = scmp.eq.s32.totalorder %s75, 1
      %p198 = por %p196, %p197
      %p199 = scmp.ne.s32.totalorder %s190, %s191
      %p200 = scmp.eq.s32.totalorder %s75, 0
      %p201 = por %p199, %p200
      %p202 = scmp.ne.s32.totalorder %s190, %s191
      %p203 = scmp.eq.s32.totalorder %s76, 1
      %p204 = por %p202, %p203
      %p206 = scmp.ne.s32.totalorder %s191, %s205
      %p207 = scmp.eq.s32.totalorder %s76, 0
      %p208 = por %p206, %p207
      %s210 = sadd.s32 %s209, 1
      %p213 = scmp.eq.s32.totalorder %s70, 1
      %p214 = scmp.ne.s32.totalorder %s209, %s211
      %p215 = scmp.eq.s32.totalorder %s70, 0
      %p216 = por %p214, %p215
      %p217 = scmp.ne.s32.totalorder %s209, %s211
      %p218 = scmp.eq.s32.totalorder %s75, 1
      %p219 = por %p217, %p218
      %p220 = scmp.ne.s32.totalorder %s211, %s212
      %p221 = scmp.eq.s32.totalorder %s75, 0
      %p222 = por %p220, %p221
      %p223 = scmp.ne.s32.totalorder %s211, %s212
      %p224 = scmp.eq.s32.totalorder %s76, 1
      %p225 = por %p223, %p224
      %p227 = scmp.ne.s32.totalorder %s212, %s226
      %p228 = scmp.eq.s32.totalorder %s76, 0
      %p229 = por %p227, %p228
      %s231 = sadd.s32 %s230, 1
      %p234 = scmp.eq.s32.totalorder %s70, 1
      %p235 = scmp.ne.s32.totalorder %s230, %s232
      %p236 = scmp.eq.s32.totalorder %s70, 0
      %p237 = por %p235, %p236
      %p238 = scmp.ne.s32.totalorder %s230, %s232
      %p239 = scmp.eq.s32.totalorder %s75, 1
      %p240 = por %p238, %p239
      %p241 = scmp.ne.s32.totalorder %s232, %s233
      %p242 = scmp.eq.s32.totalorder %s75, 0
      %p243 = por %p241, %p242
      %p244 = scmp.ne.s32.totalorder %s232, %s233
      %p245 = scmp.eq.s32.totalorder %s76, 1
      %p246 = por %p244, %p245
      %p248 = scmp.ne.s32.totalorder %s233, %s247
      %p249 = scmp.eq.s32.totalorder %s76, 0
      %p250 = por %p248, %p249
      %s252 = sadd.s32 %s251, 1
      %p255 = scmp.eq.s32.totalorder %s70, 1
      %p256 = scmp.ne.s32.totalorder %s251, %s253
      %p257 = scmp.eq.s32.totalorder %s70, 0
      %p258 = por %p256, %p257
      %p259 = scmp.ne.s32.totalorder %s251, %s253
      %p260 = scmp.eq.s32.totalorder %s75, 1
      %p261 = por %p259, %p260
      %p262 = scmp.ne.s32.totalorder %s253, %s254
      %p263 = scmp.eq.s32.totalorder %s75, 0
      %p264 = por %p262, %p263
      %p265 = scmp.ne.s32.totalorder %s253, %s254
      %p266 = scmp.eq.s32.totalorder %s76, 1
      %p267 = por %p265, %p266
      %p269 = scmp.ne.s32.totalorder %s254, %s268
      %p270 = scmp.eq.s32.totalorder %s76, 0
      %p271 = por %p269, %p270
      %s273 = sadd.s32 %s272, 1
      %p276 = scmp.eq.s32.totalorder %s70, 1
      %p277 = scmp.ne.s32.totalorder %s272, %s274
      %p278 = scmp.eq.s32.totalorder %s70, 0
      %p279 = por %p277, %p278
      %p280 = scmp.ne.s32.totalorder %s272, %s274
      %p281 = scmp.eq.s32.totalorder %s75, 1
      %p282 = por %p280, %p281
      %p283 = scmp.ne.s32.totalorder %s274, %s275
      %p284 = scmp.eq.s32.totalorder %s75, 0
      %p285 = por %p283, %p284
      %p286 = scmp.ne.s32.totalorder %s274, %s275
      %p287 = scmp.eq.s32.totalorder %s76, 1
      %p288 = por %p286, %p287
      %p290 = scmp.ne.s32.totalorder %s275, %s289
      %p291 = scmp.eq.s32.totalorder %s76, 0
      %p292 = por %p290, %p291
      %s294 = sadd.s32 %s293, 1
      %p297 = scmp.eq.s32.totalorder %s70, 1
      %p298 = scmp.ne.s32.totalorder %s293, %s295
      %p299 = scmp.eq.s32.totalorder %s70, 0
      %p300 = por %p298, %p299
      %p301 = scmp.ne.s32.totalorder %s293, %s295
      %p302 = scmp.eq.s32.totalorder %s75, 1
      %p303 = por %p301, %p302
      %p304 = scmp.ne.s32.totalorder %s295, %s296
      %p305 = scmp.eq.s32.totalorder %s75, 0
      %p306 = por %p304, %p305
      %p307 = scmp.ne.s32.totalorder %s295, %s296
      %p308 = scmp.eq.s32.totalorder %s76, 1
      %p309 = por %p307, %p308
      %p311 = scmp.ne.s32.totalorder %s296, %s310
      %p312 = scmp.eq.s32.totalorder %s76, 0
      %p313 = por %p311, %p312
      %s315 = sadd.s32 %s314, 1
      %p318 = scmp.eq.s32.totalorder %s70, 1
      %p319 = scmp.ne.s32.totalorder %s314, %s316
      %p320 = scmp.eq.s32.totalorder %s70, 0
      %p321 = por %p319, %p320
      %p322 = scmp.ne.s32.totalorder %s314, %s316
      %p323 = scmp.eq.s32.totalorder %s75, 1
      %p324 = por %p322, %p323
      %p325 = scmp.ne.s32.totalorder %s316, %s317
      %p326 = scmp.eq.s32.totalorder %s75, 0
      %p327 = por %p325, %p326
      %p328 = scmp.ne.s32.totalorder %s316, %s317
      %p329 = scmp.eq.s32.totalorder %s76, 1
      %p330 = por %p328, %p329
      %p332 = scmp.ne.s32.totalorder %s317, %s331
      %p333 = scmp.eq.s32.totalorder %s76, 0
      %p334 = por %p332, %p333
      %s336 = sadd.s32 %s335, 1
      %p339 = scmp.eq.s32.totalorder %s70, 1
      %p340 = scmp.ne.s32.totalorder %s335, %s337
      %p341 = scmp.eq.s32.totalorder %s70, 0
      %p342 = por %p340, %p341
      %p343 = scmp.ne.s32.totalorder %s335, %s337
      %p344 = scmp.eq.s32.totalorder %s75, 1
      %p345 = por %p343, %p344
      %p346 = scmp.ne.s32.totalorder %s337, %s338
      %p347 = scmp.eq.s32.totalorder %s75, 0
      %p348 = por %p346, %p347
      %p349 = scmp.ne.s32.totalorder %s337, %s338
      %p350 = scmp.eq.s32.totalorder %s76, 1
      %p351 = por %p349, %p350
      %p353 = scmp.ne.s32.totalorder %s338, %s352
      %p354 = scmp.eq.s32.totalorder %s76, 0
      %p355 = por %p353, %p354
      %s357 = sadd.s32 %s356, 1
      %p360 = scmp.eq.s32.totalorder %s70, 1
      %p361 = scmp.ne.s32.totalorder %s356, %s358
      %p362 = scmp.eq.s32.totalorder %s70, 0
      %p363 = por %p361, %p362
      %p364 = scmp.ne.s32.totalorder %s356, %s358
      %p365 = scmp.eq.s32.totalorder %s75, 1
      %p366 = por %p364, %p365
      %p367 = scmp.ne.s32.totalorder %s358, %s359
      %p368 = scmp.eq.s32.totalorder %s75, 0
      %p369 = por %p367, %p368
      %p370 = scmp.ne.s32.totalorder %s358, %s359
      %p371 = scmp.eq.s32.totalorder %s76, 1
      %p372 = por %p370, %p371
      %p374 = scmp.ne.s32.totalorder %s359, %s373
      %p375 = scmp.eq.s32.totalorder %s76, 0
      %p376 = por %p374, %p375
      %s378 = sadd.s32 %s377, 1
      %p381 = scmp.eq.s32.totalorder %s70, 1
      %p382 = scmp.ne.s32.totalorder %s377, %s379
      %p383 = scmp.eq.s32.totalorder %s70, 0
      %p384 = por %p382, %p383
      %p385 = scmp.ne.s32.totalorder %s377, %s379
      %p386 = scmp.eq.s32.totalorder %s75, 1
      %p387 = por %p385, %p386
      %p388 = scmp.ne.s32.totalorder %s379, %s380
      %p389 = scmp.eq.s32.totalorder %s75, 0
      %p390 = por %p388, %p389
      %p391 = scmp.ne.s32.totalorder %s379, %s380
      %p392 = scmp.eq.s32.totalorder %s76, 1
      %p393 = por %p391, %p392
      %p395 = scmp.ne.s32.totalorder %s380, %s394
      %p396 = scmp.eq.s32.totalorder %s76, 0
      %p397 = por %p395, %p396
      %s399 = sadd.s32 %s398, 1
      %p402 = scmp.eq.s32.totalorder %s70, 1
      %p403 = scmp.ne.s32.totalorder %s398, %s400
      %p404 = scmp.eq.s32.totalorder %s70, 0
      %p405 = por %p403, %p404
      %p406 = scmp.ne.s32.totalorder %s398, %s400
      %p407 = scmp.eq.s32.totalorder %s75, 1
      %p408 = por %p406, %p407
      %p409 = scmp.ne.s32.totalorder %s400, %s401
      %p410 = scmp.eq.s32.totalorder %s75, 0
      %p411 = por %p409, %p410
      %p412 = scmp.ne.s32.totalorder %s400, %s401
      %p413 = scmp.eq.s32.totalorder %s76, 1
      %p414 = por %p412, %p413
      %p416 = scmp.ne.s32.totalorder %s401, %s415
      %p417 = scmp.eq.s32.totalorder %s76, 0
      %p418 = por %p416, %p417
      %s420 = sadd.s32 %s419, 1
      %p423 = scmp.eq.s32.totalorder %s70, 1
      %p424 = scmp.ne.s32.totalorder %s419, %s421
      %p425 = scmp.eq.s32.totalorder %s70, 0
      %p426 = por %p424, %p425
      %p427 = scmp.ne.s32.totalorder %s419, %s421
      %p428 = scmp.eq.s32.totalorder %s75, 1
      %p429 = por %p427, %p428
      %p430 = scmp.ne.s32.totalorder %s421, %s422
      %p431 = scmp.eq.s32.totalorder %s75, 0
      %p432 = por %p430, %p431
      %p433 = scmp.ne.s32.totalorder %s421, %s422
      %p434 = scmp.eq.s32.totalorder %s76, 1
      %p435 = por %p433, %p434
      %p437 = scmp.ne.s32.totalorder %s422, %s436
      %p438 = scmp.eq.s32.totalorder %s76, 0
      %p439 = por %p437, %p438
      %s441 = sadd.s32 %s440, 1
      %p444 = scmp.eq.s32.totalorder %s70, 1
      %p445 = scmp.ne.s32.totalorder %s440, %s442
      %p446 = scmp.eq.s32.totalorder %s70, 0
      %p447 = por %p445, %p446
      %p448 = scmp.ne.s32.totalorder %s440, %s442
      %p449 = scmp.eq.s32.totalorder %s75, 1
      %p450 = por %p448, %p449
      %p451 = scmp.ne.s32.totalorder %s442, %s443
      %p452 = scmp.eq.s32.totalorder %s75, 0
      %p453 = por %p451, %p452
      %p454 = scmp.ne.s32.totalorder %s442, %s443
      %p455 = scmp.eq.s32.totalorder %s76, 1
      %p456 = por %p454, %p455
      %p458 = scmp.ne.s32.totalorder %s443, %s457
      %p459 = scmp.eq.s32.totalorder %s76, 0
      %p460 = por %p458, %p459
      %s462 = sadd.s32 %s461, 1
      %p465 = scmp.eq.s32.totalorder %s70, 1
      %p466 = scmp.ne.s32.totalorder %s461, %s463
      %p467 = scmp.eq.s32.totalorder %s70, 0
      %p468 = por %p466, %p467
      %p469 = scmp.ne.s32.totalorder %s461, %s463
      %p470 = scmp.eq.s32.totalorder %s75, 1
      %p471 = por %p469, %p470
      %p472 = scmp.ne.s32.totalorder %s463, %s464
      %p473 = scmp.eq.s32.totalorder %s75, 0
      %p474 = por %p472, %p473
      %p475 = scmp.ne.s32.totalorder %s463, %s464
      %p476 = scmp.eq.s32.totalorder %s76, 1
      %p477 = por %p475, %p476
      %p479 = scmp.ne.s32.totalorder %s464, %s478
      %p480 = scmp.eq.s32.totalorder %s76, 0
      %p481 = por %p479, %p480
      %s483 = sadd.s32 %s482, 1
      %p486 = scmp.eq.s32.totalorder %s70, 1
      %p487 = scmp.ne.s32.totalorder %s482, %s484
      %p488 = scmp.eq.s32.totalorder %s70, 0
      %p489 = por %p487, %p488
      %p490 = scmp.ne.s32.totalorder %s482, %s484
      %p491 = scmp.eq.s32.totalorder %s75, 1
      %p492 = por %p490, %p491
      %p493 = scmp.ne.s32.totalorder %s484, %s485
      %p494 = scmp.eq.s32.totalorder %s75, 0
      %p495 = por %p493, %p494
      %p496 = scmp.ne.s32.totalorder %s484, %s485
      %p497 = scmp.eq.s32.totalorder %s76, 1
      %p498 = por %p496, %p497
      %p500 = scmp.ne.s32.totalorder %s485, %s499
      %p501 = scmp.eq.s32.totalorder %s76, 0
      %p502 = por %p500, %p501
      %s504 = sadd.s32 %s503, 1
      %p507 = scmp.eq.s32.totalorder %s70, 1
      %p508 = scmp.ne.s32.totalorder %s503, %s505
      %p509 = scmp.eq.s32.totalorder %s70, 0
      %p510 = por %p508, %p509
      %p511 = scmp.ne.s32.totalorder %s503, %s505
      %p512 = scmp.eq.s32.totalorder %s75, 1
      %p513 = por %p511, %p512
      %p514 = scmp.ne.s32.totalorder %s505, %s506
      %p515 = scmp.eq.s32.totalorder %s75, 0
      %p516 = por %p514, %p515
      %p517 = scmp.ne.s32.totalorder %s505, %s506
      %p518 = scmp.eq.s32.totalorder %s76, 1
      %p519 = por %p517, %p518
      %p521 = scmp.ne.s32.totalorder %s506, %s520
      %p522 = scmp.eq.s32.totalorder %s76, 0
      %p523 = por %p521, %p522
      %s525 = sadd.s32 %s524, 1
      %p528 = scmp.eq.s32.totalorder %s70, 1
      %p529 = scmp.ne.s32.totalorder %s524, %s526
      %p530 = scmp.eq.s32.totalorder %s70, 0
      %p531 = por %p529, %p530
      %p532 = scmp.ne.s32.totalorder %s524, %s526
      %p533 = scmp.eq.s32.totalorder %s75, 1
      %p534 = por %p532, %p533
      %p535 = scmp.ne.s32.totalorder %s526, %s527
      %p536 = scmp.eq.s32.totalorder %s75, 0
      %p537 = por %p535, %p536
      %p538 = scmp.ne.s32.totalorder %s526, %s527
      %p539 = scmp.eq.s32.totalorder %s76, 1
      %p540 = por %p538, %p539
      %p542 = scmp.ne.s32.totalorder %s527, %s541
      %p543 = scmp.eq.s32.totalorder %s76, 0
      %p544 = por %p542, %p543
      %s546 = sadd.s32 %s545, 1
      %p549 = scmp.eq.s32.totalorder %s70, 1
      %p550 = scmp.ne.s32.totalorder %s545, %s547
      %p551 = scmp.eq.s32.totalorder %s70, 0
      %p552 = por %p550, %p551
      %p553 = scmp.ne.s32.totalorder %s545, %s547
      %p554 = scmp.eq.s32.totalorder %s75, 1
      %p555 = por %p553, %p554
      %p556 = scmp.ne.s32.totalorder %s547, %s548
      %p557 = scmp.eq.s32.totalorder %s75, 0
      %p558 = por %p556, %p557
      %p559 = scmp.ne.s32.totalorder %s547, %s548
      %p560 = scmp.eq.s32.totalorder %s76, 1
      %p561 = por %p559, %p560
      %p563 = scmp.ne.s32.totalorder %s548, %s562
      %p564 = scmp.eq.s32.totalorder %s76, 0
      %p565 = por %p563, %p564
      %s567 = sadd.s32 %s566, 1
      %p570 = scmp.eq.s32.totalorder %s70, 1
      %p571 = scmp.ne.s32.totalorder %s566, %s568
      %p572 = scmp.eq.s32.totalorder %s70, 0
      %p573 = por %p571, %p572
      %p574 = scmp.ne.s32.totalorder %s566, %s568
      %p575 = scmp.eq.s32.totalorder %s75, 1
      %p576 = por %p574, %p575
      %p577 = scmp.ne.s32.totalorder %s568, %s569
      %p578 = scmp.eq.s32.totalorder %s75, 0
      %p579 = por %p577, %p578
      %p580 = scmp.ne.s32.totalorder %s568, %s569
      %p581 = scmp.eq.s32.totalorder %s76, 1
      %p582 = por %p580, %p581
      %p584 = scmp.ne.s32.totalorder %s569, %s583
      %p585 = scmp.eq.s32.totalorder %s76, 0
      %p586 = por %p584, %p585
      %s588 = sadd.s32 %s587, 1
      %p591 = scmp.eq.s32.totalorder %s70, 1
      %p592 = scmp.ne.s32.totalorder %s587, %s589
      %p593 = scmp.eq.s32.totalorder %s70, 0
      %p594 = por %p592, %p593
      %p595 = scmp.ne.s32.totalorder %s587, %s589
      %p596 = scmp.eq.s32.totalorder %s75, 1
      %p597 = por %p595, %p596
      %p598 = scmp.ne.s32.totalorder %s589, %s590
      %p599 = scmp.eq.s32.totalorder %s75, 0
      %p600 = por %p598, %p599
      %p601 = scmp.ne.s32.totalorder %s589, %s590
      %p602 = scmp.eq.s32.totalorder %s76, 1
      %p603 = por %p601, %p602
      %p605 = scmp.ne.s32.totalorder %s590, %s604
      %p606 = scmp.eq.s32.totalorder %s76, 0
      %p607 = por %p605, %p606
      %s609 = sadd.s32 %s608, 1
      %p612 = scmp.eq.s32.totalorder %s70, 1
      %p613 = scmp.ne.s32.totalorder %s608, %s610
      %p614 = scmp.eq.s32.totalorder %s70, 0
      %p615 = por %p613, %p614
      %p616 = scmp.ne.s32.totalorder %s608, %s610
      %p617 = scmp.eq.s32.totalorder %s75, 1
      %p618 = por %p616, %p617
      %p619 = scmp.ne.s32.totalorder %s610, %s611
      %p620 = scmp.eq.s32.totalorder %s75, 0
      %p621 = por %p619, %p620
      %p622 = scmp.ne.s32.totalorder %s610, %s611
      %p623 = scmp.eq.s32.totalorder %s76, 1
      %p624 = por %p622, %p623
      %p626 = scmp.ne.s32.totalorder %s611, %s625
      %p627 = scmp.eq.s32.totalorder %s76, 0
      %p628 = por %p626, %p627
      %s630 = sadd.s32 %s629, 1
      %p633 = scmp.eq.s32.totalorder %s70, 1
      %p634 = scmp.ne.s32.totalorder %s629, %s631
      %p635 = scmp.eq.s32.totalorder %s70, 0
      %p636 = por %p634, %p635
      %p637 = scmp.ne.s32.totalorder %s629, %s631
      %p638 = scmp.eq.s32.totalorder %s75, 1
      %p639 = por %p637, %p638
      %p640 = scmp.ne.s32.totalorder %s631, %s632
      %p641 = scmp.eq.s32.totalorder %s75, 0
      %p642 = por %p640, %p641
      %p643 = scmp.ne.s32.totalorder %s631, %s632
      %p644 = scmp.eq.s32.totalorder %s76, 1
      %p645 = por %p643, %p644
      %p647 = scmp.ne.s32.totalorder %s632, %s646
      %p648 = scmp.eq.s32.totalorder %s76, 0
      %p649 = por %p647, %p648
      %s651 = sadd.s32 %s650, 1
      %p654 = scmp.eq.s32.totalorder %s70, 1
      %p655 = scmp.ne.s32.totalorder %s650, %s652
      %p656 = scmp.eq.s32.totalorder %s70, 0
      %p657 = por %p655, %p656
      %p658 = scmp.ne.s32.totalorder %s650, %s652
      %p659 = scmp.eq.s32.totalorder %s75, 1
      %p660 = por %p658, %p659
      %p661 = scmp.ne.s32.totalorder %s652, %s653
      %p662 = scmp.eq.s32.totalorder %s75, 0
      %p663 = por %p661, %p662
      %p664 = scmp.ne.s32.totalorder %s652, %s653
      %p665 = scmp.eq.s32.totalorder %s76, 1
      %p666 = por %p664, %p665
      %p668 = scmp.ne.s32.totalorder %s653, %s667
      %p669 = scmp.eq.s32.totalorder %s76, 0
      %p670 = por %p668, %p669
      %s672 = sadd.s32 %s671, 1
      %p675 = scmp.eq.s32.totalorder %s70, 1
      %p676 = scmp.ne.s32.totalorder %s671, %s673
      %p677 = scmp.eq.s32.totalorder %s70, 0
      %p678 = por %p676, %p677
      %p679 = scmp.ne.s32.totalorder %s671, %s673
      %p680 = scmp.eq.s32.totalorder %s75, 1
      %p681 = por %p679, %p680
      %p682 = scmp.ne.s32.totalorder %s673, %s674
      %p683 = scmp.eq.s32.totalorder %s75, 0
      %p684 = por %p682, %p683
      %p685 = scmp.ne.s32.totalorder %s673, %s674
      %p686 = scmp.eq.s32.totalorder %s76, 1
      %p687 = por %p685, %p686
      %p689 = scmp.ne.s32.totalorder %s674, %s688
      %p690 = scmp.eq.s32.totalorder %s76, 0
      %p691 = por %p689, %p690
      %s693 = sadd.s32 %s692, 1
      %p696 = scmp.eq.s32.totalorder %s70, 1
      %p697 = scmp.ne.s32.totalorder %s692, %s694
      %p698 = scmp.eq.s32.totalorder %s70, 0
      %p699 = por %p697, %p698
      %p700 = scmp.ne.s32.totalorder %s692, %s694
      %p701 = scmp.eq.s32.totalorder %s75, 1
      %p702 = por %p700, %p701
      %p703 = scmp.ne.s32.totalorder %s694, %s695
      %p704 = scmp.eq.s32.totalorder %s75, 0
      %p705 = por %p703, %p704
      %p706 = scmp.ne.s32.totalorder %s694, %s695
      %p707 = scmp.eq.s32.totalorder %s76, 1
      %p708 = por %p706, %p707
      %p710 = scmp.ne.s32.totalorder %s695, %s709
      %p711 = scmp.eq.s32.totalorder %s76, 0
      %p712 = por %p710, %p711
      %s713 = ssub.s32 %s70, %s77
      %p714 = scmp.eq.s32.totalorder %s713, 0
      %s716 = sadd.s32 %s715, 1
      %s717 = scalar_select %p714, %s715, %s716
      %p720 = pneg %p714
      %p721 = scmp.eq.s32.totalorder %s70, 1
      %p722 = por %p720, %p721
      %p723 = scmp.ne.s32.totalorder %s715, %s718
      %p724 = scmp.eq.s32.totalorder %s70, 0
      %p725 = por %p723, %p724
      %p726 = scmp.ne.s32.totalorder %s715, %s718
      %p727 = scmp.eq.s32.totalorder %s75, 1
      %p728 = por %p726, %p727
      %p729 = scmp.ne.s32.totalorder %s718, %s719
      %p730 = scmp.eq.s32.totalorder %s75, 0
      %p731 = por %p729, %p730
      %p732 = scmp.ne.s32.totalorder %s718, %s719
      %p733 = scmp.eq.s32.totalorder %s76, 1
      %p734 = por %p732, %p733
      %p736 = scmp.ne.s32.totalorder %s719, %s735
      %p737 = scmp.eq.s32.totalorder %s76, 0
      %p738 = por %p736, %p737
      %p739 = scmp.le.s32.totalorder 1, %s70
      %p740 = scmp.lt.s32.totalorder %s70, 3
      %p741 = pnand %p739, %p740
      %p742 = pneg %p741
      // Predicated region
      $region9: #{m5_forward.1} parent=5 // pred_check
        _
      $region10: #{m5_forward.1} parent=5 // pred_check_branch
        %744 = sbr.rel (%p741) target = $region12
      $region11: #{m5_forward.1} parent=5 // pred_region
        %s745 = ssub.s32 %s70, 1
        // Predicated region
        $region13: #{m5_forward.1} parent=11 // pred_check
          %p746 = pneg %p117
        $region14: #{m5_forward.1} parent=11 // pred_check_branch
          %748 = sbr.rel (%p746) target = $region16
        $region15: #{m5_forward.1} parent=11 // pred_region
          _
        $region16: #{m5_forward.1} parent=11 // pred_fallthru
          _
        // Predicated region
        $region17: #{m5_forward.1} parent=11 // pred_check
          %p749 = pneg %p138
        $region18: #{m5_forward.1} parent=11 // pred_check_branch
          %751 = sbr.rel (%p749) target = $region20
        $region19: #{m5_forward.1} parent=11 // pred_region
          _
        $region20: #{m5_forward.1} parent=11 // pred_fallthru
          _
        // Predicated region
        $region21: #{m5_forward.1} parent=11 // pred_check
          %p752 = pneg %p159
        $region22: #{m5_forward.1} parent=11 // pred_check_branch
          %754 = sbr.rel (%p752) target = $region24
        $region23: #{m5_forward.1} parent=11 // pred_region
          _
        $region24: #{m5_forward.1} parent=11 // pred_fallthru
          _
        // Predicated region
        $region25: #{m5_forward.1} parent=11 // pred_check
          %p755 = pneg %p180
        $region26: #{m5_forward.1} parent=11 // pred_check_branch
          %757 = sbr.rel (%p755) target = $region28
        $region27: #{m5_forward.1} parent=11 // pred_region
          _
        $region28: #{m5_forward.1} parent=11 // pred_fallthru
          _
        // Predicated region
        $region29: #{m5_forward.1} parent=11 // pred_check
          %p758 = pneg %p201
        $region30: #{m5_forward.1} parent=11 // pred_check_branch
          %760 = sbr.rel (%p758) target = $region32
        $region31: #{m5_forward.1} parent=11 // pred_region
          _
        $region32: #{m5_forward.1} parent=11 // pred_fallthru
          _
        // Predicated region
        $region33: #{m5_forward.1} parent=11 // pred_check
          %p761 = pneg %p222
        $region34: #{m5_forward.1} parent=11 // pred_check_branch
          %763 = sbr.rel (%p761) target = $region36
        $region35: #{m5_forward.1} parent=11 // pred_region
          _
        $region36: #{m5_forward.1} parent=11 // pred_fallthru
          _
        // Predicated region
        $region37: #{m5_forward.1} parent=11 // pred_check
          %p764 = pneg %p243
        $region38: #{m5_forward.1} parent=11 // pred_check_branch
          %766 = sbr.rel (%p764) target = $region40
        $region39: #{m5_forward.1} parent=11 // pred_region
          _
        $region40: #{m5_forward.1} parent=11 // pred_fallthru
          _
        // Predicated region
        $region41: #{m5_forward.1} parent=11 // pred_check
          %p767 = pneg %p264
        $region42: #{m5_forward.1} parent=11 // pred_check_branch
          %769 = sbr.rel (%p767) target = $region44
        $region43: #{m5_forward.1} parent=11 // pred_region
          _
        $region44: #{m5_forward.1} parent=11 // pred_fallthru
          _
        // Predicated region
        $region45: #{m5_forward.1} parent=11 // pred_check
          %p770 = pneg %p285
        $region46: #{m5_forward.1} parent=11 // pred_check_branch
          %772 = sbr.rel (%p770) target = $region48
        $region47: #{m5_forward.1} parent=11 // pred_region
          _
        $region48: #{m5_forward.1} parent=11 // pred_fallthru
          _
        // Predicated region
        $region49: #{m5_forward.1} parent=11 // pred_check
          %p773 = pneg %p306
        $region50: #{m5_forward.1} parent=11 // pred_check_branch
          %775 = sbr.rel (%p773) target = $region52
        $region51: #{m5_forward.1} parent=11 // pred_region
          _
        $region52: #{m5_forward.1} parent=11 // pred_fallthru
          _
        // Predicated region
        $region53: #{m5_forward.1} parent=11 // pred_check
          %p776 = pneg %p327
        $region54: #{m5_forward.1} parent=11 // pred_check_branch
          %778 = sbr.rel (%p776) target = $region56
        $region55: #{m5_forward.1} parent=11 // pred_region
          _
        $region56: #{m5_forward.1} parent=11 // pred_fallthru
          _
        // Predicated region
        $region57: #{m5_forward.1} parent=11 // pred_check
          %p779 = pneg %p348
        $region58: #{m5_forward.1} parent=11 // pred_check_branch
          %781 = sbr.rel (%p779) target = $region60
        $region59: #{m5_forward.1} parent=11 // pred_region
          _
        $region60: #{m5_forward.1} parent=11 // pred_fallthru
          _
        // Predicated region
        $region61: #{m5_forward.1} parent=11 // pred_check
          %p782 = pneg %p369
        $region62: #{m5_forward.1} parent=11 // pred_check_branch
          %784 = sbr.rel (%p782) target = $region64
        $region63: #{m5_forward.1} parent=11 // pred_region
          _
        $region64: #{m5_forward.1} parent=11 // pred_fallthru
          _
        // Predicated region
        $region65: #{m5_forward.1} parent=11 // pred_check
          %p785 = pneg %p390
        $region66: #{m5_forward.1} parent=11 // pred_check_branch
          %787 = sbr.rel (%p785) target = $region68
        $region67: #{m5_forward.1} parent=11 // pred_region
          _
        $region68: #{m5_forward.1} parent=11 // pred_fallthru
          _
        // Predicated region
        $region69: #{m5_forward.1} parent=11 // pred_check
          %p788 = pneg %p411
        $region70: #{m5_forward.1} parent=11 // pred_check_branch
          %790 = sbr.rel (%p788) target = $region72
        $region71: #{m5_forward.1} parent=11 // pred_region
          _
        $region72: #{m5_forward.1} parent=11 // pred_fallthru
          _
        // Predicated region
        $region73: #{m5_forward.1} parent=11 // pred_check
          %p791 = pneg %p432
        $region74: #{m5_forward.1} parent=11 // pred_check_branch
          %793 = sbr.rel (%p791) target = $region76
        $region75: #{m5_forward.1} parent=11 // pred_region
          _
        $region76: #{m5_forward.1} parent=11 // pred_fallthru
          _
        // Predicated region
        $region77: #{m5_forward.1} parent=11 // pred_check
          %p794 = pneg %p453
        $region78: #{m5_forward.1} parent=11 // pred_check_branch
          %796 = sbr.rel (%p794) target = $region80
        $region79: #{m5_forward.1} parent=11 // pred_region
          _
        $region80: #{m5_forward.1} parent=11 // pred_fallthru
          _
        // Predicated region
        $region81: #{m5_forward.1} parent=11 // pred_check
          %p797 = pneg %p474
        $region82: #{m5_forward.1} parent=11 // pred_check_branch
          %799 = sbr.rel (%p797) target = $region84
        $region83: #{m5_forward.1} parent=11 // pred_region
          _
        $region84: #{m5_forward.1} parent=11 // pred_fallthru
          _
        // Predicated region
        $region85: #{m5_forward.1} parent=11 // pred_check
          %p800 = pneg %p495
        $region86: #{m5_forward.1} parent=11 // pred_check_branch
          %802 = sbr.rel (%p800) target = $region88
        $region87: #{m5_forward.1} parent=11 // pred_region
          _
        $region88: #{m5_forward.1} parent=11 // pred_fallthru
          _
        // Predicated region
        $region89: #{m5_forward.1} parent=11 // pred_check
          %p803 = pneg %p516
        $region90: #{m5_forward.1} parent=11 // pred_check_branch
          %805 = sbr.rel (%p803) target = $region92
        $region91: #{m5_forward.1} parent=11 // pred_region
          _
        $region92: #{m5_forward.1} parent=11 // pred_fallthru
          _
        // Predicated region
        $region93: #{m5_forward.1} parent=11 // pred_check
          %p806 = pneg %p537
        $region94: #{m5_forward.1} parent=11 // pred_check_branch
          %808 = sbr.rel (%p806) target = $region96
        $region95: #{m5_forward.1} parent=11 // pred_region
          _
        $region96: #{m5_forward.1} parent=11 // pred_fallthru
          _
        // Predicated region
        $region97: #{m5_forward.1} parent=11 // pred_check
          %p809 = pneg %p558
        $region98: #{m5_forward.1} parent=11 // pred_check_branch
          %811 = sbr.rel (%p809) target = $region100
        $region99: #{m5_forward.1} parent=11 // pred_region
          _
        $region100: #{m5_forward.1} parent=11 // pred_fallthru
          _
        // Predicated region
        $region101: #{m5_forward.1} parent=11 // pred_check
          %p812 = pneg %p579
        $region102: #{m5_forward.1} parent=11 // pred_check_branch
          %814 = sbr.rel (%p812) target = $region104
        $region103: #{m5_forward.1} parent=11 // pred_region
          _
        $region104: #{m5_forward.1} parent=11 // pred_fallthru
          _
        // Predicated region
        $region105: #{m5_forward.1} parent=11 // pred_check
          %p815 = pneg %p600
        $region106: #{m5_forward.1} parent=11 // pred_check_branch
          %817 = sbr.rel (%p815) target = $region108
        $region107: #{m5_forward.1} parent=11 // pred_region
          _
        $region108: #{m5_forward.1} parent=11 // pred_fallthru
          _
        // Predicated region
        $region109: #{m5_forward.1} parent=11 // pred_check
          %p818 = pneg %p621
        $region110: #{m5_forward.1} parent=11 // pred_check_branch
          %820 = sbr.rel (%p818) target = $region112
        $region111: #{m5_forward.1} parent=11 // pred_region
          _
        $region112: #{m5_forward.1} parent=11 // pred_fallthru
          _
        // Predicated region
        $region113: #{m5_forward.1} parent=11 // pred_check
          %p821 = pneg %p642
        $region114: #{m5_forward.1} parent=11 // pred_check_branch
          %823 = sbr.rel (%p821) target = $region116
        $region115: #{m5_forward.1} parent=11 // pred_region
          _
        $region116: #{m5_forward.1} parent=11 // pred_fallthru
          _
        // Predicated region
        $region117: #{m5_forward.1} parent=11 // pred_check
          %p824 = pneg %p663
        $region118: #{m5_forward.1} parent=11 // pred_check_branch
          %826 = sbr.rel (%p824) target = $region120
        $region119: #{m5_forward.1} parent=11 // pred_region
          _
        $region120: #{m5_forward.1} parent=11 // pred_fallthru
          _
        // Predicated region
        $region121: #{m5_forward.1} parent=11 // pred_check
          %p827 = pneg %p684
        $region122: #{m5_forward.1} parent=11 // pred_check_branch
          %829 = sbr.rel (%p827) target = $region124
        $region123: #{m5_forward.1} parent=11 // pred_region
          _
        $region124: #{m5_forward.1} parent=11 // pred_fallthru
          _
        // Predicated region
        $region125: #{m5_forward.1} parent=11 // pred_check
          %p830 = pneg %p705
        $region126: #{m5_forward.1} parent=11 // pred_check_branch
          %832 = sbr.rel (%p830) target = $region128
        $region127: #{m5_forward.1} parent=11 // pred_region
          _
        $region128: #{m5_forward.1} parent=11 // pred_fallthru
          _
      $region12: #{m5_forward.1} parent=5 // pred_fallthru
        _
      %p833 = scmp.lt.s32.totalorder %s70, 2
      // Predicated region
      $region129: #{m5_forward.1} parent=5 // pred_check
        %p834 = pneg %p833
      $region130: #{m5_forward.1} parent=5 // pred_check_branch
        %836 = sbr.rel (%p834) target = $region132
      $region131: #{m5_forward.1} parent=5 // pred_region
        // Predicated region
        $region133: #{m5_forward.1} parent=131 // pred_check
          %p837 = pneg %p90
        $region134: #{m5_forward.1} parent=131 // pred_check_branch
          %839 = sbr.rel (%p837) target = $region136
        $region135: #{m5_forward.1} parent=131 // pred_region
          %p840 = scmp.lt.s32.totalorder %s70, 1
          %s841 = scalar_select %p840, %s70, 1
          %s842 = smul.addr %s841, 128
          %s843 = smul.addr %s842, 8
          %s844 = scalar_lea.vmem %s1, %s843
        $region136: #{m5_forward.1} parent=131 // pred_fallthru
          _
      $region132: #{m5_forward.1} parent=5 // pred_fallthru
        _
      %p845 = scmp.le.s32.totalorder 1, %s70
      %p846 = scmp.lt.s32.totalorder %s70, 3
      %p847 = pnand %p845, %p846
      %p848 = pneg %p847
      // Predicated region
      $region137: #{m5_forward.1} parent=5 // pred_check
        _
      $region138: #{m5_forward.1} parent=5 // pred_check_branch
        %850 = sbr.rel (%p847) target = $region140
      $region139: #{m5_forward.1} parent=5 // pred_region
        %s851 = ssub.s32 %s70, 1
        %p852 = scmp.lt.s32.totalorder %s75, 1
        %s853 = scalar_select %p852, %s75, 1
        %s854 = smul.addr %s853, 128
        %s855 = smul.addr %s854, 8
        %s856 = scalar_lea.vmem %s1, %s855
        %p857 = pneg %p96
        %p858 = pneg %p93
        %p859 = pneg %p117
        %p860 = pneg %p114
        %p861 = pneg %p138
        %p862 = pneg %p135
        %p863 = pneg %p159
        %p864 = pneg %p156
        %p865 = pneg %p180
        %p866 = pneg %p177
        %p867 = pneg %p201
        %p868 = pneg %p198
        %p869 = pneg %p222
        %p870 = pneg %p219
        %p871 = pneg %p243
        %p872 = pneg %p240
        %p873 = pneg %p264
        %p874 = pneg %p261
        %p875 = pneg %p285
        %p876 = pneg %p282
        %p877 = pneg %p306
        %p878 = pneg %p303
        %p879 = pneg %p327
        %p880 = pneg %p324
        %p881 = pneg %p348
        %p882 = pneg %p345
        %p883 = pneg %p369
        %p884 = pneg %p366
        %p885 = pneg %p390
        %p886 = pneg %p387
        %p887 = pneg %p411
        %p888 = pneg %p408
        %p889 = pneg %p432
        %p890 = pneg %p429
        %p891 = pneg %p453
        %p892 = pneg %p450
        %p893 = pneg %p474
        %p894 = pneg %p471
        %p895 = pneg %p495
        %p896 = pneg %p492
        %p897 = pneg %p516
        %p898 = pneg %p513
        %p899 = pneg %p537
        %p900 = pneg %p534
        %p901 = pneg %p558
        %p902 = pneg %p555
        %p903 = pneg %p579
        %p904 = pneg %p576
        %p905 = pneg %p600
        %p906 = pneg %p597
        %p907 = pneg %p621
        %p908 = pneg %p618
        %p909 = pneg %p642
        %p910 = pneg %p639
        %p911 = pneg %p663
        %p912 = pneg %p660
        %p913 = pneg %p684
        %p914 = pneg %p681
        %p915 = pneg %p705
        %p916 = pneg %p702
        %p917 = pneg %p731
        %p918 = pneg %p728
        %s919 = sand.u32 %s718, 1
        %s920 = scalar_lea.sflag [#allocation3], %s919
        %s921 = sand.u32 %s718, 1
        %s922 = scalar_lea.vmem [#allocation2], %s921
        %p923 = scmp.lt.s32.totalorder %s75, 1
        %s924 = scalar_select %p923, %s75, 1
        %s925 = smul.addr %s924, 128
        %s926 = smul.addr %s925, 8
        %s927 = scalar_lea.vmem %s1, %s926
        %v928 = vld [vmem:[%s927] sm:$0xff]
        %v929 = vld [vmem:[%s927 + $0x8] sm:$0xff]
        %v930 = vld [vmem:[%s927 + $0x10] sm:$0xff]
        %v931 = vld [vmem:[%s927 + $0x18] sm:$0xff]
        %v932 = vld [vmem:[%s927 + $0x20] sm:$0xff]
        %v933 = vld [vmem:[%s927 + $0x28] sm:$0xff]
        %v934 = vld [vmem:[%s927 + $0x30] sm:$0xff]
        %v935 = vld [vmem:[%s927 + $0x38] sm:$0xff]
        %v936 = vld [vmem:[%s927 + $0x40] sm:$0xff]
        %v937 = vld [vmem:[%s927 + $0x48] sm:$0xff]
        %v938 = vld [vmem:[%s927 + $0x50] sm:$0xff]
        %v939 = vld [vmem:[%s927 + $0x58] sm:$0xff]
        %v940 = vld [vmem:[%s927 + $0x60] sm:$0xff]
        %v941 = vld [vmem:[%s927 + $0x68] sm:$0xff]
        %v942 = vld [vmem:[%s927 + $0x70] sm:$0xff]
        %v943 = vld [vmem:[%s927 + $0x78] sm:$0xff]
        %v944 = vld [vmem:[%s927 + $0x80] sm:$0xff]
        %v945 = vld [vmem:[%s927 + $0x88] sm:$0xff]
        %v946 = vld [vmem:[%s927 + $0x90] sm:$0xff]
        %v947 = vld [vmem:[%s927 + $0x98] sm:$0xff]
        %v948 = vld [vmem:[%s927 + $0xa0] sm:$0xff]
        %v949 = vld [vmem:[%s927 + $0xa8] sm:$0xff]
        %v950 = vld [vmem:[%s927 + $0xb0] sm:$0xff]
        %v951 = vld [vmem:[%s927 + $0xb8] sm:$0xff]
        %v952 = vld [vmem:[%s927 + $0xc0] sm:$0xff]
        %v953 = vld [vmem:[%s927 + $0xc8] sm:$0xff]
        %v954 = vld [vmem:[%s927 + $0xd0] sm:$0xff]
        %v955 = vld [vmem:[%s927 + $0xd8] sm:$0xff]
        %v956 = vld [vmem:[%s927 + $0xe0] sm:$0xff]
        %v957 = vld [vmem:[%s927 + $0xe8] sm:$0xff]
        %v958 = vld [vmem:[%s927 + $0xf0] sm:$0xff]
        %v959 = vld [vmem:[%s927 + $0xf8] sm:$0xff]
        %v960 = vld [vmem:[%s927 + $0x100] sm:$0xff]
        %v961 = vld [vmem:[%s927 + $0x108] sm:$0xff]
        %v962 = vld [vmem:[%s927 + $0x110] sm:$0xff]
        %v963 = vld [vmem:[%s927 + $0x118] sm:$0xff]
        %v964 = vld [vmem:[%s927 + $0x120] sm:$0xff]
        %v965 = vld [vmem:[%s927 + $0x128] sm:$0xff]
        %v966 = vld [vmem:[%s927 + $0x130] sm:$0xff]
        %v967 = vld [vmem:[%s927 + $0x138] sm:$0xff]
        %v968 = vld [vmem:[%s927 + $0x140] sm:$0xff]
        %v969 = vld [vmem:[%s927 + $0x148] sm:$0xff]
        %v970 = vld [vmem:[%s927 + $0x150] sm:$0xff]
        %v971 = vld [vmem:[%s927 + $0x158] sm:$0xff]
        %v972 = vld [vmem:[%s927 + $0x160] sm:$0xff]
        %v973 = vld [vmem:[%s927 + $0x168] sm:$0xff]
        %v974 = vld [vmem:[%s927 + $0x170] sm:$0xff]
        %v975 = vld [vmem:[%s927 + $0x178] sm:$0xff]
        %v976 = vld [vmem:[%s927 + $0x180] sm:$0xff]
        %v977 = vld [vmem:[%s927 + $0x188] sm:$0xff]
        %v978 = vld [vmem:[%s927 + $0x190] sm:$0xff]
        %v979 = vld [vmem:[%s927 + $0x198] sm:$0xff]
        %v980 = vld [vmem:[%s927 + $0x1a0] sm:$0xff]
        %v981 = vld [vmem:[%s927 + $0x1a8] sm:$0xff]
        %v982 = vld [vmem:[%s927 + $0x1b0] sm:$0xff]
        %v983 = vld [vmem:[%s927 + $0x1b8] sm:$0xff]
        %v984 = vld [vmem:[%s927 + $0x1c0] sm:$0xff]
        %v985 = vld [vmem:[%s927 + $0x1c8] sm:$0xff]
        %v986 = vld [vmem:[%s927 + $0x1d0] sm:$0xff]
        %v987 = vld [vmem:[%s927 + $0x1d8] sm:$0xff]
        %v988 = vld [vmem:[%s927 + $0x1e0] sm:$0xff]
        %v989 = vld [vmem:[%s927 + $0x1e8] sm:$0xff]
        %v990 = vld [vmem:[%s927 + $0x1f0] sm:$0xff]
        %v991 = vld [vmem:[%s927 + $0x1f8] sm:$0xff]
        %v992 = vld [vmem:[%s927 + $0x200] sm:$0xff]
        %v993 = vld [vmem:[%s927 + $0x208] sm:$0xff]
        %v994 = vld [vmem:[%s927 + $0x210] sm:$0xff]
        %v995 = vld [vmem:[%s927 + $0x218] sm:$0xff]
        %v996 = vld [vmem:[%s927 + $0x220] sm:$0xff]
        %v997 = vld [vmem:[%s927 + $0x228] sm:$0xff]
        %v998 = vld [vmem:[%s927 + $0x230] sm:$0xff]
        %v999 = vld [vmem:[%s927 + $0x238] sm:$0xff]
        %v1000 = vld [vmem:[%s927 + $0x240] sm:$0xff]
        %v1001 = vld [vmem:[%s927 + $0x248] sm:$0xff]
        %v1002 = vld [vmem:[%s927 + $0x250] sm:$0xff]
        %v1003 = vld [vmem:[%s927 + $0x258] sm:$0xff]
        %v1004 = vld [vmem:[%s927 + $0x260] sm:$0xff]
        %v1005 = vld [vmem:[%s927 + $0x268] sm:$0xff]
        %v1006 = vld [vmem:[%s927 + $0x270] sm:$0xff]
        %v1007 = vld [vmem:[%s927 + $0x278] sm:$0xff]
        %v1008 = vld [vmem:[%s927 + $0x280] sm:$0xff]
        %v1009 = vld [vmem:[%s927 + $0x288] sm:$0xff]
        %v1010 = vld [vmem:[%s927 + $0x290] sm:$0xff]
        %v1011 = vld [vmem:[%s927 + $0x298] sm:$0xff]
        %v1012 = vld [vmem:[%s927 + $0x2a0] sm:$0xff]
        %v1013 = vld [vmem:[%s927 + $0x2a8] sm:$0xff]
        %v1014 = vld [vmem:[%s927 + $0x2b0] sm:$0xff]
        %v1015 = vld [vmem:[%s927 + $0x2b8] sm:$0xff]
        %v1016 = vld [vmem:[%s927 + $0x2c0] sm:$0xff]
        %v1017 = vld [vmem:[%s927 + $0x2c8] sm:$0xff]
        %v1018 = vld [vmem:[%s927 + $0x2d0] sm:$0xff]
        %v1019 = vld [vmem:[%s927 + $0x2d8] sm:$0xff]
        %v1020 = vld [vmem:[%s927 + $0x2e0] sm:$0xff]
        %v1021 = vld [vmem:[%s927 + $0x2e8] sm:$0xff]
        %v1022 = vld [vmem:[%s927 + $0x2f0] sm:$0xff]
        %v1023 = vld [vmem:[%s927 + $0x2f8] sm:$0xff]
        %v1024 = vld [vmem:[%s927 + $0x300] sm:$0xff]
        %v1025 = vld [vmem:[%s927 + $0x308] sm:$0xff]
        %v1026 = vld [vmem:[%s927 + $0x310] sm:$0xff]
        %v1027 = vld [vmem:[%s927 + $0x318] sm:$0xff]
        %v1028 = vld [vmem:[%s927 + $0x320] sm:$0xff]
        %v1029 = vld [vmem:[%s927 + $0x328] sm:$0xff]
        %v1030 = vld [vmem:[%s927 + $0x330] sm:$0xff]
        %v1031 = vld [vmem:[%s927 + $0x338] sm:$0xff]
        %v1032 = vld [vmem:[%s927 + $0x340] sm:$0xff]
        %v1033 = vld [vmem:[%s927 + $0x348] sm:$0xff]
        %v1034 = vld [vmem:[%s927 + $0x350] sm:$0xff]
        %v1035 = vld [vmem:[%s927 + $0x358] sm:$0xff]
        %v1036 = vld [vmem:[%s927 + $0x360] sm:$0xff]
        %v1037 = vld [vmem:[%s927 + $0x368] sm:$0xff]
        %v1038 = vld [vmem:[%s927 + $0x370] sm:$0xff]
        %v1039 = vld [vmem:[%s927 + $0x378] sm:$0xff]
        %v1040 = vld [vmem:[%s927 + $0x380] sm:$0xff]
        %v1041 = vld [vmem:[%s927 + $0x388] sm:$0xff]
        %v1042 = vld [vmem:[%s927 + $0x390] sm:$0xff]
        %v1043 = vld [vmem:[%s927 + $0x398] sm:$0xff]
        %v1044 = vld [vmem:[%s927 + $0x3a0] sm:$0xff]
        %v1045 = vld [vmem:[%s927 + $0x3a8] sm:$0xff]
        %v1046 = vld [vmem:[%s927 + $0x3b0] sm:$0xff]
        %v1047 = vld [vmem:[%s927 + $0x3b8] sm:$0xff]
        %v1048 = vld [vmem:[%s927 + $0x3c0] sm:$0xff]
        %v1049 = vld [vmem:[%s927 + $0x3c8] sm:$0xff]
        %v1050 = vld [vmem:[%s927 + $0x3d0] sm:$0xff]
        %v1051 = vld [vmem:[%s927 + $0x3d8] sm:$0xff]
        %v1052 = vld [vmem:[%s927 + $0x3e0] sm:$0xff]
        %v1053 = vld [vmem:[%s927 + $0x3e8] sm:$0xff]
        %v1054 = vld [vmem:[%s927 + $0x3f0] sm:$0xff]
        %v1055 = vld [vmem:[%s927 + $0x3f8] sm:$0xff]
        %v1056 = vld [vmem:[%s3] sm:$0xff]
        %v1057 = vld [vmem:[%s3 + $0x8] sm:$0xff]
        %v1058 = vld [vmem:[%s3 + $0x10] sm:$0xff]
        %v1059 = vld [vmem:[%s3 + $0x18] sm:$0xff]
        %v1060 = vld [vmem:[%s3 + $0x20] sm:$0xff]
        %v1061 = vld [vmem:[%s3 + $0x28] sm:$0xff]
        %v1062 = vld [vmem:[%s3 + $0x30] sm:$0xff]
        %v1063 = vld [vmem:[%s3 + $0x38] sm:$0xff]
        %v1064 = vld [vmem:[%s3 + $0x40] sm:$0xff]
        %v1065 = vld [vmem:[%s3 + $0x48] sm:$0xff]
        %v1066 = vld [vmem:[%s3 + $0x50] sm:$0xff]
        %v1067 = vld [vmem:[%s3 + $0x58] sm:$0xff]
        %v1068 = vld [vmem:[%s3 + $0x60] sm:$0xff]
        %v1069 = vld [vmem:[%s3 + $0x68] sm:$0xff]
        %v1070 = vld [vmem:[%s3 + $0x70] sm:$0xff]
        %v1071 = vld [vmem:[%s3 + $0x78] sm:$0xff]
        %1072 = vmatprep.subr.mxu0 0.0
        %1073 = vmatpush1.msra.mxu0 %v1071
        %1074 = vmatprep.subr.mxu0 0.0
        %1075 = vmatpush1.msra.mxu0 %v1070
        %1076 = vmatprep.subr.mxu0 0.0
        %1077 = vmatpush1.msra.mxu0 %v1069
        %1078 = vmatprep.subr.mxu0 0.0
        %1079 = vmatpush1.msra.mxu0 %v1068
        %1080 = vmatprep.subr.mxu0 0.0
        %1081 = vmatpush1.msra.mxu0 %v1067
        %1082 = vmatprep.subr.mxu0 0.0
        %1083 = vmatpush1.msra.mxu0 %v1066
        %1084 = vmatprep.subr.mxu0 0.0
        %1085 = vmatpush1.msra.mxu0 %v1065
        %1086 = vmatprep.subr.mxu0 0.0
        %1087 = vmatpush1.msra.mxu0 %v1064
        %1088 = vmatprep.subr.mxu0 0.0
        %1089 = vmatpush1.msra.mxu0 %v1063
        %1090 = vmatprep.subr.mxu0 0.0
        %1091 = vmatpush1.msra.mxu0 %v1062
        %1092 = vmatprep.subr.mxu0 0.0
        %1093 = vmatpush1.msra.mxu0 %v1061
        %1094 = vmatprep.subr.mxu0 0.0
        %1095 = vmatpush1.msra.mxu0 %v1060
        %1096 = vmatprep.subr.mxu0 0.0
        %1097 = vmatpush1.msra.mxu0 %v1059
        %1098 = vmatprep.subr.mxu0 0.0
        %1099 = vmatpush1.msra.mxu0 %v1058
        %1100 = vmatprep.subr.mxu0 0.0
        %1101 = vmatpush1.msra.mxu0 %v1057
        %1102 = vmatprep.subr.mxu0 0.0
        %1103 = vmatpush1.msra.mxu0 %v1056
        %1104 = vmatprep.subr.mxu0 0.0
        %1105 = vmatpush2.msra.mxu0 0.0
        %1106 = vmatprep.subr.mxu0 0.0
        %1107 = vmatpush2.msra.mxu0 0.0
        %1108 = vmatprep.subr.mxu0 0.0
        %1109 = vmatpush2.msra.mxu0 0.0
        %1110 = vmatprep.subr.mxu0 0.0
        %1111 = vmatpush2.msra.mxu0 0.0
        %1112 = vmatprep.subr.mxu0 0.0
        %1113 = vmatpush2.msra.mxu0 0.0
        %1114 = vmatprep.subr.mxu0 0.0
        %1115 = vmatpush2.msra.mxu0 0.0
        %1116 = vmatprep.subr.mxu0 0.0
        %1117 = vmatpush2.msra.mxu0 0.0
        %1118 = vmatprep.subr.mxu0 0.0
        %1119 = vmatpush2.msra.mxu0 0.0
        %1120 = vmatprep.subr.mxu0 0.0
        %1121 = vmatpush2.msra.mxu0 0.0
        %1122 = vmatprep.subr.mxu0 0.0
        %1123 = vmatpush2.msra.mxu0 0.0
        %1124 = vmatprep.subr.mxu0 0.0
        %1125 = vmatpush2.msra.mxu0 0.0
        %1126 = vmatprep.subr.mxu0 0.0
        %1127 = vmatpush2.msra.mxu0 0.0
        %1128 = vmatprep.subr.mxu0 0.0
        %1129 = vmatpush2.msra.mxu0 0.0
        %1130 = vmatprep.subr.mxu0 0.0
        %1131 = vmatpush2.msra.mxu0 0.0
        %1132 = vmatprep.subr.mxu0 0.0
        %1133 = vmatpush2.msra.mxu0 0.0
        %1134 = vmatprep.subr.mxu0 0.0
        %1135 = vmatpush2.msra.mxu0 0.0
        %1136 = vmatprep.mubr.f32.mxu0 0.0
        %1137 = vmatmul.mubr.f32.gmra.mxu0 %v928
        %v1138 = vpop.f32.mrf.mxu0
        %v1139 = vadd.f32 0.0, %v1138
        %v1140 = vpop.f32.mrf.mxu0
        %1141 = vmatprep.mubr.f32.mxu0 0.0
        %1142 = vmatmul.mubr.f32.gmra.mxu0 %v929
        %v1143 = vpop.f32.mrf.mxu0
        %v1144 = vadd.f32 0.0, %v1143
        %v1145 = vpop.f32.mrf.mxu0
        %1146 = vmatprep.mubr.f32.mxu0 0.0
        %1147 = vmatmul.mubr.f32.gmra.mxu0 %v930
        %v1148 = vpop.f32.mrf.mxu0
        %v1149 = vadd.f32 0.0, %v1148
        %v1150 = vpop.f32.mrf.mxu0
        %1151 = vmatprep.mubr.f32.mxu0 0.0
        %1152 = vmatmul.mubr.f32.gmra.mxu0 %v931
        %v1153 = vpop.f32.mrf.mxu0
        %v1154 = vadd.f32 0.0, %v1153
        %v1155 = vpop.f32.mrf.mxu0
        %1156 = vmatprep.mubr.f32.mxu0 0.0
        %1157 = vmatmul.mubr.f32.gmra.mxu0 %v932
        %v1158 = vpop.f32.mrf.mxu0
        %v1159 = vadd.f32 0.0, %v1158
        %v1160 = vpop.f32.mrf.mxu0
        %1161 = vmatprep.mubr.f32.mxu0 0.0
        %1162 = vmatmul.mubr.f32.gmra.mxu0 %v933
        %v1163 = vpop.f32.mrf.mxu0
        %v1164 = vadd.f32 0.0, %v1163
        %v1165 = vpop.f32.mrf.mxu0
        %1166 = vmatprep.mubr.f32.mxu0 0.0
        %1167 = vmatmul.mubr.f32.gmra.mxu0 %v934
        %v1168 = vpop.f32.mrf.mxu0
        %v1169 = vadd.f32 0.0, %v1168
        %v1170 = vpop.f32.mrf.mxu0
        %1171 = vmatprep.mubr.f32.mxu0 0.0
        %1172 = vmatmul.mubr.f32.gmra.mxu0 %v935
        %v1173 = vpop.f32.mrf.mxu0
        %v1174 = vadd.f32 0.0, %v1173
        %v1175 = vpop.f32.mrf.mxu0
        %1176 = vmatprep.mubr.f32.mxu0 0.0
        %1177 = vmatmul.mubr.f32.gmra.mxu0 %v936
        %v1178 = vpop.f32.mrf.mxu0
        %v1179 = vadd.f32 0.0, %v1178
        %v1180 = vpop.f32.mrf.mxu0
        %1181 = vmatprep.mubr.f32.mxu0 0.0
        %1182 = vmatmul.mubr.f32.gmra.mxu0 %v937
        %v1183 = vpop.f32.mrf.mxu0
        %v1184 = vadd.f32 0.0, %v1183
        %v1185 = vpop.f32.mrf.mxu0
        %1186 = vmatprep.mubr.f32.mxu0 0.0
        %1187 = vmatmul.mubr.f32.gmra.mxu0 %v938
        %v1188 = vpop.f32.mrf.mxu0
        %v1189 = vadd.f32 0.0, %v1188
        %v1190 = vpop.f32.mrf.mxu0
        %1191 = vmatprep.mubr.f32.mxu0 0.0
        %1192 = vmatmul.mubr.f32.gmra.mxu0 %v939
        %v1193 = vpop.f32.mrf.mxu0
        %v1194 = vadd.f32 0.0, %v1193
        %v1195 = vpop.f32.mrf.mxu0
        %1196 = vmatprep.mubr.f32.mxu0 0.0
        %1197 = vmatmul.mubr.f32.gmra.mxu0 %v940
        %v1198 = vpop.f32.mrf.mxu0
        %v1199 = vadd.f32 0.0, %v1198
        %v1200 = vpop.f32.mrf.mxu0
        %1201 = vmatprep.mubr.f32.mxu0 0.0
        %1202 = vmatmul.mubr.f32.gmra.mxu0 %v941
        %v1203 = vpop.f32.mrf.mxu0
        %v1204 = vadd.f32 0.0, %v1203
        %v1205 = vpop.f32.mrf.mxu0
        %1206 = vmatprep.mubr.f32.mxu0 0.0
        %1207 = vmatmul.mubr.f32.gmra.mxu0 %v942
        %v1208 = vpop.f32.mrf.mxu0
        %v1209 = vadd.f32 0.0, %v1208
        %v1210 = vpop.f32.mrf.mxu0
        %1211 = vmatprep.mubr.f32.mxu0 0.0
        %1212 = vmatmul.mubr.f32.gmra.mxu0 %v943
        %v1213 = vpop.f32.mrf.mxu0
        %v1214 = vadd.f32 0.0, %v1213
        %v1215 = vpop.f32.mrf.mxu0
        %1216 = vmatprep.mubr.f32.mxu0 0.0
        %1217 = vmatmul.mubr.f32.gmra.mxu0 %v944
        %v1218 = vpop.f32.mrf.mxu0
        %v1219 = vadd.f32 0.0, %v1218
        %v1220 = vpop.f32.mrf.mxu0
        %1221 = vmatprep.mubr.f32.mxu0 0.0
        %1222 = vmatmul.mubr.f32.gmra.mxu0 %v945
        %v1223 = vpop.f32.mrf.mxu0
        %v1224 = vadd.f32 0.0, %v1223
        %v1225 = vpop.f32.mrf.mxu0
        %1226 = vmatprep.mubr.f32.mxu0 0.0
        %1227 = vmatmul.mubr.f32.gmra.mxu0 %v946
        %v1228 = vpop.f32.mrf.mxu0
        %v1229 = vadd.f32 0.0, %v1228
        %v1230 = vpop.f32.mrf.mxu0
        %1231 = vmatprep.mubr.f32.mxu0 0.0
        %1232 = vmatmul.mubr.f32.gmra.mxu0 %v947
        %v1233 = vpop.f32.mrf.mxu0
        %v1234 = vadd.f32 0.0, %v1233
        %v1235 = vpop.f32.mrf.mxu0
        %1236 = vmatprep.mubr.f32.mxu0 0.0
        %1237 = vmatmul.mubr.f32.gmra.mxu0 %v948
        %v1238 = vpop.f32.mrf.mxu0
        %v1239 = vadd.f32 0.0, %v1238
        %v1240 = vpop.f32.mrf.mxu0
        %1241 = vmatprep.mubr.f32.mxu0 0.0
        %1242 = vmatmul.mubr.f32.gmra.mxu0 %v949
        %v1243 = vpop.f32.mrf.mxu0
        %v1244 = vadd.f32 0.0, %v1243
        %v1245 = vpop.f32.mrf.mxu0
        %1246 = vmatprep.mubr.f32.mxu0 0.0
        %1247 = vmatmul.mubr.f32.gmra.mxu0 %v950
        %v1248 = vpop.f32.mrf.mxu0
        %v1249 = vadd.f32 0.0, %v1248
        %v1250 = vpop.f32.mrf.mxu0
        %1251 = vmatprep.mubr.f32.mxu0 0.0
        %1252 = vmatmul.mubr.f32.gmra.mxu0 %v951
        %v1253 = vpop.f32.mrf.mxu0
        %v1254 = vadd.f32 0.0, %v1253
        %v1255 = vpop.f32.mrf.mxu0
        %1256 = vmatprep.mubr.f32.mxu0 0.0
        %1257 = vmatmul.mubr.f32.gmra.mxu0 %v952
        %v1258 = vpop.f32.mrf.mxu0
        %v1259 = vadd.f32 0.0, %v1258
        %v1260 = vpop.f32.mrf.mxu0
        %1261 = vmatprep.mubr.f32.mxu0 0.0
        %1262 = vmatmul.mubr.f32.gmra.mxu0 %v953
        %v1263 = vpop.f32.mrf.mxu0
        %v1264 = vadd.f32 0.0, %v1263
        %v1265 = vpop.f32.mrf.mxu0
        %1266 = vmatprep.mubr.f32.mxu0 0.0
        %1267 = vmatmul.mubr.f32.gmra.mxu0 %v954
        %v1268 = vpop.f32.mrf.mxu0
        %v1269 = vadd.f32 0.0, %v1268
        %v1270 = vpop.f32.mrf.mxu0
        %1271 = vmatprep.mubr.f32.mxu0 0.0
        %1272 = vmatmul.mubr.f32.gmra.mxu0 %v955
        %v1273 = vpop.f32.mrf.mxu0
        %v1274 = vadd.f32 0.0, %v1273
        %v1275 = vpop.f32.mrf.mxu0
        %1276 = vmatprep.mubr.f32.mxu0 0.0
        %1277 = vmatmul.mubr.f32.gmra.mxu0 %v956
        %v1278 = vpop.f32.mrf.mxu0
        %v1279 = vadd.f32 0.0, %v1278
        %v1280 = vpop.f32.mrf.mxu0
        %1281 = vmatprep.mubr.f32.mxu0 0.0
        %1282 = vmatmul.mubr.f32.gmra.mxu0 %v957
        %v1283 = vpop.f32.mrf.mxu0
        %v1284 = vadd.f32 0.0, %v1283
        %v1285 = vpop.f32.mrf.mxu0
        %1286 = vmatprep.mubr.f32.mxu0 0.0
        %1287 = vmatmul.mubr.f32.gmra.mxu0 %v958
        %v1288 = vpop.f32.mrf.mxu0
        %v1289 = vadd.f32 0.0, %v1288
        %v1290 = vpop.f32.mrf.mxu0
        %1291 = vmatprep.mubr.f32.mxu0 0.0
        %1292 = vmatmul.mubr.f32.gmra.mxu0 %v959
        %v1293 = vpop.f32.mrf.mxu0
        %v1294 = vadd.f32 0.0, %v1293
        %v1295 = vpop.f32.mrf.mxu0
        %1296 = vmatprep.mubr.f32.mxu0 0.0
        %1297 = vmatmul.mubr.f32.gmra.mxu0 %v960
        %v1298 = vpop.f32.mrf.mxu0
        %v1299 = vadd.f32 0.0, %v1298
        %v1300 = vpop.f32.mrf.mxu0
        %1301 = vmatprep.mubr.f32.mxu0 0.0
        %1302 = vmatmul.mubr.f32.gmra.mxu0 %v961
        %v1303 = vpop.f32.mrf.mxu0
        %v1304 = vadd.f32 0.0, %v1303
        %v1305 = vpop.f32.mrf.mxu0
        %1306 = vmatprep.mubr.f32.mxu0 0.0
        %1307 = vmatmul.mubr.f32.gmra.mxu0 %v962
        %v1308 = vpop.f32.mrf.mxu0
        %v1309 = vadd.f32 0.0, %v1308
        %v1310 = vpop.f32.mrf.mxu0
        %1311 = vmatprep.mubr.f32.mxu0 0.0
        %1312 = vmatmul.mubr.f32.gmra.mxu0 %v963
        %v1313 = vpop.f32.mrf.mxu0
        %v1314 = vadd.f32 0.0, %v1313
        %v1315 = vpop.f32.mrf.mxu0
        %1316 = vmatprep.mubr.f32.mxu0 0.0
        %1317 = vmatmul.mubr.f32.gmra.mxu0 %v964
        %v1318 = vpop.f32.mrf.mxu0
        %v1319 = vadd.f32 0.0, %v1318
        %v1320 = vpop.f32.mrf.mxu0
        %1321 = vmatprep.mubr.f32.mxu0 0.0
        %1322 = vmatmul.mubr.f32.gmra.mxu0 %v965
        %v1323 = vpop.f32.mrf.mxu0
        %v1324 = vadd.f32 0.0, %v1323
        %v1325 = vpop.f32.mrf.mxu0
        %1326 = vmatprep.mubr.f32.mxu0 0.0
        %1327 = vmatmul.mubr.f32.gmra.mxu0 %v966
        %v1328 = vpop.f32.mrf.mxu0
        %v1329 = vadd.f32 0.0, %v1328
        %v1330 = vpop.f32.mrf.mxu0
        %1331 = vmatprep.mubr.f32.mxu0 0.0
        %1332 = vmatmul.mubr.f32.gmra.mxu0 %v967
        %v1333 = vpop.f32.mrf.mxu0
        %v1334 = vadd.f32 0.0, %v1333
        %v1335 = vpop.f32.mrf.mxu0
        %1336 = vmatprep.mubr.f32.mxu0 0.0
        %1337 = vmatmul.mubr.f32.gmra.mxu0 %v968
        %v1338 = vpop.f32.mrf.mxu0
        %v1339 = vadd.f32 0.0, %v1338
        %v1340 = vpop.f32.mrf.mxu0
        %1341 = vmatprep.mubr.f32.mxu0 0.0
        %1342 = vmatmul.mubr.f32.gmra.mxu0 %v969
        %v1343 = vpop.f32.mrf.mxu0
        %v1344 = vadd.f32 0.0, %v1343
        %v1345 = vpop.f32.mrf.mxu0
        %1346 = vmatprep.mubr.f32.mxu0 0.0
        %1347 = vmatmul.mubr.f32.gmra.mxu0 %v970
        %v1348 = vpop.f32.mrf.mxu0
        %v1349 = vadd.f32 0.0, %v1348
        %v1350 = vpop.f32.mrf.mxu0
        %1351 = vmatprep.mubr.f32.mxu0 0.0
        %1352 = vmatmul.mubr.f32.gmra.mxu0 %v971
        %v1353 = vpop.f32.mrf.mxu0
        %v1354 = vadd.f32 0.0, %v1353
        %v1355 = vpop.f32.mrf.mxu0
        %1356 = vmatprep.mubr.f32.mxu0 0.0
        %1357 = vmatmul.mubr.f32.gmra.mxu0 %v972
        %v1358 = vpop.f32.mrf.mxu0
        %v1359 = vadd.f32 0.0, %v1358
        %v1360 = vpop.f32.mrf.mxu0
        %1361 = vmatprep.mubr.f32.mxu0 0.0
        %1362 = vmatmul.mubr.f32.gmra.mxu0 %v973
        %v1363 = vpop.f32.mrf.mxu0
        %v1364 = vadd.f32 0.0, %v1363
        %v1365 = vpop.f32.mrf.mxu0
        %1366 = vmatprep.mubr.f32.mxu0 0.0
        %1367 = vmatmul.mubr.f32.gmra.mxu0 %v974
        %v1368 = vpop.f32.mrf.mxu0
        %v1369 = vadd.f32 0.0, %v1368
        %v1370 = vpop.f32.mrf.mxu0
        %1371 = vmatprep.mubr.f32.mxu0 0.0
        %1372 = vmatmul.mubr.f32.gmra.mxu0 %v975
        %v1373 = vpop.f32.mrf.mxu0
        %v1374 = vadd.f32 0.0, %v1373
        %v1375 = vpop.f32.mrf.mxu0
        %1376 = vmatprep.mubr.f32.mxu0 0.0
        %1377 = vmatmul.mubr.f32.gmra.mxu0 %v976
        %v1378 = vpop.f32.mrf.mxu0
        %v1379 = vadd.f32 0.0, %v1378
        %v1380 = vpop.f32.mrf.mxu0
        %1381 = vmatprep.mubr.f32.mxu0 0.0
        %1382 = vmatmul.mubr.f32.gmra.mxu0 %v977
        %v1383 = vpop.f32.mrf.mxu0
        %v1384 = vadd.f32 0.0, %v1383
        %v1385 = vpop.f32.mrf.mxu0
        %1386 = vmatprep.mubr.f32.mxu0 0.0
        %1387 = vmatmul.mubr.f32.gmra.mxu0 %v978
        %v1388 = vpop.f32.mrf.mxu0
        %v1389 = vadd.f32 0.0, %v1388
        %v1390 = vpop.f32.mrf.mxu0
        %1391 = vmatprep.mubr.f32.mxu0 0.0
        %1392 = vmatmul.mubr.f32.gmra.mxu0 %v979
        %v1393 = vpop.f32.mrf.mxu0
        %v1394 = vadd.f32 0.0, %v1393
        %v1395 = vpop.f32.mrf.mxu0
        %1396 = vmatprep.mubr.f32.mxu0 0.0
        %1397 = vmatmul.mubr.f32.gmra.mxu0 %v980
        %v1398 = vpop.f32.mrf.mxu0
        %v1399 = vadd.f32 0.0, %v1398
        %v1400 = vpop.f32.mrf.mxu0
        %1401 = vmatprep.mubr.f32.mxu0 0.0
        %1402 = vmatmul.mubr.f32.gmra.mxu0 %v981
        %v1403 = vpop.f32.mrf.mxu0
        %v1404 = vadd.f32 0.0, %v1403
        %v1405 = vpop.f32.mrf.mxu0
        %1406 = vmatprep.mubr.f32.mxu0 0.0
        %1407 = vmatmul.mubr.f32.gmra.mxu0 %v982
        %v1408 = vpop.f32.mrf.mxu0
        %v1409 = vadd.f32 0.0, %v1408
        %v1410 = vpop.f32.mrf.mxu0
        %1411 = vmatprep.mubr.f32.mxu0 0.0
        %1412 = vmatmul.mubr.f32.gmra.mxu0 %v983
        %v1413 = vpop.f32.mrf.mxu0
        %v1414 = vadd.f32 0.0, %v1413
        %v1415 = vpop.f32.mrf.mxu0
        %1416 = vmatprep.mubr.f32.mxu0 0.0
        %1417 = vmatmul.mubr.f32.gmra.mxu0 %v984
        %v1418 = vpop.f32.mrf.mxu0
        %v1419 = vadd.f32 0.0, %v1418
        %v1420 = vpop.f32.mrf.mxu0
        %1421 = vmatprep.mubr.f32.mxu0 0.0
        %1422 = vmatmul.mubr.f32.gmra.mxu0 %v985
        %v1423 = vpop.f32.mrf.mxu0
        %v1424 = vadd.f32 0.0, %v1423
        %v1425 = vpop.f32.mrf.mxu0
        %1426 = vmatprep.mubr.f32.mxu0 0.0
        %1427 = vmatmul.mubr.f32.gmra.mxu0 %v986
        %v1428 = vpop.f32.mrf.mxu0
        %v1429 = vadd.f32 0.0, %v1428
        %v1430 = vpop.f32.mrf.mxu0
        %1431 = vmatprep.mubr.f32.mxu0 0.0
        %1432 = vmatmul.mubr.f32.gmra.mxu0 %v987
        %v1433 = vpop.f32.mrf.mxu0
        %v1434 = vadd.f32 0.0, %v1433
        %v1435 = vpop.f32.mrf.mxu0
        %1436 = vmatprep.mubr.f32.mxu0 0.0
        %1437 = vmatmul.mubr.f32.gmra.mxu0 %v988
        %v1438 = vpop.f32.mrf.mxu0
        %v1439 = vadd.f32 0.0, %v1438
        %v1440 = vpop.f32.mrf.mxu0
        %1441 = vmatprep.mubr.f32.mxu0 0.0
        %1442 = vmatmul.mubr.f32.gmra.mxu0 %v989
        %v1443 = vpop.f32.mrf.mxu0
        %v1444 = vadd.f32 0.0, %v1443
        %v1445 = vpop.f32.mrf.mxu0
        %1446 = vmatprep.mubr.f32.mxu0 0.0
        %1447 = vmatmul.mubr.f32.gmra.mxu0 %v990
        %v1448 = vpop.f32.mrf.mxu0
        %v1449 = vadd.f32 0.0, %v1448
        %v1450 = vpop.f32.mrf.mxu0
        %1451 = vmatprep.mubr.f32.mxu0 0.0
        %1452 = vmatmul.mubr.f32.gmra.mxu0 %v991
        %v1453 = vpop.f32.mrf.mxu0
        %v1454 = vadd.f32 0.0, %v1453
        %v1455 = vpop.f32.mrf.mxu0
        %1456 = vmatprep.mubr.f32.mxu0 0.0
        %1457 = vmatmul.mubr.f32.gmra.mxu0 %v992
        %v1458 = vpop.f32.mrf.mxu0
        %v1459 = vadd.f32 0.0, %v1458
        %v1460 = vpop.f32.mrf.mxu0
        %1461 = vmatprep.mubr.f32.mxu0 0.0
        %1462 = vmatmul.mubr.f32.gmra.mxu0 %v993
        %v1463 = vpop.f32.mrf.mxu0
        %v1464 = vadd.f32 0.0, %v1463
        %v1465 = vpop.f32.mrf.mxu0
        %1466 = vmatprep.mubr.f32.mxu0 0.0
        %1467 = vmatmul.mubr.f32.gmra.mxu0 %v994
        %v1468 = vpop.f32.mrf.mxu0
        %v1469 = vadd.f32 0.0, %v1468
        %v1470 = vpop.f32.mrf.mxu0
        %1471 = vmatprep.mubr.f32.mxu0 0.0
        %1472 = vmatmul.mubr.f32.gmra.mxu0 %v995
        %v1473 = vpop.f32.mrf.mxu0
        %v1474 = vadd.f32 0.0, %v1473
        %v1475 = vpop.f32.mrf.mxu0
        %1476 = vmatprep.mubr.f32.mxu0 0.0
        %1477 = vmatmul.mubr.f32.gmra.mxu0 %v996
        %v1478 = vpop.f32.mrf.mxu0
        %v1479 = vadd.f32 0.0, %v1478
        %v1480 = vpop.f32.mrf.mxu0
        %1481 = vmatprep.mubr.f32.mxu0 0.0
        %1482 = vmatmul.mubr.f32.gmra.mxu0 %v997
        %v1483 = vpop.f32.mrf.mxu0
        %v1484 = vadd.f32 0.0, %v1483
        %v1485 = vpop.f32.mrf.mxu0
        %1486 = vmatprep.mubr.f32.mxu0 0.0
        %1487 = vmatmul.mubr.f32.gmra.mxu0 %v998
        %v1488 = vpop.f32.mrf.mxu0
        %v1489 = vadd.f32 0.0, %v1488
        %v1490 = vpop.f32.mrf.mxu0
        %1491 = vmatprep.mubr.f32.mxu0 0.0
        %1492 = vmatmul.mubr.f32.gmra.mxu0 %v999
        %v1493 = vpop.f32.mrf.mxu0
        %v1494 = vadd.f32 0.0, %v1493
        %v1495 = vpop.f32.mrf.mxu0
        %1496 = vmatprep.mubr.f32.mxu0 0.0
        %1497 = vmatmul.mubr.f32.gmra.mxu0 %v1000
        %v1498 = vpop.f32.mrf.mxu0
        %v1499 = vadd.f32 0.0, %v1498
        %v1500 = vpop.f32.mrf.mxu0
        %1501 = vmatprep.mubr.f32.mxu0 0.0
        %1502 = vmatmul.mubr.f32.gmra.mxu0 %v1001
        %v1503 = vpop.f32.mrf.mxu0
        %v1504 = vadd.f32 0.0, %v1503
        %v1505 = vpop.f32.mrf.mxu0
        %1506 = vmatprep.mubr.f32.mxu0 0.0
        %1507 = vmatmul.mubr.f32.gmra.mxu0 %v1002
        %v1508 = vpop.f32.mrf.mxu0
        %v1509 = vadd.f32 0.0, %v1508
        %v1510 = vpop.f32.mrf.mxu0
        %1511 = vmatprep.mubr.f32.mxu0 0.0
        %1512 = vmatmul.mubr.f32.gmra.mxu0 %v1003
        %v1513 = vpop.f32.mrf.mxu0
        %v1514 = vadd.f32 0.0, %v1513
        %v1515 = vpop.f32.mrf.mxu0
        %1516 = vmatprep.mubr.f32.mxu0 0.0
        %1517 = vmatmul.mubr.f32.gmra.mxu0 %v1004
        %v1518 = vpop.f32.mrf.mxu0
        %v1519 = vadd.f32 0.0, %v1518
        %v1520 = vpop.f32.mrf.mxu0
        %1521 = vmatprep.mubr.f32.mxu0 0.0
        %1522 = vmatmul.mubr.f32.gmra.mxu0 %v1005
        %v1523 = vpop.f32.mrf.mxu0
        %v1524 = vadd.f32 0.0, %v1523
        %v1525 = vpop.f32.mrf.mxu0
        %1526 = vmatprep.mubr.f32.mxu0 0.0
        %1527 = vmatmul.mubr.f32.gmra.mxu0 %v1006
        %v1528 = vpop.f32.mrf.mxu0
        %v1529 = vadd.f32 0.0, %v1528
        %v1530 = vpop.f32.mrf.mxu0
        %1531 = vmatprep.mubr.f32.mxu0 0.0
        %1532 = vmatmul.mubr.f32.gmra.mxu0 %v1007
        %v1533 = vpop.f32.mrf.mxu0
        %v1534 = vadd.f32 0.0, %v1533
        %v1535 = vpop.f32.mrf.mxu0
        %1536 = vmatprep.mubr.f32.mxu0 0.0
        %1537 = vmatmul.mubr.f32.gmra.mxu0 %v1008
        %v1538 = vpop.f32.mrf.mxu0
        %v1539 = vadd.f32 0.0, %v1538
        %v1540 = vpop.f32.mrf.mxu0
        %1541 = vmatprep.mubr.f32.mxu0 0.0
        %1542 = vmatmul.mubr.f32.gmra.mxu0 %v1009
        %v1543 = vpop.f32.mrf.mxu0
        %v1544 = vadd.f32 0.0, %v1543
        %v1545 = vpop.f32.mrf.mxu0
        %1546 = vmatprep.mubr.f32.mxu0 0.0
        %1547 = vmatmul.mubr.f32.gmra.mxu0 %v1010
        %v1548 = vpop.f32.mrf.mxu0
        %v1549 = vadd.f32 0.0, %v1548
        %v1550 = vpop.f32.mrf.mxu0
        %1551 = vmatprep.mubr.f32.mxu0 0.0
        %1552 = vmatmul.mubr.f32.gmra.mxu0 %v1011
        %v1553 = vpop.f32.mrf.mxu0
        %v1554 = vadd.f32 0.0, %v1553
        %v1555 = vpop.f32.mrf.mxu0
        %1556 = vmatprep.mubr.f32.mxu0 0.0
        %1557 = vmatmul.mubr.f32.gmra.mxu0 %v1012
        %v1558 = vpop.f32.mrf.mxu0
        %v1559 = vadd.f32 0.0, %v1558
        %v1560 = vpop.f32.mrf.mxu0
        %1561 = vmatprep.mubr.f32.mxu0 0.0
        %1562 = vmatmul.mubr.f32.gmra.mxu0 %v1013
        %v1563 = vpop.f32.mrf.mxu0
        %v1564 = vadd.f32 0.0, %v1563
        %v1565 = vpop.f32.mrf.mxu0
        %1566 = vmatprep.mubr.f32.mxu0 0.0
        %1567 = vmatmul.mubr.f32.gmra.mxu0 %v1014
        %v1568 = vpop.f32.mrf.mxu0
        %v1569 = vadd.f32 0.0, %v1568
        %v1570 = vpop.f32.mrf.mxu0
        %1571 = vmatprep.mubr.f32.mxu0 0.0
        %1572 = vmatmul.mubr.f32.gmra.mxu0 %v1015
        %v1573 = vpop.f32.mrf.mxu0
        %v1574 = vadd.f32 0.0, %v1573
        %v1575 = vpop.f32.mrf.mxu0
        %1576 = vmatprep.mubr.f32.mxu0 0.0
        %1577 = vmatmul.mubr.f32.gmra.mxu0 %v1016
        %v1578 = vpop.f32.mrf.mxu0
        %v1579 = vadd.f32 0.0, %v1578
        %v1580 = vpop.f32.mrf.mxu0
        %1581 = vmatprep.mubr.f32.mxu0 0.0
        %1582 = vmatmul.mubr.f32.gmra.mxu0 %v1017
        %v1583 = vpop.f32.mrf.mxu0
        %v1584 = vadd.f32 0.0, %v1583
        %v1585 = vpop.f32.mrf.mxu0
        %1586 = vmatprep.mubr.f32.mxu0 0.0
        %1587 = vmatmul.mubr.f32.gmra.mxu0 %v1018
        %v1588 = vpop.f32.mrf.mxu0
        %v1589 = vadd.f32 0.0, %v1588
        %v1590 = vpop.f32.mrf.mxu0
        %1591 = vmatprep.mubr.f32.mxu0 0.0
        %1592 = vmatmul.mubr.f32.gmra.mxu0 %v1019
        %v1593 = vpop.f32.mrf.mxu0
        %v1594 = vadd.f32 0.0, %v1593
        %v1595 = vpop.f32.mrf.mxu0
        %1596 = vmatprep.mubr.f32.mxu0 0.0
        %1597 = vmatmul.mubr.f32.gmra.mxu0 %v1020
        %v1598 = vpop.f32.mrf.mxu0
        %v1599 = vadd.f32 0.0, %v1598
        %v1600 = vpop.f32.mrf.mxu0
        %1601 = vmatprep.mubr.f32.mxu0 0.0
        %1602 = vmatmul.mubr.f32.gmra.mxu0 %v1021
        %v1603 = vpop.f32.mrf.mxu0
        %v1604 = vadd.f32 0.0, %v1603
        %v1605 = vpop.f32.mrf.mxu0
        %1606 = vmatprep.mubr.f32.mxu0 0.0
        %1607 = vmatmul.mubr.f32.gmra.mxu0 %v1022
        %v1608 = vpop.f32.mrf.mxu0
        %v1609 = vadd.f32 0.0, %v1608
        %v1610 = vpop.f32.mrf.mxu0
        %1611 = vmatprep.mubr.f32.mxu0 0.0
        %1612 = vmatmul.mubr.f32.gmra.mxu0 %v1023
        %v1613 = vpop.f32.mrf.mxu0
        %v1614 = vadd.f32 0.0, %v1613
        %v1615 = vpop.f32.mrf.mxu0
        %1616 = vmatprep.mubr.f32.mxu0 0.0
        %1617 = vmatmul.mubr.f32.gmra.mxu0 %v1024
        %v1618 = vpop.f32.mrf.mxu0
        %v1619 = vadd.f32 0.0, %v1618
        %v1620 = vpop.f32.mrf.mxu0
        %1621 = vmatprep.mubr.f32.mxu0 0.0
        %1622 = vmatmul.mubr.f32.gmra.mxu0 %v1025
        %v1623 = vpop.f32.mrf.mxu0
        %v1624 = vadd.f32 0.0, %v1623
        %v1625 = vpop.f32.mrf.mxu0
        %1626 = vmatprep.mubr.f32.mxu0 0.0
        %1627 = vmatmul.mubr.f32.gmra.mxu0 %v1026
        %v1628 = vpop.f32.mrf.mxu0
        %v1629 = vadd.f32 0.0, %v1628
        %v1630 = vpop.f32.mrf.mxu0
        %1631 = vmatprep.mubr.f32.mxu0 0.0
        %1632 = vmatmul.mubr.f32.gmra.mxu0 %v1027
        %v1633 = vpop.f32.mrf.mxu0
        %v1634 = vadd.f32 0.0, %v1633
        %v1635 = vpop.f32.mrf.mxu0
        %1636 = vmatprep.mubr.f32.mxu0 0.0
        %1637 = vmatmul.mubr.f32.gmra.mxu0 %v1028
        %v1638 = vpop.f32.mrf.mxu0
        %v1639 = vadd.f32 0.0, %v1638
        %v1640 = vpop.f32.mrf.mxu0
        %1641 = vmatprep.mubr.f32.mxu0 0.0
        %1642 = vmatmul.mubr.f32.gmra.mxu0 %v1029
        %v1643 = vpop.f32.mrf.mxu0
        %v1644 = vadd.f32 0.0, %v1643
        %v1645 = vpop.f32.mrf.mxu0
        %1646 = vmatprep.mubr.f32.mxu0 0.0
        %1647 = vmatmul.mubr.f32.gmra.mxu0 %v1030
        %v1648 = vpop.f32.mrf.mxu0
        %v1649 = vadd.f32 0.0, %v1648
        %v1650 = vpop.f32.mrf.mxu0
        %1651 = vmatprep.mubr.f32.mxu0 0.0
        %1652 = vmatmul.mubr.f32.gmra.mxu0 %v1031
        %v1653 = vpop.f32.mrf.mxu0
        %v1654 = vadd.f32 0.0, %v1653
        %v1655 = vpop.f32.mrf.mxu0
        %1656 = vmatprep.mubr.f32.mxu0 0.0
        %1657 = vmatmul.mubr.f32.gmra.mxu0 %v1032
        %v1658 = vpop.f32.mrf.mxu0
        %v1659 = vadd.f32 0.0, %v1658
        %v1660 = vpop.f32.mrf.mxu0
        %1661 = vmatprep.mubr.f32.mxu0 0.0
        %1662 = vmatmul.mubr.f32.gmra.mxu0 %v1033
        %v1663 = vpop.f32.mrf.mxu0
        %v1664 = vadd.f32 0.0, %v1663
        %v1665 = vpop.f32.mrf.mxu0
        %1666 = vmatprep.mubr.f32.mxu0 0.0
        %1667 = vmatmul.mubr.f32.gmra.mxu0 %v1034
        %v1668 = vpop.f32.mrf.mxu0
        %v1669 = vadd.f32 0.0, %v1668
        %v1670 = vpop.f32.mrf.mxu0
        %1671 = vmatprep.mubr.f32.mxu0 0.0
        %1672 = vmatmul.mubr.f32.gmra.mxu0 %v1035
        %v1673 = vpop.f32.mrf.mxu0
        %v1674 = vadd.f32 0.0, %v1673
        %v1675 = vpop.f32.mrf.mxu0
        %1676 = vmatprep.mubr.f32.mxu0 0.0
        %1677 = vmatmul.mubr.f32.gmra.mxu0 %v1036
        %v1678 = vpop.f32.mrf.mxu0
        %v1679 = vadd.f32 0.0, %v1678
        %v1680 = vpop.f32.mrf.mxu0
        %1681 = vmatprep.mubr.f32.mxu0 0.0
        %1682 = vmatmul.mubr.f32.gmra.mxu0 %v1037
        %v1683 = vpop.f32.mrf.mxu0
        %v1684 = vadd.f32 0.0, %v1683
        %v1685 = vpop.f32.mrf.mxu0
        %1686 = vmatprep.mubr.f32.mxu0 0.0
        %1687 = vmatmul.mubr.f32.gmra.mxu0 %v1038
        %v1688 = vpop.f32.mrf.mxu0
        %v1689 = vadd.f32 0.0, %v1688
        %v1690 = vpop.f32.mrf.mxu0
        %1691 = vmatprep.mubr.f32.mxu0 0.0
        %1692 = vmatmul.mubr.f32.gmra.mxu0 %v1039
        %v1693 = vpop.f32.mrf.mxu0
        %v1694 = vadd.f32 0.0, %v1693
        %v1695 = vpop.f32.mrf.mxu0
        %1696 = vmatprep.mubr.f32.mxu0 0.0
        %1697 = vmatmul.mubr.f32.gmra.mxu0 %v1040
        %v1698 = vpop.f32.mrf.mxu0
        %v1699 = vadd.f32 0.0, %v1698
        %v1700 = vpop.f32.mrf.mxu0
        %1701 = vmatprep.mubr.f32.mxu0 0.0
        %1702 = vmatmul.mubr.f32.gmra.mxu0 %v1041
        %v1703 = vpop.f32.mrf.mxu0
        %v1704 = vadd.f32 0.0, %v1703
        %v1705 = vpop.f32.mrf.mxu0
        %1706 = vmatprep.mubr.f32.mxu0 0.0
        %1707 = vmatmul.mubr.f32.gmra.mxu0 %v1042
        %v1708 = vpop.f32.mrf.mxu0
        %v1709 = vadd.f32 0.0, %v1708
        %v1710 = vpop.f32.mrf.mxu0
        %1711 = vmatprep.mubr.f32.mxu0 0.0
        %1712 = vmatmul.mubr.f32.gmra.mxu0 %v1043
        %v1713 = vpop.f32.mrf.mxu0
        %v1714 = vadd.f32 0.0, %v1713
        %v1715 = vpop.f32.mrf.mxu0
        %1716 = vmatprep.mubr.f32.mxu0 0.0
        %1717 = vmatmul.mubr.f32.gmra.mxu0 %v1044
        %v1718 = vpop.f32.mrf.mxu0
        %v1719 = vadd.f32 0.0, %v1718
        %v1720 = vpop.f32.mrf.mxu0
        %1721 = vmatprep.mubr.f32.mxu0 0.0
        %1722 = vmatmul.mubr.f32.gmra.mxu0 %v1045
        %v1723 = vpop.f32.mrf.mxu0
        %v1724 = vadd.f32 0.0, %v1723
        %v1725 = vpop.f32.mrf.mxu0
        %1726 = vmatprep.mubr.f32.mxu0 0.0
        %1727 = vmatmul.mubr.f32.gmra.mxu0 %v1046
        %v1728 = vpop.f32.mrf.mxu0
        %v1729 = vadd.f32 0.0, %v1728
        %v1730 = vpop.f32.mrf.mxu0
        %1731 = vmatprep.mubr.f32.mxu0 0.0
        %1732 = vmatmul.mubr.f32.gmra.mxu0 %v1047
        %v1733 = vpop.f32.mrf.mxu0
        %v1734 = vadd.f32 0.0, %v1733
        %v1735 = vpop.f32.mrf.mxu0
        %1736 = vmatprep.mubr.f32.mxu0 0.0
        %1737 = vmatmul.mubr.f32.gmra.mxu0 %v1048
        %v1738 = vpop.f32.mrf.mxu0
        %v1739 = vadd.f32 0.0, %v1738
        %v1740 = vpop.f32.mrf.mxu0
        %1741 = vmatprep.mubr.f32.mxu0 0.0
        %1742 = vmatmul.mubr.f32.gmra.mxu0 %v1049
        %v1743 = vpop.f32.mrf.mxu0
        %v1744 = vadd.f32 0.0, %v1743
        %v1745 = vpop.f32.mrf.mxu0
        %1746 = vmatprep.mubr.f32.mxu0 0.0
        %1747 = vmatmul.mubr.f32.gmra.mxu0 %v1050
        %v1748 = vpop.f32.mrf.mxu0
        %v1749 = vadd.f32 0.0, %v1748
        %v1750 = vpop.f32.mrf.mxu0
        %1751 = vmatprep.mubr.f32.mxu0 0.0
        %1752 = vmatmul.mubr.f32.gmra.mxu0 %v1051
        %v1753 = vpop.f32.mrf.mxu0
        %v1754 = vadd.f32 0.0, %v1753
        %v1755 = vpop.f32.mrf.mxu0
        %1756 = vmatprep.mubr.f32.mxu0 0.0
        %1757 = vmatmul.mubr.f32.gmra.mxu0 %v1052
        %v1758 = vpop.f32.mrf.mxu0
        %v1759 = vadd.f32 0.0, %v1758
        %v1760 = vpop.f32.mrf.mxu0
        %1761 = vmatprep.mubr.f32.mxu0 0.0
        %1762 = vmatmul.mubr.f32.gmra.mxu0 %v1053
        %v1763 = vpop.f32.mrf.mxu0
        %v1764 = vadd.f32 0.0, %v1763
        %v1765 = vpop.f32.mrf.mxu0
        %1766 = vmatprep.mubr.f32.mxu0 0.0
        %1767 = vmatmul.mubr.f32.gmra.mxu0 %v1054
        %v1768 = vpop.f32.mrf.mxu0
        %v1769 = vadd.f32 0.0, %v1768
        %v1770 = vpop.f32.mrf.mxu0
        %1771 = vmatprep.mubr.f32.mxu0 0.0
        %1772 = vmatmul.mubr.f32.gmra.mxu0 %v1055
        %v1773 = vpop.f32.mrf.mxu0
        %v1774 = vadd.f32 0.0, %v1773
        %v1775 = vpop.f32.mrf.mxu0
        %1776 = vdwg.mxu0
        %v1777 = vld [vmem:[%s5] sm:$0x1]
        %v1779 = vlaneseq
        %v1780 = vshrl.u32 %v1779, 7
        %v1781 = vsub.s32 0, %v1780
        %v1782 = vrot.slane %v1777, %v1781
        %v1784 = vmul.f32 %v1139, %v1782
        %v1785 = vmul.f32 %v1144, %v1782
        %v1786 = vmul.f32 %v1149, %v1782
        %v1787 = vmul.f32 %v1154, %v1782
        %v1788 = vmul.f32 %v1159, %v1782
        %v1789 = vmul.f32 %v1164, %v1782
        %v1790 = vmul.f32 %v1169, %v1782
        %v1791 = vmul.f32 %v1174, %v1782
        %v1792 = vmul.f32 %v1179, %v1782
        %v1793 = vmul.f32 %v1184, %v1782
        %v1794 = vmul.f32 %v1189, %v1782
        %v1795 = vmul.f32 %v1194, %v1782
        %v1796 = vmul.f32 %v1199, %v1782
        %v1797 = vmul.f32 %v1204, %v1782
        %v1798 = vmul.f32 %v1209, %v1782
        %v1799 = vmul.f32 %v1214, %v1782
        %v1800 = vmul.f32 %v1219, %v1782
        %v1801 = vmul.f32 %v1224, %v1782
        %v1802 = vmul.f32 %v1229, %v1782
        %v1803 = vmul.f32 %v1234, %v1782
        %v1804 = vmul.f32 %v1239, %v1782
        %v1805 = vmul.f32 %v1244, %v1782
        %v1806 = vmul.f32 %v1249, %v1782
        %v1807 = vmul.f32 %v1254, %v1782
        %v1808 = vmul.f32 %v1259, %v1782
        %v1809 = vmul.f32 %v1264, %v1782
        %v1810 = vmul.f32 %v1269, %v1782
        %v1811 = vmul.f32 %v1274, %v1782
        %v1812 = vmul.f32 %v1279, %v1782
        %v1813 = vmul.f32 %v1284, %v1782
        %v1814 = vmul.f32 %v1289, %v1782
        %v1815 = vmul.f32 %v1294, %v1782
        %v1816 = vmul.f32 %v1299, %v1782
        %v1817 = vmul.f32 %v1304, %v1782
        %v1818 = vmul.f32 %v1309, %v1782
        %v1819 = vmul.f32 %v1314, %v1782
        %v1820 = vmul.f32 %v1319, %v1782
        %v1821 = vmul.f32 %v1324, %v1782
        %v1822 = vmul.f32 %v1329, %v1782
        %v1823 = vmul.f32 %v1334, %v1782
        %v1824 = vmul.f32 %v1339, %v1782
        %v1825 = vmul.f32 %v1344, %v1782
        %v1826 = vmul.f32 %v1349, %v1782
        %v1827 = vmul.f32 %v1354, %v1782
        %v1828 = vmul.f32 %v1359, %v1782
        %v1829 = vmul.f32 %v1364, %v1782
        %v1830 = vmul.f32 %v1369, %v1782
        %v1831 = vmul.f32 %v1374, %v1782
        %v1832 = vmul.f32 %v1379, %v1782
        %v1833 = vmul.f32 %v1384, %v1782
        %v1834 = vmul.f32 %v1389, %v1782
        %v1835 = vmul.f32 %v1394, %v1782
        %v1836 = vmul.f32 %v1399, %v1782
        %v1837 = vmul.f32 %v1404, %v1782
        %v1838 = vmul.f32 %v1409, %v1782
        %v1839 = vmul.f32 %v1414, %v1782
        %v1840 = vmul.f32 %v1419, %v1782
        %v1841 = vmul.f32 %v1424, %v1782
        %v1842 = vmul.f32 %v1429, %v1782
        %v1843 = vmul.f32 %v1434, %v1782
        %v1844 = vmul.f32 %v1439, %v1782
        %v1845 = vmul.f32 %v1444, %v1782
        %v1846 = vmul.f32 %v1449, %v1782
        %v1847 = vmul.f32 %v1454, %v1782
        %v1848 = vmul.f32 %v1459, %v1782
        %v1849 = vmul.f32 %v1464, %v1782
        %v1850 = vmul.f32 %v1469, %v1782
        %v1851 = vmul.f32 %v1474, %v1782
        %v1852 = vmul.f32 %v1479, %v1782
        %v1853 = vmul.f32 %v1484, %v1782
        %v1854 = vmul.f32 %v1489, %v1782
        %v1855 = vmul.f32 %v1494, %v1782
        %v1856 = vmul.f32 %v1499, %v1782
        %v1857 = vmul.f32 %v1504, %v1782
        %v1858 = vmul.f32 %v1509, %v1782
        %v1859 = vmul.f32 %v1514, %v1782
        %v1860 = vmul.f32 %v1519, %v1782
        %v1861 = vmul.f32 %v1524, %v1782
        %v1862 = vmul.f32 %v1529, %v1782
        %v1863 = vmul.f32 %v1534, %v1782
        %v1864 = vmul.f32 %v1539, %v1782
        %v1865 = vmul.f32 %v1544, %v1782
        %v1866 = vmul.f32 %v1549, %v1782
        %v1867 = vmul.f32 %v1554, %v1782
        %v1868 = vmul.f32 %v1559, %v1782
        %v1869 = vmul.f32 %v1564, %v1782
        %v1870 = vmul.f32 %v1569, %v1782
        %v1871 = vmul.f32 %v1574, %v1782
        %v1872 = vmul.f32 %v1579, %v1782
        %v1873 = vmul.f32 %v1584, %v1782
        %v1874 = vmul.f32 %v1589, %v1782
        %v1875 = vmul.f32 %v1594, %v1782
        %v1876 = vmul.f32 %v1599, %v1782
        %v1877 = vmul.f32 %v1604, %v1782
        %v1878 = vmul.f32 %v1609, %v1782
        %v1879 = vmul.f32 %v1614, %v1782
        %v1880 = vmul.f32 %v1619, %v1782
        %v1881 = vmul.f32 %v1624, %v1782
        %v1882 = vmul.f32 %v1629, %v1782
        %v1883 = vmul.f32 %v1634, %v1782
        %v1884 = vmul.f32 %v1639, %v1782
        %v1885 = vmul.f32 %v1644, %v1782
        %v1886 = vmul.f32 %v1649, %v1782
        %v1887 = vmul.f32 %v1654, %v1782
        %v1888 = vmul.f32 %v1659, %v1782
        %v1889 = vmul.f32 %v1664, %v1782
        %v1890 = vmul.f32 %v1669, %v1782
        %v1891 = vmul.f32 %v1674, %v1782
        %v1892 = vmul.f32 %v1679, %v1782
        %v1893 = vmul.f32 %v1684, %v1782
        %v1894 = vmul.f32 %v1689, %v1782
        %v1895 = vmul.f32 %v1694, %v1782
        %v1896 = vmul.f32 %v1699, %v1782
        %v1897 = vmul.f32 %v1704, %v1782
        %v1898 = vmul.f32 %v1709, %v1782
        %v1899 = vmul.f32 %v1714, %v1782
        %v1900 = vmul.f32 %v1719, %v1782
        %v1901 = vmul.f32 %v1724, %v1782
        %v1902 = vmul.f32 %v1729, %v1782
        %v1903 = vmul.f32 %v1734, %v1782
        %v1904 = vmul.f32 %v1739, %v1782
        %v1905 = vmul.f32 %v1744, %v1782
        %v1906 = vmul.f32 %v1749, %v1782
        %v1907 = vmul.f32 %v1754, %v1782
        %v1908 = vmul.f32 %v1759, %v1782
        %v1909 = vmul.f32 %v1764, %v1782
        %v1910 = vmul.f32 %v1769, %v1782
        %v1911 = vmul.f32 %v1774, %v1782
        %v1912 = vld [vmem:[%s7] sm:$0x1]
        %v1914 = vlaneseq
        %v1915 = vshrl.u32 %v1914, 7
        %v1916 = vsub.s32 0, %v1915
        %v1917 = vrot.slane %v1912, %v1916
        %v1919 = vadd.f32 %v1784, %v1917
        %v1920 = vadd.f32 %v1785, %v1917
        %v1921 = vadd.f32 %v1786, %v1917
        %v1922 = vadd.f32 %v1787, %v1917
        %v1923 = vadd.f32 %v1788, %v1917
        %v1924 = vadd.f32 %v1789, %v1917
        %v1925 = vadd.f32 %v1790, %v1917
        %v1926 = vadd.f32 %v1791, %v1917
        %v1927 = vadd.f32 %v1792, %v1917
        %v1928 = vadd.f32 %v1793, %v1917
        %v1929 = vadd.f32 %v1794, %v1917
        %v1930 = vadd.f32 %v1795, %v1917
        %v1931 = vadd.f32 %v1796, %v1917
        %v1932 = vadd.f32 %v1797, %v1917
        %v1933 = vadd.f32 %v1798, %v1917
        %v1934 = vadd.f32 %v1799, %v1917
        %v1935 = vadd.f32 %v1800, %v1917
        %v1936 = vadd.f32 %v1801, %v1917
        %v1937 = vadd.f32 %v1802, %v1917
        %v1938 = vadd.f32 %v1803, %v1917
        %v1939 = vadd.f32 %v1804, %v1917
        %v1940 = vadd.f32 %v1805, %v1917
        %v1941 = vadd.f32 %v1806, %v1917
        %v1942 = vadd.f32 %v1807, %v1917
        %v1943 = vadd.f32 %v1808, %v1917
        %v1944 = vadd.f32 %v1809, %v1917
        %v1945 = vadd.f32 %v1810, %v1917
        %v1946 = vadd.f32 %v1811, %v1917
        %v1947 = vadd.f32 %v1812, %v1917
        %v1948 = vadd.f32 %v1813, %v1917
        %v1949 = vadd.f32 %v1814, %v1917
        %v1950 = vadd.f32 %v1815, %v1917
        %v1951 = vadd.f32 %v1816, %v1917
        %v1952 = vadd.f32 %v1817, %v1917
        %v1953 = vadd.f32 %v1818, %v1917
        %v1954 = vadd.f32 %v1819, %v1917
        %v1955 = vadd.f32 %v1820, %v1917
        %v1956 = vadd.f32 %v1821, %v1917
        %v1957 = vadd.f32 %v1822, %v1917
        %v1958 = vadd.f32 %v1823, %v1917
        %v1959 = vadd.f32 %v1824, %v1917
        %v1960 = vadd.f32 %v1825, %v1917
        %v1961 = vadd.f32 %v1826, %v1917
        %v1962 = vadd.f32 %v1827, %v1917
        %v1963 = vadd.f32 %v1828, %v1917
        %v1964 = vadd.f32 %v1829, %v1917
        %v1965 = vadd.f32 %v1830, %v1917
        %v1966 = vadd.f32 %v1831, %v1917
        %v1967 = vadd.f32 %v1832, %v1917
        %v1968 = vadd.f32 %v1833, %v1917
        %v1969 = vadd.f32 %v1834, %v1917
        %v1970 = vadd.f32 %v1835, %v1917
        %v1971 = vadd.f32 %v1836, %v1917
        %v1972 = vadd.f32 %v1837, %v1917
        %v1973 = vadd.f32 %v1838, %v1917
        %v1974 = vadd.f32 %v1839, %v1917
        %v1975 = vadd.f32 %v1840, %v1917
        %v1976 = vadd.f32 %v1841, %v1917
        %v1977 = vadd.f32 %v1842, %v1917
        %v1978 = vadd.f32 %v1843, %v1917
        %v1979 = vadd.f32 %v1844, %v1917
        %v1980 = vadd.f32 %v1845, %v1917
        %v1981 = vadd.f32 %v1846, %v1917
        %v1982 = vadd.f32 %v1847, %v1917
        %v1983 = vadd.f32 %v1848, %v1917
        %v1984 = vadd.f32 %v1849, %v1917
        %v1985 = vadd.f32 %v1850, %v1917
        %v1986 = vadd.f32 %v1851, %v1917
        %v1987 = vadd.f32 %v1852, %v1917
        %v1988 = vadd.f32 %v1853, %v1917
        %v1989 = vadd.f32 %v1854, %v1917
        %v1990 = vadd.f32 %v1855, %v1917
        %v1991 = vadd.f32 %v1856, %v1917
        %v1992 = vadd.f32 %v1857, %v1917
        %v1993 = vadd.f32 %v1858, %v1917
        %v1994 = vadd.f32 %v1859, %v1917
        %v1995 = vadd.f32 %v1860, %v1917
        %v1996 = vadd.f32 %v1861, %v1917
        %v1997 = vadd.f32 %v1862, %v1917
        %v1998 = vadd.f32 %v1863, %v1917
        %v1999 = vadd.f32 %v1864, %v1917
        %v2000 = vadd.f32 %v1865, %v1917
        %v2001 = vadd.f32 %v1866, %v1917
        %v2002 = vadd.f32 %v1867, %v1917
        %v2003 = vadd.f32 %v1868, %v1917
        %v2004 = vadd.f32 %v1869, %v1917
        %v2005 = vadd.f32 %v1870, %v1917
        %v2006 = vadd.f32 %v1871, %v1917
        %v2007 = vadd.f32 %v1872, %v1917
        %v2008 = vadd.f32 %v1873, %v1917
        %v2009 = vadd.f32 %v1874, %v1917
        %v2010 = vadd.f32 %v1875, %v1917
        %v2011 = vadd.f32 %v1876, %v1917
        %v2012 = vadd.f32 %v1877, %v1917
        %v2013 = vadd.f32 %v1878, %v1917
        %v2014 = vadd.f32 %v1879, %v1917
        %v2015 = vadd.f32 %v1880, %v1917
        %v2016 = vadd.f32 %v1881, %v1917
        %v2017 = vadd.f32 %v1882, %v1917
        %v2018 = vadd.f32 %v1883, %v1917
        %v2019 = vadd.f32 %v1884, %v1917
        %v2020 = vadd.f32 %v1885, %v1917
        %v2021 = vadd.f32 %v1886, %v1917
        %v2022 = vadd.f32 %v1887, %v1917
        %v2023 = vadd.f32 %v1888, %v1917
        %v2024 = vadd.f32 %v1889, %v1917
        %v2025 = vadd.f32 %v1890, %v1917
        %v2026 = vadd.f32 %v1891, %v1917
        %v2027 = vadd.f32 %v1892, %v1917
        %v2028 = vadd.f32 %v1893, %v1917
        %v2029 = vadd.f32 %v1894, %v1917
        %v2030 = vadd.f32 %v1895, %v1917
        %v2031 = vadd.f32 %v1896, %v1917
        %v2032 = vadd.f32 %v1897, %v1917
        %v2033 = vadd.f32 %v1898, %v1917
        %v2034 = vadd.f32 %v1899, %v1917
        %v2035 = vadd.f32 %v1900, %v1917
        %v2036 = vadd.f32 %v1901, %v1917
        %v2037 = vadd.f32 %v1902, %v1917
        %v2038 = vadd.f32 %v1903, %v1917
        %v2039 = vadd.f32 %v1904, %v1917
        %v2040 = vadd.f32 %v1905, %v1917
        %v2041 = vadd.f32 %v1906, %v1917
        %v2042 = vadd.f32 %v1907, %v1917
        %v2043 = vadd.f32 %v1908, %v1917
        %v2044 = vadd.f32 %v1909, %v1917
        %v2045 = vadd.f32 %v1910, %v1917
        %v2046 = vadd.f32 %v1911, %v1917
        %v2047 = vmax.f32 %v1919, 0.0
        %v2048 = vmax.f32 %v1920, 0.0
        %v2049 = vmax.f32 %v1921, 0.0
        %v2050 = vmax.f32 %v1922, 0.0
        %v2051 = vmax.f32 %v1923, 0.0
        %v2052 = vmax.f32 %v1924, 0.0
        %v2053 = vmax.f32 %v1925, 0.0
        %v2054 = vmax.f32 %v1926, 0.0
        %v2055 = vmax.f32 %v1927, 0.0
        %v2056 = vmax.f32 %v1928, 0.0
        %v2057 = vmax.f32 %v1929, 0.0
        %v2058 = vmax.f32 %v1930, 0.0
        %v2059 = vmax.f32 %v1931, 0.0
        %v2060 = vmax.f32 %v1932, 0.0
        %v2061 = vmax.f32 %v1933, 0.0
        %v2062 = vmax.f32 %v1934, 0.0
        %v2063 = vmax.f32 %v1935, 0.0
        %v2064 = vmax.f32 %v1936, 0.0
        %v2065 = vmax.f32 %v1937, 0.0
        %v2066 = vmax.f32 %v1938, 0.0
        %v2067 = vmax.f32 %v1939, 0.0
        %v2068 = vmax.f32 %v1940, 0.0
        %v2069 = vmax.f32 %v1941, 0.0
        %v2070 = vmax.f32 %v1942, 0.0
        %v2071 = vmax.f32 %v1943, 0.0
        %v2072 = vmax.f32 %v1944, 0.0
        %v2073 = vmax.f32 %v1945, 0.0
        %v2074 = vmax.f32 %v1946, 0.0
        %v2075 = vmax.f32 %v1947, 0.0
        %v2076 = vmax.f32 %v1948, 0.0
        %v2077 = vmax.f32 %v1949, 0.0
        %v2078 = vmax.f32 %v1950, 0.0
        %v2079 = vmax.f32 %v1951, 0.0
        %v2080 = vmax.f32 %v1952, 0.0
        %v2081 = vmax.f32 %v1953, 0.0
        %v2082 = vmax.f32 %v1954, 0.0
        %v2083 = vmax.f32 %v1955, 0.0
        %v2084 = vmax.f32 %v1956, 0.0
        %v2085 = vmax.f32 %v1957, 0.0
        %v2086 = vmax.f32 %v1958, 0.0
        %v2087 = vmax.f32 %v1959, 0.0
        %v2088 = vmax.f32 %v1960, 0.0
        %v2089 = vmax.f32 %v1961, 0.0
        %v2090 = vmax.f32 %v1962, 0.0
        %v2091 = vmax.f32 %v1963, 0.0
        %v2092 = vmax.f32 %v1964, 0.0
        %v2093 = vmax.f32 %v1965, 0.0
        %v2094 = vmax.f32 %v1966, 0.0
        %v2095 = vmax.f32 %v1967, 0.0
        %v2096 = vmax.f32 %v1968, 0.0
        %v2097 = vmax.f32 %v1969, 0.0
        %v2098 = vmax.f32 %v1970, 0.0
        %v2099 = vmax.f32 %v1971, 0.0
        %v2100 = vmax.f32 %v1972, 0.0
        %v2101 = vmax.f32 %v1973, 0.0
        %v2102 = vmax.f32 %v1974, 0.0
        %v2103 = vmax.f32 %v1975, 0.0
        %v2104 = vmax.f32 %v1976, 0.0
        %v2105 = vmax.f32 %v1977, 0.0
        %v2106 = vmax.f32 %v1978, 0.0
        %v2107 = vmax.f32 %v1979, 0.0
        %v2108 = vmax.f32 %v1980, 0.0
        %v2109 = vmax.f32 %v1981, 0.0
        %v2110 = vmax.f32 %v1982, 0.0
        %v2111 = vmax.f32 %v1983, 0.0
        %v2112 = vmax.f32 %v1984, 0.0
        %v2113 = vmax.f32 %v1985, 0.0
        %v2114 = vmax.f32 %v1986, 0.0
        %v2115 = vmax.f32 %v1987, 0.0
        %v2116 = vmax.f32 %v1988, 0.0
        %v2117 = vmax.f32 %v1989, 0.0
        %v2118 = vmax.f32 %v1990, 0.0
        %v2119 = vmax.f32 %v1991, 0.0
        %v2120 = vmax.f32 %v1992, 0.0
        %v2121 = vmax.f32 %v1993, 0.0
        %v2122 = vmax.f32 %v1994, 0.0
        %v2123 = vmax.f32 %v1995, 0.0
        %v2124 = vmax.f32 %v1996, 0.0
        %v2125 = vmax.f32 %v1997, 0.0
        %v2126 = vmax.f32 %v1998, 0.0
        %v2127 = vmax.f32 %v1999, 0.0
        %v2128 = vmax.f32 %v2000, 0.0
        %v2129 = vmax.f32 %v2001, 0.0
        %v2130 = vmax.f32 %v2002, 0.0
        %v2131 = vmax.f32 %v2003, 0.0
        %v2132 = vmax.f32 %v2004, 0.0
        %v2133 = vmax.f32 %v2005, 0.0
        %v2134 = vmax.f32 %v2006, 0.0
        %v2135 = vmax.f32 %v2007, 0.0
        %v2136 = vmax.f32 %v2008, 0.0
        %v2137 = vmax.f32 %v2009, 0.0
        %v2138 = vmax.f32 %v2010, 0.0
        %v2139 = vmax.f32 %v2011, 0.0
        %v2140 = vmax.f32 %v2012, 0.0
        %v2141 = vmax.f32 %v2013, 0.0
        %v2142 = vmax.f32 %v2014, 0.0
        %v2143 = vmax.f32 %v2015, 0.0
        %v2144 = vmax.f32 %v2016, 0.0
        %v2145 = vmax.f32 %v2017, 0.0
        %v2146 = vmax.f32 %v2018, 0.0
        %v2147 = vmax.f32 %v2019, 0.0
        %v2148 = vmax.f32 %v2020, 0.0
        %v2149 = vmax.f32 %v2021, 0.0
        %v2150 = vmax.f32 %v2022, 0.0
        %v2151 = vmax.f32 %v2023, 0.0
        %v2152 = vmax.f32 %v2024, 0.0
        %v2153 = vmax.f32 %v2025, 0.0
        %v2154 = vmax.f32 %v2026, 0.0
        %v2155 = vmax.f32 %v2027, 0.0
        %v2156 = vmax.f32 %v2028, 0.0
        %v2157 = vmax.f32 %v2029, 0.0
        %v2158 = vmax.f32 %v2030, 0.0
        %v2159 = vmax.f32 %v2031, 0.0
        %v2160 = vmax.f32 %v2032, 0.0
        %v2161 = vmax.f32 %v2033, 0.0
        %v2162 = vmax.f32 %v2034, 0.0
        %v2163 = vmax.f32 %v2035, 0.0
        %v2164 = vmax.f32 %v2036, 0.0
        %v2165 = vmax.f32 %v2037, 0.0
        %v2166 = vmax.f32 %v2038, 0.0
        %v2167 = vmax.f32 %v2039, 0.0
        %v2168 = vmax.f32 %v2040, 0.0
        %v2169 = vmax.f32 %v2041, 0.0
        %v2170 = vmax.f32 %v2042, 0.0
        %v2171 = vmax.f32 %v2043, 0.0
        %v2172 = vmax.f32 %v2044, 0.0
        %v2173 = vmax.f32 %v2045, 0.0
        %v2174 = vmax.f32 %v2046, 0.0
        %v2303 = vcombine.high %v2047, %v2047
        %v2304 = vcombine.high %v2048, %v2048
        %v2305 = vcombine.high %v2049, %v2049
        %v2306 = vcombine.high %v2050, %v2050
        %v2307 = vcombine.high %v2051, %v2051
        %v2308 = vcombine.high %v2052, %v2052
        %v2309 = vcombine.high %v2053, %v2053
        %v2310 = vcombine.high %v2054, %v2054
        %v2311 = vcombine.high %v2055, %v2055
        %v2312 = vcombine.high %v2056, %v2056
        %v2313 = vcombine.high %v2057, %v2057
        %v2314 = vcombine.high %v2058, %v2058
        %v2315 = vcombine.high %v2059, %v2059
        %v2316 = vcombine.high %v2060, %v2060
        %v2317 = vcombine.high %v2061, %v2061
        %v2318 = vcombine.high %v2062, %v2062
        %v2319 = vcombine.high %v2063, %v2063
        %v2320 = vcombine.high %v2064, %v2064
        %v2321 = vcombine.high %v2065, %v2065
        %v2322 = vcombine.high %v2066, %v2066
        %v2323 = vcombine.high %v2067, %v2067
        %v2324 = vcombine.high %v2068, %v2068
        %v2325 = vcombine.high %v2069, %v2069
        %v2326 = vcombine.high %v2070, %v2070
        %v2327 = vcombine.high %v2071, %v2071
        %v2328 = vcombine.high %v2072, %v2072
        %v2329 = vcombine.high %v2073, %v2073
        %v2330 = vcombine.high %v2074, %v2074
        %v2331 = vcombine.high %v2075, %v2075
        %v2332 = vcombine.high %v2076, %v2076
        %v2333 = vcombine.high %v2077, %v2077
        %v2334 = vcombine.high %v2078, %v2078
        %v2335 = vcombine.high %v2079, %v2079
        %v2336 = vcombine.high %v2080, %v2080
        %v2337 = vcombine.high %v2081, %v2081
        %v2338 = vcombine.high %v2082, %v2082
        %v2339 = vcombine.high %v2083, %v2083
        %v2340 = vcombine.high %v2084, %v2084
        %v2341 = vcombine.high %v2085, %v2085
        %v2342 = vcombine.high %v2086, %v2086
        %v2343 = vcombine.high %v2087, %v2087
        %v2344 = vcombine.high %v2088, %v2088
        %v2345 = vcombine.high %v2089, %v2089
        %v2346 = vcombine.high %v2090, %v2090
        %v2347 = vcombine.high %v2091, %v2091
        %v2348 = vcombine.high %v2092, %v2092
        %v2349 = vcombine.high %v2093, %v2093
        %v2350 = vcombine.high %v2094, %v2094
        %v2351 = vcombine.high %v2095, %v2095
        %v2352 = vcombine.high %v2096, %v2096
        %v2353 = vcombine.high %v2097, %v2097
        %v2354 = vcombine.high %v2098, %v2098
        %v2355 = vcombine.high %v2099, %v2099
        %v2356 = vcombine.high %v2100, %v2100
        %v2357 = vcombine.high %v2101, %v2101
        %v2358 = vcombine.high %v2102, %v2102
        %v2359 = vcombine.high %v2103, %v2103
        %v2360 = vcombine.high %v2104, %v2104
        %v2361 = vcombine.high %v2105, %v2105
        %v2362 = vcombine.high %v2106, %v2106
        %v2363 = vcombine.high %v2107, %v2107
        %v2364 = vcombine.high %v2108, %v2108
        %v2365 = vcombine.high %v2109, %v2109
        %v2366 = vcombine.high %v2110, %v2110
        %v2367 = vcombine.high %v2111, %v2111
        %v2368 = vcombine.high %v2112, %v2112
        %v2369 = vcombine.high %v2113, %v2113
        %v2370 = vcombine.high %v2114, %v2114
        %v2371 = vcombine.high %v2115, %v2115
        %v2372 = vcombine.high %v2116, %v2116
        %v2373 = vcombine.high %v2117, %v2117
        %v2374 = vcombine.high %v2118, %v2118
        %v2375 = vcombine.high %v2119, %v2119
        %v2376 = vcombine.high %v2120, %v2120
        %v2377 = vcombine.high %v2121, %v2121
        %v2378 = vcombine.high %v2122, %v2122
        %v2379 = vcombine.high %v2123, %v2123
        %v2380 = vcombine.high %v2124, %v2124
        %v2381 = vcombine.high %v2125, %v2125
        %v2382 = vcombine.high %v2126, %v2126
        %v2383 = vcombine.high %v2127, %v2127
        %v2384 = vcombine.high %v2128, %v2128
        %v2385 = vcombine.high %v2129, %v2129
        %v2386 = vcombine.high %v2130, %v2130
        %v2387 = vcombine.high %v2131, %v2131
        %v2388 = vcombine.high %v2132, %v2132
        %v2389 = vcombine.high %v2133, %v2133
        %v2390 = vcombine.high %v2134, %v2134
        %v2391 = vcombine.high %v2135, %v2135
        %v2392 = vcombine.high %v2136, %v2136
        %v2393 = vcombine.high %v2137, %v2137
        %v2394 = vcombine.high %v2138, %v2138
        %v2395 = vcombine.high %v2139, %v2139
        %v2396 = vcombine.high %v2140, %v2140
        %v2397 = vcombine.high %v2141, %v2141
        %v2398 = vcombine.high %v2142, %v2142
        %v2399 = vcombine.high %v2143, %v2143
        %v2400 = vcombine.high %v2144, %v2144
        %v2401 = vcombine.high %v2145, %v2145
        %v2402 = vcombine.high %v2146, %v2146
        %v2403 = vcombine.high %v2147, %v2147
        %v2404 = vcombine.high %v2148, %v2148
        %v2405 = vcombine.high %v2149, %v2149
        %v2406 = vcombine.high %v2150, %v2150
        %v2407 = vcombine.high %v2151, %v2151
        %v2408 = vcombine.high %v2152, %v2152
        %v2409 = vcombine.high %v2153, %v2153
        %v2410 = vcombine.high %v2154, %v2154
        %v2411 = vcombine.high %v2155, %v2155
        %v2412 = vcombine.high %v2156, %v2156
        %v2413 = vcombine.high %v2157, %v2157
        %v2414 = vcombine.high %v2158, %v2158
        %v2415 = vcombine.high %v2159, %v2159
        %v2416 = vcombine.high %v2160, %v2160
        %v2417 = vcombine.high %v2161, %v2161
        %v2418 = vcombine.high %v2162, %v2162
        %v2419 = vcombine.high %v2163, %v2163
        %v2420 = vcombine.high %v2164, %v2164
        %v2421 = vcombine.high %v2165, %v2165
        %v2422 = vcombine.high %v2166, %v2166
        %v2423 = vcombine.high %v2167, %v2167
        %v2424 = vcombine.high %v2168, %v2168
        %v2425 = vcombine.high %v2169, %v2169
        %v2426 = vcombine.high %v2170, %v2170
        %v2427 = vcombine.high %v2171, %v2171
        %v2428 = vcombine.high %v2172, %v2172
        %v2429 = vcombine.high %v2173, %v2173
        %v2430 = vcombine.high %v2174, %v2174
        %vm2559 = vcmask 519168
        %v2560 = vsel %vm2559, %v2047, -inf
        %v2561 = vrot.slane %v2560, 4
        %v2562 = vmax.f32 %v2560, %v2561
        %v2563 = vrot.slane %v2562, 2
        %v2564 = vmax.f32 %v2562, %v2563
        %v2565 = vrot.slane %v2564, 1
        %v2566 = vmax.f32 %v2564, %v2565
        %v2567 = vsel %vm2559, %v2303, -inf
        %v2568 = vrot.slane %v2567, 4
        %v2569 = vmax.f32 %v2567, %v2568
        %v2570 = vrot.slane %v2569, 2
        %v2571 = vmax.f32 %v2569, %v2570
        %v2572 = vrot.slane %v2571, 1
        %v2573 = vmax.f32 %v2571, %v2572
        %v2574 = vsel %vm2559, %v2048, -inf
        %v2575 = vrot.slane %v2574, 4
        %v2576 = vmax.f32 %v2574, %v2575
        %v2577 = vrot.slane %v2576, 2
        %v2578 = vmax.f32 %v2576, %v2577
        %v2579 = vrot.slane %v2578, 1
        %v2580 = vmax.f32 %v2578, %v2579
        %v2581 = vsel %vm2559, %v2304, -inf
        %v2582 = vrot.slane %v2581, 4
        %v2583 = vmax.f32 %v2581, %v2582
        %v2584 = vrot.slane %v2583, 2
        %v2585 = vmax.f32 %v2583, %v2584
        %v2586 = vrot.slane %v2585, 1
        %v2587 = vmax.f32 %v2585, %v2586
        %v2588 = vsel %vm2559, %v2049, -inf
        %v2589 = vrot.slane %v2588, 4
        %v2590 = vmax.f32 %v2588, %v2589
        %v2591 = vrot.slane %v2590, 2
        %v2592 = vmax.f32 %v2590, %v2591
        %v2593 = vrot.slane %v2592, 1
        %v2594 = vmax.f32 %v2592, %v2593
        %v2595 = vsel %vm2559, %v2305, -inf
        %v2596 = vrot.slane %v2595, 4
        %v2597 = vmax.f32 %v2595, %v2596
        %v2598 = vrot.slane %v2597, 2
        %v2599 = vmax.f32 %v2597, %v2598
        %v2600 = vrot.slane %v2599, 1
        %v2601 = vmax.f32 %v2599, %v2600
        %v2602 = vsel %vm2559, %v2050, -inf
        %v2603 = vrot.slane %v2602, 4
        %v2604 = vmax.f32 %v2602, %v2603
        %v2605 = vrot.slane %v2604, 2
        %v2606 = vmax.f32 %v2604, %v2605
        %v2607 = vrot.slane %v2606, 1
        %v2608 = vmax.f32 %v2606, %v2607
        %v2609 = vsel %vm2559, %v2306, -inf
        %v2610 = vrot.slane %v2609, 4
        %v2611 = vmax.f32 %v2609, %v2610
        %v2612 = vrot.slane %v2611, 2
        %v2613 = vmax.f32 %v2611, %v2612
        %v2614 = vrot.slane %v2613, 1
        %v2615 = vmax.f32 %v2613, %v2614
        %v2616 = vsel %vm2559, %v2051, -inf
        %v2617 = vrot.slane %v2616, 4
        %v2618 = vmax.f32 %v2616, %v2617
        %v2619 = vrot.slane %v2618, 2
        %v2620 = vmax.f32 %v2618, %v2619
        %v2621 = vrot.slane %v2620, 1
        %v2622 = vmax.f32 %v2620, %v2621
        %v2623 = vsel %vm2559, %v2307, -inf
        %v2624 = vrot.slane %v2623, 4
        %v2625 = vmax.f32 %v2623, %v2624
        %v2626 = vrot.slane %v2625, 2
        %v2627 = vmax.f32 %v2625, %v2626
        %v2628 = vrot.slane %v2627, 1
        %v2629 = vmax.f32 %v2627, %v2628
        %v2630 = vsel %vm2559, %v2052, -inf
        %v2631 = vrot.slane %v2630, 4
        %v2632 = vmax.f32 %v2630, %v2631
        %v2633 = vrot.slane %v2632, 2
        %v2634 = vmax.f32 %v2632, %v2633
        %v2635 = vrot.slane %v2634, 1
        %v2636 = vmax.f32 %v2634, %v2635
        %v2637 = vsel %vm2559, %v2308, -inf
        %v2638 = vrot.slane %v2637, 4
        %v2639 = vmax.f32 %v2637, %v2638
        %v2640 = vrot.slane %v2639, 2
        %v2641 = vmax.f32 %v2639, %v2640
        %v2642 = vrot.slane %v2641, 1
        %v2643 = vmax.f32 %v2641, %v2642
        %v2644 = vsel %vm2559, %v2053, -inf
        %v2645 = vrot.slane %v2644, 4
        %v2646 = vmax.f32 %v2644, %v2645
        %v2647 = vrot.slane %v2646, 2
        %v2648 = vmax.f32 %v2646, %v2647
        %v2649 = vrot.slane %v2648, 1
        %v2650 = vmax.f32 %v2648, %v2649
        %v2651 = vsel %vm2559, %v2309, -inf
        %v2652 = vrot.slane %v2651, 4
        %v2653 = vmax.f32 %v2651, %v2652
        %v2654 = vrot.slane %v2653, 2
        %v2655 = vmax.f32 %v2653, %v2654
        %v2656 = vrot.slane %v2655, 1
        %v2657 = vmax.f32 %v2655, %v2656
        %v2658 = vsel %vm2559, %v2054, -inf
        %v2659 = vrot.slane %v2658, 4
        %v2660 = vmax.f32 %v2658, %v2659
        %v2661 = vrot.slane %v2660, 2
        %v2662 = vmax.f32 %v2660, %v2661
        %v2663 = vrot.slane %v2662, 1
        %v2664 = vmax.f32 %v2662, %v2663
        %v2665 = vsel %vm2559, %v2310, -inf
        %v2666 = vrot.slane %v2665, 4
        %v2667 = vmax.f32 %v2665, %v2666
        %v2668 = vrot.slane %v2667, 2
        %v2669 = vmax.f32 %v2667, %v2668
        %v2670 = vrot.slane %v2669, 1
        %v2671 = vmax.f32 %v2669, %v2670
        %v2672 = vsel %vm2559, %v2055, -inf
        %v2673 = vrot.slane %v2672, 4
        %v2674 = vmax.f32 %v2672, %v2673
        %v2675 = vrot.slane %v2674, 2
        %v2676 = vmax.f32 %v2674, %v2675
        %v2677 = vrot.slane %v2676, 1
        %v2678 = vmax.f32 %v2676, %v2677
        %v2679 = vsel %vm2559, %v2311, -inf
        %v2680 = vrot.slane %v2679, 4
        %v2681 = vmax.f32 %v2679, %v2680
        %v2682 = vrot.slane %v2681, 2
        %v2683 = vmax.f32 %v2681, %v2682
        %v2684 = vrot.slane %v2683, 1
        %v2685 = vmax.f32 %v2683, %v2684
        %v2686 = vsel %vm2559, %v2056, -inf
        %v2687 = vrot.slane %v2686, 4
        %v2688 = vmax.f32 %v2686, %v2687
        %v2689 = vrot.slane %v2688, 2
        %v2690 = vmax.f32 %v2688, %v2689
        %v2691 = vrot.slane %v2690, 1
        %v2692 = vmax.f32 %v2690, %v2691
        %v2693 = vsel %vm2559, %v2312, -inf
        %v2694 = vrot.slane %v2693, 4
        %v2695 = vmax.f32 %v2693, %v2694
        %v2696 = vrot.slane %v2695, 2
        %v2697 = vmax.f32 %v2695, %v2696
        %v2698 = vrot.slane %v2697, 1
        %v2699 = vmax.f32 %v2697, %v2698
        %v2700 = vsel %vm2559, %v2057, -inf
        %v2701 = vrot.slane %v2700, 4
        %v2702 = vmax.f32 %v2700, %v2701
        %v2703 = vrot.slane %v2702, 2
        %v2704 = vmax.f32 %v2702, %v2703
        %v2705 = vrot.slane %v2704, 1
        %v2706 = vmax.f32 %v2704, %v2705
        %v2707 = vsel %vm2559, %v2313, -inf
        %v2708 = vrot.slane %v2707, 4
        %v2709 = vmax.f32 %v2707, %v2708
        %v2710 = vrot.slane %v2709, 2
        %v2711 = vmax.f32 %v2709, %v2710
        %v2712 = vrot.slane %v2711, 1
        %v2713 = vmax.f32 %v2711, %v2712
        %v2714 = vsel %vm2559, %v2058, -inf
        %v2715 = vrot.slane %v2714, 4
        %v2716 = vmax.f32 %v2714, %v2715
        %v2717 = vrot.slane %v2716, 2
        %v2718 = vmax.f32 %v2716, %v2717
        %v2719 = vrot.slane %v2718, 1
        %v2720 = vmax.f32 %v2718, %v2719
        %v2721 = vsel %vm2559, %v2314, -inf
        %v2722 = vrot.slane %v2721, 4
        %v2723 = vmax.f32 %v2721, %v2722
        %v2724 = vrot.slane %v2723, 2
        %v2725 = vmax.f32 %v2723, %v2724
        %v2726 = vrot.slane %v2725, 1
        %v2727 = vmax.f32 %v2725, %v2726
        %v2728 = vsel %vm2559, %v2059, -inf
        %v2729 = vrot.slane %v2728, 4
        %v2730 = vmax.f32 %v2728, %v2729
        %v2731 = vrot.slane %v2730, 2
        %v2732 = vmax.f32 %v2730, %v2731
        %v2733 = vrot.slane %v2732, 1
        %v2734 = vmax.f32 %v2732, %v2733
        %v2735 = vsel %vm2559, %v2315, -inf
        %v2736 = vrot.slane %v2735, 4
        %v2737 = vmax.f32 %v2735, %v2736
        %v2738 = vrot.slane %v2737, 2
        %v2739 = vmax.f32 %v2737, %v2738
        %v2740 = vrot.slane %v2739, 1
        %v2741 = vmax.f32 %v2739, %v2740
        %v2742 = vsel %vm2559, %v2060, -inf
        %v2743 = vrot.slane %v2742, 4
        %v2744 = vmax.f32 %v2742, %v2743
        %v2745 = vrot.slane %v2744, 2
        %v2746 = vmax.f32 %v2744, %v2745
        %v2747 = vrot.slane %v2746, 1
        %v2748 = vmax.f32 %v2746, %v2747
        %v2749 = vsel %vm2559, %v2316, -inf
        %v2750 = vrot.slane %v2749, 4
        %v2751 = vmax.f32 %v2749, %v2750
        %v2752 = vrot.slane %v2751, 2
        %v2753 = vmax.f32 %v2751, %v2752
        %v2754 = vrot.slane %v2753, 1
        %v2755 = vmax.f32 %v2753, %v2754
        %v2756 = vsel %vm2559, %v2061, -inf
        %v2757 = vrot.slane %v2756, 4
        %v2758 = vmax.f32 %v2756, %v2757
        %v2759 = vrot.slane %v2758, 2
        %v2760 = vmax.f32 %v2758, %v2759
        %v2761 = vrot.slane %v2760, 1
        %v2762 = vmax.f32 %v2760, %v2761
        %v2763 = vsel %vm2559, %v2317, -inf
        %v2764 = vrot.slane %v2763, 4
        %v2765 = vmax.f32 %v2763, %v2764
        %v2766 = vrot.slane %v2765, 2
        %v2767 = vmax.f32 %v2765, %v2766
        %v2768 = vrot.slane %v2767, 1
        %v2769 = vmax.f32 %v2767, %v2768
        %v2770 = vsel %vm2559, %v2062, -inf
        %v2771 = vrot.slane %v2770, 4
        %v2772 = vmax.f32 %v2770, %v2771
        %v2773 = vrot.slane %v2772, 2
        %v2774 = vmax.f32 %v2772, %v2773
        %v2775 = vrot.slane %v2774, 1
        %v2776 = vmax.f32 %v2774, %v2775
        %v2777 = vsel %vm2559, %v2318, -inf
        %v2778 = vrot.slane %v2777, 4
        %v2779 = vmax.f32 %v2777, %v2778
        %v2780 = vrot.slane %v2779, 2
        %v2781 = vmax.f32 %v2779, %v2780
        %v2782 = vrot.slane %v2781, 1
        %v2783 = vmax.f32 %v2781, %v2782
        %v2784 = vsel %vm2559, %v2063, -inf
        %v2785 = vrot.slane %v2784, 4
        %v2786 = vmax.f32 %v2784, %v2785
        %v2787 = vrot.slane %v2786, 2
        %v2788 = vmax.f32 %v2786, %v2787
        %v2789 = vrot.slane %v2788, 1
        %v2790 = vmax.f32 %v2788, %v2789
        %v2791 = vsel %vm2559, %v2319, -inf
        %v2792 = vrot.slane %v2791, 4
        %v2793 = vmax.f32 %v2791, %v2792
        %v2794 = vrot.slane %v2793, 2
        %v2795 = vmax.f32 %v2793, %v2794
        %v2796 = vrot.slane %v2795, 1
        %v2797 = vmax.f32 %v2795, %v2796
        %v2798 = vsel %vm2559, %v2064, -inf
        %v2799 = vrot.slane %v2798, 4
        %v2800 = vmax.f32 %v2798, %v2799
        %v2801 = vrot.slane %v2800, 2
        %v2802 = vmax.f32 %v2800, %v2801
        %v2803 = vrot.slane %v2802, 1
        %v2804 = vmax.f32 %v2802, %v2803
        %v2805 = vsel %vm2559, %v2320, -inf
        %v2806 = vrot.slane %v2805, 4
        %v2807 = vmax.f32 %v2805, %v2806
        %v2808 = vrot.slane %v2807, 2
        %v2809 = vmax.f32 %v2807, %v2808
        %v2810 = vrot.slane %v2809, 1
        %v2811 = vmax.f32 %v2809, %v2810
        %v2812 = vsel %vm2559, %v2065, -inf
        %v2813 = vrot.slane %v2812, 4
        %v2814 = vmax.f32 %v2812, %v2813
        %v2815 = vrot.slane %v2814, 2
        %v2816 = vmax.f32 %v2814, %v2815
        %v2817 = vrot.slane %v2816, 1
        %v2818 = vmax.f32 %v2816, %v2817
        %v2819 = vsel %vm2559, %v2321, -inf
        %v2820 = vrot.slane %v2819, 4
        %v2821 = vmax.f32 %v2819, %v2820
        %v2822 = vrot.slane %v2821, 2
        %v2823 = vmax.f32 %v2821, %v2822
        %v2824 = vrot.slane %v2823, 1
        %v2825 = vmax.f32 %v2823, %v2824
        %v2826 = vsel %vm2559, %v2066, -inf
        %v2827 = vrot.slane %v2826, 4
        %v2828 = vmax.f32 %v2826, %v2827
        %v2829 = vrot.slane %v2828, 2
        %v2830 = vmax.f32 %v2828, %v2829
        %v2831 = vrot.slane %v2830, 1
        %v2832 = vmax.f32 %v2830, %v2831
        %v2833 = vsel %vm2559, %v2322, -inf
        %v2834 = vrot.slane %v2833, 4
        %v2835 = vmax.f32 %v2833, %v2834
        %v2836 = vrot.slane %v2835, 2
        %v2837 = vmax.f32 %v2835, %v2836
        %v2838 = vrot.slane %v2837, 1
        %v2839 = vmax.f32 %v2837, %v2838
        %v2840 = vsel %vm2559, %v2067, -inf
        %v2841 = vrot.slane %v2840, 4
        %v2842 = vmax.f32 %v2840, %v2841
        %v2843 = vrot.slane %v2842, 2
        %v2844 = vmax.f32 %v2842, %v2843
        %v2845 = vrot.slane %v2844, 1
        %v2846 = vmax.f32 %v2844, %v2845
        %v2847 = vsel %vm2559, %v2323, -inf
        %v2848 = vrot.slane %v2847, 4
        %v2849 = vmax.f32 %v2847, %v2848
        %v2850 = vrot.slane %v2849, 2
        %v2851 = vmax.f32 %v2849, %v2850
        %v2852 = vrot.slane %v2851, 1
        %v2853 = vmax.f32 %v2851, %v2852
        %v2854 = vsel %vm2559, %v2068, -inf
        %v2855 = vrot.slane %v2854, 4
        %v2856 = vmax.f32 %v2854, %v2855
        %v2857 = vrot.slane %v2856, 2
        %v2858 = vmax.f32 %v2856, %v2857
        %v2859 = vrot.slane %v2858, 1
        %v2860 = vmax.f32 %v2858, %v2859
        %v2861 = vsel %vm2559, %v2324, -inf
        %v2862 = vrot.slane %v2861, 4
        %v2863 = vmax.f32 %v2861, %v2862
        %v2864 = vrot.slane %v2863, 2
        %v2865 = vmax.f32 %v2863, %v2864
        %v2866 = vrot.slane %v2865, 1
        %v2867 = vmax.f32 %v2865, %v2866
        %v2868 = vsel %vm2559, %v2069, -inf
        %v2869 = vrot.slane %v2868, 4
        %v2870 = vmax.f32 %v2868, %v2869
        %v2871 = vrot.slane %v2870, 2
        %v2872 = vmax.f32 %v2870, %v2871
        %v2873 = vrot.slane %v2872, 1
        %v2874 = vmax.f32 %v2872, %v2873
        %v2875 = vsel %vm2559, %v2325, -inf
        %v2876 = vrot.slane %v2875, 4
        %v2877 = vmax.f32 %v2875, %v2876
        %v2878 = vrot.slane %v2877, 2
        %v2879 = vmax.f32 %v2877, %v2878
        %v2880 = vrot.slane %v2879, 1
        %v2881 = vmax.f32 %v2879, %v2880
        %v2882 = vsel %vm2559, %v2070, -inf
        %v2883 = vrot.slane %v2882, 4
        %v2884 = vmax.f32 %v2882, %v2883
        %v2885 = vrot.slane %v2884, 2
        %v2886 = vmax.f32 %v2884, %v2885
        %v2887 = vrot.slane %v2886, 1
        %v2888 = vmax.f32 %v2886, %v2887
        %v2889 = vsel %vm2559, %v2326, -inf
        %v2890 = vrot.slane %v2889, 4
        %v2891 = vmax.f32 %v2889, %v2890
        %v2892 = vrot.slane %v2891, 2
        %v2893 = vmax.f32 %v2891, %v2892
        %v2894 = vrot.slane %v2893, 1
        %v2895 = vmax.f32 %v2893, %v2894
        %v2896 = vsel %vm2559, %v2071, -inf
        %v2897 = vrot.slane %v2896, 4
        %v2898 = vmax.f32 %v2896, %v2897
        %v2899 = vrot.slane %v2898, 2
        %v2900 = vmax.f32 %v2898, %v2899
        %v2901 = vrot.slane %v2900, 1
        %v2902 = vmax.f32 %v2900, %v2901
        %v2903 = vsel %vm2559, %v2327, -inf
        %v2904 = vrot.slane %v2903, 4
        %v2905 = vmax.f32 %v2903, %v2904
        %v2906 = vrot.slane %v2905, 2
        %v2907 = vmax.f32 %v2905, %v2906
        %v2908 = vrot.slane %v2907, 1
        %v2909 = vmax.f32 %v2907, %v2908
        %v2910 = vsel %vm2559, %v2072, -inf
        %v2911 = vrot.slane %v2910, 4
        %v2912 = vmax.f32 %v2910, %v2911
        %v2913 = vrot.slane %v2912, 2
        %v2914 = vmax.f32 %v2912, %v2913
        %v2915 = vrot.slane %v2914, 1
        %v2916 = vmax.f32 %v2914, %v2915
        %v2917 = vsel %vm2559, %v2328, -inf
        %v2918 = vrot.slane %v2917, 4
        %v2919 = vmax.f32 %v2917, %v2918
        %v2920 = vrot.slane %v2919, 2
        %v2921 = vmax.f32 %v2919, %v2920
        %v2922 = vrot.slane %v2921, 1
        %v2923 = vmax.f32 %v2921, %v2922
        %v2924 = vsel %vm2559, %v2073, -inf
        %v2925 = vrot.slane %v2924, 4
        %v2926 = vmax.f32 %v2924, %v2925
        %v2927 = vrot.slane %v2926, 2
        %v2928 = vmax.f32 %v2926, %v2927
        %v2929 = vrot.slane %v2928, 1
        %v2930 = vmax.f32 %v2928, %v2929
        %v2931 = vsel %vm2559, %v2329, -inf
        %v2932 = vrot.slane %v2931, 4
        %v2933 = vmax.f32 %v2931, %v2932
        %v2934 = vrot.slane %v2933, 2
        %v2935 = vmax.f32 %v2933, %v2934
        %v2936 = vrot.slane %v2935, 1
        %v2937 = vmax.f32 %v2935, %v2936
        %v2938 = vsel %vm2559, %v2074, -inf
        %v2939 = vrot.slane %v2938, 4
        %v2940 = vmax.f32 %v2938, %v2939
        %v2941 = vrot.slane %v2940, 2
        %v2942 = vmax.f32 %v2940, %v2941
        %v2943 = vrot.slane %v2942, 1
        %v2944 = vmax.f32 %v2942, %v2943
        %v2945 = vsel %vm2559, %v2330, -inf
        %v2946 = vrot.slane %v2945, 4
        %v2947 = vmax.f32 %v2945, %v2946
        %v2948 = vrot.slane %v2947, 2
        %v2949 = vmax.f32 %v2947, %v2948
        %v2950 = vrot.slane %v2949, 1
        %v2951 = vmax.f32 %v2949, %v2950
        %v2952 = vsel %vm2559, %v2075, -inf
        %v2953 = vrot.slane %v2952, 4
        %v2954 = vmax.f32 %v2952, %v2953
        %v2955 = vrot.slane %v2954, 2
        %v2956 = vmax.f32 %v2954, %v2955
        %v2957 = vrot.slane %v2956, 1
        %v2958 = vmax.f32 %v2956, %v2957
        %v2959 = vsel %vm2559, %v2331, -inf
        %v2960 = vrot.slane %v2959, 4
        %v2961 = vmax.f32 %v2959, %v2960
        %v2962 = vrot.slane %v2961, 2
        %v2963 = vmax.f32 %v2961, %v2962
        %v2964 = vrot.slane %v2963, 1
        %v2965 = vmax.f32 %v2963, %v2964
        %v2966 = vsel %vm2559, %v2076, -inf
        %v2967 = vrot.slane %v2966, 4
        %v2968 = vmax.f32 %v2966, %v2967
        %v2969 = vrot.slane %v2968, 2
        %v2970 = vmax.f32 %v2968, %v2969
        %v2971 = vrot.slane %v2970, 1
        %v2972 = vmax.f32 %v2970, %v2971
        %v2973 = vsel %vm2559, %v2332, -inf
        %v2974 = vrot.slane %v2973, 4
        %v2975 = vmax.f32 %v2973, %v2974
        %v2976 = vrot.slane %v2975, 2
        %v2977 = vmax.f32 %v2975, %v2976
        %v2978 = vrot.slane %v2977, 1
        %v2979 = vmax.f32 %v2977, %v2978
        %v2980 = vsel %vm2559, %v2077, -inf
        %v2981 = vrot.slane %v2980, 4
        %v2982 = vmax.f32 %v2980, %v2981
        %v2983 = vrot.slane %v2982, 2
        %v2984 = vmax.f32 %v2982, %v2983
        %v2985 = vrot.slane %v2984, 1
        %v2986 = vmax.f32 %v2984, %v2985
        %v2987 = vsel %vm2559, %v2333, -inf
        %v2988 = vrot.slane %v2987, 4
        %v2989 = vmax.f32 %v2987, %v2988
        %v2990 = vrot.slane %v2989, 2
        %v2991 = vmax.f32 %v2989, %v2990
        %v2992 = vrot.slane %v2991, 1
        %v2993 = vmax.f32 %v2991, %v2992
        %v2994 = vsel %vm2559, %v2078, -inf
        %v2995 = vrot.slane %v2994, 4
        %v2996 = vmax.f32 %v2994, %v2995
        %v2997 = vrot.slane %v2996, 2
        %v2998 = vmax.f32 %v2996, %v2997
        %v2999 = vrot.slane %v2998, 1
        %v3000 = vmax.f32 %v2998, %v2999
        %v3001 = vsel %vm2559, %v2334, -inf
        %v3002 = vrot.slane %v3001, 4
        %v3003 = vmax.f32 %v3001, %v3002
        %v3004 = vrot.slane %v3003, 2
        %v3005 = vmax.f32 %v3003, %v3004
        %v3006 = vrot.slane %v3005, 1
        %v3007 = vmax.f32 %v3005, %v3006
        %v3008 = vsel %vm2559, %v2079, -inf
        %v3009 = vrot.slane %v3008, 4
        %v3010 = vmax.f32 %v3008, %v3009
        %v3011 = vrot.slane %v3010, 2
        %v3012 = vmax.f32 %v3010, %v3011
        %v3013 = vrot.slane %v3012, 1
        %v3014 = vmax.f32 %v3012, %v3013
        %v3015 = vsel %vm2559, %v2335, -inf
        %v3016 = vrot.slane %v3015, 4
        %v3017 = vmax.f32 %v3015, %v3016
        %v3018 = vrot.slane %v3017, 2
        %v3019 = vmax.f32 %v3017, %v3018
        %v3020 = vrot.slane %v3019, 1
        %v3021 = vmax.f32 %v3019, %v3020
        %v3022 = vsel %vm2559, %v2080, -inf
        %v3023 = vrot.slane %v3022, 4
        %v3024 = vmax.f32 %v3022, %v3023
        %v3025 = vrot.slane %v3024, 2
        %v3026 = vmax.f32 %v3024, %v3025
        %v3027 = vrot.slane %v3026, 1
        %v3028 = vmax.f32 %v3026, %v3027
        %v3029 = vsel %vm2559, %v2336, -inf
        %v3030 = vrot.slane %v3029, 4
        %v3031 = vmax.f32 %v3029, %v3030
        %v3032 = vrot.slane %v3031, 2
        %v3033 = vmax.f32 %v3031, %v3032
        %v3034 = vrot.slane %v3033, 1
        %v3035 = vmax.f32 %v3033, %v3034
        %v3036 = vsel %vm2559, %v2081, -inf
        %v3037 = vrot.slane %v3036, 4
        %v3038 = vmax.f32 %v3036, %v3037
        %v3039 = vrot.slane %v3038, 2
        %v3040 = vmax.f32 %v3038, %v3039
        %v3041 = vrot.slane %v3040, 1
        %v3042 = vmax.f32 %v3040, %v3041
        %v3043 = vsel %vm2559, %v2337, -inf
        %v3044 = vrot.slane %v3043, 4
        %v3045 = vmax.f32 %v3043, %v3044
        %v3046 = vrot.slane %v3045, 2
        %v3047 = vmax.f32 %v3045, %v3046
        %v3048 = vrot.slane %v3047, 1
        %v3049 = vmax.f32 %v3047, %v3048
        %v3050 = vsel %vm2559, %v2082, -inf
        %v3051 = vrot.slane %v3050, 4
        %v3052 = vmax.f32 %v3050, %v3051
        %v3053 = vrot.slane %v3052, 2
        %v3054 = vmax.f32 %v3052, %v3053
        %v3055 = vrot.slane %v3054, 1
        %v3056 = vmax.f32 %v3054, %v3055
        %v3057 = vsel %vm2559, %v2338, -inf
        %v3058 = vrot.slane %v3057, 4
        %v3059 = vmax.f32 %v3057, %v3058
        %v3060 = vrot.slane %v3059, 2
        %v3061 = vmax.f32 %v3059, %v3060
        %v3062 = vrot.slane %v3061, 1
        %v3063 = vmax.f32 %v3061, %v3062
        %v3064 = vsel %vm2559, %v2083, -inf
        %v3065 = vrot.slane %v3064, 4
        %v3066 = vmax.f32 %v3064, %v3065
        %v3067 = vrot.slane %v3066, 2
        %v3068 = vmax.f32 %v3066, %v3067
        %v3069 = vrot.slane %v3068, 1
        %v3070 = vmax.f32 %v3068, %v3069
        %v3071 = vsel %vm2559, %v2339, -inf
        %v3072 = vrot.slane %v3071, 4
        %v3073 = vmax.f32 %v3071, %v3072
        %v3074 = vrot.slane %v3073, 2
        %v3075 = vmax.f32 %v3073, %v3074
        %v3076 = vrot.slane %v3075, 1
        %v3077 = vmax.f32 %v3075, %v3076
        %v3078 = vsel %vm2559, %v2084, -inf
        %v3079 = vrot.slane %v3078, 4
        %v3080 = vmax.f32 %v3078, %v3079
        %v3081 = vrot.slane %v3080, 2
        %v3082 = vmax.f32 %v3080, %v3081
        %v3083 = vrot.slane %v3082, 1
        %v3084 = vmax.f32 %v3082, %v3083
        %v3085 = vsel %vm2559, %v2340, -inf
        %v3086 = vrot.slane %v3085, 4
        %v3087 = vmax.f32 %v3085, %v3086
        %v3088 = vrot.slane %v3087, 2
        %v3089 = vmax.f32 %v3087, %v3088
        %v3090 = vrot.slane %v3089, 1
        %v3091 = vmax.f32 %v3089, %v3090
        %v3092 = vsel %vm2559, %v2085, -inf
        %v3093 = vrot.slane %v3092, 4
        %v3094 = vmax.f32 %v3092, %v3093
        %v3095 = vrot.slane %v3094, 2
        %v3096 = vmax.f32 %v3094, %v3095
        %v3097 = vrot.slane %v3096, 1
        %v3098 = vmax.f32 %v3096, %v3097
        %v3099 = vsel %vm2559, %v2341, -inf
        %v3100 = vrot.slane %v3099, 4
        %v3101 = vmax.f32 %v3099, %v3100
        %v3102 = vrot.slane %v3101, 2
        %v3103 = vmax.f32 %v3101, %v3102
        %v3104 = vrot.slane %v3103, 1
        %v3105 = vmax.f32 %v3103, %v3104
        %v3106 = vsel %vm2559, %v2086, -inf
        %v3107 = vrot.slane %v3106, 4
        %v3108 = vmax.f32 %v3106, %v3107
        %v3109 = vrot.slane %v3108, 2
        %v3110 = vmax.f32 %v3108, %v3109
        %v3111 = vrot.slane %v3110, 1
        %v3112 = vmax.f32 %v3110, %v3111
        %v3113 = vsel %vm2559, %v2342, -inf
        %v3114 = vrot.slane %v3113, 4
        %v3115 = vmax.f32 %v3113, %v3114
        %v3116 = vrot.slane %v3115, 2
        %v3117 = vmax.f32 %v3115, %v3116
        %v3118 = vrot.slane %v3117, 1
        %v3119 = vmax.f32 %v3117, %v3118
        %v3120 = vsel %vm2559, %v2087, -inf
        %v3121 = vrot.slane %v3120, 4
        %v3122 = vmax.f32 %v3120, %v3121
        %v3123 = vrot.slane %v3122, 2
        %v3124 = vmax.f32 %v3122, %v3123
        %v3125 = vrot.slane %v3124, 1
        %v3126 = vmax.f32 %v3124, %v3125
        %v3127 = vsel %vm2559, %v2343, -inf
        %v3128 = vrot.slane %v3127, 4
        %v3129 = vmax.f32 %v3127, %v3128
        %v3130 = vrot.slane %v3129, 2
        %v3131 = vmax.f32 %v3129, %v3130
        %v3132 = vrot.slane %v3131, 1
        %v3133 = vmax.f32 %v3131, %v3132
        %v3134 = vsel %vm2559, %v2088, -inf
        %v3135 = vrot.slane %v3134, 4
        %v3136 = vmax.f32 %v3134, %v3135
        %v3137 = vrot.slane %v3136, 2
        %v3138 = vmax.f32 %v3136, %v3137
        %v3139 = vrot.slane %v3138, 1
        %v3140 = vmax.f32 %v3138, %v3139
        %v3141 = vsel %vm2559, %v2344, -inf
        %v3142 = vrot.slane %v3141, 4
        %v3143 = vmax.f32 %v3141, %v3142
        %v3144 = vrot.slane %v3143, 2
        %v3145 = vmax.f32 %v3143, %v3144
        %v3146 = vrot.slane %v3145, 1
        %v3147 = vmax.f32 %v3145, %v3146
        %v3148 = vsel %vm2559, %v2089, -inf
        %v3149 = vrot.slane %v3148, 4
        %v3150 = vmax.f32 %v3148, %v3149
        %v3151 = vrot.slane %v3150, 2
        %v3152 = vmax.f32 %v3150, %v3151
        %v3153 = vrot.slane %v3152, 1
        %v3154 = vmax.f32 %v3152, %v3153
        %v3155 = vsel %vm2559, %v2345, -inf
        %v3156 = vrot.slane %v3155, 4
        %v3157 = vmax.f32 %v3155, %v3156
        %v3158 = vrot.slane %v3157, 2
        %v3159 = vmax.f32 %v3157, %v3158
        %v3160 = vrot.slane %v3159, 1
        %v3161 = vmax.f32 %v3159, %v3160
        %v3162 = vsel %vm2559, %v2090, -inf
        %v3163 = vrot.slane %v3162, 4
        %v3164 = vmax.f32 %v3162, %v3163
        %v3165 = vrot.slane %v3164, 2
        %v3166 = vmax.f32 %v3164, %v3165
        %v3167 = vrot.slane %v3166, 1
        %v3168 = vmax.f32 %v3166, %v3167
        %v3169 = vsel %vm2559, %v2346, -inf
        %v3170 = vrot.slane %v3169, 4
        %v3171 = vmax.f32 %v3169, %v3170
        %v3172 = vrot.slane %v3171, 2
        %v3173 = vmax.f32 %v3171, %v3172
        %v3174 = vrot.slane %v3173, 1
        %v3175 = vmax.f32 %v3173, %v3174
        %v3176 = vsel %vm2559, %v2091, -inf
        %v3177 = vrot.slane %v3176, 4
        %v3178 = vmax.f32 %v3176, %v3177
        %v3179 = vrot.slane %v3178, 2
        %v3180 = vmax.f32 %v3178, %v3179
        %v3181 = vrot.slane %v3180, 1
        %v3182 = vmax.f32 %v3180, %v3181
        %v3183 = vsel %vm2559, %v2347, -inf
        %v3184 = vrot.slane %v3183, 4
        %v3185 = vmax.f32 %v3183, %v3184
        %v3186 = vrot.slane %v3185, 2
        %v3187 = vmax.f32 %v3185, %v3186
        %v3188 = vrot.slane %v3187, 1
        %v3189 = vmax.f32 %v3187, %v3188
        %v3190 = vsel %vm2559, %v2092, -inf
        %v3191 = vrot.slane %v3190, 4
        %v3192 = vmax.f32 %v3190, %v3191
        %v3193 = vrot.slane %v3192, 2
        %v3194 = vmax.f32 %v3192, %v3193
        %v3195 = vrot.slane %v3194, 1
        %v3196 = vmax.f32 %v3194, %v3195
        %v3197 = vsel %vm2559, %v2348, -inf
        %v3198 = vrot.slane %v3197, 4
        %v3199 = vmax.f32 %v3197, %v3198
        %v3200 = vrot.slane %v3199, 2
        %v3201 = vmax.f32 %v3199, %v3200
        %v3202 = vrot.slane %v3201, 1
        %v3203 = vmax.f32 %v3201, %v3202
        %v3204 = vsel %vm2559, %v2093, -inf
        %v3205 = vrot.slane %v3204, 4
        %v3206 = vmax.f32 %v3204, %v3205
        %v3207 = vrot.slane %v3206, 2
        %v3208 = vmax.f32 %v3206, %v3207
        %v3209 = vrot.slane %v3208, 1
        %v3210 = vmax.f32 %v3208, %v3209
        %v3211 = vsel %vm2559, %v2349, -inf
        %v3212 = vrot.slane %v3211, 4
        %v3213 = vmax.f32 %v3211, %v3212
        %v3214 = vrot.slane %v3213, 2
        %v3215 = vmax.f32 %v3213, %v3214
        %v3216 = vrot.slane %v3215, 1
        %v3217 = vmax.f32 %v3215, %v3216
        %v3218 = vsel %vm2559, %v2094, -inf
        %v3219 = vrot.slane %v3218, 4
        %v3220 = vmax.f32 %v3218, %v3219
        %v3221 = vrot.slane %v3220, 2
        %v3222 = vmax.f32 %v3220, %v3221
        %v3223 = vrot.slane %v3222, 1
        %v3224 = vmax.f32 %v3222, %v3223
        %v3225 = vsel %vm2559, %v2350, -inf
        %v3226 = vrot.slane %v3225, 4
        %v3227 = vmax.f32 %v3225, %v3226
        %v3228 = vrot.slane %v3227, 2
        %v3229 = vmax.f32 %v3227, %v3228
        %v3230 = vrot.slane %v3229, 1
        %v3231 = vmax.f32 %v3229, %v3230
        %v3232 = vsel %vm2559, %v2095, -inf
        %v3233 = vrot.slane %v3232, 4
        %v3234 = vmax.f32 %v3232, %v3233
        %v3235 = vrot.slane %v3234, 2
        %v3236 = vmax.f32 %v3234, %v3235
        %v3237 = vrot.slane %v3236, 1
        %v3238 = vmax.f32 %v3236, %v3237
        %v3239 = vsel %vm2559, %v2351, -inf
        %v3240 = vrot.slane %v3239, 4
        %v3241 = vmax.f32 %v3239, %v3240
        %v3242 = vrot.slane %v3241, 2
        %v3243 = vmax.f32 %v3241, %v3242
        %v3244 = vrot.slane %v3243, 1
        %v3245 = vmax.f32 %v3243, %v3244
        %v3246 = vsel %vm2559, %v2096, -inf
        %v3247 = vrot.slane %v3246, 4
        %v3248 = vmax.f32 %v3246, %v3247
        %v3249 = vrot.slane %v3248, 2
        %v3250 = vmax.f32 %v3248, %v3249
        %v3251 = vrot.slane %v3250, 1
        %v3252 = vmax.f32 %v3250, %v3251
        %v3253 = vsel %vm2559, %v2352, -inf
        %v3254 = vrot.slane %v3253, 4
        %v3255 = vmax.f32 %v3253, %v3254
        %v3256 = vrot.slane %v3255, 2
        %v3257 = vmax.f32 %v3255, %v3256
        %v3258 = vrot.slane %v3257, 1
        %v3259 = vmax.f32 %v3257, %v3258
        %v3260 = vsel %vm2559, %v2097, -inf
        %v3261 = vrot.slane %v3260, 4
        %v3262 = vmax.f32 %v3260, %v3261
        %v3263 = vrot.slane %v3262, 2
        %v3264 = vmax.f32 %v3262, %v3263
        %v3265 = vrot.slane %v3264, 1
        %v3266 = vmax.f32 %v3264, %v3265
        %v3267 = vsel %vm2559, %v2353, -inf
        %v3268 = vrot.slane %v3267, 4
        %v3269 = vmax.f32 %v3267, %v3268
        %v3270 = vrot.slane %v3269, 2
        %v3271 = vmax.f32 %v3269, %v3270
        %v3272 = vrot.slane %v3271, 1
        %v3273 = vmax.f32 %v3271, %v3272
        %v3274 = vsel %vm2559, %v2098, -inf
        %v3275 = vrot.slane %v3274, 4
        %v3276 = vmax.f32 %v3274, %v3275
        %v3277 = vrot.slane %v3276, 2
        %v3278 = vmax.f32 %v3276, %v3277
        %v3279 = vrot.slane %v3278, 1
        %v3280 = vmax.f32 %v3278, %v3279
        %v3281 = vsel %vm2559, %v2354, -inf
        %v3282 = vrot.slane %v3281, 4
        %v3283 = vmax.f32 %v3281, %v3282
        %v3284 = vrot.slane %v3283, 2
        %v3285 = vmax.f32 %v3283, %v3284
        %v3286 = vrot.slane %v3285, 1
        %v3287 = vmax.f32 %v3285, %v3286
        %v3288 = vsel %vm2559, %v2099, -inf
        %v3289 = vrot.slane %v3288, 4
        %v3290 = vmax.f32 %v3288, %v3289
        %v3291 = vrot.slane %v3290, 2
        %v3292 = vmax.f32 %v3290, %v3291
        %v3293 = vrot.slane %v3292, 1
        %v3294 = vmax.f32 %v3292, %v3293
        %v3295 = vsel %vm2559, %v2355, -inf
        %v3296 = vrot.slane %v3295, 4
        %v3297 = vmax.f32 %v3295, %v3296
        %v3298 = vrot.slane %v3297, 2
        %v3299 = vmax.f32 %v3297, %v3298
        %v3300 = vrot.slane %v3299, 1
        %v3301 = vmax.f32 %v3299, %v3300
        %v3302 = vsel %vm2559, %v2100, -inf
        %v3303 = vrot.slane %v3302, 4
        %v3304 = vmax.f32 %v3302, %v3303
        %v3305 = vrot.slane %v3304, 2
        %v3306 = vmax.f32 %v3304, %v3305
        %v3307 = vrot.slane %v3306, 1
        %v3308 = vmax.f32 %v3306, %v3307
        %v3309 = vsel %vm2559, %v2356, -inf
        %v3310 = vrot.slane %v3309, 4
        %v3311 = vmax.f32 %v3309, %v3310
        %v3312 = vrot.slane %v3311, 2
        %v3313 = vmax.f32 %v3311, %v3312
        %v3314 = vrot.slane %v3313, 1
        %v3315 = vmax.f32 %v3313, %v3314
        %v3316 = vsel %vm2559, %v2101, -inf
        %v3317 = vrot.slane %v3316, 4
        %v3318 = vmax.f32 %v3316, %v3317
        %v3319 = vrot.slane %v3318, 2
        %v3320 = vmax.f32 %v3318, %v3319
        %v3321 = vrot.slane %v3320, 1
        %v3322 = vmax.f32 %v3320, %v3321
        %v3323 = vsel %vm2559, %v2357, -inf
        %v3324 = vrot.slane %v3323, 4
        %v3325 = vmax.f32 %v3323, %v3324
        %v3326 = vrot.slane %v3325, 2
        %v3327 = vmax.f32 %v3325, %v3326
        %v3328 = vrot.slane %v3327, 1
        %v3329 = vmax.f32 %v3327, %v3328
        %v3330 = vsel %vm2559, %v2102, -inf
        %v3331 = vrot.slane %v3330, 4
        %v3332 = vmax.f32 %v3330, %v3331
        %v3333 = vrot.slane %v3332, 2
        %v3334 = vmax.f32 %v3332, %v3333
        %v3335 = vrot.slane %v3334, 1
        %v3336 = vmax.f32 %v3334, %v3335
        %v3337 = vsel %vm2559, %v2358, -inf
        %v3338 = vrot.slane %v3337, 4
        %v3339 = vmax.f32 %v3337, %v3338
        %v3340 = vrot.slane %v3339, 2
        %v3341 = vmax.f32 %v3339, %v3340
        %v3342 = vrot.slane %v3341, 1
        %v3343 = vmax.f32 %v3341, %v3342
        %v3344 = vsel %vm2559, %v2103, -inf
        %v3345 = vrot.slane %v3344, 4
        %v3346 = vmax.f32 %v3344, %v3345
        %v3347 = vrot.slane %v3346, 2
        %v3348 = vmax.f32 %v3346, %v3347
        %v3349 = vrot.slane %v3348, 1
        %v3350 = vmax.f32 %v3348, %v3349
        %v3351 = vsel %vm2559, %v2359, -inf
        %v3352 = vrot.slane %v3351, 4
        %v3353 = vmax.f32 %v3351, %v3352
        %v3354 = vrot.slane %v3353, 2
        %v3355 = vmax.f32 %v3353, %v3354
        %v3356 = vrot.slane %v3355, 1
        %v3357 = vmax.f32 %v3355, %v3356
        %v3358 = vsel %vm2559, %v2104, -inf
        %v3359 = vrot.slane %v3358, 4
        %v3360 = vmax.f32 %v3358, %v3359
        %v3361 = vrot.slane %v3360, 2
        %v3362 = vmax.f32 %v3360, %v3361
        %v3363 = vrot.slane %v3362, 1
        %v3364 = vmax.f32 %v3362, %v3363
        %v3365 = vsel %vm2559, %v2360, -inf
        %v3366 = vrot.slane %v3365, 4
        %v3367 = vmax.f32 %v3365, %v3366
        %v3368 = vrot.slane %v3367, 2
        %v3369 = vmax.f32 %v3367, %v3368
        %v3370 = vrot.slane %v3369, 1
        %v3371 = vmax.f32 %v3369, %v3370
        %v3372 = vsel %vm2559, %v2105, -inf
        %v3373 = vrot.slane %v3372, 4
        %v3374 = vmax.f32 %v3372, %v3373
        %v3375 = vrot.slane %v3374, 2
        %v3376 = vmax.f32 %v3374, %v3375
        %v3377 = vrot.slane %v3376, 1
        %v3378 = vmax.f32 %v3376, %v3377
        %v3379 = vsel %vm2559, %v2361, -inf
        %v3380 = vrot.slane %v3379, 4
        %v3381 = vmax.f32 %v3379, %v3380
        %v3382 = vrot.slane %v3381, 2
        %v3383 = vmax.f32 %v3381, %v3382
        %v3384 = vrot.slane %v3383, 1
        %v3385 = vmax.f32 %v3383, %v3384
        %v3386 = vsel %vm2559, %v2106, -inf
        %v3387 = vrot.slane %v3386, 4
        %v3388 = vmax.f32 %v3386, %v3387
        %v3389 = vrot.slane %v3388, 2
        %v3390 = vmax.f32 %v3388, %v3389
        %v3391 = vrot.slane %v3390, 1
        %v3392 = vmax.f32 %v3390, %v3391
        %v3393 = vsel %vm2559, %v2362, -inf
        %v3394 = vrot.slane %v3393, 4
        %v3395 = vmax.f32 %v3393, %v3394
        %v3396 = vrot.slane %v3395, 2
        %v3397 = vmax.f32 %v3395, %v3396
        %v3398 = vrot.slane %v3397, 1
        %v3399 = vmax.f32 %v3397, %v3398
        %v3400 = vsel %vm2559, %v2107, -inf
        %v3401 = vrot.slane %v3400, 4
        %v3402 = vmax.f32 %v3400, %v3401
        %v3403 = vrot.slane %v3402, 2
        %v3404 = vmax.f32 %v3402, %v3403
        %v3405 = vrot.slane %v3404, 1
        %v3406 = vmax.f32 %v3404, %v3405
        %v3407 = vsel %vm2559, %v2363, -inf
        %v3408 = vrot.slane %v3407, 4
        %v3409 = vmax.f32 %v3407, %v3408
        %v3410 = vrot.slane %v3409, 2
        %v3411 = vmax.f32 %v3409, %v3410
        %v3412 = vrot.slane %v3411, 1
        %v3413 = vmax.f32 %v3411, %v3412
        %v3414 = vsel %vm2559, %v2108, -inf
        %v3415 = vrot.slane %v3414, 4
        %v3416 = vmax.f32 %v3414, %v3415
        %v3417 = vrot.slane %v3416, 2
        %v3418 = vmax.f32 %v3416, %v3417
        %v3419 = vrot.slane %v3418, 1
        %v3420 = vmax.f32 %v3418, %v3419
        %v3421 = vsel %vm2559, %v2364, -inf
        %v3422 = vrot.slane %v3421, 4
        %v3423 = vmax.f32 %v3421, %v3422
        %v3424 = vrot.slane %v3423, 2
        %v3425 = vmax.f32 %v3423, %v3424
        %v3426 = vrot.slane %v3425, 1
        %v3427 = vmax.f32 %v3425, %v3426
        %v3428 = vsel %vm2559, %v2109, -inf
        %v3429 = vrot.slane %v3428, 4
        %v3430 = vmax.f32 %v3428, %v3429
        %v3431 = vrot.slane %v3430, 2
        %v3432 = vmax.f32 %v3430, %v3431
        %v3433 = vrot.slane %v3432, 1
        %v3434 = vmax.f32 %v3432, %v3433
        %v3435 = vsel %vm2559, %v2365, -inf
        %v3436 = vrot.slane %v3435, 4
        %v3437 = vmax.f32 %v3435, %v3436
        %v3438 = vrot.slane %v3437, 2
        %v3439 = vmax.f32 %v3437, %v3438
        %v3440 = vrot.slane %v3439, 1
        %v3441 = vmax.f32 %v3439, %v3440
        %v3442 = vsel %vm2559, %v2110, -inf
        %v3443 = vrot.slane %v3442, 4
        %v3444 = vmax.f32 %v3442, %v3443
        %v3445 = vrot.slane %v3444, 2
        %v3446 = vmax.f32 %v3444, %v3445
        %v3447 = vrot.slane %v3446, 1
        %v3448 = vmax.f32 %v3446, %v3447
        %v3449 = vsel %vm2559, %v2366, -inf
        %v3450 = vrot.slane %v3449, 4
        %v3451 = vmax.f32 %v3449, %v3450
        %v3452 = vrot.slane %v3451, 2
        %v3453 = vmax.f32 %v3451, %v3452
        %v3454 = vrot.slane %v3453, 1
        %v3455 = vmax.f32 %v3453, %v3454
        %v3456 = vsel %vm2559, %v2111, -inf
        %v3457 = vrot.slane %v3456, 4
        %v3458 = vmax.f32 %v3456, %v3457
        %v3459 = vrot.slane %v3458, 2
        %v3460 = vmax.f32 %v3458, %v3459
        %v3461 = vrot.slane %v3460, 1
        %v3462 = vmax.f32 %v3460, %v3461
        %v3463 = vsel %vm2559, %v2367, -inf
        %v3464 = vrot.slane %v3463, 4
        %v3465 = vmax.f32 %v3463, %v3464
        %v3466 = vrot.slane %v3465, 2
        %v3467 = vmax.f32 %v3465, %v3466
        %v3468 = vrot.slane %v3467, 1
        %v3469 = vmax.f32 %v3467, %v3468
        %v3470 = vsel %vm2559, %v2112, -inf
        %v3471 = vrot.slane %v3470, 4
        %v3472 = vmax.f32 %v3470, %v3471
        %v3473 = vrot.slane %v3472, 2
        %v3474 = vmax.f32 %v3472, %v3473
        %v3475 = vrot.slane %v3474, 1
        %v3476 = vmax.f32 %v3474, %v3475
        %v3477 = vsel %vm2559, %v2368, -inf
        %v3478 = vrot.slane %v3477, 4
        %v3479 = vmax.f32 %v3477, %v3478
        %v3480 = vrot.slane %v3479, 2
        %v3481 = vmax.f32 %v3479, %v3480
        %v3482 = vrot.slane %v3481, 1
        %v3483 = vmax.f32 %v3481, %v3482
        %v3484 = vsel %vm2559, %v2113, -inf
        %v3485 = vrot.slane %v3484, 4
        %v3486 = vmax.f32 %v3484, %v3485
        %v3487 = vrot.slane %v3486, 2
        %v3488 = vmax.f32 %v3486, %v3487
        %v3489 = vrot.slane %v3488, 1
        %v3490 = vmax.f32 %v3488, %v3489
        %v3491 = vsel %vm2559, %v2369, -inf
        %v3492 = vrot.slane %v3491, 4
        %v3493 = vmax.f32 %v3491, %v3492
        %v3494 = vrot.slane %v3493, 2
        %v3495 = vmax.f32 %v3493, %v3494
        %v3496 = vrot.slane %v3495, 1
        %v3497 = vmax.f32 %v3495, %v3496
        %v3498 = vsel %vm2559, %v2114, -inf
        %v3499 = vrot.slane %v3498, 4
        %v3500 = vmax.f32 %v3498, %v3499
        %v3501 = vrot.slane %v3500, 2
        %v3502 = vmax.f32 %v3500, %v3501
        %v3503 = vrot.slane %v3502, 1
        %v3504 = vmax.f32 %v3502, %v3503
        %v3505 = vsel %vm2559, %v2370, -inf
        %v3506 = vrot.slane %v3505, 4
        %v3507 = vmax.f32 %v3505, %v3506
        %v3508 = vrot.slane %v3507, 2
        %v3509 = vmax.f32 %v3507, %v3508
        %v3510 = vrot.slane %v3509, 1
        %v3511 = vmax.f32 %v3509, %v3510
        %v3512 = vsel %vm2559, %v2115, -inf
        %v3513 = vrot.slane %v3512, 4
        %v3514 = vmax.f32 %v3512, %v3513
        %v3515 = vrot.slane %v3514, 2
        %v3516 = vmax.f32 %v3514, %v3515
        %v3517 = vrot.slane %v3516, 1
        %v3518 = vmax.f32 %v3516, %v3517
        %v3519 = vsel %vm2559, %v2371, -inf
        %v3520 = vrot.slane %v3519, 4
        %v3521 = vmax.f32 %v3519, %v3520
        %v3522 = vrot.slane %v3521, 2
        %v3523 = vmax.f32 %v3521, %v3522
        %v3524 = vrot.slane %v3523, 1
        %v3525 = vmax.f32 %v3523, %v3524
        %v3526 = vsel %vm2559, %v2116, -inf
        %v3527 = vrot.slane %v3526, 4
        %v3528 = vmax.f32 %v3526, %v3527
        %v3529 = vrot.slane %v3528, 2
        %v3530 = vmax.f32 %v3528, %v3529
        %v3531 = vrot.slane %v3530, 1
        %v3532 = vmax.f32 %v3530, %v3531
        %v3533 = vsel %vm2559, %v2372, -inf
        %v3534 = vrot.slane %v3533, 4
        %v3535 = vmax.f32 %v3533, %v3534
        %v3536 = vrot.slane %v3535, 2
        %v3537 = vmax.f32 %v3535, %v3536
        %v3538 = vrot.slane %v3537, 1
        %v3539 = vmax.f32 %v3537, %v3538
        %v3540 = vsel %vm2559, %v2117, -inf
        %v3541 = vrot.slane %v3540, 4
        %v3542 = vmax.f32 %v3540, %v3541
        %v3543 = vrot.slane %v3542, 2
        %v3544 = vmax.f32 %v3542, %v3543
        %v3545 = vrot.slane %v3544, 1
        %v3546 = vmax.f32 %v3544, %v3545
        %v3547 = vsel %vm2559, %v2373, -inf
        %v3548 = vrot.slane %v3547, 4
        %v3549 = vmax.f32 %v3547, %v3548
        %v3550 = vrot.slane %v3549, 2
        %v3551 = vmax.f32 %v3549, %v3550
        %v3552 = vrot.slane %v3551, 1
        %v3553 = vmax.f32 %v3551, %v3552
        %v3554 = vsel %vm2559, %v2118, -inf
        %v3555 = vrot.slane %v3554, 4
        %v3556 = vmax.f32 %v3554, %v3555
        %v3557 = vrot.slane %v3556, 2
        %v3558 = vmax.f32 %v3556, %v3557
        %v3559 = vrot.slane %v3558, 1
        %v3560 = vmax.f32 %v3558, %v3559
        %v3561 = vsel %vm2559, %v2374, -inf
        %v3562 = vrot.slane %v3561, 4
        %v3563 = vmax.f32 %v3561, %v3562
        %v3564 = vrot.slane %v3563, 2
        %v3565 = vmax.f32 %v3563, %v3564
        %v3566 = vrot.slane %v3565, 1
        %v3567 = vmax.f32 %v3565, %v3566
        %v3568 = vsel %vm2559, %v2119, -inf
        %v3569 = vrot.slane %v3568, 4
        %v3570 = vmax.f32 %v3568, %v3569
        %v3571 = vrot.slane %v3570, 2
        %v3572 = vmax.f32 %v3570, %v3571
        %v3573 = vrot.slane %v3572, 1
        %v3574 = vmax.f32 %v3572, %v3573
        %v3575 = vsel %vm2559, %v2375, -inf
        %v3576 = vrot.slane %v3575, 4
        %v3577 = vmax.f32 %v3575, %v3576
        %v3578 = vrot.slane %v3577, 2
        %v3579 = vmax.f32 %v3577, %v3578
        %v3580 = vrot.slane %v3579, 1
        %v3581 = vmax.f32 %v3579, %v3580
        %v3582 = vsel %vm2559, %v2120, -inf
        %v3583 = vrot.slane %v3582, 4
        %v3584 = vmax.f32 %v3582, %v3583
        %v3585 = vrot.slane %v3584, 2
        %v3586 = vmax.f32 %v3584, %v3585
        %v3587 = vrot.slane %v3586, 1
        %v3588 = vmax.f32 %v3586, %v3587
        %v3589 = vsel %vm2559, %v2376, -inf
        %v3590 = vrot.slane %v3589, 4
        %v3591 = vmax.f32 %v3589, %v3590
        %v3592 = vrot.slane %v3591, 2
        %v3593 = vmax.f32 %v3591, %v3592
        %v3594 = vrot.slane %v3593, 1
        %v3595 = vmax.f32 %v3593, %v3594
        %v3596 = vsel %vm2559, %v2121, -inf
        %v3597 = vrot.slane %v3596, 4
        %v3598 = vmax.f32 %v3596, %v3597
        %v3599 = vrot.slane %v3598, 2
        %v3600 = vmax.f32 %v3598, %v3599
        %v3601 = vrot.slane %v3600, 1
        %v3602 = vmax.f32 %v3600, %v3601
        %v3603 = vsel %vm2559, %v2377, -inf
        %v3604 = vrot.slane %v3603, 4
        %v3605 = vmax.f32 %v3603, %v3604
        %v3606 = vrot.slane %v3605, 2
        %v3607 = vmax.f32 %v3605, %v3606
        %v3608 = vrot.slane %v3607, 1
        %v3609 = vmax.f32 %v3607, %v3608
        %v3610 = vsel %vm2559, %v2122, -inf
        %v3611 = vrot.slane %v3610, 4
        %v3612 = vmax.f32 %v3610, %v3611
        %v3613 = vrot.slane %v3612, 2
        %v3614 = vmax.f32 %v3612, %v3613
        %v3615 = vrot.slane %v3614, 1
        %v3616 = vmax.f32 %v3614, %v3615
        %v3617 = vsel %vm2559, %v2378, -inf
        %v3618 = vrot.slane %v3617, 4
        %v3619 = vmax.f32 %v3617, %v3618
        %v3620 = vrot.slane %v3619, 2
        %v3621 = vmax.f32 %v3619, %v3620
        %v3622 = vrot.slane %v3621, 1
        %v3623 = vmax.f32 %v3621, %v3622
        %v3624 = vsel %vm2559, %v2123, -inf
        %v3625 = vrot.slane %v3624, 4
        %v3626 = vmax.f32 %v3624, %v3625
        %v3627 = vrot.slane %v3626, 2
        %v3628 = vmax.f32 %v3626, %v3627
        %v3629 = vrot.slane %v3628, 1
        %v3630 = vmax.f32 %v3628, %v3629
        %v3631 = vsel %vm2559, %v2379, -inf
        %v3632 = vrot.slane %v3631, 4
        %v3633 = vmax.f32 %v3631, %v3632
        %v3634 = vrot.slane %v3633, 2
        %v3635 = vmax.f32 %v3633, %v3634
        %v3636 = vrot.slane %v3635, 1
        %v3637 = vmax.f32 %v3635, %v3636
        %v3638 = vsel %vm2559, %v2124, -inf
        %v3639 = vrot.slane %v3638, 4
        %v3640 = vmax.f32 %v3638, %v3639
        %v3641 = vrot.slane %v3640, 2
        %v3642 = vmax.f32 %v3640, %v3641
        %v3643 = vrot.slane %v3642, 1
        %v3644 = vmax.f32 %v3642, %v3643
        %v3645 = vsel %vm2559, %v2380, -inf
        %v3646 = vrot.slane %v3645, 4
        %v3647 = vmax.f32 %v3645, %v3646
        %v3648 = vrot.slane %v3647, 2
        %v3649 = vmax.f32 %v3647, %v3648
        %v3650 = vrot.slane %v3649, 1
        %v3651 = vmax.f32 %v3649, %v3650
        %v3652 = vsel %vm2559, %v2125, -inf
        %v3653 = vrot.slane %v3652, 4
        %v3654 = vmax.f32 %v3652, %v3653
        %v3655 = vrot.slane %v3654, 2
        %v3656 = vmax.f32 %v3654, %v3655
        %v3657 = vrot.slane %v3656, 1
        %v3658 = vmax.f32 %v3656, %v3657
        %v3659 = vsel %vm2559, %v2381, -inf
        %v3660 = vrot.slane %v3659, 4
        %v3661 = vmax.f32 %v3659, %v3660
        %v3662 = vrot.slane %v3661, 2
        %v3663 = vmax.f32 %v3661, %v3662
        %v3664 = vrot.slane %v3663, 1
        %v3665 = vmax.f32 %v3663, %v3664
        %v3666 = vsel %vm2559, %v2126, -inf
        %v3667 = vrot.slane %v3666, 4
        %v3668 = vmax.f32 %v3666, %v3667
        %v3669 = vrot.slane %v3668, 2
        %v3670 = vmax.f32 %v3668, %v3669
        %v3671 = vrot.slane %v3670, 1
        %v3672 = vmax.f32 %v3670, %v3671
        %v3673 = vsel %vm2559, %v2382, -inf
        %v3674 = vrot.slane %v3673, 4
        %v3675 = vmax.f32 %v3673, %v3674
        %v3676 = vrot.slane %v3675, 2
        %v3677 = vmax.f32 %v3675, %v3676
        %v3678 = vrot.slane %v3677, 1
        %v3679 = vmax.f32 %v3677, %v3678
        %v3680 = vsel %vm2559, %v2127, -inf
        %v3681 = vrot.slane %v3680, 4
        %v3682 = vmax.f32 %v3680, %v3681
        %v3683 = vrot.slane %v3682, 2
        %v3684 = vmax.f32 %v3682, %v3683
        %v3685 = vrot.slane %v3684, 1
        %v3686 = vmax.f32 %v3684, %v3685
        %v3687 = vsel %vm2559, %v2383, -inf
        %v3688 = vrot.slane %v3687, 4
        %v3689 = vmax.f32 %v3687, %v3688
        %v3690 = vrot.slane %v3689, 2
        %v3691 = vmax.f32 %v3689, %v3690
        %v3692 = vrot.slane %v3691, 1
        %v3693 = vmax.f32 %v3691, %v3692
        %v3694 = vsel %vm2559, %v2128, -inf
        %v3695 = vrot.slane %v3694, 4
        %v3696 = vmax.f32 %v3694, %v3695
        %v3697 = vrot.slane %v3696, 2
        %v3698 = vmax.f32 %v3696, %v3697
        %v3699 = vrot.slane %v3698, 1
        %v3700 = vmax.f32 %v3698, %v3699
        %v3701 = vsel %vm2559, %v2384, -inf
        %v3702 = vrot.slane %v3701, 4
        %v3703 = vmax.f32 %v3701, %v3702
        %v3704 = vrot.slane %v3703, 2
        %v3705 = vmax.f32 %v3703, %v3704
        %v3706 = vrot.slane %v3705, 1
        %v3707 = vmax.f32 %v3705, %v3706
        %v3708 = vsel %vm2559, %v2129, -inf
        %v3709 = vrot.slane %v3708, 4
        %v3710 = vmax.f32 %v3708, %v3709
        %v3711 = vrot.slane %v3710, 2
        %v3712 = vmax.f32 %v3710, %v3711
        %v3713 = vrot.slane %v3712, 1
        %v3714 = vmax.f32 %v3712, %v3713
        %v3715 = vsel %vm2559, %v2385, -inf
        %v3716 = vrot.slane %v3715, 4
        %v3717 = vmax.f32 %v3715, %v3716
        %v3718 = vrot.slane %v3717, 2
        %v3719 = vmax.f32 %v3717, %v3718
        %v3720 = vrot.slane %v3719, 1
        %v3721 = vmax.f32 %v3719, %v3720
        %v3722 = vsel %vm2559, %v2130, -inf
        %v3723 = vrot.slane %v3722, 4
        %v3724 = vmax.f32 %v3722, %v3723
        %v3725 = vrot.slane %v3724, 2
        %v3726 = vmax.f32 %v3724, %v3725
        %v3727 = vrot.slane %v3726, 1
        %v3728 = vmax.f32 %v3726, %v3727
        %v3729 = vsel %vm2559, %v2386, -inf
        %v3730 = vrot.slane %v3729, 4
        %v3731 = vmax.f32 %v3729, %v3730
        %v3732 = vrot.slane %v3731, 2
        %v3733 = vmax.f32 %v3731, %v3732
        %v3734 = vrot.slane %v3733, 1
        %v3735 = vmax.f32 %v3733, %v3734
        %v3736 = vsel %vm2559, %v2131, -inf
        %v3737 = vrot.slane %v3736, 4
        %v3738 = vmax.f32 %v3736, %v3737
        %v3739 = vrot.slane %v3738, 2
        %v3740 = vmax.f32 %v3738, %v3739
        %v3741 = vrot.slane %v3740, 1
        %v3742 = vmax.f32 %v3740, %v3741
        %v3743 = vsel %vm2559, %v2387, -inf
        %v3744 = vrot.slane %v3743, 4
        %v3745 = vmax.f32 %v3743, %v3744
        %v3746 = vrot.slane %v3745, 2
        %v3747 = vmax.f32 %v3745, %v3746
        %v3748 = vrot.slane %v3747, 1
        %v3749 = vmax.f32 %v3747, %v3748
        %v3750 = vsel %vm2559, %v2132, -inf
        %v3751 = vrot.slane %v3750, 4
        %v3752 = vmax.f32 %v3750, %v3751
        %v3753 = vrot.slane %v3752, 2
        %v3754 = vmax.f32 %v3752, %v3753
        %v3755 = vrot.slane %v3754, 1
        %v3756 = vmax.f32 %v3754, %v3755
        %v3757 = vsel %vm2559, %v2388, -inf
        %v3758 = vrot.slane %v3757, 4
        %v3759 = vmax.f32 %v3757, %v3758
        %v3760 = vrot.slane %v3759, 2
        %v3761 = vmax.f32 %v3759, %v3760
        %v3762 = vrot.slane %v3761, 1
        %v3763 = vmax.f32 %v3761, %v3762
        %v3764 = vsel %vm2559, %v2133, -inf
        %v3765 = vrot.slane %v3764, 4
        %v3766 = vmax.f32 %v3764, %v3765
        %v3767 = vrot.slane %v3766, 2
        %v3768 = vmax.f32 %v3766, %v3767
        %v3769 = vrot.slane %v3768, 1
        %v3770 = vmax.f32 %v3768, %v3769
        %v3771 = vsel %vm2559, %v2389, -inf
        %v3772 = vrot.slane %v3771, 4
        %v3773 = vmax.f32 %v3771, %v3772
        %v3774 = vrot.slane %v3773, 2
        %v3775 = vmax.f32 %v3773, %v3774
        %v3776 = vrot.slane %v3775, 1
        %v3777 = vmax.f32 %v3775, %v3776
        %v3778 = vsel %vm2559, %v2134, -inf
        %v3779 = vrot.slane %v3778, 4
        %v3780 = vmax.f32 %v3778, %v3779
        %v3781 = vrot.slane %v3780, 2
        %v3782 = vmax.f32 %v3780, %v3781
        %v3783 = vrot.slane %v3782, 1
        %v3784 = vmax.f32 %v3782, %v3783
        %v3785 = vsel %vm2559, %v2390, -inf
        %v3786 = vrot.slane %v3785, 4
        %v3787 = vmax.f32 %v3785, %v3786
        %v3788 = vrot.slane %v3787, 2
        %v3789 = vmax.f32 %v3787, %v3788
        %v3790 = vrot.slane %v3789, 1
        %v3791 = vmax.f32 %v3789, %v3790
        %v3792 = vsel %vm2559, %v2135, -inf
        %v3793 = vrot.slane %v3792, 4
        %v3794 = vmax.f32 %v3792, %v3793
        %v3795 = vrot.slane %v3794, 2
        %v3796 = vmax.f32 %v3794, %v3795
        %v3797 = vrot.slane %v3796, 1
        %v3798 = vmax.f32 %v3796, %v3797
        %v3799 = vsel %vm2559, %v2391, -inf
        %v3800 = vrot.slane %v3799, 4
        %v3801 = vmax.f32 %v3799, %v3800
        %v3802 = vrot.slane %v3801, 2
        %v3803 = vmax.f32 %v3801, %v3802
        %v3804 = vrot.slane %v3803, 1
        %v3805 = vmax.f32 %v3803, %v3804
        %v3806 = vsel %vm2559, %v2136, -inf
        %v3807 = vrot.slane %v3806, 4
        %v3808 = vmax.f32 %v3806, %v3807
        %v3809 = vrot.slane %v3808, 2
        %v3810 = vmax.f32 %v3808, %v3809
        %v3811 = vrot.slane %v3810, 1
        %v3812 = vmax.f32 %v3810, %v3811
        %v3813 = vsel %vm2559, %v2392, -inf
        %v3814 = vrot.slane %v3813, 4
        %v3815 = vmax.f32 %v3813, %v3814
        %v3816 = vrot.slane %v3815, 2
        %v3817 = vmax.f32 %v3815, %v3816
        %v3818 = vrot.slane %v3817, 1
        %v3819 = vmax.f32 %v3817, %v3818
        %v3820 = vsel %vm2559, %v2137, -inf
        %v3821 = vrot.slane %v3820, 4
        %v3822 = vmax.f32 %v3820, %v3821
        %v3823 = vrot.slane %v3822, 2
        %v3824 = vmax.f32 %v3822, %v3823
        %v3825 = vrot.slane %v3824, 1
        %v3826 = vmax.f32 %v3824, %v3825
        %v3827 = vsel %vm2559, %v2393, -inf
        %v3828 = vrot.slane %v3827, 4
        %v3829 = vmax.f32 %v3827, %v3828
        %v3830 = vrot.slane %v3829, 2
        %v3831 = vmax.f32 %v3829, %v3830
        %v3832 = vrot.slane %v3831, 1
        %v3833 = vmax.f32 %v3831, %v3832
        %v3834 = vsel %vm2559, %v2138, -inf
        %v3835 = vrot.slane %v3834, 4
        %v3836 = vmax.f32 %v3834, %v3835
        %v3837 = vrot.slane %v3836, 2
        %v3838 = vmax.f32 %v3836, %v3837
        %v3839 = vrot.slane %v3838, 1
        %v3840 = vmax.f32 %v3838, %v3839
        %v3841 = vsel %vm2559, %v2394, -inf
        %v3842 = vrot.slane %v3841, 4
        %v3843 = vmax.f32 %v3841, %v3842
        %v3844 = vrot.slane %v3843, 2
        %v3845 = vmax.f32 %v3843, %v3844
        %v3846 = vrot.slane %v3845, 1
        %v3847 = vmax.f32 %v3845, %v3846
        %v3848 = vsel %vm2559, %v2139, -inf
        %v3849 = vrot.slane %v3848, 4
        %v3850 = vmax.f32 %v3848, %v3849
        %v3851 = vrot.slane %v3850, 2
        %v3852 = vmax.f32 %v3850, %v3851
        %v3853 = vrot.slane %v3852, 1
        %v3854 = vmax.f32 %v3852, %v3853
        %v3855 = vsel %vm2559, %v2395, -inf
        %v3856 = vrot.slane %v3855, 4
        %v3857 = vmax.f32 %v3855, %v3856
        %v3858 = vrot.slane %v3857, 2
        %v3859 = vmax.f32 %v3857, %v3858
        %v3860 = vrot.slane %v3859, 1
        %v3861 = vmax.f32 %v3859, %v3860
        %v3862 = vsel %vm2559, %v2140, -inf
        %v3863 = vrot.slane %v3862, 4
        %v3864 = vmax.f32 %v3862, %v3863
        %v3865 = vrot.slane %v3864, 2
        %v3866 = vmax.f32 %v3864, %v3865
        %v3867 = vrot.slane %v3866, 1
        %v3868 = vmax.f32 %v3866, %v3867
        %v3869 = vsel %vm2559, %v2396, -inf
        %v3870 = vrot.slane %v3869, 4
        %v3871 = vmax.f32 %v3869, %v3870
        %v3872 = vrot.slane %v3871, 2
        %v3873 = vmax.f32 %v3871, %v3872
        %v3874 = vrot.slane %v3873, 1
        %v3875 = vmax.f32 %v3873, %v3874
        %v3876 = vsel %vm2559, %v2141, -inf
        %v3877 = vrot.slane %v3876, 4
        %v3878 = vmax.f32 %v3876, %v3877
        %v3879 = vrot.slane %v3878, 2
        %v3880 = vmax.f32 %v3878, %v3879
        %v3881 = vrot.slane %v3880, 1
        %v3882 = vmax.f32 %v3880, %v3881
        %v3883 = vsel %vm2559, %v2397, -inf
        %v3884 = vrot.slane %v3883, 4
        %v3885 = vmax.f32 %v3883, %v3884
        %v3886 = vrot.slane %v3885, 2
        %v3887 = vmax.f32 %v3885, %v3886
        %v3888 = vrot.slane %v3887, 1
        %v3889 = vmax.f32 %v3887, %v3888
        %v3890 = vsel %vm2559, %v2142, -inf
        %v3891 = vrot.slane %v3890, 4
        %v3892 = vmax.f32 %v3890, %v3891
        %v3893 = vrot.slane %v3892, 2
        %v3894 = vmax.f32 %v3892, %v3893
        %v3895 = vrot.slane %v3894, 1
        %v3896 = vmax.f32 %v3894, %v3895
        %v3897 = vsel %vm2559, %v2398, -inf
        %v3898 = vrot.slane %v3897, 4
        %v3899 = vmax.f32 %v3897, %v3898
        %v3900 = vrot.slane %v3899, 2
        %v3901 = vmax.f32 %v3899, %v3900
        %v3902 = vrot.slane %v3901, 1
        %v3903 = vmax.f32 %v3901, %v3902
        %v3904 = vsel %vm2559, %v2143, -inf
        %v3905 = vrot.slane %v3904, 4
        %v3906 = vmax.f32 %v3904, %v3905
        %v3907 = vrot.slane %v3906, 2
        %v3908 = vmax.f32 %v3906, %v3907
        %v3909 = vrot.slane %v3908, 1
        %v3910 = vmax.f32 %v3908, %v3909
        %v3911 = vsel %vm2559, %v2399, -inf
        %v3912 = vrot.slane %v3911, 4
        %v3913 = vmax.f32 %v3911, %v3912
        %v3914 = vrot.slane %v3913, 2
        %v3915 = vmax.f32 %v3913, %v3914
        %v3916 = vrot.slane %v3915, 1
        %v3917 = vmax.f32 %v3915, %v3916
        %v3918 = vsel %vm2559, %v2144, -inf
        %v3919 = vrot.slane %v3918, 4
        %v3920 = vmax.f32 %v3918, %v3919
        %v3921 = vrot.slane %v3920, 2
        %v3922 = vmax.f32 %v3920, %v3921
        %v3923 = vrot.slane %v3922, 1
        %v3924 = vmax.f32 %v3922, %v3923
        %v3925 = vsel %vm2559, %v2400, -inf
        %v3926 = vrot.slane %v3925, 4
        %v3927 = vmax.f32 %v3925, %v3926
        %v3928 = vrot.slane %v3927, 2
        %v3929 = vmax.f32 %v3927, %v3928
        %v3930 = vrot.slane %v3929, 1
        %v3931 = vmax.f32 %v3929, %v3930
        %v3932 = vsel %vm2559, %v2145, -inf
        %v3933 = vrot.slane %v3932, 4
        %v3934 = vmax.f32 %v3932, %v3933
        %v3935 = vrot.slane %v3934, 2
        %v3936 = vmax.f32 %v3934, %v3935
        %v3937 = vrot.slane %v3936, 1
        %v3938 = vmax.f32 %v3936, %v3937
        %v3939 = vsel %vm2559, %v2401, -inf
        %v3940 = vrot.slane %v3939, 4
        %v3941 = vmax.f32 %v3939, %v3940
        %v3942 = vrot.slane %v3941, 2
        %v3943 = vmax.f32 %v3941, %v3942
        %v3944 = vrot.slane %v3943, 1
        %v3945 = vmax.f32 %v3943, %v3944
        %v3946 = vsel %vm2559, %v2146, -inf
        %v3947 = vrot.slane %v3946, 4
        %v3948 = vmax.f32 %v3946, %v3947
        %v3949 = vrot.slane %v3948, 2
        %v3950 = vmax.f32 %v3948, %v3949
        %v3951 = vrot.slane %v3950, 1
        %v3952 = vmax.f32 %v3950, %v3951
        %v3953 = vsel %vm2559, %v2402, -inf
        %v3954 = vrot.slane %v3953, 4
        %v3955 = vmax.f32 %v3953, %v3954
        %v3956 = vrot.slane %v3955, 2
        %v3957 = vmax.f32 %v3955, %v3956
        %v3958 = vrot.slane %v3957, 1
        %v3959 = vmax.f32 %v3957, %v3958
        %v3960 = vsel %vm2559, %v2147, -inf
        %v3961 = vrot.slane %v3960, 4
        %v3962 = vmax.f32 %v3960, %v3961
        %v3963 = vrot.slane %v3962, 2
        %v3964 = vmax.f32 %v3962, %v3963
        %v3965 = vrot.slane %v3964, 1
        %v3966 = vmax.f32 %v3964, %v3965
        %v3967 = vsel %vm2559, %v2403, -inf
        %v3968 = vrot.slane %v3967, 4
        %v3969 = vmax.f32 %v3967, %v3968
        %v3970 = vrot.slane %v3969, 2
        %v3971 = vmax.f32 %v3969, %v3970
        %v3972 = vrot.slane %v3971, 1
        %v3973 = vmax.f32 %v3971, %v3972
        %v3974 = vsel %vm2559, %v2148, -inf
        %v3975 = vrot.slane %v3974, 4
        %v3976 = vmax.f32 %v3974, %v3975
        %v3977 = vrot.slane %v3976, 2
        %v3978 = vmax.f32 %v3976, %v3977
        %v3979 = vrot.slane %v3978, 1
        %v3980 = vmax.f32 %v3978, %v3979
        %v3981 = vsel %vm2559, %v2404, -inf
        %v3982 = vrot.slane %v3981, 4
        %v3983 = vmax.f32 %v3981, %v3982
        %v3984 = vrot.slane %v3983, 2
        %v3985 = vmax.f32 %v3983, %v3984
        %v3986 = vrot.slane %v3985, 1
        %v3987 = vmax.f32 %v3985, %v3986
        %v3988 = vsel %vm2559, %v2149, -inf
        %v3989 = vrot.slane %v3988, 4
        %v3990 = vmax.f32 %v3988, %v3989
        %v3991 = vrot.slane %v3990, 2
        %v3992 = vmax.f32 %v3990, %v3991
        %v3993 = vrot.slane %v3992, 1
        %v3994 = vmax.f32 %v3992, %v3993
        %v3995 = vsel %vm2559, %v2405, -inf
        %v3996 = vrot.slane %v3995, 4
        %v3997 = vmax.f32 %v3995, %v3996
        %v3998 = vrot.slane %v3997, 2
        %v3999 = vmax.f32 %v3997, %v3998
        %v4000 = vrot.slane %v3999, 1
        %v4001 = vmax.f32 %v3999, %v4000
        %v4002 = vsel %vm2559, %v2150, -inf
        %v4003 = vrot.slane %v4002, 4
        %v4004 = vmax.f32 %v4002, %v4003
        %v4005 = vrot.slane %v4004, 2
        %v4006 = vmax.f32 %v4004, %v4005
        %v4007 = vrot.slane %v4006, 1
        %v4008 = vmax.f32 %v4006, %v4007
        %v4009 = vsel %vm2559, %v2406, -inf
        %v4010 = vrot.slane %v4009, 4
        %v4011 = vmax.f32 %v4009, %v4010
        %v4012 = vrot.slane %v4011, 2
        %v4013 = vmax.f32 %v4011, %v4012
        %v4014 = vrot.slane %v4013, 1
        %v4015 = vmax.f32 %v4013, %v4014
        %v4016 = vsel %vm2559, %v2151, -inf
        %v4017 = vrot.slane %v4016, 4
        %v4018 = vmax.f32 %v4016, %v4017
        %v4019 = vrot.slane %v4018, 2
        %v4020 = vmax.f32 %v4018, %v4019
        %v4021 = vrot.slane %v4020, 1
        %v4022 = vmax.f32 %v4020, %v4021
        %v4023 = vsel %vm2559, %v2407, -inf
        %v4024 = vrot.slane %v4023, 4
        %v4025 = vmax.f32 %v4023, %v4024
        %v4026 = vrot.slane %v4025, 2
        %v4027 = vmax.f32 %v4025, %v4026
        %v4028 = vrot.slane %v4027, 1
        %v4029 = vmax.f32 %v4027, %v4028
        %v4030 = vsel %vm2559, %v2152, -inf
        %v4031 = vrot.slane %v4030, 4
        %v4032 = vmax.f32 %v4030, %v4031
        %v4033 = vrot.slane %v4032, 2
        %v4034 = vmax.f32 %v4032, %v4033
        %v4035 = vrot.slane %v4034, 1
        %v4036 = vmax.f32 %v4034, %v4035
        %v4037 = vsel %vm2559, %v2408, -inf
        %v4038 = vrot.slane %v4037, 4
        %v4039 = vmax.f32 %v4037, %v4038
        %v4040 = vrot.slane %v4039, 2
        %v4041 = vmax.f32 %v4039, %v4040
        %v4042 = vrot.slane %v4041, 1
        %v4043 = vmax.f32 %v4041, %v4042
        %v4044 = vsel %vm2559, %v2153, -inf
        %v4045 = vrot.slane %v4044, 4
        %v4046 = vmax.f32 %v4044, %v4045
        %v4047 = vrot.slane %v4046, 2
        %v4048 = vmax.f32 %v4046, %v4047
        %v4049 = vrot.slane %v4048, 1
        %v4050 = vmax.f32 %v4048, %v4049
        %v4051 = vsel %vm2559, %v2409, -inf
        %v4052 = vrot.slane %v4051, 4
        %v4053 = vmax.f32 %v4051, %v4052
        %v4054 = vrot.slane %v4053, 2
        %v4055 = vmax.f32 %v4053, %v4054
        %v4056 = vrot.slane %v4055, 1
        %v4057 = vmax.f32 %v4055, %v4056
        %v4058 = vsel %vm2559, %v2154, -inf
        %v4059 = vrot.slane %v4058, 4
        %v4060 = vmax.f32 %v4058, %v4059
        %v4061 = vrot.slane %v4060, 2
        %v4062 = vmax.f32 %v4060, %v4061
        %v4063 = vrot.slane %v4062, 1
        %v4064 = vmax.f32 %v4062, %v4063
        %v4065 = vsel %vm2559, %v2410, -inf
        %v4066 = vrot.slane %v4065, 4
        %v4067 = vmax.f32 %v4065, %v4066
        %v4068 = vrot.slane %v4067, 2
        %v4069 = vmax.f32 %v4067, %v4068
        %v4070 = vrot.slane %v4069, 1
        %v4071 = vmax.f32 %v4069, %v4070
        %v4072 = vsel %vm2559, %v2155, -inf
        %v4073 = vrot.slane %v4072, 4
        %v4074 = vmax.f32 %v4072, %v4073
        %v4075 = vrot.slane %v4074, 2
        %v4076 = vmax.f32 %v4074, %v4075
        %v4077 = vrot.slane %v4076, 1
        %v4078 = vmax.f32 %v4076, %v4077
        %v4079 = vsel %vm2559, %v2411, -inf
        %v4080 = vrot.slane %v4079, 4
        %v4081 = vmax.f32 %v4079, %v4080
        %v4082 = vrot.slane %v4081, 2
        %v4083 = vmax.f32 %v4081, %v4082
        %v4084 = vrot.slane %v4083, 1
        %v4085 = vmax.f32 %v4083, %v4084
        %v4086 = vsel %vm2559, %v2156, -inf
        %v4087 = vrot.slane %v4086, 4
        %v4088 = vmax.f32 %v4086, %v4087
        %v4089 = vrot.slane %v4088, 2
        %v4090 = vmax.f32 %v4088, %v4089
        %v4091 = vrot.slane %v4090, 1
        %v4092 = vmax.f32 %v4090, %v4091
        %v4093 = vsel %vm2559, %v2412, -inf
        %v4094 = vrot.slane %v4093, 4
        %v4095 = vmax.f32 %v4093, %v4094
        %v4096 = vrot.slane %v4095, 2
        %v4097 = vmax.f32 %v4095, %v4096
        %v4098 = vrot.slane %v4097, 1
        %v4099 = vmax.f32 %v4097, %v4098
        %v4100 = vsel %vm2559, %v2157, -inf
        %v4101 = vrot.slane %v4100, 4
        %v4102 = vmax.f32 %v4100, %v4101
        %v4103 = vrot.slane %v4102, 2
        %v4104 = vmax.f32 %v4102, %v4103
        %v4105 = vrot.slane %v4104, 1
        %v4106 = vmax.f32 %v4104, %v4105
        %v4107 = vsel %vm2559, %v2413, -inf
        %v4108 = vrot.slane %v4107, 4
        %v4109 = vmax.f32 %v4107, %v4108
        %v4110 = vrot.slane %v4109, 2
        %v4111 = vmax.f32 %v4109, %v4110
        %v4112 = vrot.slane %v4111, 1
        %v4113 = vmax.f32 %v4111, %v4112
        %v4114 = vsel %vm2559, %v2158, -inf
        %v4115 = vrot.slane %v4114, 4
        %v4116 = vmax.f32 %v4114, %v4115
        %v4117 = vrot.slane %v4116, 2
        %v4118 = vmax.f32 %v4116, %v4117
        %v4119 = vrot.slane %v4118, 1
        %v4120 = vmax.f32 %v4118, %v4119
        %v4121 = vsel %vm2559, %v2414, -inf
        %v4122 = vrot.slane %v4121, 4
        %v4123 = vmax.f32 %v4121, %v4122
        %v4124 = vrot.slane %v4123, 2
        %v4125 = vmax.f32 %v4123, %v4124
        %v4126 = vrot.slane %v4125, 1
        %v4127 = vmax.f32 %v4125, %v4126
        %v4128 = vsel %vm2559, %v2159, -inf
        %v4129 = vrot.slane %v4128, 4
        %v4130 = vmax.f32 %v4128, %v4129
        %v4131 = vrot.slane %v4130, 2
        %v4132 = vmax.f32 %v4130, %v4131
        %v4133 = vrot.slane %v4132, 1
        %v4134 = vmax.f32 %v4132, %v4133
        %v4135 = vsel %vm2559, %v2415, -inf
        %v4136 = vrot.slane %v4135, 4
        %v4137 = vmax.f32 %v4135, %v4136
        %v4138 = vrot.slane %v4137, 2
        %v4139 = vmax.f32 %v4137, %v4138
        %v4140 = vrot.slane %v4139, 1
        %v4141 = vmax.f32 %v4139, %v4140
        %v4142 = vsel %vm2559, %v2160, -inf
        %v4143 = vrot.slane %v4142, 4
        %v4144 = vmax.f32 %v4142, %v4143
        %v4145 = vrot.slane %v4144, 2
        %v4146 = vmax.f32 %v4144, %v4145
        %v4147 = vrot.slane %v4146, 1
        %v4148 = vmax.f32 %v4146, %v4147
        %v4149 = vsel %vm2559, %v2416, -inf
        %v4150 = vrot.slane %v4149, 4
        %v4151 = vmax.f32 %v4149, %v4150
        %v4152 = vrot.slane %v4151, 2
        %v4153 = vmax.f32 %v4151, %v4152
        %v4154 = vrot.slane %v4153, 1
        %v4155 = vmax.f32 %v4153, %v4154
        %v4156 = vsel %vm2559, %v2161, -inf
        %v4157 = vrot.slane %v4156, 4
        %v4158 = vmax.f32 %v4156, %v4157
        %v4159 = vrot.slane %v4158, 2
        %v4160 = vmax.f32 %v4158, %v4159
        %v4161 = vrot.slane %v4160, 1
        %v4162 = vmax.f32 %v4160, %v4161
        %v4163 = vsel %vm2559, %v2417, -inf
        %v4164 = vrot.slane %v4163, 4
        %v4165 = vmax.f32 %v4163, %v4164
        %v4166 = vrot.slane %v4165, 2
        %v4167 = vmax.f32 %v4165, %v4166
        %v4168 = vrot.slane %v4167, 1
        %v4169 = vmax.f32 %v4167, %v4168
        %v4170 = vsel %vm2559, %v2162, -inf
        %v4171 = vrot.slane %v4170, 4
        %v4172 = vmax.f32 %v4170, %v4171
        %v4173 = vrot.slane %v4172, 2
        %v4174 = vmax.f32 %v4172, %v4173
        %v4175 = vrot.slane %v4174, 1
        %v4176 = vmax.f32 %v4174, %v4175
        %v4177 = vsel %vm2559, %v2418, -inf
        %v4178 = vrot.slane %v4177, 4
        %v4179 = vmax.f32 %v4177, %v4178
        %v4180 = vrot.slane %v4179, 2
        %v4181 = vmax.f32 %v4179, %v4180
        %v4182 = vrot.slane %v4181, 1
        %v4183 = vmax.f32 %v4181, %v4182
        %v4184 = vsel %vm2559, %v2163, -inf
        %v4185 = vrot.slane %v4184, 4
        %v4186 = vmax.f32 %v4184, %v4185
        %v4187 = vrot.slane %v4186, 2
        %v4188 = vmax.f32 %v4186, %v4187
        %v4189 = vrot.slane %v4188, 1
        %v4190 = vmax.f32 %v4188, %v4189
        %v4191 = vsel %vm2559, %v2419, -inf
        %v4192 = vrot.slane %v4191, 4
        %v4193 = vmax.f32 %v4191, %v4192
        %v4194 = vrot.slane %v4193, 2
        %v4195 = vmax.f32 %v4193, %v4194
        %v4196 = vrot.slane %v4195, 1
        %v4197 = vmax.f32 %v4195, %v4196
        %v4198 = vsel %vm2559, %v2164, -inf
        %v4199 = vrot.slane %v4198, 4
        %v4200 = vmax.f32 %v4198, %v4199
        %v4201 = vrot.slane %v4200, 2
        %v4202 = vmax.f32 %v4200, %v4201
        %v4203 = vrot.slane %v4202, 1
        %v4204 = vmax.f32 %v4202, %v4203
        %v4205 = vsel %vm2559, %v2420, -inf
        %v4206 = vrot.slane %v4205, 4
        %v4207 = vmax.f32 %v4205, %v4206
        %v4208 = vrot.slane %v4207, 2
        %v4209 = vmax.f32 %v4207, %v4208
        %v4210 = vrot.slane %v4209, 1
        %v4211 = vmax.f32 %v4209, %v4210
        %v4212 = vsel %vm2559, %v2165, -inf
        %v4213 = vrot.slane %v4212, 4
        %v4214 = vmax.f32 %v4212, %v4213
        %v4215 = vrot.slane %v4214, 2
        %v4216 = vmax.f32 %v4214, %v4215
        %v4217 = vrot.slane %v4216, 1
        %v4218 = vmax.f32 %v4216, %v4217
        %v4219 = vsel %vm2559, %v2421, -inf
        %v4220 = vrot.slane %v4219, 4
        %v4221 = vmax.f32 %v4219, %v4220
        %v4222 = vrot.slane %v4221, 2
        %v4223 = vmax.f32 %v4221, %v4222
        %v4224 = vrot.slane %v4223, 1
        %v4225 = vmax.f32 %v4223, %v4224
        %v4226 = vsel %vm2559, %v2166, -inf
        %v4227 = vrot.slane %v4226, 4
        %v4228 = vmax.f32 %v4226, %v4227
        %v4229 = vrot.slane %v4228, 2
        %v4230 = vmax.f32 %v4228, %v4229
        %v4231 = vrot.slane %v4230, 1
        %v4232 = vmax.f32 %v4230, %v4231
        %v4233 = vsel %vm2559, %v2422, -inf
        %v4234 = vrot.slane %v4233, 4
        %v4235 = vmax.f32 %v4233, %v4234
        %v4236 = vrot.slane %v4235, 2
        %v4237 = vmax.f32 %v4235, %v4236
        %v4238 = vrot.slane %v4237, 1
        %v4239 = vmax.f32 %v4237, %v4238
        %v4240 = vsel %vm2559, %v2167, -inf
        %v4241 = vrot.slane %v4240, 4
        %v4242 = vmax.f32 %v4240, %v4241
        %v4243 = vrot.slane %v4242, 2
        %v4244 = vmax.f32 %v4242, %v4243
        %v4245 = vrot.slane %v4244, 1
        %v4246 = vmax.f32 %v4244, %v4245
        %v4247 = vsel %vm2559, %v2423, -inf
        %v4248 = vrot.slane %v4247, 4
        %v4249 = vmax.f32 %v4247, %v4248
        %v4250 = vrot.slane %v4249, 2
        %v4251 = vmax.f32 %v4249, %v4250
        %v4252 = vrot.slane %v4251, 1
        %v4253 = vmax.f32 %v4251, %v4252
        %v4254 = vsel %vm2559, %v2168, -inf
        %v4255 = vrot.slane %v4254, 4
        %v4256 = vmax.f32 %v4254, %v4255
        %v4257 = vrot.slane %v4256, 2
        %v4258 = vmax.f32 %v4256, %v4257
        %v4259 = vrot.slane %v4258, 1
        %v4260 = vmax.f32 %v4258, %v4259
        %v4261 = vsel %vm2559, %v2424, -inf
        %v4262 = vrot.slane %v4261, 4
        %v4263 = vmax.f32 %v4261, %v4262
        %v4264 = vrot.slane %v4263, 2
        %v4265 = vmax.f32 %v4263, %v4264
        %v4266 = vrot.slane %v4265, 1
        %v4267 = vmax.f32 %v4265, %v4266
        %v4268 = vsel %vm2559, %v2169, -inf
        %v4269 = vrot.slane %v4268, 4
        %v4270 = vmax.f32 %v4268, %v4269
        %v4271 = vrot.slane %v4270, 2
        %v4272 = vmax.f32 %v4270, %v4271
        %v4273 = vrot.slane %v4272, 1
        %v4274 = vmax.f32 %v4272, %v4273
        %v4275 = vsel %vm2559, %v2425, -inf
        %v4276 = vrot.slane %v4275, 4
        %v4277 = vmax.f32 %v4275, %v4276
        %v4278 = vrot.slane %v4277, 2
        %v4279 = vmax.f32 %v4277, %v4278
        %v4280 = vrot.slane %v4279, 1
        %v4281 = vmax.f32 %v4279, %v4280
        %v4282 = vsel %vm2559, %v2170, -inf
        %v4283 = vrot.slane %v4282, 4
        %v4284 = vmax.f32 %v4282, %v4283
        %v4285 = vrot.slane %v4284, 2
        %v4286 = vmax.f32 %v4284, %v4285
        %v4287 = vrot.slane %v4286, 1
        %v4288 = vmax.f32 %v4286, %v4287
        %v4289 = vsel %vm2559, %v2426, -inf
        %v4290 = vrot.slane %v4289, 4
        %v4291 = vmax.f32 %v4289, %v4290
        %v4292 = vrot.slane %v4291, 2
        %v4293 = vmax.f32 %v4291, %v4292
        %v4294 = vrot.slane %v4293, 1
        %v4295 = vmax.f32 %v4293, %v4294
        %v4296 = vsel %vm2559, %v2171, -inf
        %v4297 = vrot.slane %v4296, 4
        %v4298 = vmax.f32 %v4296, %v4297
        %v4299 = vrot.slane %v4298, 2
        %v4300 = vmax.f32 %v4298, %v4299
        %v4301 = vrot.slane %v4300, 1
        %v4302 = vmax.f32 %v4300, %v4301
        %v4303 = vsel %vm2559, %v2427, -inf
        %v4304 = vrot.slane %v4303, 4
        %v4305 = vmax.f32 %v4303, %v4304
        %v4306 = vrot.slane %v4305, 2
        %v4307 = vmax.f32 %v4305, %v4306
        %v4308 = vrot.slane %v4307, 1
        %v4309 = vmax.f32 %v4307, %v4308
        %v4310 = vsel %vm2559, %v2172, -inf
        %v4311 = vrot.slane %v4310, 4
        %v4312 = vmax.f32 %v4310, %v4311
        %v4313 = vrot.slane %v4312, 2
        %v4314 = vmax.f32 %v4312, %v4313
        %v4315 = vrot.slane %v4314, 1
        %v4316 = vmax.f32 %v4314, %v4315
        %v4317 = vsel %vm2559, %v2428, -inf
        %v4318 = vrot.slane %v4317, 4
        %v4319 = vmax.f32 %v4317, %v4318
        %v4320 = vrot.slane %v4319, 2
        %v4321 = vmax.f32 %v4319, %v4320
        %v4322 = vrot.slane %v4321, 1
        %v4323 = vmax.f32 %v4321, %v4322
        %v4324 = vsel %vm2559, %v2173, -inf
        %v4325 = vrot.slane %v4324, 4
        %v4326 = vmax.f32 %v4324, %v4325
        %v4327 = vrot.slane %v4326, 2
        %v4328 = vmax.f32 %v4326, %v4327
        %v4329 = vrot.slane %v4328, 1
        %v4330 = vmax.f32 %v4328, %v4329
        %v4331 = vsel %vm2559, %v2429, -inf
        %v4332 = vrot.slane %v4331, 4
        %v4333 = vmax.f32 %v4331, %v4332
        %v4334 = vrot.slane %v4333, 2
        %v4335 = vmax.f32 %v4333, %v4334
        %v4336 = vrot.slane %v4335, 1
        %v4337 = vmax.f32 %v4335, %v4336
        %v4338 = vsel %vm2559, %v2174, -inf
        %v4339 = vrot.slane %v4338, 4
        %v4340 = vmax.f32 %v4338, %v4339
        %v4341 = vrot.slane %v4340, 2
        %v4342 = vmax.f32 %v4340, %v4341
        %v4343 = vrot.slane %v4342, 1
        %v4344 = vmax.f32 %v4342, %v4343
        %v4345 = vsel %vm2559, %v2430, -inf
        %v4346 = vrot.slane %v4345, 4
        %v4347 = vmax.f32 %v4345, %v4346
        %v4348 = vrot.slane %v4347, 2
        %v4349 = vmax.f32 %v4347, %v4348
        %v4350 = vrot.slane %v4349, 1
        %v4351 = vmax.f32 %v4349, %v4350
        %vm4608 = vcmask 1042434
        %v4609 = vsel %vm4608, %v2573, %v2566
        %vm4610 = vcmask 1043459
        %v4611 = vsel %vm4610, %v2580, %v4609
        %vm4612 = vcmask 1044484
        %v4613 = vsel %vm4612, %v2587, %v4611
        %vm4614 = vcmask 1045509
        %v4615 = vsel %vm4614, %v2594, %v4613
        %vm4616 = vcmask 1046534
        %v4617 = vsel %vm4616, %v2601, %v4615
        %vm4618 = vcmask 1047559
        %v4619 = vsel %vm4618, %v2608, %v4617
        %vm4620 = vcmask 1041409
        %v4621 = vsel %vm4620, %v2622, %v2615
        %v4622 = vsel %vm4608, %v2629, %v4621
        %v4623 = vsel %vm4610, %v2636, %v4622
        %v4624 = vsel %vm4612, %v2643, %v4623
        %v4625 = vsel %vm4614, %v2650, %v4624
        %v4626 = vsel %vm4616, %v2657, %v4625
        %v4627 = vsel %vm4618, %v2664, %v4626
        %v4628 = vsel %vm4620, %v2678, %v2671
        %v4629 = vsel %vm4608, %v2685, %v4628
        %v4630 = vsel %vm4610, %v2692, %v4629
        %v4631 = vsel %vm4612, %v2699, %v4630
        %v4632 = vsel %vm4614, %v2706, %v4631
        %v4633 = vsel %vm4616, %v2713, %v4632
        %v4634 = vsel %vm4618, %v2720, %v4633
        %v4635 = vsel %vm4620, %v2734, %v2727
        %v4636 = vsel %vm4608, %v2741, %v4635
        %v4637 = vsel %vm4610, %v2748, %v4636
        %v4638 = vsel %vm4612, %v2755, %v4637
        %v4639 = vsel %vm4614, %v2762, %v4638
        %v4640 = vsel %vm4616, %v2769, %v4639
        %v4641 = vsel %vm4618, %v2776, %v4640
        %v4642 = vsel %vm4620, %v2790, %v2783
        %v4643 = vsel %vm4608, %v2797, %v4642
        %v4644 = vsel %vm4610, %v2804, %v4643
        %v4645 = vsel %vm4612, %v2811, %v4644
        %v4646 = vsel %vm4614, %v2818, %v4645
        %v4647 = vsel %vm4616, %v2825, %v4646
        %v4648 = vsel %vm4618, %v2832, %v4647
        %v4649 = vsel %vm4620, %v2846, %v2839
        %v4650 = vsel %vm4608, %v2853, %v4649
        %v4651 = vsel %vm4610, %v2860, %v4650
        %v4652 = vsel %vm4612, %v2867, %v4651
        %v4653 = vsel %vm4614, %v2874, %v4652
        %v4654 = vsel %vm4616, %v2881, %v4653
        %v4655 = vsel %vm4618, %v2888, %v4654
        %v4656 = vsel %vm4620, %v2902, %v2895
        %v4657 = vsel %vm4608, %v2909, %v4656
        %v4658 = vsel %vm4610, %v2916, %v4657
        %v4659 = vsel %vm4612, %v2923, %v4658
        %v4660 = vsel %vm4614, %v2930, %v4659
        %v4661 = vsel %vm4616, %v2937, %v4660
        %v4662 = vsel %vm4618, %v2944, %v4661
        %v4663 = vsel %vm4620, %v2958, %v2951
        %v4664 = vsel %vm4608, %v2965, %v4663
        %v4665 = vsel %vm4610, %v2972, %v4664
        %v4666 = vsel %vm4612, %v2979, %v4665
        %v4667 = vsel %vm4614, %v2986, %v4666
        %v4668 = vsel %vm4616, %v2993, %v4667
        %v4669 = vsel %vm4618, %v3000, %v4668
        %v4670 = vsel %vm4620, %v3014, %v3007
        %v4671 = vsel %vm4608, %v3021, %v4670
        %v4672 = vsel %vm4610, %v3028, %v4671
        %v4673 = vsel %vm4612, %v3035, %v4672
        %v4674 = vsel %vm4614, %v3042, %v4673
        %v4675 = vsel %vm4616, %v3049, %v4674
        %v4676 = vsel %vm4618, %v3056, %v4675
        %v4677 = vsel %vm4620, %v3070, %v3063
        %v4678 = vsel %vm4608, %v3077, %v4677
        %v4679 = vsel %vm4610, %v3084, %v4678
        %v4680 = vsel %vm4612, %v3091, %v4679
        %v4681 = vsel %vm4614, %v3098, %v4680
        %v4682 = vsel %vm4616, %v3105, %v4681
        %v4683 = vsel %vm4618, %v3112, %v4682
        %v4684 = vsel %vm4620, %v3126, %v3119
        %v4685 = vsel %vm4608, %v3133, %v4684
        %v4686 = vsel %vm4610, %v3140, %v4685
        %v4687 = vsel %vm4612, %v3147, %v4686
        %v4688 = vsel %vm4614, %v3154, %v4687
        %v4689 = vsel %vm4616, %v3161, %v4688
        %v4690 = vsel %vm4618, %v3168, %v4689
        %v4691 = vsel %vm4620, %v3182, %v3175
        %v4692 = vsel %vm4608, %v3189, %v4691
        %v4693 = vsel %vm4610, %v3196, %v4692
        %v4694 = vsel %vm4612, %v3203, %v4693
        %v4695 = vsel %vm4614, %v3210, %v4694
        %v4696 = vsel %vm4616, %v3217, %v4695
        %v4697 = vsel %vm4618, %v3224, %v4696
        %v4698 = vsel %vm4620, %v3238, %v3231
        %v4699 = vsel %vm4608, %v3245, %v4698
        %v4700 = vsel %vm4610, %v3252, %v4699
        %v4701 = vsel %vm4612, %v3259, %v4700
        %v4702 = vsel %vm4614, %v3266, %v4701
        %v4703 = vsel %vm4616, %v3273, %v4702
        %v4704 = vsel %vm4618, %v3280, %v4703
        %v4705 = vsel %vm4620, %v3294, %v3287
        %v4706 = vsel %vm4608, %v3301, %v4705
        %v4707 = vsel %vm4610, %v3308, %v4706
        %v4708 = vsel %vm4612, %v3315, %v4707
        %v4709 = vsel %vm4614, %v3322, %v4708
        %v4710 = vsel %vm4616, %v3329, %v4709
        %v4711 = vsel %vm4618, %v3336, %v4710
        %v4712 = vsel %vm4620, %v3350, %v3343
        %v4713 = vsel %vm4608, %v3357, %v4712
        %v4714 = vsel %vm4610, %v3364, %v4713
        %v4715 = vsel %vm4612, %v3371, %v4714
        %v4716 = vsel %vm4614, %v3378, %v4715
        %v4717 = vsel %vm4616, %v3385, %v4716
        %v4718 = vsel %vm4618, %v3392, %v4717
        %v4719 = vsel %vm4620, %v3406, %v3399
        %v4720 = vsel %vm4608, %v3413, %v4719
        %v4721 = vsel %vm4610, %v3420, %v4720
        %v4722 = vsel %vm4612, %v3427, %v4721
        %v4723 = vsel %vm4614, %v3434, %v4722
        %v4724 = vsel %vm4616, %v3441, %v4723
        %v4725 = vsel %vm4618, %v3448, %v4724
        %v4726 = vsel %vm4620, %v3462, %v3455
        %v4727 = vsel %vm4608, %v3469, %v4726
        %v4728 = vsel %vm4610, %v3476, %v4727
        %v4729 = vsel %vm4612, %v3483, %v4728
        %v4730 = vsel %vm4614, %v3490, %v4729
        %v4731 = vsel %vm4616, %v3497, %v4730
        %v4732 = vsel %vm4618, %v3504, %v4731
        %v4733 = vsel %vm4620, %v3518, %v3511
        %v4734 = vsel %vm4608, %v3525, %v4733
        %v4735 = vsel %vm4610, %v3532, %v4734
        %v4736 = vsel %vm4612, %v3539, %v4735
        %v4737 = vsel %vm4614, %v3546, %v4736
        %v4738 = vsel %vm4616, %v3553, %v4737
        %v4739 = vsel %vm4618, %v3560, %v4738
        %v4740 = vsel %vm4620, %v3574, %v3567
        %v4741 = vsel %vm4608, %v3581, %v4740
        %v4742 = vsel %vm4610, %v3588, %v4741
        %v4743 = vsel %vm4612, %v3595, %v4742
        %v4744 = vsel %vm4614, %v3602, %v4743
        %v4745 = vsel %vm4616, %v3609, %v4744
        %v4746 = vsel %vm4618, %v3616, %v4745
        %v4747 = vsel %vm4620, %v3630, %v3623
        %v4748 = vsel %vm4608, %v3637, %v4747
        %v4749 = vsel %vm4610, %v3644, %v4748
        %v4750 = vsel %vm4612, %v3651, %v4749
        %v4751 = vsel %vm4614, %v3658, %v4750
        %v4752 = vsel %vm4616, %v3665, %v4751
        %v4753 = vsel %vm4618, %v3672, %v4752
        %v4754 = vsel %vm4620, %v3686, %v3679
        %v4755 = vsel %vm4608, %v3693, %v4754
        %v4756 = vsel %vm4610, %v3700, %v4755
        %v4757 = vsel %vm4612, %v3707, %v4756
        %v4758 = vsel %vm4614, %v3714, %v4757
        %v4759 = vsel %vm4616, %v3721, %v4758
        %v4760 = vsel %vm4618, %v3728, %v4759
        %v4761 = vsel %vm4620, %v3742, %v3735
        %v4762 = vsel %vm4608, %v3749, %v4761
        %v4763 = vsel %vm4610, %v3756, %v4762
        %v4764 = vsel %vm4612, %v3763, %v4763
        %v4765 = vsel %vm4614, %v3770, %v4764
        %v4766 = vsel %vm4616, %v3777, %v4765
        %v4767 = vsel %vm4618, %v3784, %v4766
        %v4768 = vsel %vm4620, %v3798, %v3791
        %v4769 = vsel %vm4608, %v3805, %v4768
        %v4770 = vsel %vm4610, %v3812, %v4769
        %v4771 = vsel %vm4612, %v3819, %v4770
        %v4772 = vsel %vm4614, %v3826, %v4771
        %v4773 = vsel %vm4616, %v3833, %v4772
        %v4774 = vsel %vm4618, %v3840, %v4773
        %v4775 = vsel %vm4620, %v3854, %v3847
        %v4776 = vsel %vm4608, %v3861, %v4775
        %v4777 = vsel %vm4610, %v3868, %v4776
        %v4778 = vsel %vm4612, %v3875, %v4777
        %v4779 = vsel %vm4614, %v3882, %v4778
        %v4780 = vsel %vm4616, %v3889, %v4779
        %v4781 = vsel %vm4618, %v3896, %v4780
        %v4782 = vsel %vm4620, %v3910, %v3903
        %v4783 = vsel %vm4608, %v3917, %v4782
        %v4784 = vsel %vm4610, %v3924, %v4783
        %v4785 = vsel %vm4612, %v3931, %v4784
        %v4786 = vsel %vm4614, %v3938, %v4785
        %v4787 = vsel %vm4616, %v3945, %v4786
        %v4788 = vsel %vm4618, %v3952, %v4787
        %v4789 = vsel %vm4620, %v3966, %v3959
        %v4790 = vsel %vm4608, %v3973, %v4789
        %v4791 = vsel %vm4610, %v3980, %v4790
        %v4792 = vsel %vm4612, %v3987, %v4791
        %v4793 = vsel %vm4614, %v3994, %v4792
        %v4794 = vsel %vm4616, %v4001, %v4793
        %v4795 = vsel %vm4618, %v4008, %v4794
        %v4796 = vsel %vm4620, %v4022, %v4015
        %v4797 = vsel %vm4608, %v4029, %v4796
        %v4798 = vsel %vm4610, %v4036, %v4797
        %v4799 = vsel %vm4612, %v4043, %v4798
        %v4800 = vsel %vm4614, %v4050, %v4799
        %v4801 = vsel %vm4616, %v4057, %v4800
        %v4802 = vsel %vm4618, %v4064, %v4801
        %v4803 = vsel %vm4620, %v4078, %v4071
        %v4804 = vsel %vm4608, %v4085, %v4803
        %v4805 = vsel %vm4610, %v4092, %v4804
        %v4806 = vsel %vm4612, %v4099, %v4805
        %v4807 = vsel %vm4614, %v4106, %v4806
        %v4808 = vsel %vm4616, %v4113, %v4807
        %v4809 = vsel %vm4618, %v4120, %v4808
        %v4810 = vsel %vm4620, %v4134, %v4127
        %v4811 = vsel %vm4608, %v4141, %v4810
        %v4812 = vsel %vm4610, %v4148, %v4811
        %v4813 = vsel %vm4612, %v4155, %v4812
        %v4814 = vsel %vm4614, %v4162, %v4813
        %v4815 = vsel %vm4616, %v4169, %v4814
        %v4816 = vsel %vm4618, %v4176, %v4815
        %v4817 = vsel %vm4620, %v4190, %v4183
        %v4818 = vsel %vm4608, %v4197, %v4817
        %v4819 = vsel %vm4610, %v4204, %v4818
        %v4820 = vsel %vm4612, %v4211, %v4819
        %v4821 = vsel %vm4614, %v4218, %v4820
        %v4822 = vsel %vm4616, %v4225, %v4821
        %v4823 = vsel %vm4618, %v4232, %v4822
        %v4824 = vsel %vm4620, %v4246, %v4239
        %v4825 = vsel %vm4608, %v4253, %v4824
        %v4826 = vsel %vm4610, %v4260, %v4825
        %v4827 = vsel %vm4612, %v4267, %v4826
        %v4828 = vsel %vm4614, %v4274, %v4827
        %v4829 = vsel %vm4616, %v4281, %v4828
        %v4830 = vsel %vm4618, %v4288, %v4829
        %v4831 = vsel %vm4620, %v4302, %v4295
        %v4832 = vsel %vm4608, %v4309, %v4831
        %v4833 = vsel %vm4610, %v4316, %v4832
        %v4834 = vsel %vm4612, %v4323, %v4833
        %v4835 = vsel %vm4614, %v4330, %v4834
        %v4836 = vsel %vm4616, %v4337, %v4835
        %v4837 = vsel %vm4618, %v4344, %v4836
        %vm4840 = vcmask 1040384
        %v4841 = vsel %vm4840, 0.0, %v4619
        %v4842 = vsel %vm4840, %v4351, 0.0
        %v4843 = vld [vmem:[%s9] sm:$0xff]
        %v4844 = vld [vmem:[%s9 + $0x8] sm:$0xff]
        %v4845 = vld [vmem:[%s9 + $0x10] sm:$0xff]
        %v4846 = vld [vmem:[%s9 + $0x18] sm:$0xff]
        %v4847 = vld [vmem:[%s9 + $0x20] sm:$0xff]
        %v4848 = vld [vmem:[%s9 + $0x28] sm:$0xff]
        %v4849 = vld [vmem:[%s9 + $0x30] sm:$0xff]
        %v4850 = vld [vmem:[%s9 + $0x38] sm:$0xff]
        %s4851 = scalar_lea.vmem %s9, 64
        %v4852 = vld [vmem:[%s4851] sm:$0xff]
        %v4853 = vld [vmem:[%s4851 + $0x8] sm:$0xff]
        %v4854 = vld [vmem:[%s4851 + $0x10] sm:$0xff]
        %v4855 = vld [vmem:[%s4851 + $0x18] sm:$0xff]
        %v4856 = vld [vmem:[%s4851 + $0x20] sm:$0xff]
        %v4857 = vld [vmem:[%s4851 + $0x28] sm:$0xff]
        %v4858 = vld [vmem:[%s4851 + $0x30] sm:$0xff]
        %v4859 = vld [vmem:[%s4851 + $0x38] sm:$0xff]
        %vm4862 = vcmask 1046528
        %v4863 = vrot.slane %v4841, 1
        %v4864 = vrot.slane %v4627, 1
        %v4865 = vsel %vm4862, %v4863, %v4864
        %v4866 = vrot.slane %v4634, 1
        %v4867 = vsel %vm4862, %v4864, %v4866
        %v4868 = vrot.slane %v4641, 1
        %v4869 = vsel %vm4862, %v4866, %v4868
        %v4870 = vrot.slane %v4648, 1
        %v4871 = vsel %vm4862, %v4868, %v4870
        %v4872 = vrot.slane %v4655, 1
        %v4873 = vsel %vm4862, %v4870, %v4872
        %v4874 = vrot.slane %v4662, 1
        %v4875 = vsel %vm4862, %v4872, %v4874
        %v4876 = vrot.slane %v4669, 1
        %v4877 = vsel %vm4862, %v4874, %v4876
        %v4878 = vrot.slane %v4676, 1
        %v4879 = vsel %vm4862, %v4876, %v4878
        %v4880 = vrot.slane %v4683, 1
        %v4881 = vsel %vm4862, %v4878, %v4880
        %v4882 = vrot.slane %v4690, 1
        %v4883 = vsel %vm4862, %v4880, %v4882
        %v4884 = vrot.slane %v4697, 1
        %v4885 = vsel %vm4862, %v4882, %v4884
        %v4886 = vrot.slane %v4704, 1
        %v4887 = vsel %vm4862, %v4884, %v4886
        %v4888 = vrot.slane %v4711, 1
        %v4889 = vsel %vm4862, %v4886, %v4888
        %v4890 = vrot.slane %v4718, 1
        %v4891 = vsel %vm4862, %v4888, %v4890
        %v4892 = vrot.slane %v4725, 1
        %v4893 = vsel %vm4862, %v4890, %v4892
        %v4894 = vrot.slane %v4732, 1
        %v4895 = vsel %vm4862, %v4892, %v4894
        %v4896 = vrot.slane %v4739, 1
        %v4897 = vsel %vm4862, %v4894, %v4896
        %v4898 = vrot.slane %v4746, 1
        %v4899 = vsel %vm4862, %v4896, %v4898
        %v4900 = vrot.slane %v4753, 1
        %v4901 = vsel %vm4862, %v4898, %v4900
        %v4902 = vrot.slane %v4760, 1
        %v4903 = vsel %vm4862, %v4900, %v4902
        %v4904 = vrot.slane %v4767, 1
        %v4905 = vsel %vm4862, %v4902, %v4904
        %v4906 = vrot.slane %v4774, 1
        %v4907 = vsel %vm4862, %v4904, %v4906
        %v4908 = vrot.slane %v4781, 1
        %v4909 = vsel %vm4862, %v4906, %v4908
        %v4910 = vrot.slane %v4788, 1
        %v4911 = vsel %vm4862, %v4908, %v4910
        %v4912 = vrot.slane %v4795, 1
        %v4913 = vsel %vm4862, %v4910, %v4912
        %v4914 = vrot.slane %v4802, 1
        %v4915 = vsel %vm4862, %v4912, %v4914
        %v4916 = vrot.slane %v4809, 1
        %v4917 = vsel %vm4862, %v4914, %v4916
        %v4918 = vrot.slane %v4816, 1
        %v4919 = vsel %vm4862, %v4916, %v4918
        %v4920 = vrot.slane %v4823, 1
        %v4921 = vsel %vm4862, %v4918, %v4920
        %v4922 = vrot.slane %v4830, 1
        %v4923 = vsel %vm4862, %v4920, %v4922
        %v4924 = vrot.slane %v4837, 1
        %v4925 = vsel %vm4862, %v4922, %v4924
        %v4926 = vrot.slane %v4842, 1
        %v4927 = vsel %vm4862, %v4924, %v4926
        %vm4928 = vcmask 523264
        %v4929 = vsel %vm4928, %v4865, 0
        %v4931 = vsel %vm4928, %v4867, 0
        %v4933 = vsel %vm4928, %v4869, 0
        %v4935 = vsel %vm4928, %v4871, 0
        %v4937 = vsel %vm4928, %v4873, 0
        %v4939 = vsel %vm4928, %v4875, 0
        %v4941 = vsel %vm4928, %v4877, 0
        %v4943 = vsel %vm4928, %v4879, 0
        %v4945 = vsel %vm4928, %v4881, 0
        %v4947 = vsel %vm4928, %v4883, 0
        %v4949 = vsel %vm4928, %v4885, 0
        %v4951 = vsel %vm4928, %v4887, 0
        %v4953 = vsel %vm4928, %v4889, 0
        %v4955 = vsel %vm4928, %v4891, 0
        %v4957 = vsel %vm4928, %v4893, 0
        %v4959 = vsel %vm4928, %v4895, 0
        %v4961 = vsel %vm4928, %v4897, 0
        %v4963 = vsel %vm4928, %v4899, 0
        %v4965 = vsel %vm4928, %v4901, 0
        %v4967 = vsel %vm4928, %v4903, 0
        %v4969 = vsel %vm4928, %v4905, 0
        %v4971 = vsel %vm4928, %v4907, 0
        %v4973 = vsel %vm4928, %v4909, 0
        %v4975 = vsel %vm4928, %v4911, 0
        %v4977 = vsel %vm4928, %v4913, 0
        %v4979 = vsel %vm4928, %v4915, 0
        %v4981 = vsel %vm4928, %v4917, 0
        %v4983 = vsel %vm4928, %v4919, 0
        %v4985 = vsel %vm4928, %v4921, 0
        %v4987 = vsel %vm4928, %v4923, 0
        %v4989 = vsel %vm4928, %v4925, 0
        %v4991 = vsel %vm4928, %v4927, 0
        %4993 = vmatprep.subr.mxu0 0.0
        %4994 = vmatpush1.msra.mxu0 0.0
        %4995 = vmatprep.subr.mxu0 0.0
        %4996 = vmatpush1.msra.mxu0 0.0
        %4997 = vmatprep.subr.mxu0 0.0
        %4998 = vmatpush1.msra.mxu0 0.0
        %4999 = vmatprep.subr.mxu0 0.0
        %5000 = vmatpush1.msra.mxu0 0.0
        %5001 = vmatprep.subr.mxu0 0.0
        %5002 = vmatpush1.msra.mxu0 0.0
        %5003 = vmatprep.subr.mxu0 0.0
        %5004 = vmatpush1.msra.mxu0 0.0
        %5005 = vmatprep.subr.mxu0 0.0
        %5006 = vmatpush1.msra.mxu0 0.0
        %5007 = vmatprep.subr.mxu0 0.0
        %5008 = vmatpush1.msra.mxu0 0.0
        %5009 = vmatprep.subr.mxu0 0.0
        %5010 = vmatpush1.msra.mxu0 %v4859
        %5011 = vmatprep.subr.mxu0 0.0
        %5012 = vmatpush1.msra.mxu0 %v4858
        %5013 = vmatprep.subr.mxu0 0.0
        %5014 = vmatpush1.msra.mxu0 %v4857
        %5015 = vmatprep.subr.mxu0 0.0
        %5016 = vmatpush1.msra.mxu0 %v4856
        %5017 = vmatprep.subr.mxu0 0.0
        %5018 = vmatpush1.msra.mxu0 %v4855
        %5019 = vmatprep.subr.mxu0 0.0
        %5020 = vmatpush1.msra.mxu0 %v4854
        %5021 = vmatprep.subr.mxu0 0.0
        %5022 = vmatpush1.msra.mxu0 %v4853
        %5023 = vmatprep.subr.mxu0 0.0
        %5024 = vmatpush1.msra.mxu0 %v4852
        %5025 = vmatprep.subr.mxu0 0.0
        %5026 = vmatpush2.msra.mxu0 0.0
        %5027 = vmatprep.subr.mxu0 0.0
        %5028 = vmatpush2.msra.mxu0 0.0
        %5029 = vmatprep.subr.mxu0 0.0
        %5030 = vmatpush2.msra.mxu0 0.0
        %5031 = vmatprep.subr.mxu0 0.0
        %5032 = vmatpush2.msra.mxu0 0.0
        %5033 = vmatprep.subr.mxu0 0.0
        %5034 = vmatpush2.msra.mxu0 0.0
        %5035 = vmatprep.subr.mxu0 0.0
        %5036 = vmatpush2.msra.mxu0 0.0
        %5037 = vmatprep.subr.mxu0 0.0
        %5038 = vmatpush2.msra.mxu0 0.0
        %5039 = vmatprep.subr.mxu0 0.0
        %5040 = vmatpush2.msra.mxu0 0.0
        %5041 = vmatprep.subr.mxu0 0.0
        %5042 = vmatpush2.msra.mxu0 0.0
        %5043 = vmatprep.subr.mxu0 0.0
        %5044 = vmatpush2.msra.mxu0 0.0
        %5045 = vmatprep.subr.mxu0 0.0
        %5046 = vmatpush2.msra.mxu0 0.0
        %5047 = vmatprep.subr.mxu0 0.0
        %5048 = vmatpush2.msra.mxu0 0.0
        %5049 = vmatprep.subr.mxu0 0.0
        %5050 = vmatpush2.msra.mxu0 0.0
        %5051 = vmatprep.subr.mxu0 0.0
        %5052 = vmatpush2.msra.mxu0 0.0
        %5053 = vmatprep.subr.mxu0 0.0
        %5054 = vmatpush2.msra.mxu0 0.0
        %5055 = vmatprep.subr.mxu0 0.0
        %5056 = vmatpush2.msra.mxu0 0.0
        %5057 = vmatprep.mubr.f32.mxu0 0.0
        %5058 = vmatmul.mubr.f32.gmra.mxu0 %v4929
        %v5059 = vpop.f32.mrf.mxu0
        %v5060 = vadd.f32 0.0, %v5059
        %v5061 = vpop.f32.mrf.mxu0
        %5062 = vmatprep.mubr.f32.mxu0 0.0
        %5063 = vmatmul.mubr.f32.gmra.mxu0 %v4931
        %v5064 = vpop.f32.mrf.mxu0
        %v5065 = vadd.f32 0.0, %v5064
        %v5066 = vpop.f32.mrf.mxu0
        %5067 = vmatprep.mubr.f32.mxu0 0.0
        %5068 = vmatmul.mubr.f32.gmra.mxu0 %v4933
        %v5069 = vpop.f32.mrf.mxu0
        %v5070 = vadd.f32 0.0, %v5069
        %v5071 = vpop.f32.mrf.mxu0
        %5072 = vmatprep.mubr.f32.mxu0 0.0
        %5073 = vmatmul.mubr.f32.gmra.mxu0 %v4935
        %v5074 = vpop.f32.mrf.mxu0
        %v5075 = vadd.f32 0.0, %v5074
        %v5076 = vpop.f32.mrf.mxu0
        %5077 = vmatprep.mubr.f32.mxu0 0.0
        %5078 = vmatmul.mubr.f32.gmra.mxu0 %v4937
        %v5079 = vpop.f32.mrf.mxu0
        %v5080 = vadd.f32 0.0, %v5079
        %v5081 = vpop.f32.mrf.mxu0
        %5082 = vmatprep.mubr.f32.mxu0 0.0
        %5083 = vmatmul.mubr.f32.gmra.mxu0 %v4939
        %v5084 = vpop.f32.mrf.mxu0
        %v5085 = vadd.f32 0.0, %v5084
        %v5086 = vpop.f32.mrf.mxu0
        %5087 = vmatprep.mubr.f32.mxu0 0.0
        %5088 = vmatmul.mubr.f32.gmra.mxu0 %v4941
        %v5089 = vpop.f32.mrf.mxu0
        %v5090 = vadd.f32 0.0, %v5089
        %v5091 = vpop.f32.mrf.mxu0
        %5092 = vmatprep.mubr.f32.mxu0 0.0
        %5093 = vmatmul.mubr.f32.gmra.mxu0 %v4943
        %v5094 = vpop.f32.mrf.mxu0
        %v5095 = vadd.f32 0.0, %v5094
        %v5096 = vpop.f32.mrf.mxu0
        %5097 = vmatprep.mubr.f32.mxu0 0.0
        %5098 = vmatmul.mubr.f32.gmra.mxu0 %v4945
        %v5099 = vpop.f32.mrf.mxu0
        %v5100 = vadd.f32 0.0, %v5099
        %v5101 = vpop.f32.mrf.mxu0
        %5102 = vmatprep.mubr.f32.mxu0 0.0
        %5103 = vmatmul.mubr.f32.gmra.mxu0 %v4947
        %v5104 = vpop.f32.mrf.mxu0
        %v5105 = vadd.f32 0.0, %v5104
        %v5106 = vpop.f32.mrf.mxu0
        %5107 = vmatprep.mubr.f32.mxu0 0.0
        %5108 = vmatmul.mubr.f32.gmra.mxu0 %v4949
        %v5109 = vpop.f32.mrf.mxu0
        %v5110 = vadd.f32 0.0, %v5109
        %v5111 = vpop.f32.mrf.mxu0
        %5112 = vmatprep.mubr.f32.mxu0 0.0
        %5113 = vmatmul.mubr.f32.gmra.mxu0 %v4951
        %v5114 = vpop.f32.mrf.mxu0
        %v5115 = vadd.f32 0.0, %v5114
        %v5116 = vpop.f32.mrf.mxu0
        %5117 = vmatprep.mubr.f32.mxu0 0.0
        %5118 = vmatmul.mubr.f32.gmra.mxu0 %v4953
        %v5119 = vpop.f32.mrf.mxu0
        %v5120 = vadd.f32 0.0, %v5119
        %v5121 = vpop.f32.mrf.mxu0
        %5122 = vmatprep.mubr.f32.mxu0 0.0
        %5123 = vmatmul.mubr.f32.gmra.mxu0 %v4955
        %v5124 = vpop.f32.mrf.mxu0
        %v5125 = vadd.f32 0.0, %v5124
        %v5126 = vpop.f32.mrf.mxu0
        %5127 = vmatprep.mubr.f32.mxu0 0.0
        %5128 = vmatmul.mubr.f32.gmra.mxu0 %v4957
        %v5129 = vpop.f32.mrf.mxu0
        %v5130 = vadd.f32 0.0, %v5129
        %v5131 = vpop.f32.mrf.mxu0
        %5132 = vmatprep.mubr.f32.mxu0 0.0
        %5133 = vmatmul.mubr.f32.gmra.mxu0 %v4959
        %v5134 = vpop.f32.mrf.mxu0
        %v5135 = vadd.f32 0.0, %v5134
        %v5136 = vpop.f32.mrf.mxu0
        %5137 = vmatprep.mubr.f32.mxu0 0.0
        %5138 = vmatmul.mubr.f32.gmra.mxu0 %v4961
        %v5139 = vpop.f32.mrf.mxu0
        %v5140 = vadd.f32 0.0, %v5139
        %v5141 = vpop.f32.mrf.mxu0
        %5142 = vmatprep.mubr.f32.mxu0 0.0
        %5143 = vmatmul.mubr.f32.gmra.mxu0 %v4963
        %v5144 = vpop.f32.mrf.mxu0
        %v5145 = vadd.f32 0.0, %v5144
        %v5146 = vpop.f32.mrf.mxu0
        %5147 = vmatprep.mubr.f32.mxu0 0.0
        %5148 = vmatmul.mubr.f32.gmra.mxu0 %v4965
        %v5149 = vpop.f32.mrf.mxu0
        %v5150 = vadd.f32 0.0, %v5149
        %v5151 = vpop.f32.mrf.mxu0
        %5152 = vmatprep.mubr.f32.mxu0 0.0
        %5153 = vmatmul.mubr.f32.gmra.mxu0 %v4967
        %v5154 = vpop.f32.mrf.mxu0
        %v5155 = vadd.f32 0.0, %v5154
        %v5156 = vpop.f32.mrf.mxu0
        %5157 = vmatprep.mubr.f32.mxu0 0.0
        %5158 = vmatmul.mubr.f32.gmra.mxu0 %v4969
        %v5159 = vpop.f32.mrf.mxu0
        %v5160 = vadd.f32 0.0, %v5159
        %v5161 = vpop.f32.mrf.mxu0
        %5162 = vmatprep.mubr.f32.mxu0 0.0
        %5163 = vmatmul.mubr.f32.gmra.mxu0 %v4971
        %v5164 = vpop.f32.mrf.mxu0
        %v5165 = vadd.f32 0.0, %v5164
        %v5166 = vpop.f32.mrf.mxu0
        %5167 = vmatprep.mubr.f32.mxu0 0.0
        %5168 = vmatmul.mubr.f32.gmra.mxu0 %v4973
        %v5169 = vpop.f32.mrf.mxu0
        %v5170 = vadd.f32 0.0, %v5169
        %v5171 = vpop.f32.mrf.mxu0
        %5172 = vmatprep.mubr.f32.mxu0 0.0
        %5173 = vmatmul.mubr.f32.gmra.mxu0 %v4975
        %v5174 = vpop.f32.mrf.mxu0
        %v5175 = vadd.f32 0.0, %v5174
        %v5176 = vpop.f32.mrf.mxu0
        %5177 = vmatprep.mubr.f32.mxu0 0.0
        %5178 = vmatmul.mubr.f32.gmra.mxu0 %v4977
        %v5179 = vpop.f32.mrf.mxu0
        %v5180 = vadd.f32 0.0, %v5179
        %v5181 = vpop.f32.mrf.mxu0
        %5182 = vmatprep.mubr.f32.mxu0 0.0
        %5183 = vmatmul.mubr.f32.gmra.mxu0 %v4979
        %v5184 = vpop.f32.mrf.mxu0
        %v5185 = vadd.f32 0.0, %v5184
        %v5186 = vpop.f32.mrf.mxu0
        %5187 = vmatprep.mubr.f32.mxu0 0.0
        %5188 = vmatmul.mubr.f32.gmra.mxu0 %v4981
        %v5189 = vpop.f32.mrf.mxu0
        %v5190 = vadd.f32 0.0, %v5189
        %v5191 = vpop.f32.mrf.mxu0
        %5192 = vmatprep.mubr.f32.mxu0 0.0
        %5193 = vmatmul.mubr.f32.gmra.mxu0 %v4983
        %v5194 = vpop.f32.mrf.mxu0
        %v5195 = vadd.f32 0.0, %v5194
        %v5196 = vpop.f32.mrf.mxu0
        %5197 = vmatprep.mubr.f32.mxu0 0.0
        %5198 = vmatmul.mubr.f32.gmra.mxu0 %v4985
        %v5199 = vpop.f32.mrf.mxu0
        %v5200 = vadd.f32 0.0, %v5199
        %v5201 = vpop.f32.mrf.mxu0
        %5202 = vmatprep.mubr.f32.mxu0 0.0
        %5203 = vmatmul.mubr.f32.gmra.mxu0 %v4987
        %v5204 = vpop.f32.mrf.mxu0
        %v5205 = vadd.f32 0.0, %v5204
        %v5206 = vpop.f32.mrf.mxu0
        %5207 = vmatprep.mubr.f32.mxu0 0.0
        %5208 = vmatmul.mubr.f32.gmra.mxu0 %v4989
        %v5209 = vpop.f32.mrf.mxu0
        %v5210 = vadd.f32 0.0, %v5209
        %v5211 = vpop.f32.mrf.mxu0
        %5212 = vmatprep.mubr.f32.mxu0 0.0
        %5213 = vmatmul.mubr.f32.gmra.mxu0 %v4991
        %v5214 = vpop.f32.mrf.mxu0
        %v5215 = vadd.f32 0.0, %v5214
        %v5216 = vpop.f32.mrf.mxu0
        %5217 = vdwg.mxu0
        %v5218 = vsel %vm4928, %v4841, 0
        %v5220 = vsel %vm4928, %v4627, 0
        %v5222 = vsel %vm4928, %v4634, 0
        %v5224 = vsel %vm4928, %v4641, 0
        %v5226 = vsel %vm4928, %v4648, 0
        %v5228 = vsel %vm4928, %v4655, 0
        %v5230 = vsel %vm4928, %v4662, 0
        %v5232 = vsel %vm4928, %v4669, 0
        %v5234 = vsel %vm4928, %v4676, 0
        %v5236 = vsel %vm4928, %v4683, 0
        %v5238 = vsel %vm4928, %v4690, 0
        %v5240 = vsel %vm4928, %v4697, 0
        %v5242 = vsel %vm4928, %v4704, 0
        %v5244 = vsel %vm4928, %v4711, 0
        %v5246 = vsel %vm4928, %v4718, 0
        %v5248 = vsel %vm4928, %v4725, 0
        %v5250 = vsel %vm4928, %v4732, 0
        %v5252 = vsel %vm4928, %v4739, 0
        %v5254 = vsel %vm4928, %v4746, 0
        %v5256 = vsel %vm4928, %v4753, 0
        %v5258 = vsel %vm4928, %v4760, 0
        %v5260 = vsel %vm4928, %v4767, 0
        %v5262 = vsel %vm4928, %v4774, 0
        %v5264 = vsel %vm4928, %v4781, 0
        %v5266 = vsel %vm4928, %v4788, 0
        %v5268 = vsel %vm4928, %v4795, 0
        %v5270 = vsel %vm4928, %v4802, 0
        %v5272 = vsel %vm4928, %v4809, 0
        %v5274 = vsel %vm4928, %v4816, 0
        %v5276 = vsel %vm4928, %v4823, 0
        %v5278 = vsel %vm4928, %v4830, 0
        %v5280 = vsel %vm4928, %v4837, 0
        %5282 = vmatprep.subr.mxu0 0.0
        %5283 = vmatpush1.msra.mxu0 0.0
        %5284 = vmatprep.subr.mxu0 0.0
        %5285 = vmatpush1.msra.mxu0 0.0
        %5286 = vmatprep.subr.mxu0 0.0
        %5287 = vmatpush1.msra.mxu0 0.0
        %5288 = vmatprep.subr.mxu0 0.0
        %5289 = vmatpush1.msra.mxu0 0.0
        %5290 = vmatprep.subr.mxu0 0.0
        %5291 = vmatpush1.msra.mxu0 0.0
        %5292 = vmatprep.subr.mxu0 0.0
        %5293 = vmatpush1.msra.mxu0 0.0
        %5294 = vmatprep.subr.mxu0 0.0
        %5295 = vmatpush1.msra.mxu0 0.0
        %5296 = vmatprep.subr.mxu0 0.0
        %5297 = vmatpush1.msra.mxu0 0.0
        %5298 = vmatprep.subr.mxu0 0.0
        %5299 = vmatpush1.msra.mxu0 %v4850
        %5300 = vmatprep.subr.mxu0 0.0
        %5301 = vmatpush1.msra.mxu0 %v4849
        %5302 = vmatprep.subr.mxu0 0.0
        %5303 = vmatpush1.msra.mxu0 %v4848
        %5304 = vmatprep.subr.mxu0 0.0
        %5305 = vmatpush1.msra.mxu0 %v4847
        %5306 = vmatprep.subr.mxu0 0.0
        %5307 = vmatpush1.msra.mxu0 %v4846
        %5308 = vmatprep.subr.mxu0 0.0
        %5309 = vmatpush1.msra.mxu0 %v4845
        %5310 = vmatprep.subr.mxu0 0.0
        %5311 = vmatpush1.msra.mxu0 %v4844
        %5312 = vmatprep.subr.mxu0 0.0
        %5313 = vmatpush1.msra.mxu0 %v4843
        %5314 = vmatprep.subr.mxu0 0.0
        %5315 = vmatpush2.msra.mxu0 0.0
        %5316 = vmatprep.subr.mxu0 0.0
        %5317 = vmatpush2.msra.mxu0 0.0
        %5318 = vmatprep.subr.mxu0 0.0
        %5319 = vmatpush2.msra.mxu0 0.0
        %5320 = vmatprep.subr.mxu0 0.0
        %5321 = vmatpush2.msra.mxu0 0.0
        %5322 = vmatprep.subr.mxu0 0.0
        %5323 = vmatpush2.msra.mxu0 0.0
        %5324 = vmatprep.subr.mxu0 0.0
        %5325 = vmatpush2.msra.mxu0 0.0
        %5326 = vmatprep.subr.mxu0 0.0
        %5327 = vmatpush2.msra.mxu0 0.0
        %5328 = vmatprep.subr.mxu0 0.0
        %5329 = vmatpush2.msra.mxu0 0.0
        %5330 = vmatprep.subr.mxu0 0.0
        %5331 = vmatpush2.msra.mxu0 0.0
        %5332 = vmatprep.subr.mxu0 0.0
        %5333 = vmatpush2.msra.mxu0 0.0
        %5334 = vmatprep.subr.mxu0 0.0
        %5335 = vmatpush2.msra.mxu0 0.0
        %5336 = vmatprep.subr.mxu0 0.0
        %5337 = vmatpush2.msra.mxu0 0.0
        %5338 = vmatprep.subr.mxu0 0.0
        %5339 = vmatpush2.msra.mxu0 0.0
        %5340 = vmatprep.subr.mxu0 0.0
        %5341 = vmatpush2.msra.mxu0 0.0
        %5342 = vmatprep.subr.mxu0 0.0
        %5343 = vmatpush2.msra.mxu0 0.0
        %5344 = vmatprep.subr.mxu0 0.0
        %5345 = vmatpush2.msra.mxu0 0.0
        %5346 = vmatprep.mubr.f32.mxu0 0.0
        %5347 = vmatmul.mubr.f32.gmra.mxu0 %v5218
        %v5348 = vpop.f32.mrf.mxu0
        %v5349 = vadd.f32 %v5060, %v5348
        %v5350 = vpop.f32.mrf.mxu0
        %5351 = vmatprep.mubr.f32.mxu0 0.0
        %5352 = vmatmul.mubr.f32.gmra.mxu0 %v5220
        %v5353 = vpop.f32.mrf.mxu0
        %v5354 = vadd.f32 %v5065, %v5353
        %v5355 = vpop.f32.mrf.mxu0
        %5356 = vmatprep.mubr.f32.mxu0 0.0
        %5357 = vmatmul.mubr.f32.gmra.mxu0 %v5222
        %v5358 = vpop.f32.mrf.mxu0
        %v5359 = vadd.f32 %v5070, %v5358
        %v5360 = vpop.f32.mrf.mxu0
        %5361 = vmatprep.mubr.f32.mxu0 0.0
        %5362 = vmatmul.mubr.f32.gmra.mxu0 %v5224
        %v5363 = vpop.f32.mrf.mxu0
        %v5364 = vadd.f32 %v5075, %v5363
        %v5365 = vpop.f32.mrf.mxu0
        %5366 = vmatprep.mubr.f32.mxu0 0.0
        %5367 = vmatmul.mubr.f32.gmra.mxu0 %v5226
        %v5368 = vpop.f32.mrf.mxu0
        %v5369 = vadd.f32 %v5080, %v5368
        %v5370 = vpop.f32.mrf.mxu0
        %5371 = vmatprep.mubr.f32.mxu0 0.0
        %5372 = vmatmul.mubr.f32.gmra.mxu0 %v5228
        %v5373 = vpop.f32.mrf.mxu0
        %v5374 = vadd.f32 %v5085, %v5373
        %v5375 = vpop.f32.mrf.mxu0
        %5376 = vmatprep.mubr.f32.mxu0 0.0
        %5377 = vmatmul.mubr.f32.gmra.mxu0 %v5230
        %v5378 = vpop.f32.mrf.mxu0
        %v5379 = vadd.f32 %v5090, %v5378
        %v5380 = vpop.f32.mrf.mxu0
        %5381 = vmatprep.mubr.f32.mxu0 0.0
        %5382 = vmatmul.mubr.f32.gmra.mxu0 %v5232
        %v5383 = vpop.f32.mrf.mxu0
        %v5384 = vadd.f32 %v5095, %v5383
        %v5385 = vpop.f32.mrf.mxu0
        %5386 = vmatprep.mubr.f32.mxu0 0.0
        %5387 = vmatmul.mubr.f32.gmra.mxu0 %v5234
        %v5388 = vpop.f32.mrf.mxu0
        %v5389 = vadd.f32 %v5100, %v5388
        %v5390 = vpop.f32.mrf.mxu0
        %5391 = vmatprep.mubr.f32.mxu0 0.0
        %5392 = vmatmul.mubr.f32.gmra.mxu0 %v5236
        %v5393 = vpop.f32.mrf.mxu0
        %v5394 = vadd.f32 %v5105, %v5393
        %v5395 = vpop.f32.mrf.mxu0
        %5396 = vmatprep.mubr.f32.mxu0 0.0
        %5397 = vmatmul.mubr.f32.gmra.mxu0 %v5238
        %v5398 = vpop.f32.mrf.mxu0
        %v5399 = vadd.f32 %v5110, %v5398
        %v5400 = vpop.f32.mrf.mxu0
        %5401 = vmatprep.mubr.f32.mxu0 0.0
        %5402 = vmatmul.mubr.f32.gmra.mxu0 %v5240
        %v5403 = vpop.f32.mrf.mxu0
        %v5404 = vadd.f32 %v5115, %v5403
        %v5405 = vpop.f32.mrf.mxu0
        %5406 = vmatprep.mubr.f32.mxu0 0.0
        %5407 = vmatmul.mubr.f32.gmra.mxu0 %v5242
        %v5408 = vpop.f32.mrf.mxu0
        %v5409 = vadd.f32 %v5120, %v5408
        %v5410 = vpop.f32.mrf.mxu0
        %5411 = vmatprep.mubr.f32.mxu0 0.0
        %5412 = vmatmul.mubr.f32.gmra.mxu0 %v5244
        %v5413 = vpop.f32.mrf.mxu0
        %v5414 = vadd.f32 %v5125, %v5413
        %v5415 = vpop.f32.mrf.mxu0
        %5416 = vmatprep.mubr.f32.mxu0 0.0
        %5417 = vmatmul.mubr.f32.gmra.mxu0 %v5246
        %v5418 = vpop.f32.mrf.mxu0
        %v5419 = vadd.f32 %v5130, %v5418
        %v5420 = vpop.f32.mrf.mxu0
        %5421 = vmatprep.mubr.f32.mxu0 0.0
        %5422 = vmatmul.mubr.f32.gmra.mxu0 %v5248
        %v5423 = vpop.f32.mrf.mxu0
        %v5424 = vadd.f32 %v5135, %v5423
        %v5425 = vpop.f32.mrf.mxu0
        %5426 = vmatprep.mubr.f32.mxu0 0.0
        %5427 = vmatmul.mubr.f32.gmra.mxu0 %v5250
        %v5428 = vpop.f32.mrf.mxu0
        %v5429 = vadd.f32 %v5140, %v5428
        %v5430 = vpop.f32.mrf.mxu0
        %5431 = vmatprep.mubr.f32.mxu0 0.0
        %5432 = vmatmul.mubr.f32.gmra.mxu0 %v5252
        %v5433 = vpop.f32.mrf.mxu0
        %v5434 = vadd.f32 %v5145, %v5433
        %v5435 = vpop.f32.mrf.mxu0
        %5436 = vmatprep.mubr.f32.mxu0 0.0
        %5437 = vmatmul.mubr.f32.gmra.mxu0 %v5254
        %v5438 = vpop.f32.mrf.mxu0
        %v5439 = vadd.f32 %v5150, %v5438
        %v5440 = vpop.f32.mrf.mxu0
        %5441 = vmatprep.mubr.f32.mxu0 0.0
        %5442 = vmatmul.mubr.f32.gmra.mxu0 %v5256
        %v5443 = vpop.f32.mrf.mxu0
        %v5444 = vadd.f32 %v5155, %v5443
        %v5445 = vpop.f32.mrf.mxu0
        %5446 = vmatprep.mubr.f32.mxu0 0.0
        %5447 = vmatmul.mubr.f32.gmra.mxu0 %v5258
        %v5448 = vpop.f32.mrf.mxu0
        %v5449 = vadd.f32 %v5160, %v5448
        %v5450 = vpop.f32.mrf.mxu0
        %5451 = vmatprep.mubr.f32.mxu0 0.0
        %5452 = vmatmul.mubr.f32.gmra.mxu0 %v5260
        %v5453 = vpop.f32.mrf.mxu0
        %v5454 = vadd.f32 %v5165, %v5453
        %v5455 = vpop.f32.mrf.mxu0
        %5456 = vmatprep.mubr.f32.mxu0 0.0
        %5457 = vmatmul.mubr.f32.gmra.mxu0 %v5262
        %v5458 = vpop.f32.mrf.mxu0
        %v5459 = vadd.f32 %v5170, %v5458
        %v5460 = vpop.f32.mrf.mxu0
        %5461 = vmatprep.mubr.f32.mxu0 0.0
        %5462 = vmatmul.mubr.f32.gmra.mxu0 %v5264
        %v5463 = vpop.f32.mrf.mxu0
        %v5464 = vadd.f32 %v5175, %v5463
        %v5465 = vpop.f32.mrf.mxu0
        %5466 = vmatprep.mubr.f32.mxu0 0.0
        %5467 = vmatmul.mubr.f32.gmra.mxu0 %v5266
        %v5468 = vpop.f32.mrf.mxu0
        %v5469 = vadd.f32 %v5180, %v5468
        %v5470 = vpop.f32.mrf.mxu0
        %5471 = vmatprep.mubr.f32.mxu0 0.0
        %5472 = vmatmul.mubr.f32.gmra.mxu0 %v5268
        %v5473 = vpop.f32.mrf.mxu0
        %v5474 = vadd.f32 %v5185, %v5473
        %v5475 = vpop.f32.mrf.mxu0
        %5476 = vmatprep.mubr.f32.mxu0 0.0
        %5477 = vmatmul.mubr.f32.gmra.mxu0 %v5270
        %v5478 = vpop.f32.mrf.mxu0
        %v5479 = vadd.f32 %v5190, %v5478
        %v5480 = vpop.f32.mrf.mxu0
        %5481 = vmatprep.mubr.f32.mxu0 0.0
        %5482 = vmatmul.mubr.f32.gmra.mxu0 %v5272
        %v5483 = vpop.f32.mrf.mxu0
        %v5484 = vadd.f32 %v5195, %v5483
        %v5485 = vpop.f32.mrf.mxu0
        %5486 = vmatprep.mubr.f32.mxu0 0.0
        %5487 = vmatmul.mubr.f32.gmra.mxu0 %v5274
        %v5488 = vpop.f32.mrf.mxu0
        %v5489 = vadd.f32 %v5200, %v5488
        %v5490 = vpop.f32.mrf.mxu0
        %5491 = vmatprep.mubr.f32.mxu0 0.0
        %5492 = vmatmul.mubr.f32.gmra.mxu0 %v5276
        %v5493 = vpop.f32.mrf.mxu0
        %v5494 = vadd.f32 %v5205, %v5493
        %v5495 = vpop.f32.mrf.mxu0
        %5496 = vmatprep.mubr.f32.mxu0 0.0
        %5497 = vmatmul.mubr.f32.gmra.mxu0 %v5278
        %v5498 = vpop.f32.mrf.mxu0
        %v5499 = vadd.f32 %v5210, %v5498
        %v5500 = vpop.f32.mrf.mxu0
        %5501 = vmatprep.mubr.f32.mxu0 0.0
        %5502 = vmatmul.mubr.f32.gmra.mxu0 %v5280
        %v5503 = vpop.f32.mrf.mxu0
        %v5504 = vadd.f32 %v5215, %v5503
        %v5505 = vpop.f32.mrf.mxu0
        %5506 = vdwg.mxu0
        %s5507 = scalar_lea.vmem %s9, 128
        %v5508 = vld [vmem:[%s5507] sm:$0xff]
        %v5509 = vld [vmem:[%s5507 + $0x8] sm:$0xff]
        %v5510 = vld [vmem:[%s5507 + $0x10] sm:$0xff]
        %v5511 = vld [vmem:[%s5507 + $0x18] sm:$0xff]
        %v5512 = vld [vmem:[%s5507 + $0x20] sm:$0xff]
        %v5513 = vld [vmem:[%s5507 + $0x28] sm:$0xff]
        %v5514 = vld [vmem:[%s5507 + $0x30] sm:$0xff]
        %v5515 = vld [vmem:[%s5507 + $0x38] sm:$0xff]
        %vm5516 = vcmask 1045504
        %v5517 = vrot.slane %v4841, 2
        %v5518 = vrot.slane %v4627, 2
        %v5519 = vsel %vm5516, %v5517, %v5518
        %v5520 = vrot.slane %v4634, 2
        %v5521 = vsel %vm5516, %v5518, %v5520
        %v5522 = vrot.slane %v4641, 2
        %v5523 = vsel %vm5516, %v5520, %v5522
        %v5524 = vrot.slane %v4648, 2
        %v5525 = vsel %vm5516, %v5522, %v5524
        %v5526 = vrot.slane %v4655, 2
        %v5527 = vsel %vm5516, %v5524, %v5526
        %v5528 = vrot.slane %v4662, 2
        %v5529 = vsel %vm5516, %v5526, %v5528
        %v5530 = vrot.slane %v4669, 2
        %v5531 = vsel %vm5516, %v5528, %v5530
        %v5532 = vrot.slane %v4676, 2
        %v5533 = vsel %vm5516, %v5530, %v5532
        %v5534 = vrot.slane %v4683, 2
        %v5535 = vsel %vm5516, %v5532, %v5534
        %v5536 = vrot.slane %v4690, 2
        %v5537 = vsel %vm5516, %v5534, %v5536
        %v5538 = vrot.slane %v4697, 2
        %v5539 = vsel %vm5516, %v5536, %v5538
        %v5540 = vrot.slane %v4704, 2
        %v5541 = vsel %vm5516, %v5538, %v5540
        %v5542 = vrot.slane %v4711, 2
        %v5543 = vsel %vm5516, %v5540, %v5542
        %v5544 = vrot.slane %v4718, 2
        %v5545 = vsel %vm5516, %v5542, %v5544
        %v5546 = vrot.slane %v4725, 2
        %v5547 = vsel %vm5516, %v5544, %v5546
        %v5548 = vrot.slane %v4732, 2
        %v5549 = vsel %vm5516, %v5546, %v5548
        %v5550 = vrot.slane %v4739, 2
        %v5551 = vsel %vm5516, %v5548, %v5550
        %v5552 = vrot.slane %v4746, 2
        %v5553 = vsel %vm5516, %v5550, %v5552
        %v5554 = vrot.slane %v4753, 2
        %v5555 = vsel %vm5516, %v5552, %v5554
        %v5556 = vrot.slane %v4760, 2
        %v5557 = vsel %vm5516, %v5554, %v5556
        %v5558 = vrot.slane %v4767, 2
        %v5559 = vsel %vm5516, %v5556, %v5558
        %v5560 = vrot.slane %v4774, 2
        %v5561 = vsel %vm5516, %v5558, %v5560
        %v5562 = vrot.slane %v4781, 2
        %v5563 = vsel %vm5516, %v5560, %v5562
        %v5564 = vrot.slane %v4788, 2
        %v5565 = vsel %vm5516, %v5562, %v5564
        %v5566 = vrot.slane %v4795, 2
        %v5567 = vsel %vm5516, %v5564, %v5566
        %v5568 = vrot.slane %v4802, 2
        %v5569 = vsel %vm5516, %v5566, %v5568
        %v5570 = vrot.slane %v4809, 2
        %v5571 = vsel %vm5516, %v5568, %v5570
        %v5572 = vrot.slane %v4816, 2
        %v5573 = vsel %vm5516, %v5570, %v5572
        %v5574 = vrot.slane %v4823, 2
        %v5575 = vsel %vm5516, %v5572, %v5574
        %v5576 = vrot.slane %v4830, 2
        %v5577 = vsel %vm5516, %v5574, %v5576
        %v5578 = vrot.slane %v4837, 2
        %v5579 = vsel %vm5516, %v5576, %v5578
        %v5580 = vrot.slane %v4842, 2
        %v5581 = vsel %vm5516, %v5578, %v5580
        %v5582 = vsel %vm4928, %v5519, 0
        %v5584 = vsel %vm4928, %v5521, 0
        %v5586 = vsel %vm4928, %v5523, 0
        %v5588 = vsel %vm4928, %v5525, 0
        %v5590 = vsel %vm4928, %v5527, 0
        %v5592 = vsel %vm4928, %v5529, 0
        %v5594 = vsel %vm4928, %v5531, 0
        %v5596 = vsel %vm4928, %v5533, 0
        %v5598 = vsel %vm4928, %v5535, 0
        %v5600 = vsel %vm4928, %v5537, 0
        %v5602 = vsel %vm4928, %v5539, 0
        %v5604 = vsel %vm4928, %v5541, 0
        %v5606 = vsel %vm4928, %v5543, 0
        %v5608 = vsel %vm4928, %v5545, 0
        %v5610 = vsel %vm4928, %v5547, 0
        %v5612 = vsel %vm4928, %v5549, 0
        %v5614 = vsel %vm4928, %v5551, 0
        %v5616 = vsel %vm4928, %v5553, 0
        %v5618 = vsel %vm4928, %v5555, 0
        %v5620 = vsel %vm4928, %v5557, 0
        %v5622 = vsel %vm4928, %v5559, 0
        %v5624 = vsel %vm4928, %v5561, 0
        %v5626 = vsel %vm4928, %v5563, 0
        %v5628 = vsel %vm4928, %v5565, 0
        %v5630 = vsel %vm4928, %v5567, 0
        %v5632 = vsel %vm4928, %v5569, 0
        %v5634 = vsel %vm4928, %v5571, 0
        %v5636 = vsel %vm4928, %v5573, 0
        %v5638 = vsel %vm4928, %v5575, 0
        %v5640 = vsel %vm4928, %v5577, 0
        %v5642 = vsel %vm4928, %v5579, 0
        %v5644 = vsel %vm4928, %v5581, 0
        %5646 = vmatprep.subr.mxu0 0.0
        %5647 = vmatpush1.msra.mxu0 0.0
        %5648 = vmatprep.subr.mxu0 0.0
        %5649 = vmatpush1.msra.mxu0 0.0
        %5650 = vmatprep.subr.mxu0 0.0
        %5651 = vmatpush1.msra.mxu0 0.0
        %5652 = vmatprep.subr.mxu0 0.0
        %5653 = vmatpush1.msra.mxu0 0.0
        %5654 = vmatprep.subr.mxu0 0.0
        %5655 = vmatpush1.msra.mxu0 0.0
        %5656 = vmatprep.subr.mxu0 0.0
        %5657 = vmatpush1.msra.mxu0 0.0
        %5658 = vmatprep.subr.mxu0 0.0
        %5659 = vmatpush1.msra.mxu0 0.0
        %5660 = vmatprep.subr.mxu0 0.0
        %5661 = vmatpush1.msra.mxu0 0.0
        %5662 = vmatprep.subr.mxu0 0.0
        %5663 = vmatpush1.msra.mxu0 %v5515
        %5664 = vmatprep.subr.mxu0 0.0
        %5665 = vmatpush1.msra.mxu0 %v5514
        %5666 = vmatprep.subr.mxu0 0.0
        %5667 = vmatpush1.msra.mxu0 %v5513
        %5668 = vmatprep.subr.mxu0 0.0
        %5669 = vmatpush1.msra.mxu0 %v5512
        %5670 = vmatprep.subr.mxu0 0.0
        %5671 = vmatpush1.msra.mxu0 %v5511
        %5672 = vmatprep.subr.mxu0 0.0
        %5673 = vmatpush1.msra.mxu0 %v5510
        %5674 = vmatprep.subr.mxu0 0.0
        %5675 = vmatpush1.msra.mxu0 %v5509
        %5676 = vmatprep.subr.mxu0 0.0
        %5677 = vmatpush1.msra.mxu0 %v5508
        %5678 = vmatprep.subr.mxu0 0.0
        %5679 = vmatpush2.msra.mxu0 0.0
        %5680 = vmatprep.subr.mxu0 0.0
        %5681 = vmatpush2.msra.mxu0 0.0
        %5682 = vmatprep.subr.mxu0 0.0
        %5683 = vmatpush2.msra.mxu0 0.0
        %5684 = vmatprep.subr.mxu0 0.0
        %5685 = vmatpush2.msra.mxu0 0.0
        %5686 = vmatprep.subr.mxu0 0.0
        %5687 = vmatpush2.msra.mxu0 0.0
        %5688 = vmatprep.subr.mxu0 0.0
        %5689 = vmatpush2.msra.mxu0 0.0
        %5690 = vmatprep.subr.mxu0 0.0
        %5691 = vmatpush2.msra.mxu0 0.0
        %5692 = vmatprep.subr.mxu0 0.0
        %5693 = vmatpush2.msra.mxu0 0.0
        %5694 = vmatprep.subr.mxu0 0.0
        %5695 = vmatpush2.msra.mxu0 0.0
        %5696 = vmatprep.subr.mxu0 0.0
        %5697 = vmatpush2.msra.mxu0 0.0
        %5698 = vmatprep.subr.mxu0 0.0
        %5699 = vmatpush2.msra.mxu0 0.0
        %5700 = vmatprep.subr.mxu0 0.0
        %5701 = vmatpush2.msra.mxu0 0.0
        %5702 = vmatprep.subr.mxu0 0.0
        %5703 = vmatpush2.msra.mxu0 0.0
        %5704 = vmatprep.subr.mxu0 0.0
        %5705 = vmatpush2.msra.mxu0 0.0
        %5706 = vmatprep.subr.mxu0 0.0
        %5707 = vmatpush2.msra.mxu0 0.0
        %5708 = vmatprep.subr.mxu0 0.0
        %5709 = vmatpush2.msra.mxu0 0.0
        %5710 = vmatprep.mubr.f32.mxu0 0.0
        %5711 = vmatmul.mubr.f32.gmra.mxu0 %v5582
        %v5712 = vpop.f32.mrf.mxu0
        %v5713 = vadd.f32 0.0, %v5712
        %v5714 = vpop.f32.mrf.mxu0
        %5715 = vmatprep.mubr.f32.mxu0 0.0
        %5716 = vmatmul.mubr.f32.gmra.mxu0 %v5584
        %v5717 = vpop.f32.mrf.mxu0
        %v5718 = vadd.f32 0.0, %v5717
        %v5719 = vpop.f32.mrf.mxu0
        %5720 = vmatprep.mubr.f32.mxu0 0.0
        %5721 = vmatmul.mubr.f32.gmra.mxu0 %v5586
        %v5722 = vpop.f32.mrf.mxu0
        %v5723 = vadd.f32 0.0, %v5722
        %v5724 = vpop.f32.mrf.mxu0
        %5725 = vmatprep.mubr.f32.mxu0 0.0
        %5726 = vmatmul.mubr.f32.gmra.mxu0 %v5588
        %v5727 = vpop.f32.mrf.mxu0
        %v5728 = vadd.f32 0.0, %v5727
        %v5729 = vpop.f32.mrf.mxu0
        %5730 = vmatprep.mubr.f32.mxu0 0.0
        %5731 = vmatmul.mubr.f32.gmra.mxu0 %v5590
        %v5732 = vpop.f32.mrf.mxu0
        %v5733 = vadd.f32 0.0, %v5732
        %v5734 = vpop.f32.mrf.mxu0
        %5735 = vmatprep.mubr.f32.mxu0 0.0
        %5736 = vmatmul.mubr.f32.gmra.mxu0 %v5592
        %v5737 = vpop.f32.mrf.mxu0
        %v5738 = vadd.f32 0.0, %v5737
        %v5739 = vpop.f32.mrf.mxu0
        %5740 = vmatprep.mubr.f32.mxu0 0.0
        %5741 = vmatmul.mubr.f32.gmra.mxu0 %v5594
        %v5742 = vpop.f32.mrf.mxu0
        %v5743 = vadd.f32 0.0, %v5742
        %v5744 = vpop.f32.mrf.mxu0
        %5745 = vmatprep.mubr.f32.mxu0 0.0
        %5746 = vmatmul.mubr.f32.gmra.mxu0 %v5596
        %v5747 = vpop.f32.mrf.mxu0
        %v5748 = vadd.f32 0.0, %v5747
        %v5749 = vpop.f32.mrf.mxu0
        %5750 = vmatprep.mubr.f32.mxu0 0.0
        %5751 = vmatmul.mubr.f32.gmra.mxu0 %v5598
        %v5752 = vpop.f32.mrf.mxu0
        %v5753 = vadd.f32 0.0, %v5752
        %v5754 = vpop.f32.mrf.mxu0
        %5755 = vmatprep.mubr.f32.mxu0 0.0
        %5756 = vmatmul.mubr.f32.gmra.mxu0 %v5600
        %v5757 = vpop.f32.mrf.mxu0
        %v5758 = vadd.f32 0.0, %v5757
        %v5759 = vpop.f32.mrf.mxu0
        %5760 = vmatprep.mubr.f32.mxu0 0.0
        %5761 = vmatmul.mubr.f32.gmra.mxu0 %v5602
        %v5762 = vpop.f32.mrf.mxu0
        %v5763 = vadd.f32 0.0, %v5762
        %v5764 = vpop.f32.mrf.mxu0
        %5765 = vmatprep.mubr.f32.mxu0 0.0
        %5766 = vmatmul.mubr.f32.gmra.mxu0 %v5604
        %v5767 = vpop.f32.mrf.mxu0
        %v5768 = vadd.f32 0.0, %v5767
        %v5769 = vpop.f32.mrf.mxu0
        %5770 = vmatprep.mubr.f32.mxu0 0.0
        %5771 = vmatmul.mubr.f32.gmra.mxu0 %v5606
        %v5772 = vpop.f32.mrf.mxu0
        %v5773 = vadd.f32 0.0, %v5772
        %v5774 = vpop.f32.mrf.mxu0
        %5775 = vmatprep.mubr.f32.mxu0 0.0
        %5776 = vmatmul.mubr.f32.gmra.mxu0 %v5608
        %v5777 = vpop.f32.mrf.mxu0
        %v5778 = vadd.f32 0.0, %v5777
        %v5779 = vpop.f32.mrf.mxu0
        %5780 = vmatprep.mubr.f32.mxu0 0.0
        %5781 = vmatmul.mubr.f32.gmra.mxu0 %v5610
        %v5782 = vpop.f32.mrf.mxu0
        %v5783 = vadd.f32 0.0, %v5782
        %v5784 = vpop.f32.mrf.mxu0
        %5785 = vmatprep.mubr.f32.mxu0 0.0
        %5786 = vmatmul.mubr.f32.gmra.mxu0 %v5612
        %v5787 = vpop.f32.mrf.mxu0
        %v5788 = vadd.f32 0.0, %v5787
        %v5789 = vpop.f32.mrf.mxu0
        %5790 = vmatprep.mubr.f32.mxu0 0.0
        %5791 = vmatmul.mubr.f32.gmra.mxu0 %v5614
        %v5792 = vpop.f32.mrf.mxu0
        %v5793 = vadd.f32 0.0, %v5792
        %v5794 = vpop.f32.mrf.mxu0
        %5795 = vmatprep.mubr.f32.mxu0 0.0
        %5796 = vmatmul.mubr.f32.gmra.mxu0 %v5616
        %v5797 = vpop.f32.mrf.mxu0
        %v5798 = vadd.f32 0.0, %v5797
        %v5799 = vpop.f32.mrf.mxu0
        %5800 = vmatprep.mubr.f32.mxu0 0.0
        %5801 = vmatmul.mubr.f32.gmra.mxu0 %v5618
        %v5802 = vpop.f32.mrf.mxu0
        %v5803 = vadd.f32 0.0, %v5802
        %v5804 = vpop.f32.mrf.mxu0
        %5805 = vmatprep.mubr.f32.mxu0 0.0
        %5806 = vmatmul.mubr.f32.gmra.mxu0 %v5620
        %v5807 = vpop.f32.mrf.mxu0
        %v5808 = vadd.f32 0.0, %v5807
        %v5809 = vpop.f32.mrf.mxu0
        %5810 = vmatprep.mubr.f32.mxu0 0.0
        %5811 = vmatmul.mubr.f32.gmra.mxu0 %v5622
        %v5812 = vpop.f32.mrf.mxu0
        %v5813 = vadd.f32 0.0, %v5812
        %v5814 = vpop.f32.mrf.mxu0
        %5815 = vmatprep.mubr.f32.mxu0 0.0
        %5816 = vmatmul.mubr.f32.gmra.mxu0 %v5624
        %v5817 = vpop.f32.mrf.mxu0
        %v5818 = vadd.f32 0.0, %v5817
        %v5819 = vpop.f32.mrf.mxu0
        %5820 = vmatprep.mubr.f32.mxu0 0.0
        %5821 = vmatmul.mubr.f32.gmra.mxu0 %v5626
        %v5822 = vpop.f32.mrf.mxu0
        %v5823 = vadd.f32 0.0, %v5822
        %v5824 = vpop.f32.mrf.mxu0
        %5825 = vmatprep.mubr.f32.mxu0 0.0
        %5826 = vmatmul.mubr.f32.gmra.mxu0 %v5628
        %v5827 = vpop.f32.mrf.mxu0
        %v5828 = vadd.f32 0.0, %v5827
        %v5829 = vpop.f32.mrf.mxu0
        %5830 = vmatprep.mubr.f32.mxu0 0.0
        %5831 = vmatmul.mubr.f32.gmra.mxu0 %v5630
        %v5832 = vpop.f32.mrf.mxu0
        %v5833 = vadd.f32 0.0, %v5832
        %v5834 = vpop.f32.mrf.mxu0
        %5835 = vmatprep.mubr.f32.mxu0 0.0
        %5836 = vmatmul.mubr.f32.gmra.mxu0 %v5632
        %v5837 = vpop.f32.mrf.mxu0
        %v5838 = vadd.f32 0.0, %v5837
        %v5839 = vpop.f32.mrf.mxu0
        %5840 = vmatprep.mubr.f32.mxu0 0.0
        %5841 = vmatmul.mubr.f32.gmra.mxu0 %v5634
        %v5842 = vpop.f32.mrf.mxu0
        %v5843 = vadd.f32 0.0, %v5842
        %v5844 = vpop.f32.mrf.mxu0
        %5845 = vmatprep.mubr.f32.mxu0 0.0
        %5846 = vmatmul.mubr.f32.gmra.mxu0 %v5636
        %v5847 = vpop.f32.mrf.mxu0
        %v5848 = vadd.f32 0.0, %v5847
        %v5849 = vpop.f32.mrf.mxu0
        %5850 = vmatprep.mubr.f32.mxu0 0.0
        %5851 = vmatmul.mubr.f32.gmra.mxu0 %v5638
        %v5852 = vpop.f32.mrf.mxu0
        %v5853 = vadd.f32 0.0, %v5852
        %v5854 = vpop.f32.mrf.mxu0
        %5855 = vmatprep.mubr.f32.mxu0 0.0
        %5856 = vmatmul.mubr.f32.gmra.mxu0 %v5640
        %v5857 = vpop.f32.mrf.mxu0
        %v5858 = vadd.f32 0.0, %v5857
        %v5859 = vpop.f32.mrf.mxu0
        %5860 = vmatprep.mubr.f32.mxu0 0.0
        %5861 = vmatmul.mubr.f32.gmra.mxu0 %v5642
        %v5862 = vpop.f32.mrf.mxu0
        %v5863 = vadd.f32 0.0, %v5862
        %v5864 = vpop.f32.mrf.mxu0
        %5865 = vmatprep.mubr.f32.mxu0 0.0
        %5866 = vmatmul.mubr.f32.gmra.mxu0 %v5644
        %v5867 = vpop.f32.mrf.mxu0
        %v5868 = vadd.f32 0.0, %v5867
        %v5869 = vpop.f32.mrf.mxu0
        %5870 = vdwg.mxu0
        %v5871 = vadd.f32 %v5349, %v5713
        %v5872 = vadd.f32 %v5354, %v5718
        %v5873 = vadd.f32 %v5359, %v5723
        %v5874 = vadd.f32 %v5364, %v5728
        %v5875 = vadd.f32 %v5369, %v5733
        %v5876 = vadd.f32 %v5374, %v5738
        %v5877 = vadd.f32 %v5379, %v5743
        %v5878 = vadd.f32 %v5384, %v5748
        %v5879 = vadd.f32 %v5389, %v5753
        %v5880 = vadd.f32 %v5394, %v5758
        %v5881 = vadd.f32 %v5399, %v5763
        %v5882 = vadd.f32 %v5404, %v5768
        %v5883 = vadd.f32 %v5409, %v5773
        %v5884 = vadd.f32 %v5414, %v5778
        %v5885 = vadd.f32 %v5419, %v5783
        %v5886 = vadd.f32 %v5424, %v5788
        %v5887 = vadd.f32 %v5429, %v5793
        %v5888 = vadd.f32 %v5434, %v5798
        %v5889 = vadd.f32 %v5439, %v5803
        %v5890 = vadd.f32 %v5444, %v5808
        %v5891 = vadd.f32 %v5449, %v5813
        %v5892 = vadd.f32 %v5454, %v5818
        %v5893 = vadd.f32 %v5459, %v5823
        %v5894 = vadd.f32 %v5464, %v5828
        %v5895 = vadd.f32 %v5469, %v5833
        %v5896 = vadd.f32 %v5474, %v5838
        %v5897 = vadd.f32 %v5479, %v5843
        %v5898 = vadd.f32 %v5484, %v5848
        %v5899 = vadd.f32 %v5489, %v5853
        %v5900 = vadd.f32 %v5494, %v5858
        %v5901 = vadd.f32 %v5499, %v5863
        %v5902 = vadd.f32 %v5504, %v5868
        %v5903 = vld [vmem:[%s11] sm:$0x1]
        %v5905 = vlaneseq
        %v5906 = vshrl.u32 %v5905, 7
        %v5907 = vsub.s32 0, %v5906
        %v5908 = vrot.slane %v5903, %v5907
        %v5910 = vmul.f32 %v5871, %v5908
        %v5911 = vmul.f32 %v5872, %v5908
        %v5912 = vmul.f32 %v5873, %v5908
        %v5913 = vmul.f32 %v5874, %v5908
        %v5914 = vmul.f32 %v5875, %v5908
        %v5915 = vmul.f32 %v5876, %v5908
        %v5916 = vmul.f32 %v5877, %v5908
        %v5917 = vmul.f32 %v5878, %v5908
        %v5918 = vmul.f32 %v5879, %v5908
        %v5919 = vmul.f32 %v5880, %v5908
        %v5920 = vmul.f32 %v5881, %v5908
        %v5921 = vmul.f32 %v5882, %v5908
        %v5922 = vmul.f32 %v5883, %v5908
        %v5923 = vmul.f32 %v5884, %v5908
        %v5924 = vmul.f32 %v5885, %v5908
        %v5925 = vmul.f32 %v5886, %v5908
        %v5926 = vmul.f32 %v5887, %v5908
        %v5927 = vmul.f32 %v5888, %v5908
        %v5928 = vmul.f32 %v5889, %v5908
        %v5929 = vmul.f32 %v5890, %v5908
        %v5930 = vmul.f32 %v5891, %v5908
        %v5931 = vmul.f32 %v5892, %v5908
        %v5932 = vmul.f32 %v5893, %v5908
        %v5933 = vmul.f32 %v5894, %v5908
        %v5934 = vmul.f32 %v5895, %v5908
        %v5935 = vmul.f32 %v5896, %v5908
        %v5936 = vmul.f32 %v5897, %v5908
        %v5937 = vmul.f32 %v5898, %v5908
        %v5938 = vmul.f32 %v5899, %v5908
        %v5939 = vmul.f32 %v5900, %v5908
        %v5940 = vmul.f32 %v5901, %v5908
        %v5941 = vmul.f32 %v5902, %v5908
        %v5942 = vld [vmem:[%s13] sm:$0x1]
        %v5944 = vlaneseq
        %v5945 = vshrl.u32 %v5944, 7
        %v5946 = vsub.s32 0, %v5945
        %v5947 = vrot.slane %v5942, %v5946
        %v5949 = vadd.f32 %v5910, %v5947
        %v5950 = vadd.f32 %v5911, %v5947
        %v5951 = vadd.f32 %v5912, %v5947
        %v5952 = vadd.f32 %v5913, %v5947
        %v5953 = vadd.f32 %v5914, %v5947
        %v5954 = vadd.f32 %v5915, %v5947
        %v5955 = vadd.f32 %v5916, %v5947
        %v5956 = vadd.f32 %v5917, %v5947
        %v5957 = vadd.f32 %v5918, %v5947
        %v5958 = vadd.f32 %v5919, %v5947
        %v5959 = vadd.f32 %v5920, %v5947
        %v5960 = vadd.f32 %v5921, %v5947
        %v5961 = vadd.f32 %v5922, %v5947
        %v5962 = vadd.f32 %v5923, %v5947
        %v5963 = vadd.f32 %v5924, %v5947
        %v5964 = vadd.f32 %v5925, %v5947
        %v5965 = vadd.f32 %v5926, %v5947
        %v5966 = vadd.f32 %v5927, %v5947
        %v5967 = vadd.f32 %v5928, %v5947
        %v5968 = vadd.f32 %v5929, %v5947
        %v5969 = vadd.f32 %v5930, %v5947
        %v5970 = vadd.f32 %v5931, %v5947
        %v5971 = vadd.f32 %v5932, %v5947
        %v5972 = vadd.f32 %v5933, %v5947
        %v5973 = vadd.f32 %v5934, %v5947
        %v5974 = vadd.f32 %v5935, %v5947
        %v5975 = vadd.f32 %v5936, %v5947
        %v5976 = vadd.f32 %v5937, %v5947
        %v5977 = vadd.f32 %v5938, %v5947
        %v5978 = vadd.f32 %v5939, %v5947
        %v5979 = vadd.f32 %v5940, %v5947
        %v5980 = vadd.f32 %v5941, %v5947
        %v5981 = vmax.f32 %v5949, 0.0
        %v5982 = vmax.f32 %v5950, 0.0
        %v5983 = vmax.f32 %v5951, 0.0
        %v5984 = vmax.f32 %v5952, 0.0
        %v5985 = vmax.f32 %v5953, 0.0
        %v5986 = vmax.f32 %v5954, 0.0
        %v5987 = vmax.f32 %v5955, 0.0
        %v5988 = vmax.f32 %v5956, 0.0
        %v5989 = vmax.f32 %v5957, 0.0
        %v5990 = vmax.f32 %v5958, 0.0
        %v5991 = vmax.f32 %v5959, 0.0
        %v5992 = vmax.f32 %v5960, 0.0
        %v5993 = vmax.f32 %v5961, 0.0
        %v5994 = vmax.f32 %v5962, 0.0
        %v5995 = vmax.f32 %v5963, 0.0
        %v5996 = vmax.f32 %v5964, 0.0
        %v5997 = vmax.f32 %v5965, 0.0
        %v5998 = vmax.f32 %v5966, 0.0
        %v5999 = vmax.f32 %v5967, 0.0
        %v6000 = vmax.f32 %v5968, 0.0
        %v6001 = vmax.f32 %v5969, 0.0
        %v6002 = vmax.f32 %v5970, 0.0
        %v6003 = vmax.f32 %v5971, 0.0
        %v6004 = vmax.f32 %v5972, 0.0
        %v6005 = vmax.f32 %v5973, 0.0
        %v6006 = vmax.f32 %v5974, 0.0
        %v6007 = vmax.f32 %v5975, 0.0
        %v6008 = vmax.f32 %v5976, 0.0
        %v6009 = vmax.f32 %v5977, 0.0
        %v6010 = vmax.f32 %v5978, 0.0
        %v6011 = vmax.f32 %v5979, 0.0
        %v6012 = vmax.f32 %v5980, 0.0
        %v6045 = vrot.slane %v5981, 7
        %v6046 = vrot.slane %v5982, 7
        %v6047 = vsel %vm4840, %v6045, %v6046
        %v6048 = vrot.slane %v5983, 7
        %v6049 = vsel %vm4840, %v6046, %v6048
        %v6050 = vrot.slane %v5984, 7
        %v6051 = vsel %vm4840, %v6048, %v6050
        %v6052 = vrot.slane %v5985, 7
        %v6053 = vsel %vm4840, %v6050, %v6052
        %v6054 = vrot.slane %v5986, 7
        %v6055 = vsel %vm4840, %v6052, %v6054
        %v6056 = vrot.slane %v5987, 7
        %v6057 = vsel %vm4840, %v6054, %v6056
        %v6058 = vrot.slane %v5988, 7
        %v6059 = vsel %vm4840, %v6056, %v6058
        %v6060 = vrot.slane %v5989, 7
        %v6061 = vsel %vm4840, %v6058, %v6060
        %v6062 = vrot.slane %v5990, 7
        %v6063 = vsel %vm4840, %v6060, %v6062
        %v6064 = vrot.slane %v5991, 7
        %v6065 = vsel %vm4840, %v6062, %v6064
        %v6066 = vrot.slane %v5992, 7
        %v6067 = vsel %vm4840, %v6064, %v6066
        %v6068 = vrot.slane %v5993, 7
        %v6069 = vsel %vm4840, %v6066, %v6068
        %v6070 = vrot.slane %v5994, 7
        %v6071 = vsel %vm4840, %v6068, %v6070
        %v6072 = vrot.slane %v5995, 7
        %v6073 = vsel %vm4840, %v6070, %v6072
        %v6074 = vrot.slane %v5996, 7
        %v6075 = vsel %vm4840, %v6072, %v6074
        %v6076 = vrot.slane %v5997, 7
        %v6077 = vsel %vm4840, %v6074, %v6076
        %v6078 = vrot.slane %v5998, 7
        %v6079 = vsel %vm4840, %v6076, %v6078
        %v6080 = vrot.slane %v5999, 7
        %v6081 = vsel %vm4840, %v6078, %v6080
        %v6082 = vrot.slane %v6000, 7
        %v6083 = vsel %vm4840, %v6080, %v6082
        %v6084 = vrot.slane %v6001, 7
        %v6085 = vsel %vm4840, %v6082, %v6084
        %v6086 = vrot.slane %v6002, 7
        %v6087 = vsel %vm4840, %v6084, %v6086
        %v6088 = vrot.slane %v6003, 7
        %v6089 = vsel %vm4840, %v6086, %v6088
        %v6090 = vrot.slane %v6004, 7
        %v6091 = vsel %vm4840, %v6088, %v6090
        %v6092 = vrot.slane %v6005, 7
        %v6093 = vsel %vm4840, %v6090, %v6092
        %v6094 = vrot.slane %v6006, 7
        %v6095 = vsel %vm4840, %v6092, %v6094
        %v6096 = vrot.slane %v6007, 7
        %v6097 = vsel %vm4840, %v6094, %v6096
        %v6098 = vrot.slane %v6008, 7
        %v6099 = vsel %vm4840, %v6096, %v6098
        %v6100 = vrot.slane %v6009, 7
        %v6101 = vsel %vm4840, %v6098, %v6100
        %v6102 = vrot.slane %v6010, 7
        %v6103 = vsel %vm4840, %v6100, %v6102
        %v6104 = vrot.slane %v6011, 7
        %v6105 = vsel %vm4840, %v6102, %v6104
        %v6106 = vrot.slane %v6012, 7
        %v6107 = vsel %vm4840, %v6104, %v6106
        %v6110 = vsel %vm4840, 0.0, %v6045
        %v6111 = vsel %vm4840, %v6106, 0.0
        %v6112 = vld [vmem:[%s15] sm:$0xff]
        %v6113 = vld [vmem:[%s15 + $0x8] sm:$0xff]
        %v6114 = vld [vmem:[%s15 + $0x10] sm:$0xff]
        %v6115 = vld [vmem:[%s15 + $0x18] sm:$0xff]
        %v6116 = vld [vmem:[%s15 + $0x20] sm:$0xff]
        %v6117 = vld [vmem:[%s15 + $0x28] sm:$0xff]
        %v6118 = vld [vmem:[%s15 + $0x30] sm:$0xff]
        %v6119 = vld [vmem:[%s15 + $0x38] sm:$0xff]
        %s6120 = scalar_lea.vmem %s15, 64
        %v6121 = vld [vmem:[%s6120] sm:$0xff]
        %v6122 = vld [vmem:[%s6120 + $0x8] sm:$0xff]
        %v6123 = vld [vmem:[%s6120 + $0x10] sm:$0xff]
        %v6124 = vld [vmem:[%s6120 + $0x18] sm:$0xff]
        %v6125 = vld [vmem:[%s6120 + $0x20] sm:$0xff]
        %v6126 = vld [vmem:[%s6120 + $0x28] sm:$0xff]
        %v6127 = vld [vmem:[%s6120 + $0x30] sm:$0xff]
        %v6128 = vld [vmem:[%s6120 + $0x38] sm:$0xff]
        %v6131 = vrot.slane %v6110, 1
        %v6132 = vrot.slane %v6047, 1
        %v6133 = vsel %vm4862, %v6131, %v6132
        %v6134 = vrot.slane %v6049, 1
        %v6135 = vsel %vm4862, %v6132, %v6134
        %v6136 = vrot.slane %v6051, 1
        %v6137 = vsel %vm4862, %v6134, %v6136
        %v6138 = vrot.slane %v6053, 1
        %v6139 = vsel %vm4862, %v6136, %v6138
        %v6140 = vrot.slane %v6055, 1
        %v6141 = vsel %vm4862, %v6138, %v6140
        %v6142 = vrot.slane %v6057, 1
        %v6143 = vsel %vm4862, %v6140, %v6142
        %v6144 = vrot.slane %v6059, 1
        %v6145 = vsel %vm4862, %v6142, %v6144
        %v6146 = vrot.slane %v6061, 1
        %v6147 = vsel %vm4862, %v6144, %v6146
        %v6148 = vrot.slane %v6063, 1
        %v6149 = vsel %vm4862, %v6146, %v6148
        %v6150 = vrot.slane %v6065, 1
        %v6151 = vsel %vm4862, %v6148, %v6150
        %v6152 = vrot.slane %v6067, 1
        %v6153 = vsel %vm4862, %v6150, %v6152
        %v6154 = vrot.slane %v6069, 1
        %v6155 = vsel %vm4862, %v6152, %v6154
        %v6156 = vrot.slane %v6071, 1
        %v6157 = vsel %vm4862, %v6154, %v6156
        %v6158 = vrot.slane %v6073, 1
        %v6159 = vsel %vm4862, %v6156, %v6158
        %v6160 = vrot.slane %v6075, 1
        %v6161 = vsel %vm4862, %v6158, %v6160
        %v6162 = vrot.slane %v6077, 1
        %v6163 = vsel %vm4862, %v6160, %v6162
        %v6164 = vrot.slane %v6079, 1
        %v6165 = vsel %vm4862, %v6162, %v6164
        %v6166 = vrot.slane %v6081, 1
        %v6167 = vsel %vm4862, %v6164, %v6166
        %v6168 = vrot.slane %v6083, 1
        %v6169 = vsel %vm4862, %v6166, %v6168
        %v6170 = vrot.slane %v6085, 1
        %v6171 = vsel %vm4862, %v6168, %v6170
        %v6172 = vrot.slane %v6087, 1
        %v6173 = vsel %vm4862, %v6170, %v6172
        %v6174 = vrot.slane %v6089, 1
        %v6175 = vsel %vm4862, %v6172, %v6174
        %v6176 = vrot.slane %v6091, 1
        %v6177 = vsel %vm4862, %v6174, %v6176
        %v6178 = vrot.slane %v6093, 1
        %v6179 = vsel %vm4862, %v6176, %v6178
        %v6180 = vrot.slane %v6095, 1
        %v6181 = vsel %vm4862, %v6178, %v6180
        %v6182 = vrot.slane %v6097, 1
        %v6183 = vsel %vm4862, %v6180, %v6182
        %v6184 = vrot.slane %v6099, 1
        %v6185 = vsel %vm4862, %v6182, %v6184
        %v6186 = vrot.slane %v6101, 1
        %v6187 = vsel %vm4862, %v6184, %v6186
        %v6188 = vrot.slane %v6103, 1
        %v6189 = vsel %vm4862, %v6186, %v6188
        %v6190 = vrot.slane %v6105, 1
        %v6191 = vsel %vm4862, %v6188, %v6190
        %v6192 = vrot.slane %v6107, 1
        %v6193 = vsel %vm4862, %v6190, %v6192
        %v6194 = vrot.slane %v6111, 1
        %v6195 = vsel %vm4862, %v6192, %v6194
        %v6196 = vsel %vm4928, %v6133, 0
        %v6198 = vsel %vm4928, %v6135, 0
        %v6200 = vsel %vm4928, %v6137, 0
        %v6202 = vsel %vm4928, %v6139, 0
        %v6204 = vsel %vm4928, %v6141, 0
        %v6206 = vsel %vm4928, %v6143, 0
        %v6208 = vsel %vm4928, %v6145, 0
        %v6210 = vsel %vm4928, %v6147, 0
        %v6212 = vsel %vm4928, %v6149, 0
        %v6214 = vsel %vm4928, %v6151, 0
        %v6216 = vsel %vm4928, %v6153, 0
        %v6218 = vsel %vm4928, %v6155, 0
        %v6220 = vsel %vm4928, %v6157, 0
        %v6222 = vsel %vm4928, %v6159, 0
        %v6224 = vsel %vm4928, %v6161, 0
        %v6226 = vsel %vm4928, %v6163, 0
        %v6228 = vsel %vm4928, %v6165, 0
        %v6230 = vsel %vm4928, %v6167, 0
        %v6232 = vsel %vm4928, %v6169, 0
        %v6234 = vsel %vm4928, %v6171, 0
        %v6236 = vsel %vm4928, %v6173, 0
        %v6238 = vsel %vm4928, %v6175, 0
        %v6240 = vsel %vm4928, %v6177, 0
        %v6242 = vsel %vm4928, %v6179, 0
        %v6244 = vsel %vm4928, %v6181, 0
        %v6246 = vsel %vm4928, %v6183, 0
        %v6248 = vsel %vm4928, %v6185, 0
        %v6250 = vsel %vm4928, %v6187, 0
        %v6252 = vsel %vm4928, %v6189, 0
        %v6254 = vsel %vm4928, %v6191, 0
        %v6256 = vsel %vm4928, %v6193, 0
        %v6258 = vsel %vm4928, %v6195, 0
        %6260 = vmatprep.subr.mxu0 0.0
        %6261 = vmatpush1.msra.mxu0 0.0
        %6262 = vmatprep.subr.mxu0 0.0
        %6263 = vmatpush1.msra.mxu0 0.0
        %6264 = vmatprep.subr.mxu0 0.0
        %6265 = vmatpush1.msra.mxu0 0.0
        %6266 = vmatprep.subr.mxu0 0.0
        %6267 = vmatpush1.msra.mxu0 0.0
        %6268 = vmatprep.subr.mxu0 0.0
        %6269 = vmatpush1.msra.mxu0 0.0
        %6270 = vmatprep.subr.mxu0 0.0
        %6271 = vmatpush1.msra.mxu0 0.0
        %6272 = vmatprep.subr.mxu0 0.0
        %6273 = vmatpush1.msra.mxu0 0.0
        %6274 = vmatprep.subr.mxu0 0.0
        %6275 = vmatpush1.msra.mxu0 0.0
        %6276 = vmatprep.subr.mxu0 0.0
        %6277 = vmatpush1.msra.mxu0 %v6128
        %6278 = vmatprep.subr.mxu0 0.0
        %6279 = vmatpush1.msra.mxu0 %v6127
        %6280 = vmatprep.subr.mxu0 0.0
        %6281 = vmatpush1.msra.mxu0 %v6126
        %6282 = vmatprep.subr.mxu0 0.0
        %6283 = vmatpush1.msra.mxu0 %v6125
        %6284 = vmatprep.subr.mxu0 0.0
        %6285 = vmatpush1.msra.mxu0 %v6124
        %6286 = vmatprep.subr.mxu0 0.0
        %6287 = vmatpush1.msra.mxu0 %v6123
        %6288 = vmatprep.subr.mxu0 0.0
        %6289 = vmatpush1.msra.mxu0 %v6122
        %6290 = vmatprep.subr.mxu0 0.0
        %6291 = vmatpush1.msra.mxu0 %v6121
        %6292 = vmatprep.subr.mxu0 0.0
        %6293 = vmatpush2.msra.mxu0 0.0
        %6294 = vmatprep.subr.mxu0 0.0
        %6295 = vmatpush2.msra.mxu0 0.0
        %6296 = vmatprep.subr.mxu0 0.0
        %6297 = vmatpush2.msra.mxu0 0.0
        %6298 = vmatprep.subr.mxu0 0.0
        %6299 = vmatpush2.msra.mxu0 0.0
        %6300 = vmatprep.subr.mxu0 0.0
        %6301 = vmatpush2.msra.mxu0 0.0
        %6302 = vmatprep.subr.mxu0 0.0
        %6303 = vmatpush2.msra.mxu0 0.0
        %6304 = vmatprep.subr.mxu0 0.0
        %6305 = vmatpush2.msra.mxu0 0.0
        %6306 = vmatprep.subr.mxu0 0.0
        %6307 = vmatpush2.msra.mxu0 0.0
        %6308 = vmatprep.subr.mxu0 0.0
        %6309 = vmatpush2.msra.mxu0 0.0
        %6310 = vmatprep.subr.mxu0 0.0
        %6311 = vmatpush2.msra.mxu0 0.0
        %6312 = vmatprep.subr.mxu0 0.0
        %6313 = vmatpush2.msra.mxu0 0.0
        %6314 = vmatprep.subr.mxu0 0.0
        %6315 = vmatpush2.msra.mxu0 0.0
        %6316 = vmatprep.subr.mxu0 0.0
        %6317 = vmatpush2.msra.mxu0 0.0
        %6318 = vmatprep.subr.mxu0 0.0
        %6319 = vmatpush2.msra.mxu0 0.0
        %6320 = vmatprep.subr.mxu0 0.0
        %6321 = vmatpush2.msra.mxu0 0.0
        %6322 = vmatprep.subr.mxu0 0.0
        %6323 = vmatpush2.msra.mxu0 0.0
        %6324 = vmatprep.mubr.f32.mxu0 0.0
        %6325 = vmatmul.mubr.f32.gmra.mxu0 %v6196
        %v6326 = vpop.f32.mrf.mxu0
        %v6327 = vadd.f32 0.0, %v6326
        %v6328 = vpop.f32.mrf.mxu0
        %6329 = vmatprep.mubr.f32.mxu0 0.0
        %6330 = vmatmul.mubr.f32.gmra.mxu0 %v6198
        %v6331 = vpop.f32.mrf.mxu0
        %v6332 = vadd.f32 0.0, %v6331
        %v6333 = vpop.f32.mrf.mxu0
        %6334 = vmatprep.mubr.f32.mxu0 0.0
        %6335 = vmatmul.mubr.f32.gmra.mxu0 %v6200
        %v6336 = vpop.f32.mrf.mxu0
        %v6337 = vadd.f32 0.0, %v6336
        %v6338 = vpop.f32.mrf.mxu0
        %6339 = vmatprep.mubr.f32.mxu0 0.0
        %6340 = vmatmul.mubr.f32.gmra.mxu0 %v6202
        %v6341 = vpop.f32.mrf.mxu0
        %v6342 = vadd.f32 0.0, %v6341
        %v6343 = vpop.f32.mrf.mxu0
        %6344 = vmatprep.mubr.f32.mxu0 0.0
        %6345 = vmatmul.mubr.f32.gmra.mxu0 %v6204
        %v6346 = vpop.f32.mrf.mxu0
        %v6347 = vadd.f32 0.0, %v6346
        %v6348 = vpop.f32.mrf.mxu0
        %6349 = vmatprep.mubr.f32.mxu0 0.0
        %6350 = vmatmul.mubr.f32.gmra.mxu0 %v6206
        %v6351 = vpop.f32.mrf.mxu0
        %v6352 = vadd.f32 0.0, %v6351
        %v6353 = vpop.f32.mrf.mxu0
        %6354 = vmatprep.mubr.f32.mxu0 0.0
        %6355 = vmatmul.mubr.f32.gmra.mxu0 %v6208
        %v6356 = vpop.f32.mrf.mxu0
        %v6357 = vadd.f32 0.0, %v6356
        %v6358 = vpop.f32.mrf.mxu0
        %6359 = vmatprep.mubr.f32.mxu0 0.0
        %6360 = vmatmul.mubr.f32.gmra.mxu0 %v6210
        %v6361 = vpop.f32.mrf.mxu0
        %v6362 = vadd.f32 0.0, %v6361
        %v6363 = vpop.f32.mrf.mxu0
        %6364 = vmatprep.mubr.f32.mxu0 0.0
        %6365 = vmatmul.mubr.f32.gmra.mxu0 %v6212
        %v6366 = vpop.f32.mrf.mxu0
        %v6367 = vadd.f32 0.0, %v6366
        %v6368 = vpop.f32.mrf.mxu0
        %6369 = vmatprep.mubr.f32.mxu0 0.0
        %6370 = vmatmul.mubr.f32.gmra.mxu0 %v6214
        %v6371 = vpop.f32.mrf.mxu0
        %v6372 = vadd.f32 0.0, %v6371
        %v6373 = vpop.f32.mrf.mxu0
        %6374 = vmatprep.mubr.f32.mxu0 0.0
        %6375 = vmatmul.mubr.f32.gmra.mxu0 %v6216
        %v6376 = vpop.f32.mrf.mxu0
        %v6377 = vadd.f32 0.0, %v6376
        %v6378 = vpop.f32.mrf.mxu0
        %6379 = vmatprep.mubr.f32.mxu0 0.0
        %6380 = vmatmul.mubr.f32.gmra.mxu0 %v6218
        %v6381 = vpop.f32.mrf.mxu0
        %v6382 = vadd.f32 0.0, %v6381
        %v6383 = vpop.f32.mrf.mxu0
        %6384 = vmatprep.mubr.f32.mxu0 0.0
        %6385 = vmatmul.mubr.f32.gmra.mxu0 %v6220
        %v6386 = vpop.f32.mrf.mxu0
        %v6387 = vadd.f32 0.0, %v6386
        %v6388 = vpop.f32.mrf.mxu0
        %6389 = vmatprep.mubr.f32.mxu0 0.0
        %6390 = vmatmul.mubr.f32.gmra.mxu0 %v6222
        %v6391 = vpop.f32.mrf.mxu0
        %v6392 = vadd.f32 0.0, %v6391
        %v6393 = vpop.f32.mrf.mxu0
        %6394 = vmatprep.mubr.f32.mxu0 0.0
        %6395 = vmatmul.mubr.f32.gmra.mxu0 %v6224
        %v6396 = vpop.f32.mrf.mxu0
        %v6397 = vadd.f32 0.0, %v6396
        %v6398 = vpop.f32.mrf.mxu0
        %6399 = vmatprep.mubr.f32.mxu0 0.0
        %6400 = vmatmul.mubr.f32.gmra.mxu0 %v6226
        %v6401 = vpop.f32.mrf.mxu0
        %v6402 = vadd.f32 0.0, %v6401
        %v6403 = vpop.f32.mrf.mxu0
        %6404 = vmatprep.mubr.f32.mxu0 0.0
        %6405 = vmatmul.mubr.f32.gmra.mxu0 %v6228
        %v6406 = vpop.f32.mrf.mxu0
        %v6407 = vadd.f32 0.0, %v6406
        %v6408 = vpop.f32.mrf.mxu0
        %6409 = vmatprep.mubr.f32.mxu0 0.0
        %6410 = vmatmul.mubr.f32.gmra.mxu0 %v6230
        %v6411 = vpop.f32.mrf.mxu0
        %v6412 = vadd.f32 0.0, %v6411
        %v6413 = vpop.f32.mrf.mxu0
        %6414 = vmatprep.mubr.f32.mxu0 0.0
        %6415 = vmatmul.mubr.f32.gmra.mxu0 %v6232
        %v6416 = vpop.f32.mrf.mxu0
        %v6417 = vadd.f32 0.0, %v6416
        %v6418 = vpop.f32.mrf.mxu0
        %6419 = vmatprep.mubr.f32.mxu0 0.0
        %6420 = vmatmul.mubr.f32.gmra.mxu0 %v6234
        %v6421 = vpop.f32.mrf.mxu0
        %v6422 = vadd.f32 0.0, %v6421
        %v6423 = vpop.f32.mrf.mxu0
        %6424 = vmatprep.mubr.f32.mxu0 0.0
        %6425 = vmatmul.mubr.f32.gmra.mxu0 %v6236
        %v6426 = vpop.f32.mrf.mxu0
        %v6427 = vadd.f32 0.0, %v6426
        %v6428 = vpop.f32.mrf.mxu0
        %6429 = vmatprep.mubr.f32.mxu0 0.0
        %6430 = vmatmul.mubr.f32.gmra.mxu0 %v6238
        %v6431 = vpop.f32.mrf.mxu0
        %v6432 = vadd.f32 0.0, %v6431
        %v6433 = vpop.f32.mrf.mxu0
        %6434 = vmatprep.mubr.f32.mxu0 0.0
        %6435 = vmatmul.mubr.f32.gmra.mxu0 %v6240
        %v6436 = vpop.f32.mrf.mxu0
        %v6437 = vadd.f32 0.0, %v6436
        %v6438 = vpop.f32.mrf.mxu0
        %6439 = vmatprep.mubr.f32.mxu0 0.0
        %6440 = vmatmul.mubr.f32.gmra.mxu0 %v6242
        %v6441 = vpop.f32.mrf.mxu0
        %v6442 = vadd.f32 0.0, %v6441
        %v6443 = vpop.f32.mrf.mxu0
        %6444 = vmatprep.mubr.f32.mxu0 0.0
        %6445 = vmatmul.mubr.f32.gmra.mxu0 %v6244
        %v6446 = vpop.f32.mrf.mxu0
        %v6447 = vadd.f32 0.0, %v6446
        %v6448 = vpop.f32.mrf.mxu0
        %6449 = vmatprep.mubr.f32.mxu0 0.0
        %6450 = vmatmul.mubr.f32.gmra.mxu0 %v6246
        %v6451 = vpop.f32.mrf.mxu0
        %v6452 = vadd.f32 0.0, %v6451
        %v6453 = vpop.f32.mrf.mxu0
        %6454 = vmatprep.mubr.f32.mxu0 0.0
        %6455 = vmatmul.mubr.f32.gmra.mxu0 %v6248
        %v6456 = vpop.f32.mrf.mxu0
        %v6457 = vadd.f32 0.0, %v6456
        %v6458 = vpop.f32.mrf.mxu0
        %6459 = vmatprep.mubr.f32.mxu0 0.0
        %6460 = vmatmul.mubr.f32.gmra.mxu0 %v6250
        %v6461 = vpop.f32.mrf.mxu0
        %v6462 = vadd.f32 0.0, %v6461
        %v6463 = vpop.f32.mrf.mxu0
        %6464 = vmatprep.mubr.f32.mxu0 0.0
        %6465 = vmatmul.mubr.f32.gmra.mxu0 %v6252
        %v6466 = vpop.f32.mrf.mxu0
        %v6467 = vadd.f32 0.0, %v6466
        %v6468 = vpop.f32.mrf.mxu0
        %6469 = vmatprep.mubr.f32.mxu0 0.0
        %6470 = vmatmul.mubr.f32.gmra.mxu0 %v6254
        %v6471 = vpop.f32.mrf.mxu0
        %v6472 = vadd.f32 0.0, %v6471
        %v6473 = vpop.f32.mrf.mxu0
        %6474 = vmatprep.mubr.f32.mxu0 0.0
        %6475 = vmatmul.mubr.f32.gmra.mxu0 %v6256
        %v6476 = vpop.f32.mrf.mxu0
        %v6477 = vadd.f32 0.0, %v6476
        %v6478 = vpop.f32.mrf.mxu0
        %6479 = vmatprep.mubr.f32.mxu0 0.0
        %6480 = vmatmul.mubr.f32.gmra.mxu0 %v6258
        %v6481 = vpop.f32.mrf.mxu0
        %v6482 = vadd.f32 0.0, %v6481
        %v6483 = vpop.f32.mrf.mxu0
        %6484 = vdwg.mxu0
        %v6485 = vsel %vm4928, %v6110, 0
        %v6487 = vsel %vm4928, %v6047, 0
        %v6489 = vsel %vm4928, %v6049, 0
        %v6491 = vsel %vm4928, %v6051, 0
        %v6493 = vsel %vm4928, %v6053, 0
        %v6495 = vsel %vm4928, %v6055, 0
        %v6497 = vsel %vm4928, %v6057, 0
        %v6499 = vsel %vm4928, %v6059, 0
        %v6501 = vsel %vm4928, %v6061, 0
        %v6503 = vsel %vm4928, %v6063, 0
        %v6505 = vsel %vm4928, %v6065, 0
        %v6507 = vsel %vm4928, %v6067, 0
        %v6509 = vsel %vm4928, %v6069, 0
        %v6511 = vsel %vm4928, %v6071, 0
        %v6513 = vsel %vm4928, %v6073, 0
        %v6515 = vsel %vm4928, %v6075, 0
        %v6517 = vsel %vm4928, %v6077, 0
        %v6519 = vsel %vm4928, %v6079, 0
        %v6521 = vsel %vm4928, %v6081, 0
        %v6523 = vsel %vm4928, %v6083, 0
        %v6525 = vsel %vm4928, %v6085, 0
        %v6527 = vsel %vm4928, %v6087, 0
        %v6529 = vsel %vm4928, %v6089, 0
        %v6531 = vsel %vm4928, %v6091, 0
        %v6533 = vsel %vm4928, %v6093, 0
        %v6535 = vsel %vm4928, %v6095, 0
        %v6537 = vsel %vm4928, %v6097, 0
        %v6539 = vsel %vm4928, %v6099, 0
        %v6541 = vsel %vm4928, %v6101, 0
        %v6543 = vsel %vm4928, %v6103, 0
        %v6545 = vsel %vm4928, %v6105, 0
        %v6547 = vsel %vm4928, %v6107, 0
        %6549 = vmatprep.subr.mxu0 0.0
        %6550 = vmatpush1.msra.mxu0 0.0
        %6551 = vmatprep.subr.mxu0 0.0
        %6552 = vmatpush1.msra.mxu0 0.0
        %6553 = vmatprep.subr.mxu0 0.0
        %6554 = vmatpush1.msra.mxu0 0.0
        %6555 = vmatprep.subr.mxu0 0.0
        %6556 = vmatpush1.msra.mxu0 0.0
        %6557 = vmatprep.subr.mxu0 0.0
        %6558 = vmatpush1.msra.mxu0 0.0
        %6559 = vmatprep.subr.mxu0 0.0
        %6560 = vmatpush1.msra.mxu0 0.0
        %6561 = vmatprep.subr.mxu0 0.0
        %6562 = vmatpush1.msra.mxu0 0.0
        %6563 = vmatprep.subr.mxu0 0.0
        %6564 = vmatpush1.msra.mxu0 0.0
        %6565 = vmatprep.subr.mxu0 0.0
        %6566 = vmatpush1.msra.mxu0 %v6119
        %6567 = vmatprep.subr.mxu0 0.0
        %6568 = vmatpush1.msra.mxu0 %v6118
        %6569 = vmatprep.subr.mxu0 0.0
        %6570 = vmatpush1.msra.mxu0 %v6117
        %6571 = vmatprep.subr.mxu0 0.0
        %6572 = vmatpush1.msra.mxu0 %v6116
        %6573 = vmatprep.subr.mxu0 0.0
        %6574 = vmatpush1.msra.mxu0 %v6115
        %6575 = vmatprep.subr.mxu0 0.0
        %6576 = vmatpush1.msra.mxu0 %v6114
        %6577 = vmatprep.subr.mxu0 0.0
        %6578 = vmatpush1.msra.mxu0 %v6113
        %6579 = vmatprep.subr.mxu0 0.0
        %6580 = vmatpush1.msra.mxu0 %v6112
        %6581 = vmatprep.subr.mxu0 0.0
        %6582 = vmatpush2.msra.mxu0 0.0
        %6583 = vmatprep.subr.mxu0 0.0
        %6584 = vmatpush2.msra.mxu0 0.0
        %6585 = vmatprep.subr.mxu0 0.0
        %6586 = vmatpush2.msra.mxu0 0.0
        %6587 = vmatprep.subr.mxu0 0.0
        %6588 = vmatpush2.msra.mxu0 0.0
        %6589 = vmatprep.subr.mxu0 0.0
        %6590 = vmatpush2.msra.mxu0 0.0
        %6591 = vmatprep.subr.mxu0 0.0
        %6592 = vmatpush2.msra.mxu0 0.0
        %6593 = vmatprep.subr.mxu0 0.0
        %6594 = vmatpush2.msra.mxu0 0.0
        %6595 = vmatprep.subr.mxu0 0.0
        %6596 = vmatpush2.msra.mxu0 0.0
        %6597 = vmatprep.subr.mxu0 0.0
        %6598 = vmatpush2.msra.mxu0 0.0
        %6599 = vmatprep.subr.mxu0 0.0
        %6600 = vmatpush2.msra.mxu0 0.0
        %6601 = vmatprep.subr.mxu0 0.0
        %6602 = vmatpush2.msra.mxu0 0.0
        %6603 = vmatprep.subr.mxu0 0.0
        %6604 = vmatpush2.msra.mxu0 0.0
        %6605 = vmatprep.subr.mxu0 0.0
        %6606 = vmatpush2.msra.mxu0 0.0
        %6607 = vmatprep.subr.mxu0 0.0
        %6608 = vmatpush2.msra.mxu0 0.0
        %6609 = vmatprep.subr.mxu0 0.0
        %6610 = vmatpush2.msra.mxu0 0.0
        %6611 = vmatprep.subr.mxu0 0.0
        %6612 = vmatpush2.msra.mxu0 0.0
        %6613 = vmatprep.mubr.f32.mxu0 0.0
        %6614 = vmatmul.mubr.f32.gmra.mxu0 %v6485
        %v6615 = vpop.f32.mrf.mxu0
        %v6616 = vadd.f32 %v6327, %v6615
        %v6617 = vpop.f32.mrf.mxu0
        %6618 = vmatprep.mubr.f32.mxu0 0.0
        %6619 = vmatmul.mubr.f32.gmra.mxu0 %v6487
        %v6620 = vpop.f32.mrf.mxu0
        %v6621 = vadd.f32 %v6332, %v6620
        %v6622 = vpop.f32.mrf.mxu0
        %6623 = vmatprep.mubr.f32.mxu0 0.0
        %6624 = vmatmul.mubr.f32.gmra.mxu0 %v6489
        %v6625 = vpop.f32.mrf.mxu0
        %v6626 = vadd.f32 %v6337, %v6625
        %v6627 = vpop.f32.mrf.mxu0
        %6628 = vmatprep.mubr.f32.mxu0 0.0
        %6629 = vmatmul.mubr.f32.gmra.mxu0 %v6491
        %v6630 = vpop.f32.mrf.mxu0
        %v6631 = vadd.f32 %v6342, %v6630
        %v6632 = vpop.f32.mrf.mxu0
        %6633 = vmatprep.mubr.f32.mxu0 0.0
        %6634 = vmatmul.mubr.f32.gmra.mxu0 %v6493
        %v6635 = vpop.f32.mrf.mxu0
        %v6636 = vadd.f32 %v6347, %v6635
        %v6637 = vpop.f32.mrf.mxu0
        %6638 = vmatprep.mubr.f32.mxu0 0.0
        %6639 = vmatmul.mubr.f32.gmra.mxu0 %v6495
        %v6640 = vpop.f32.mrf.mxu0
        %v6641 = vadd.f32 %v6352, %v6640
        %v6642 = vpop.f32.mrf.mxu0
        %6643 = vmatprep.mubr.f32.mxu0 0.0
        %6644 = vmatmul.mubr.f32.gmra.mxu0 %v6497
        %v6645 = vpop.f32.mrf.mxu0
        %v6646 = vadd.f32 %v6357, %v6645
        %v6647 = vpop.f32.mrf.mxu0
        %6648 = vmatprep.mubr.f32.mxu0 0.0
        %6649 = vmatmul.mubr.f32.gmra.mxu0 %v6499
        %v6650 = vpop.f32.mrf.mxu0
        %v6651 = vadd.f32 %v6362, %v6650
        %v6652 = vpop.f32.mrf.mxu0
        %6653 = vmatprep.mubr.f32.mxu0 0.0
        %6654 = vmatmul.mubr.f32.gmra.mxu0 %v6501
        %v6655 = vpop.f32.mrf.mxu0
        %v6656 = vadd.f32 %v6367, %v6655
        %v6657 = vpop.f32.mrf.mxu0
        %6658 = vmatprep.mubr.f32.mxu0 0.0
        %6659 = vmatmul.mubr.f32.gmra.mxu0 %v6503
        %v6660 = vpop.f32.mrf.mxu0
        %v6661 = vadd.f32 %v6372, %v6660
        %v6662 = vpop.f32.mrf.mxu0
        %6663 = vmatprep.mubr.f32.mxu0 0.0
        %6664 = vmatmul.mubr.f32.gmra.mxu0 %v6505
        %v6665 = vpop.f32.mrf.mxu0
        %v6666 = vadd.f32 %v6377, %v6665
        %v6667 = vpop.f32.mrf.mxu0
        %6668 = vmatprep.mubr.f32.mxu0 0.0
        %6669 = vmatmul.mubr.f32.gmra.mxu0 %v6507
        %v6670 = vpop.f32.mrf.mxu0
        %v6671 = vadd.f32 %v6382, %v6670
        %v6672 = vpop.f32.mrf.mxu0
        %6673 = vmatprep.mubr.f32.mxu0 0.0
        %6674 = vmatmul.mubr.f32.gmra.mxu0 %v6509
        %v6675 = vpop.f32.mrf.mxu0
        %v6676 = vadd.f32 %v6387, %v6675
        %v6677 = vpop.f32.mrf.mxu0
        %6678 = vmatprep.mubr.f32.mxu0 0.0
        %6679 = vmatmul.mubr.f32.gmra.mxu0 %v6511
        %v6680 = vpop.f32.mrf.mxu0
        %v6681 = vadd.f32 %v6392, %v6680
        %v6682 = vpop.f32.mrf.mxu0
        %6683 = vmatprep.mubr.f32.mxu0 0.0
        %6684 = vmatmul.mubr.f32.gmra.mxu0 %v6513
        %v6685 = vpop.f32.mrf.mxu0
        %v6686 = vadd.f32 %v6397, %v6685
        %v6687 = vpop.f32.mrf.mxu0
        %6688 = vmatprep.mubr.f32.mxu0 0.0
        %6689 = vmatmul.mubr.f32.gmra.mxu0 %v6515
        %v6690 = vpop.f32.mrf.mxu0
        %v6691 = vadd.f32 %v6402, %v6690
        %v6692 = vpop.f32.mrf.mxu0
        %6693 = vmatprep.mubr.f32.mxu0 0.0
        %6694 = vmatmul.mubr.f32.gmra.mxu0 %v6517
        %v6695 = vpop.f32.mrf.mxu0
        %v6696 = vadd.f32 %v6407, %v6695
        %v6697 = vpop.f32.mrf.mxu0
        %6698 = vmatprep.mubr.f32.mxu0 0.0
        %6699 = vmatmul.mubr.f32.gmra.mxu0 %v6519
        %v6700 = vpop.f32.mrf.mxu0
        %v6701 = vadd.f32 %v6412, %v6700
        %v6702 = vpop.f32.mrf.mxu0
        %6703 = vmatprep.mubr.f32.mxu0 0.0
        %6704 = vmatmul.mubr.f32.gmra.mxu0 %v6521
        %v6705 = vpop.f32.mrf.mxu0
        %v6706 = vadd.f32 %v6417, %v6705
        %v6707 = vpop.f32.mrf.mxu0
        %6708 = vmatprep.mubr.f32.mxu0 0.0
        %6709 = vmatmul.mubr.f32.gmra.mxu0 %v6523
        %v6710 = vpop.f32.mrf.mxu0
        %v6711 = vadd.f32 %v6422, %v6710
        %v6712 = vpop.f32.mrf.mxu0
        %6713 = vmatprep.mubr.f32.mxu0 0.0
        %6714 = vmatmul.mubr.f32.gmra.mxu0 %v6525
        %v6715 = vpop.f32.mrf.mxu0
        %v6716 = vadd.f32 %v6427, %v6715
        %v6717 = vpop.f32.mrf.mxu0
        %6718 = vmatprep.mubr.f32.mxu0 0.0
        %6719 = vmatmul.mubr.f32.gmra.mxu0 %v6527
        %v6720 = vpop.f32.mrf.mxu0
        %v6721 = vadd.f32 %v6432, %v6720
        %v6722 = vpop.f32.mrf.mxu0
        %6723 = vmatprep.mubr.f32.mxu0 0.0
        %6724 = vmatmul.mubr.f32.gmra.mxu0 %v6529
        %v6725 = vpop.f32.mrf.mxu0
        %v6726 = vadd.f32 %v6437, %v6725
        %v6727 = vpop.f32.mrf.mxu0
        %6728 = vmatprep.mubr.f32.mxu0 0.0
        %6729 = vmatmul.mubr.f32.gmra.mxu0 %v6531
        %v6730 = vpop.f32.mrf.mxu0
        %v6731 = vadd.f32 %v6442, %v6730
        %v6732 = vpop.f32.mrf.mxu0
        %6733 = vmatprep.mubr.f32.mxu0 0.0
        %6734 = vmatmul.mubr.f32.gmra.mxu0 %v6533
        %v6735 = vpop.f32.mrf.mxu0
        %v6736 = vadd.f32 %v6447, %v6735
        %v6737 = vpop.f32.mrf.mxu0
        %6738 = vmatprep.mubr.f32.mxu0 0.0
        %6739 = vmatmul.mubr.f32.gmra.mxu0 %v6535
        %v6740 = vpop.f32.mrf.mxu0
        %v6741 = vadd.f32 %v6452, %v6740
        %v6742 = vpop.f32.mrf.mxu0
        %6743 = vmatprep.mubr.f32.mxu0 0.0
        %6744 = vmatmul.mubr.f32.gmra.mxu0 %v6537
        %v6745 = vpop.f32.mrf.mxu0
        %v6746 = vadd.f32 %v6457, %v6745
        %v6747 = vpop.f32.mrf.mxu0
        %6748 = vmatprep.mubr.f32.mxu0 0.0
        %6749 = vmatmul.mubr.f32.gmra.mxu0 %v6539
        %v6750 = vpop.f32.mrf.mxu0
        %v6751 = vadd.f32 %v6462, %v6750
        %v6752 = vpop.f32.mrf.mxu0
        %6753 = vmatprep.mubr.f32.mxu0 0.0
        %6754 = vmatmul.mubr.f32.gmra.mxu0 %v6541
        %v6755 = vpop.f32.mrf.mxu0
        %v6756 = vadd.f32 %v6467, %v6755
        %v6757 = vpop.f32.mrf.mxu0
        %6758 = vmatprep.mubr.f32.mxu0 0.0
        %6759 = vmatmul.mubr.f32.gmra.mxu0 %v6543
        %v6760 = vpop.f32.mrf.mxu0
        %v6761 = vadd.f32 %v6472, %v6760
        %v6762 = vpop.f32.mrf.mxu0
        %6763 = vmatprep.mubr.f32.mxu0 0.0
        %6764 = vmatmul.mubr.f32.gmra.mxu0 %v6545
        %v6765 = vpop.f32.mrf.mxu0
        %v6766 = vadd.f32 %v6477, %v6765
        %v6767 = vpop.f32.mrf.mxu0
        %6768 = vmatprep.mubr.f32.mxu0 0.0
        %6769 = vmatmul.mubr.f32.gmra.mxu0 %v6547
        %v6770 = vpop.f32.mrf.mxu0
        %v6771 = vadd.f32 %v6482, %v6770
        %v6772 = vpop.f32.mrf.mxu0
        %6773 = vdwg.mxu0
        %s6774 = scalar_lea.vmem %s15, 128
        %v6775 = vld [vmem:[%s6774] sm:$0xff]
        %v6776 = vld [vmem:[%s6774 + $0x8] sm:$0xff]
        %v6777 = vld [vmem:[%s6774 + $0x10] sm:$0xff]
        %v6778 = vld [vmem:[%s6774 + $0x18] sm:$0xff]
        %v6779 = vld [vmem:[%s6774 + $0x20] sm:$0xff]
        %v6780 = vld [vmem:[%s6774 + $0x28] sm:$0xff]
        %v6781 = vld [vmem:[%s6774 + $0x30] sm:$0xff]
        %v6782 = vld [vmem:[%s6774 + $0x38] sm:$0xff]
        %v6783 = vrot.slane %v6110, 2
        %v6784 = vrot.slane %v6047, 2
        %v6785 = vsel %vm5516, %v6783, %v6784
        %v6786 = vrot.slane %v6049, 2
        %v6787 = vsel %vm5516, %v6784, %v6786
        %v6788 = vrot.slane %v6051, 2
        %v6789 = vsel %vm5516, %v6786, %v6788
        %v6790 = vrot.slane %v6053, 2
        %v6791 = vsel %vm5516, %v6788, %v6790
        %v6792 = vrot.slane %v6055, 2
        %v6793 = vsel %vm5516, %v6790, %v6792
        %v6794 = vrot.slane %v6057, 2
        %v6795 = vsel %vm5516, %v6792, %v6794
        %v6796 = vrot.slane %v6059, 2
        %v6797 = vsel %vm5516, %v6794, %v6796
        %v6798 = vrot.slane %v6061, 2
        %v6799 = vsel %vm5516, %v6796, %v6798
        %v6800 = vrot.slane %v6063, 2
        %v6801 = vsel %vm5516, %v6798, %v6800
        %v6802 = vrot.slane %v6065, 2
        %v6803 = vsel %vm5516, %v6800, %v6802
        %v6804 = vrot.slane %v6067, 2
        %v6805 = vsel %vm5516, %v6802, %v6804
        %v6806 = vrot.slane %v6069, 2
        %v6807 = vsel %vm5516, %v6804, %v6806
        %v6808 = vrot.slane %v6071, 2
        %v6809 = vsel %vm5516, %v6806, %v6808
        %v6810 = vrot.slane %v6073, 2
        %v6811 = vsel %vm5516, %v6808, %v6810
        %v6812 = vrot.slane %v6075, 2
        %v6813 = vsel %vm5516, %v6810, %v6812
        %v6814 = vrot.slane %v6077, 2
        %v6815 = vsel %vm5516, %v6812, %v6814
        %v6816 = vrot.slane %v6079, 2
        %v6817 = vsel %vm5516, %v6814, %v6816
        %v6818 = vrot.slane %v6081, 2
        %v6819 = vsel %vm5516, %v6816, %v6818
        %v6820 = vrot.slane %v6083, 2
        %v6821 = vsel %vm5516, %v6818, %v6820
        %v6822 = vrot.slane %v6085, 2
        %v6823 = vsel %vm5516, %v6820, %v6822
        %v6824 = vrot.slane %v6087, 2
        %v6825 = vsel %vm5516, %v6822, %v6824
        %v6826 = vrot.slane %v6089, 2
        %v6827 = vsel %vm5516, %v6824, %v6826
        %v6828 = vrot.slane %v6091, 2
        %v6829 = vsel %vm5516, %v6826, %v6828
        %v6830 = vrot.slane %v6093, 2
        %v6831 = vsel %vm5516, %v6828, %v6830
        %v6832 = vrot.slane %v6095, 2
        %v6833 = vsel %vm5516, %v6830, %v6832
        %v6834 = vrot.slane %v6097, 2
        %v6835 = vsel %vm5516, %v6832, %v6834
        %v6836 = vrot.slane %v6099, 2
        %v6837 = vsel %vm5516, %v6834, %v6836
        %v6838 = vrot.slane %v6101, 2
        %v6839 = vsel %vm5516, %v6836, %v6838
        %v6840 = vrot.slane %v6103, 2
        %v6841 = vsel %vm5516, %v6838, %v6840
        %v6842 = vrot.slane %v6105, 2
        %v6843 = vsel %vm5516, %v6840, %v6842
        %v6844 = vrot.slane %v6107, 2
        %v6845 = vsel %vm5516, %v6842, %v6844
        %v6846 = vrot.slane %v6111, 2
        %v6847 = vsel %vm5516, %v6844, %v6846
        %v6848 = vsel %vm4928, %v6785, 0
        %v6850 = vsel %vm4928, %v6787, 0
        %v6852 = vsel %vm4928, %v6789, 0
        %v6854 = vsel %vm4928, %v6791, 0
        %v6856 = vsel %vm4928, %v6793, 0
        %v6858 = vsel %vm4928, %v6795, 0
        %v6860 = vsel %vm4928, %v6797, 0
        %v6862 = vsel %vm4928, %v6799, 0
        %v6864 = vsel %vm4928, %v6801, 0
        %v6866 = vsel %vm4928, %v6803, 0
        %v6868 = vsel %vm4928, %v6805, 0
        %v6870 = vsel %vm4928, %v6807, 0
        %v6872 = vsel %vm4928, %v6809, 0
        %v6874 = vsel %vm4928, %v6811, 0
        %v6876 = vsel %vm4928, %v6813, 0
        %v6878 = vsel %vm4928, %v6815, 0
        %v6880 = vsel %vm4928, %v6817, 0
        %v6882 = vsel %vm4928, %v6819, 0
        %v6884 = vsel %vm4928, %v6821, 0
        %v6886 = vsel %vm4928, %v6823, 0
        %v6888 = vsel %vm4928, %v6825, 0
        %v6890 = vsel %vm4928, %v6827, 0
        %v6892 = vsel %vm4928, %v6829, 0
        %v6894 = vsel %vm4928, %v6831, 0
        %v6896 = vsel %vm4928, %v6833, 0
        %v6898 = vsel %vm4928, %v6835, 0
        %v6900 = vsel %vm4928, %v6837, 0
        %v6902 = vsel %vm4928, %v6839, 0
        %v6904 = vsel %vm4928, %v6841, 0
        %v6906 = vsel %vm4928, %v6843, 0
        %v6908 = vsel %vm4928, %v6845, 0
        %v6910 = vsel %vm4928, %v6847, 0
        %6912 = vmatprep.subr.mxu0 0.0
        %6913 = vmatpush1.msra.mxu0 0.0
        %6914 = vmatprep.subr.mxu0 0.0
        %6915 = vmatpush1.msra.mxu0 0.0
        %6916 = vmatprep.subr.mxu0 0.0
        %6917 = vmatpush1.msra.mxu0 0.0
        %6918 = vmatprep.subr.mxu0 0.0
        %6919 = vmatpush1.msra.mxu0 0.0
        %6920 = vmatprep.subr.mxu0 0.0
        %6921 = vmatpush1.msra.mxu0 0.0
        %6922 = vmatprep.subr.mxu0 0.0
        %6923 = vmatpush1.msra.mxu0 0.0
        %6924 = vmatprep.subr.mxu0 0.0
        %6925 = vmatpush1.msra.mxu0 0.0
        %6926 = vmatprep.subr.mxu0 0.0
        %6927 = vmatpush1.msra.mxu0 0.0
        %6928 = vmatprep.subr.mxu0 0.0
        %6929 = vmatpush1.msra.mxu0 %v6782
        %6930 = vmatprep.subr.mxu0 0.0
        %6931 = vmatpush1.msra.mxu0 %v6781
        %6932 = vmatprep.subr.mxu0 0.0
        %6933 = vmatpush1.msra.mxu0 %v6780
        %6934 = vmatprep.subr.mxu0 0.0
        %6935 = vmatpush1.msra.mxu0 %v6779
        %6936 = vmatprep.subr.mxu0 0.0
        %6937 = vmatpush1.msra.mxu0 %v6778
        %6938 = vmatprep.subr.mxu0 0.0
        %6939 = vmatpush1.msra.mxu0 %v6777
        %6940 = vmatprep.subr.mxu0 0.0
        %6941 = vmatpush1.msra.mxu0 %v6776
        %6942 = vmatprep.subr.mxu0 0.0
        %6943 = vmatpush1.msra.mxu0 %v6775
        %6944 = vmatprep.subr.mxu0 0.0
        %6945 = vmatpush2.msra.mxu0 0.0
        %6946 = vmatprep.subr.mxu0 0.0
        %6947 = vmatpush2.msra.mxu0 0.0
        %6948 = vmatprep.subr.mxu0 0.0
        %6949 = vmatpush2.msra.mxu0 0.0
        %6950 = vmatprep.subr.mxu0 0.0
        %6951 = vmatpush2.msra.mxu0 0.0
        %6952 = vmatprep.subr.mxu0 0.0
        %6953 = vmatpush2.msra.mxu0 0.0
        %6954 = vmatprep.subr.mxu0 0.0
        %6955 = vmatpush2.msra.mxu0 0.0
        %6956 = vmatprep.subr.mxu0 0.0
        %6957 = vmatpush2.msra.mxu0 0.0
        %6958 = vmatprep.subr.mxu0 0.0
        %6959 = vmatpush2.msra.mxu0 0.0
        %6960 = vmatprep.subr.mxu0 0.0
        %6961 = vmatpush2.msra.mxu0 0.0
        %6962 = vmatprep.subr.mxu0 0.0
        %6963 = vmatpush2.msra.mxu0 0.0
        %6964 = vmatprep.subr.mxu0 0.0
        %6965 = vmatpush2.msra.mxu0 0.0
        %6966 = vmatprep.subr.mxu0 0.0
        %6967 = vmatpush2.msra.mxu0 0.0
        %6968 = vmatprep.subr.mxu0 0.0
        %6969 = vmatpush2.msra.mxu0 0.0
        %6970 = vmatprep.subr.mxu0 0.0
        %6971 = vmatpush2.msra.mxu0 0.0
        %6972 = vmatprep.subr.mxu0 0.0
        %6973 = vmatpush2.msra.mxu0 0.0
        %6974 = vmatprep.subr.mxu0 0.0
        %6975 = vmatpush2.msra.mxu0 0.0
        %6976 = vmatprep.mubr.f32.mxu0 0.0
        %6977 = vmatmul.mubr.f32.gmra.mxu0 %v6848
        %v6978 = vpop.f32.mrf.mxu0
        %v6979 = vadd.f32 0.0, %v6978
        %v6980 = vpop.f32.mrf.mxu0
        %6981 = vmatprep.mubr.f32.mxu0 0.0
        %6982 = vmatmul.mubr.f32.gmra.mxu0 %v6850
        %v6983 = vpop.f32.mrf.mxu0
        %v6984 = vadd.f32 0.0, %v6983
        %v6985 = vpop.f32.mrf.mxu0
        %6986 = vmatprep.mubr.f32.mxu0 0.0
        %6987 = vmatmul.mubr.f32.gmra.mxu0 %v6852
        %v6988 = vpop.f32.mrf.mxu0
        %v6989 = vadd.f32 0.0, %v6988
        %v6990 = vpop.f32.mrf.mxu0
        %6991 = vmatprep.mubr.f32.mxu0 0.0
        %6992 = vmatmul.mubr.f32.gmra.mxu0 %v6854
        %v6993 = vpop.f32.mrf.mxu0
        %v6994 = vadd.f32 0.0, %v6993
        %v6995 = vpop.f32.mrf.mxu0
        %6996 = vmatprep.mubr.f32.mxu0 0.0
        %6997 = vmatmul.mubr.f32.gmra.mxu0 %v6856
        %v6998 = vpop.f32.mrf.mxu0
        %v6999 = vadd.f32 0.0, %v6998
        %v7000 = vpop.f32.mrf.mxu0
        %7001 = vmatprep.mubr.f32.mxu0 0.0
        %7002 = vmatmul.mubr.f32.gmra.mxu0 %v6858
        %v7003 = vpop.f32.mrf.mxu0
        %v7004 = vadd.f32 0.0, %v7003
        %v7005 = vpop.f32.mrf.mxu0
        %7006 = vmatprep.mubr.f32.mxu0 0.0
        %7007 = vmatmul.mubr.f32.gmra.mxu0 %v6860
        %v7008 = vpop.f32.mrf.mxu0
        %v7009 = vadd.f32 0.0, %v7008
        %v7010 = vpop.f32.mrf.mxu0
        %7011 = vmatprep.mubr.f32.mxu0 0.0
        %7012 = vmatmul.mubr.f32.gmra.mxu0 %v6862
        %v7013 = vpop.f32.mrf.mxu0
        %v7014 = vadd.f32 0.0, %v7013
        %v7015 = vpop.f32.mrf.mxu0
        %7016 = vmatprep.mubr.f32.mxu0 0.0
        %7017 = vmatmul.mubr.f32.gmra.mxu0 %v6864
        %v7018 = vpop.f32.mrf.mxu0
        %v7019 = vadd.f32 0.0, %v7018
        %v7020 = vpop.f32.mrf.mxu0
        %7021 = vmatprep.mubr.f32.mxu0 0.0
        %7022 = vmatmul.mubr.f32.gmra.mxu0 %v6866
        %v7023 = vpop.f32.mrf.mxu0
        %v7024 = vadd.f32 0.0, %v7023
        %v7025 = vpop.f32.mrf.mxu0
        %7026 = vmatprep.mubr.f32.mxu0 0.0
        %7027 = vmatmul.mubr.f32.gmra.mxu0 %v6868
        %v7028 = vpop.f32.mrf.mxu0
        %v7029 = vadd.f32 0.0, %v7028
        %v7030 = vpop.f32.mrf.mxu0
        %7031 = vmatprep.mubr.f32.mxu0 0.0
        %7032 = vmatmul.mubr.f32.gmra.mxu0 %v6870
        %v7033 = vpop.f32.mrf.mxu0
        %v7034 = vadd.f32 0.0, %v7033
        %v7035 = vpop.f32.mrf.mxu0
        %7036 = vmatprep.mubr.f32.mxu0 0.0
        %7037 = vmatmul.mubr.f32.gmra.mxu0 %v6872
        %v7038 = vpop.f32.mrf.mxu0
        %v7039 = vadd.f32 0.0, %v7038
        %v7040 = vpop.f32.mrf.mxu0
        %7041 = vmatprep.mubr.f32.mxu0 0.0
        %7042 = vmatmul.mubr.f32.gmra.mxu0 %v6874
        %v7043 = vpop.f32.mrf.mxu0
        %v7044 = vadd.f32 0.0, %v7043
        %v7045 = vpop.f32.mrf.mxu0
        %7046 = vmatprep.mubr.f32.mxu0 0.0
        %7047 = vmatmul.mubr.f32.gmra.mxu0 %v6876
        %v7048 = vpop.f32.mrf.mxu0
        %v7049 = vadd.f32 0.0, %v7048
        %v7050 = vpop.f32.mrf.mxu0
        %7051 = vmatprep.mubr.f32.mxu0 0.0
        %7052 = vmatmul.mubr.f32.gmra.mxu0 %v6878
        %v7053 = vpop.f32.mrf.mxu0
        %v7054 = vadd.f32 0.0, %v7053
        %v7055 = vpop.f32.mrf.mxu0
        %7056 = vmatprep.mubr.f32.mxu0 0.0
        %7057 = vmatmul.mubr.f32.gmra.mxu0 %v6880
        %v7058 = vpop.f32.mrf.mxu0
        %v7059 = vadd.f32 0.0, %v7058
        %v7060 = vpop.f32.mrf.mxu0
        %7061 = vmatprep.mubr.f32.mxu0 0.0
        %7062 = vmatmul.mubr.f32.gmra.mxu0 %v6882
        %v7063 = vpop.f32.mrf.mxu0
        %v7064 = vadd.f32 0.0, %v7063
        %v7065 = vpop.f32.mrf.mxu0
        %7066 = vmatprep.mubr.f32.mxu0 0.0
        %7067 = vmatmul.mubr.f32.gmra.mxu0 %v6884
        %v7068 = vpop.f32.mrf.mxu0
        %v7069 = vadd.f32 0.0, %v7068
        %v7070 = vpop.f32.mrf.mxu0
        %7071 = vmatprep.mubr.f32.mxu0 0.0
        %7072 = vmatmul.mubr.f32.gmra.mxu0 %v6886
        %v7073 = vpop.f32.mrf.mxu0
        %v7074 = vadd.f32 0.0, %v7073
        %v7075 = vpop.f32.mrf.mxu0
        %7076 = vmatprep.mubr.f32.mxu0 0.0
        %7077 = vmatmul.mubr.f32.gmra.mxu0 %v6888
        %v7078 = vpop.f32.mrf.mxu0
        %v7079 = vadd.f32 0.0, %v7078
        %v7080 = vpop.f32.mrf.mxu0
        %7081 = vmatprep.mubr.f32.mxu0 0.0
        %7082 = vmatmul.mubr.f32.gmra.mxu0 %v6890
        %v7083 = vpop.f32.mrf.mxu0
        %v7084 = vadd.f32 0.0, %v7083
        %v7085 = vpop.f32.mrf.mxu0
        %7086 = vmatprep.mubr.f32.mxu0 0.0
        %7087 = vmatmul.mubr.f32.gmra.mxu0 %v6892
        %v7088 = vpop.f32.mrf.mxu0
        %v7089 = vadd.f32 0.0, %v7088
        %v7090 = vpop.f32.mrf.mxu0
        %7091 = vmatprep.mubr.f32.mxu0 0.0
        %7092 = vmatmul.mubr.f32.gmra.mxu0 %v6894
        %v7093 = vpop.f32.mrf.mxu0
        %v7094 = vadd.f32 0.0, %v7093
        %v7095 = vpop.f32.mrf.mxu0
        %7096 = vmatprep.mubr.f32.mxu0 0.0
        %7097 = vmatmul.mubr.f32.gmra.mxu0 %v6896
        %v7098 = vpop.f32.mrf.mxu0
        %v7099 = vadd.f32 0.0, %v7098
        %v7100 = vpop.f32.mrf.mxu0
        %7101 = vmatprep.mubr.f32.mxu0 0.0
        %7102 = vmatmul.mubr.f32.gmra.mxu0 %v6898
        %v7103 = vpop.f32.mrf.mxu0
        %v7104 = vadd.f32 0.0, %v7103
        %v7105 = vpop.f32.mrf.mxu0
        %7106 = vmatprep.mubr.f32.mxu0 0.0
        %7107 = vmatmul.mubr.f32.gmra.mxu0 %v6900
        %v7108 = vpop.f32.mrf.mxu0
        %v7109 = vadd.f32 0.0, %v7108
        %v7110 = vpop.f32.mrf.mxu0
        %7111 = vmatprep.mubr.f32.mxu0 0.0
        %7112 = vmatmul.mubr.f32.gmra.mxu0 %v6902
        %v7113 = vpop.f32.mrf.mxu0
        %v7114 = vadd.f32 0.0, %v7113
        %v7115 = vpop.f32.mrf.mxu0
        %7116 = vmatprep.mubr.f32.mxu0 0.0
        %7117 = vmatmul.mubr.f32.gmra.mxu0 %v6904
        %v7118 = vpop.f32.mrf.mxu0
        %v7119 = vadd.f32 0.0, %v7118
        %v7120 = vpop.f32.mrf.mxu0
        %7121 = vmatprep.mubr.f32.mxu0 0.0
        %7122 = vmatmul.mubr.f32.gmra.mxu0 %v6906
        %v7123 = vpop.f32.mrf.mxu0
        %v7124 = vadd.f32 0.0, %v7123
        %v7125 = vpop.f32.mrf.mxu0
        %7126 = vmatprep.mubr.f32.mxu0 0.0
        %7127 = vmatmul.mubr.f32.gmra.mxu0 %v6908
        %v7128 = vpop.f32.mrf.mxu0
        %v7129 = vadd.f32 0.0, %v7128
        %v7130 = vpop.f32.mrf.mxu0
        %7131 = vmatprep.mubr.f32.mxu0 0.0
        %7132 = vmatmul.mubr.f32.gmra.mxu0 %v6910
        %v7133 = vpop.f32.mrf.mxu0
        %v7134 = vadd.f32 0.0, %v7133
        %v7135 = vpop.f32.mrf.mxu0
        %7136 = vdwg.mxu0
        %v7137 = vadd.f32 %v6616, %v6979
        %v7138 = vadd.f32 %v6621, %v6984
        %v7139 = vadd.f32 %v6626, %v6989
        %v7140 = vadd.f32 %v6631, %v6994
        %v7141 = vadd.f32 %v6636, %v6999
        %v7142 = vadd.f32 %v6641, %v7004
        %v7143 = vadd.f32 %v6646, %v7009
        %v7144 = vadd.f32 %v6651, %v7014
        %v7145 = vadd.f32 %v6656, %v7019
        %v7146 = vadd.f32 %v6661, %v7024
        %v7147 = vadd.f32 %v6666, %v7029
        %v7148 = vadd.f32 %v6671, %v7034
        %v7149 = vadd.f32 %v6676, %v7039
        %v7150 = vadd.f32 %v6681, %v7044
        %v7151 = vadd.f32 %v6686, %v7049
        %v7152 = vadd.f32 %v6691, %v7054
        %v7153 = vadd.f32 %v6696, %v7059
        %v7154 = vadd.f32 %v6701, %v7064
        %v7155 = vadd.f32 %v6706, %v7069
        %v7156 = vadd.f32 %v6711, %v7074
        %v7157 = vadd.f32 %v6716, %v7079
        %v7158 = vadd.f32 %v6721, %v7084
        %v7159 = vadd.f32 %v6726, %v7089
        %v7160 = vadd.f32 %v6731, %v7094
        %v7161 = vadd.f32 %v6736, %v7099
        %v7162 = vadd.f32 %v6741, %v7104
        %v7163 = vadd.f32 %v6746, %v7109
        %v7164 = vadd.f32 %v6751, %v7114
        %v7165 = vadd.f32 %v6756, %v7119
        %v7166 = vadd.f32 %v6761, %v7124
        %v7167 = vadd.f32 %v6766, %v7129
        %v7168 = vadd.f32 %v6771, %v7134
        %v7169 = vld [vmem:[%s17] sm:$0x1]
        %v7171 = vlaneseq
        %v7172 = vshrl.u32 %v7171, 7
        %v7173 = vsub.s32 0, %v7172
        %v7174 = vrot.slane %v7169, %v7173
        %v7176 = vmul.f32 %v7137, %v7174
        %v7177 = vmul.f32 %v7138, %v7174
        %v7178 = vmul.f32 %v7139, %v7174
        %v7179 = vmul.f32 %v7140, %v7174
        %v7180 = vmul.f32 %v7141, %v7174
        %v7181 = vmul.f32 %v7142, %v7174
        %v7182 = vmul.f32 %v7143, %v7174
        %v7183 = vmul.f32 %v7144, %v7174
        %v7184 = vmul.f32 %v7145, %v7174
        %v7185 = vmul.f32 %v7146, %v7174
        %v7186 = vmul.f32 %v7147, %v7174
        %v7187 = vmul.f32 %v7148, %v7174
        %v7188 = vmul.f32 %v7149, %v7174
        %v7189 = vmul.f32 %v7150, %v7174
        %v7190 = vmul.f32 %v7151, %v7174
        %v7191 = vmul.f32 %v7152, %v7174
        %v7192 = vmul.f32 %v7153, %v7174
        %v7193 = vmul.f32 %v7154, %v7174
        %v7194 = vmul.f32 %v7155, %v7174
        %v7195 = vmul.f32 %v7156, %v7174
        %v7196 = vmul.f32 %v7157, %v7174
        %v7197 = vmul.f32 %v7158, %v7174
        %v7198 = vmul.f32 %v7159, %v7174
        %v7199 = vmul.f32 %v7160, %v7174
        %v7200 = vmul.f32 %v7161, %v7174
        %v7201 = vmul.f32 %v7162, %v7174
        %v7202 = vmul.f32 %v7163, %v7174
        %v7203 = vmul.f32 %v7164, %v7174
        %v7204 = vmul.f32 %v7165, %v7174
        %v7205 = vmul.f32 %v7166, %v7174
        %v7206 = vmul.f32 %v7167, %v7174
        %v7207 = vmul.f32 %v7168, %v7174
        %v7208 = vld [vmem:[%s19] sm:$0x1]
        %v7210 = vlaneseq
        %v7211 = vshrl.u32 %v7210, 7
        %v7212 = vsub.s32 0, %v7211
        %v7213 = vrot.slane %v7208, %v7212
        %v7215 = vadd.f32 %v7176, %v7213
        %v7216 = vadd.f32 %v7177, %v7213
        %v7217 = vadd.f32 %v7178, %v7213
        %v7218 = vadd.f32 %v7179, %v7213
        %v7219 = vadd.f32 %v7180, %v7213
        %v7220 = vadd.f32 %v7181, %v7213
        %v7221 = vadd.f32 %v7182, %v7213
        %v7222 = vadd.f32 %v7183, %v7213
        %v7223 = vadd.f32 %v7184, %v7213
        %v7224 = vadd.f32 %v7185, %v7213
        %v7225 = vadd.f32 %v7186, %v7213
        %v7226 = vadd.f32 %v7187, %v7213
        %v7227 = vadd.f32 %v7188, %v7213
        %v7228 = vadd.f32 %v7189, %v7213
        %v7229 = vadd.f32 %v7190, %v7213
        %v7230 = vadd.f32 %v7191, %v7213
        %v7231 = vadd.f32 %v7192, %v7213
        %v7232 = vadd.f32 %v7193, %v7213
        %v7233 = vadd.f32 %v7194, %v7213
        %v7234 = vadd.f32 %v7195, %v7213
        %v7235 = vadd.f32 %v7196, %v7213
        %v7236 = vadd.f32 %v7197, %v7213
        %v7237 = vadd.f32 %v7198, %v7213
        %v7238 = vadd.f32 %v7199, %v7213
        %v7239 = vadd.f32 %v7200, %v7213
        %v7240 = vadd.f32 %v7201, %v7213
        %v7241 = vadd.f32 %v7202, %v7213
        %v7242 = vadd.f32 %v7203, %v7213
        %v7243 = vadd.f32 %v7204, %v7213
        %v7244 = vadd.f32 %v7205, %v7213
        %v7245 = vadd.f32 %v7206, %v7213
        %v7246 = vadd.f32 %v7207, %v7213
        %v7247 = vmax.f32 %v7215, 0.0
        %v7248 = vmax.f32 %v7216, 0.0
        %v7249 = vmax.f32 %v7217, 0.0
        %v7250 = vmax.f32 %v7218, 0.0
        %v7251 = vmax.f32 %v7219, 0.0
        %v7252 = vmax.f32 %v7220, 0.0
        %v7253 = vmax.f32 %v7221, 0.0
        %v7254 = vmax.f32 %v7222, 0.0
        %v7255 = vmax.f32 %v7223, 0.0
        %v7256 = vmax.f32 %v7224, 0.0
        %v7257 = vmax.f32 %v7225, 0.0
        %v7258 = vmax.f32 %v7226, 0.0
        %v7259 = vmax.f32 %v7227, 0.0
        %v7260 = vmax.f32 %v7228, 0.0
        %v7261 = vmax.f32 %v7229, 0.0
        %v7262 = vmax.f32 %v7230, 0.0
        %v7263 = vmax.f32 %v7231, 0.0
        %v7264 = vmax.f32 %v7232, 0.0
        %v7265 = vmax.f32 %v7233, 0.0
        %v7266 = vmax.f32 %v7234, 0.0
        %v7267 = vmax.f32 %v7235, 0.0
        %v7268 = vmax.f32 %v7236, 0.0
        %v7269 = vmax.f32 %v7237, 0.0
        %v7270 = vmax.f32 %v7238, 0.0
        %v7271 = vmax.f32 %v7239, 0.0
        %v7272 = vmax.f32 %v7240, 0.0
        %v7273 = vmax.f32 %v7241, 0.0
        %v7274 = vmax.f32 %v7242, 0.0
        %v7275 = vmax.f32 %v7243, 0.0
        %v7276 = vmax.f32 %v7244, 0.0
        %v7277 = vmax.f32 %v7245, 0.0
        %v7278 = vmax.f32 %v7246, 0.0
        %v7311 = vcombine.high %v7247, %v7247
        %v7312 = vcombine.high %v7248, %v7248
        %v7313 = vcombine.high %v7249, %v7249
        %v7314 = vcombine.high %v7250, %v7250
        %v7315 = vcombine.high %v7251, %v7251
        %v7316 = vcombine.high %v7252, %v7252
        %v7317 = vcombine.high %v7253, %v7253
        %v7318 = vcombine.high %v7254, %v7254
        %v7319 = vcombine.high %v7255, %v7255
        %v7320 = vcombine.high %v7256, %v7256
        %v7321 = vcombine.high %v7257, %v7257
        %v7322 = vcombine.high %v7258, %v7258
        %v7323 = vcombine.high %v7259, %v7259
        %v7324 = vcombine.high %v7260, %v7260
        %v7325 = vcombine.high %v7261, %v7261
        %v7326 = vcombine.high %v7262, %v7262
        %v7327 = vcombine.high %v7263, %v7263
        %v7328 = vcombine.high %v7264, %v7264
        %v7329 = vcombine.high %v7265, %v7265
        %v7330 = vcombine.high %v7266, %v7266
        %v7331 = vcombine.high %v7267, %v7267
        %v7332 = vcombine.high %v7268, %v7268
        %v7333 = vcombine.high %v7269, %v7269
        %v7334 = vcombine.high %v7270, %v7270
        %v7335 = vcombine.high %v7271, %v7271
        %v7336 = vcombine.high %v7272, %v7272
        %v7337 = vcombine.high %v7273, %v7273
        %v7338 = vcombine.high %v7274, %v7274
        %v7339 = vcombine.high %v7275, %v7275
        %v7340 = vcombine.high %v7276, %v7276
        %v7341 = vcombine.high %v7277, %v7277
        %v7342 = vcombine.high %v7278, %v7278
        %v7375 = vsel %vm2559, %v7247, -inf
        %v7376 = vrot.slane %v7375, 4
        %v7377 = vmax.f32 %v7375, %v7376
        %v7378 = vrot.slane %v7377, 2
        %v7379 = vmax.f32 %v7377, %v7378
        %v7380 = vrot.slane %v7379, 1
        %v7381 = vmax.f32 %v7379, %v7380
        %v7382 = vsel %vm2559, %v7311, -inf
        %v7383 = vrot.slane %v7382, 4
        %v7384 = vmax.f32 %v7382, %v7383
        %v7385 = vrot.slane %v7384, 2
        %v7386 = vmax.f32 %v7384, %v7385
        %v7387 = vrot.slane %v7386, 1
        %v7388 = vmax.f32 %v7386, %v7387
        %v7389 = vsel %vm2559, %v7248, -inf
        %v7390 = vrot.slane %v7389, 4
        %v7391 = vmax.f32 %v7389, %v7390
        %v7392 = vrot.slane %v7391, 2
        %v7393 = vmax.f32 %v7391, %v7392
        %v7394 = vrot.slane %v7393, 1
        %v7395 = vmax.f32 %v7393, %v7394
        %v7396 = vsel %vm2559, %v7312, -inf
        %v7397 = vrot.slane %v7396, 4
        %v7398 = vmax.f32 %v7396, %v7397
        %v7399 = vrot.slane %v7398, 2
        %v7400 = vmax.f32 %v7398, %v7399
        %v7401 = vrot.slane %v7400, 1
        %v7402 = vmax.f32 %v7400, %v7401
        %v7403 = vsel %vm2559, %v7249, -inf
        %v7404 = vrot.slane %v7403, 4
        %v7405 = vmax.f32 %v7403, %v7404
        %v7406 = vrot.slane %v7405, 2
        %v7407 = vmax.f32 %v7405, %v7406
        %v7408 = vrot.slane %v7407, 1
        %v7409 = vmax.f32 %v7407, %v7408
        %v7410 = vsel %vm2559, %v7313, -inf
        %v7411 = vrot.slane %v7410, 4
        %v7412 = vmax.f32 %v7410, %v7411
        %v7413 = vrot.slane %v7412, 2
        %v7414 = vmax.f32 %v7412, %v7413
        %v7415 = vrot.slane %v7414, 1
        %v7416 = vmax.f32 %v7414, %v7415
        %v7417 = vsel %vm2559, %v7250, -inf
        %v7418 = vrot.slane %v7417, 4
        %v7419 = vmax.f32 %v7417, %v7418
        %v7420 = vrot.slane %v7419, 2
        %v7421 = vmax.f32 %v7419, %v7420
        %v7422 = vrot.slane %v7421, 1
        %v7423 = vmax.f32 %v7421, %v7422
        %v7424 = vsel %vm2559, %v7314, -inf
        %v7425 = vrot.slane %v7424, 4
        %v7426 = vmax.f32 %v7424, %v7425
        %v7427 = vrot.slane %v7426, 2
        %v7428 = vmax.f32 %v7426, %v7427
        %v7429 = vrot.slane %v7428, 1
        %v7430 = vmax.f32 %v7428, %v7429
        %v7431 = vsel %vm2559, %v7251, -inf
        %v7432 = vrot.slane %v7431, 4
        %v7433 = vmax.f32 %v7431, %v7432
        %v7434 = vrot.slane %v7433, 2
        %v7435 = vmax.f32 %v7433, %v7434
        %v7436 = vrot.slane %v7435, 1
        %v7437 = vmax.f32 %v7435, %v7436
        %v7438 = vsel %vm2559, %v7315, -inf
        %v7439 = vrot.slane %v7438, 4
        %v7440 = vmax.f32 %v7438, %v7439
        %v7441 = vrot.slane %v7440, 2
        %v7442 = vmax.f32 %v7440, %v7441
        %v7443 = vrot.slane %v7442, 1
        %v7444 = vmax.f32 %v7442, %v7443
        %v7445 = vsel %vm2559, %v7252, -inf
        %v7446 = vrot.slane %v7445, 4
        %v7447 = vmax.f32 %v7445, %v7446
        %v7448 = vrot.slane %v7447, 2
        %v7449 = vmax.f32 %v7447, %v7448
        %v7450 = vrot.slane %v7449, 1
        %v7451 = vmax.f32 %v7449, %v7450
        %v7452 = vsel %vm2559, %v7316, -inf
        %v7453 = vrot.slane %v7452, 4
        %v7454 = vmax.f32 %v7452, %v7453
        %v7455 = vrot.slane %v7454, 2
        %v7456 = vmax.f32 %v7454, %v7455
        %v7457 = vrot.slane %v7456, 1
        %v7458 = vmax.f32 %v7456, %v7457
        %v7459 = vsel %vm2559, %v7253, -inf
        %v7460 = vrot.slane %v7459, 4
        %v7461 = vmax.f32 %v7459, %v7460
        %v7462 = vrot.slane %v7461, 2
        %v7463 = vmax.f32 %v7461, %v7462
        %v7464 = vrot.slane %v7463, 1
        %v7465 = vmax.f32 %v7463, %v7464
        %v7466 = vsel %vm2559, %v7317, -inf
        %v7467 = vrot.slane %v7466, 4
        %v7468 = vmax.f32 %v7466, %v7467
        %v7469 = vrot.slane %v7468, 2
        %v7470 = vmax.f32 %v7468, %v7469
        %v7471 = vrot.slane %v7470, 1
        %v7472 = vmax.f32 %v7470, %v7471
        %v7473 = vsel %vm2559, %v7254, -inf
        %v7474 = vrot.slane %v7473, 4
        %v7475 = vmax.f32 %v7473, %v7474
        %v7476 = vrot.slane %v7475, 2
        %v7477 = vmax.f32 %v7475, %v7476
        %v7478 = vrot.slane %v7477, 1
        %v7479 = vmax.f32 %v7477, %v7478
        %v7480 = vsel %vm2559, %v7318, -inf
        %v7481 = vrot.slane %v7480, 4
        %v7482 = vmax.f32 %v7480, %v7481
        %v7483 = vrot.slane %v7482, 2
        %v7484 = vmax.f32 %v7482, %v7483
        %v7485 = vrot.slane %v7484, 1
        %v7486 = vmax.f32 %v7484, %v7485
        %v7487 = vsel %vm2559, %v7255, -inf
        %v7488 = vrot.slane %v7487, 4
        %v7489 = vmax.f32 %v7487, %v7488
        %v7490 = vrot.slane %v7489, 2
        %v7491 = vmax.f32 %v7489, %v7490
        %v7492 = vrot.slane %v7491, 1
        %v7493 = vmax.f32 %v7491, %v7492
        %v7494 = vsel %vm2559, %v7319, -inf
        %v7495 = vrot.slane %v7494, 4
        %v7496 = vmax.f32 %v7494, %v7495
        %v7497 = vrot.slane %v7496, 2
        %v7498 = vmax.f32 %v7496, %v7497
        %v7499 = vrot.slane %v7498, 1
        %v7500 = vmax.f32 %v7498, %v7499
        %v7501 = vsel %vm2559, %v7256, -inf
        %v7502 = vrot.slane %v7501, 4
        %v7503 = vmax.f32 %v7501, %v7502
        %v7504 = vrot.slane %v7503, 2
        %v7505 = vmax.f32 %v7503, %v7504
        %v7506 = vrot.slane %v7505, 1
        %v7507 = vmax.f32 %v7505, %v7506
        %v7508 = vsel %vm2559, %v7320, -inf
        %v7509 = vrot.slane %v7508, 4
        %v7510 = vmax.f32 %v7508, %v7509
        %v7511 = vrot.slane %v7510, 2
        %v7512 = vmax.f32 %v7510, %v7511
        %v7513 = vrot.slane %v7512, 1
        %v7514 = vmax.f32 %v7512, %v7513
        %v7515 = vsel %vm2559, %v7257, -inf
        %v7516 = vrot.slane %v7515, 4
        %v7517 = vmax.f32 %v7515, %v7516
        %v7518 = vrot.slane %v7517, 2
        %v7519 = vmax.f32 %v7517, %v7518
        %v7520 = vrot.slane %v7519, 1
        %v7521 = vmax.f32 %v7519, %v7520
        %v7522 = vsel %vm2559, %v7321, -inf
        %v7523 = vrot.slane %v7522, 4
        %v7524 = vmax.f32 %v7522, %v7523
        %v7525 = vrot.slane %v7524, 2
        %v7526 = vmax.f32 %v7524, %v7525
        %v7527 = vrot.slane %v7526, 1
        %v7528 = vmax.f32 %v7526, %v7527
        %v7529 = vsel %vm2559, %v7258, -inf
        %v7530 = vrot.slane %v7529, 4
        %v7531 = vmax.f32 %v7529, %v7530
        %v7532 = vrot.slane %v7531, 2
        %v7533 = vmax.f32 %v7531, %v7532
        %v7534 = vrot.slane %v7533, 1
        %v7535 = vmax.f32 %v7533, %v7534
        %v7536 = vsel %vm2559, %v7322, -inf
        %v7537 = vrot.slane %v7536, 4
        %v7538 = vmax.f32 %v7536, %v7537
        %v7539 = vrot.slane %v7538, 2
        %v7540 = vmax.f32 %v7538, %v7539
        %v7541 = vrot.slane %v7540, 1
        %v7542 = vmax.f32 %v7540, %v7541
        %v7543 = vsel %vm2559, %v7259, -inf
        %v7544 = vrot.slane %v7543, 4
        %v7545 = vmax.f32 %v7543, %v7544
        %v7546 = vrot.slane %v7545, 2
        %v7547 = vmax.f32 %v7545, %v7546
        %v7548 = vrot.slane %v7547, 1
        %v7549 = vmax.f32 %v7547, %v7548
        %v7550 = vsel %vm2559, %v7323, -inf
        %v7551 = vrot.slane %v7550, 4
        %v7552 = vmax.f32 %v7550, %v7551
        %v7553 = vrot.slane %v7552, 2
        %v7554 = vmax.f32 %v7552, %v7553
        %v7555 = vrot.slane %v7554, 1
        %v7556 = vmax.f32 %v7554, %v7555
        %v7557 = vsel %vm2559, %v7260, -inf
        %v7558 = vrot.slane %v7557, 4
        %v7559 = vmax.f32 %v7557, %v7558
        %v7560 = vrot.slane %v7559, 2
        %v7561 = vmax.f32 %v7559, %v7560
        %v7562 = vrot.slane %v7561, 1
        %v7563 = vmax.f32 %v7561, %v7562
        %v7564 = vsel %vm2559, %v7324, -inf
        %v7565 = vrot.slane %v7564, 4
        %v7566 = vmax.f32 %v7564, %v7565
        %v7567 = vrot.slane %v7566, 2
        %v7568 = vmax.f32 %v7566, %v7567
        %v7569 = vrot.slane %v7568, 1
        %v7570 = vmax.f32 %v7568, %v7569
        %v7571 = vsel %vm2559, %v7261, -inf
        %v7572 = vrot.slane %v7571, 4
        %v7573 = vmax.f32 %v7571, %v7572
        %v7574 = vrot.slane %v7573, 2
        %v7575 = vmax.f32 %v7573, %v7574
        %v7576 = vrot.slane %v7575, 1
        %v7577 = vmax.f32 %v7575, %v7576
        %v7578 = vsel %vm2559, %v7325, -inf
        %v7579 = vrot.slane %v7578, 4
        %v7580 = vmax.f32 %v7578, %v7579
        %v7581 = vrot.slane %v7580, 2
        %v7582 = vmax.f32 %v7580, %v7581
        %v7583 = vrot.slane %v7582, 1
        %v7584 = vmax.f32 %v7582, %v7583
        %v7585 = vsel %vm2559, %v7262, -inf
        %v7586 = vrot.slane %v7585, 4
        %v7587 = vmax.f32 %v7585, %v7586
        %v7588 = vrot.slane %v7587, 2
        %v7589 = vmax.f32 %v7587, %v7588
        %v7590 = vrot.slane %v7589, 1
        %v7591 = vmax.f32 %v7589, %v7590
        %v7592 = vsel %vm2559, %v7326, -inf
        %v7593 = vrot.slane %v7592, 4
        %v7594 = vmax.f32 %v7592, %v7593
        %v7595 = vrot.slane %v7594, 2
        %v7596 = vmax.f32 %v7594, %v7595
        %v7597 = vrot.slane %v7596, 1
        %v7598 = vmax.f32 %v7596, %v7597
        %v7599 = vsel %vm2559, %v7263, -inf
        %v7600 = vrot.slane %v7599, 4
        %v7601 = vmax.f32 %v7599, %v7600
        %v7602 = vrot.slane %v7601, 2
        %v7603 = vmax.f32 %v7601, %v7602
        %v7604 = vrot.slane %v7603, 1
        %v7605 = vmax.f32 %v7603, %v7604
        %v7606 = vsel %vm2559, %v7327, -inf
        %v7607 = vrot.slane %v7606, 4
        %v7608 = vmax.f32 %v7606, %v7607
        %v7609 = vrot.slane %v7608, 2
        %v7610 = vmax.f32 %v7608, %v7609
        %v7611 = vrot.slane %v7610, 1
        %v7612 = vmax.f32 %v7610, %v7611
        %v7613 = vsel %vm2559, %v7264, -inf
        %v7614 = vrot.slane %v7613, 4
        %v7615 = vmax.f32 %v7613, %v7614
        %v7616 = vrot.slane %v7615, 2
        %v7617 = vmax.f32 %v7615, %v7616
        %v7618 = vrot.slane %v7617, 1
        %v7619 = vmax.f32 %v7617, %v7618
        %v7620 = vsel %vm2559, %v7328, -inf
        %v7621 = vrot.slane %v7620, 4
        %v7622 = vmax.f32 %v7620, %v7621
        %v7623 = vrot.slane %v7622, 2
        %v7624 = vmax.f32 %v7622, %v7623
        %v7625 = vrot.slane %v7624, 1
        %v7626 = vmax.f32 %v7624, %v7625
        %v7627 = vsel %vm2559, %v7265, -inf
        %v7628 = vrot.slane %v7627, 4
        %v7629 = vmax.f32 %v7627, %v7628
        %v7630 = vrot.slane %v7629, 2
        %v7631 = vmax.f32 %v7629, %v7630
        %v7632 = vrot.slane %v7631, 1
        %v7633 = vmax.f32 %v7631, %v7632
        %v7634 = vsel %vm2559, %v7329, -inf
        %v7635 = vrot.slane %v7634, 4
        %v7636 = vmax.f32 %v7634, %v7635
        %v7637 = vrot.slane %v7636, 2
        %v7638 = vmax.f32 %v7636, %v7637
        %v7639 = vrot.slane %v7638, 1
        %v7640 = vmax.f32 %v7638, %v7639
        %v7641 = vsel %vm2559, %v7266, -inf
        %v7642 = vrot.slane %v7641, 4
        %v7643 = vmax.f32 %v7641, %v7642
        %v7644 = vrot.slane %v7643, 2
        %v7645 = vmax.f32 %v7643, %v7644
        %v7646 = vrot.slane %v7645, 1
        %v7647 = vmax.f32 %v7645, %v7646
        %v7648 = vsel %vm2559, %v7330, -inf
        %v7649 = vrot.slane %v7648, 4
        %v7650 = vmax.f32 %v7648, %v7649
        %v7651 = vrot.slane %v7650, 2
        %v7652 = vmax.f32 %v7650, %v7651
        %v7653 = vrot.slane %v7652, 1
        %v7654 = vmax.f32 %v7652, %v7653
        %v7655 = vsel %vm2559, %v7267, -inf
        %v7656 = vrot.slane %v7655, 4
        %v7657 = vmax.f32 %v7655, %v7656
        %v7658 = vrot.slane %v7657, 2
        %v7659 = vmax.f32 %v7657, %v7658
        %v7660 = vrot.slane %v7659, 1
        %v7661 = vmax.f32 %v7659, %v7660
        %v7662 = vsel %vm2559, %v7331, -inf
        %v7663 = vrot.slane %v7662, 4
        %v7664 = vmax.f32 %v7662, %v7663
        %v7665 = vrot.slane %v7664, 2
        %v7666 = vmax.f32 %v7664, %v7665
        %v7667 = vrot.slane %v7666, 1
        %v7668 = vmax.f32 %v7666, %v7667
        %v7669 = vsel %vm2559, %v7268, -inf
        %v7670 = vrot.slane %v7669, 4
        %v7671 = vmax.f32 %v7669, %v7670
        %v7672 = vrot.slane %v7671, 2
        %v7673 = vmax.f32 %v7671, %v7672
        %v7674 = vrot.slane %v7673, 1
        %v7675 = vmax.f32 %v7673, %v7674
        %v7676 = vsel %vm2559, %v7332, -inf
        %v7677 = vrot.slane %v7676, 4
        %v7678 = vmax.f32 %v7676, %v7677
        %v7679 = vrot.slane %v7678, 2
        %v7680 = vmax.f32 %v7678, %v7679
        %v7681 = vrot.slane %v7680, 1
        %v7682 = vmax.f32 %v7680, %v7681
        %v7683 = vsel %vm2559, %v7269, -inf
        %v7684 = vrot.slane %v7683, 4
        %v7685 = vmax.f32 %v7683, %v7684
        %v7686 = vrot.slane %v7685, 2
        %v7687 = vmax.f32 %v7685, %v7686
        %v7688 = vrot.slane %v7687, 1
        %v7689 = vmax.f32 %v7687, %v7688
        %v7690 = vsel %vm2559, %v7333, -inf
        %v7691 = vrot.slane %v7690, 4
        %v7692 = vmax.f32 %v7690, %v7691
        %v7693 = vrot.slane %v7692, 2
        %v7694 = vmax.f32 %v7692, %v7693
        %v7695 = vrot.slane %v7694, 1
        %v7696 = vmax.f32 %v7694, %v7695
        %v7697 = vsel %vm2559, %v7270, -inf
        %v7698 = vrot.slane %v7697, 4
        %v7699 = vmax.f32 %v7697, %v7698
        %v7700 = vrot.slane %v7699, 2
        %v7701 = vmax.f32 %v7699, %v7700
        %v7702 = vrot.slane %v7701, 1
        %v7703 = vmax.f32 %v7701, %v7702
        %v7704 = vsel %vm2559, %v7334, -inf
        %v7705 = vrot.slane %v7704, 4
        %v7706 = vmax.f32 %v7704, %v7705
        %v7707 = vrot.slane %v7706, 2
        %v7708 = vmax.f32 %v7706, %v7707
        %v7709 = vrot.slane %v7708, 1
        %v7710 = vmax.f32 %v7708, %v7709
        %v7711 = vsel %vm2559, %v7271, -inf
        %v7712 = vrot.slane %v7711, 4
        %v7713 = vmax.f32 %v7711, %v7712
        %v7714 = vrot.slane %v7713, 2
        %v7715 = vmax.f32 %v7713, %v7714
        %v7716 = vrot.slane %v7715, 1
        %v7717 = vmax.f32 %v7715, %v7716
        %v7718 = vsel %vm2559, %v7335, -inf
        %v7719 = vrot.slane %v7718, 4
        %v7720 = vmax.f32 %v7718, %v7719
        %v7721 = vrot.slane %v7720, 2
        %v7722 = vmax.f32 %v7720, %v7721
        %v7723 = vrot.slane %v7722, 1
        %v7724 = vmax.f32 %v7722, %v7723
        %v7725 = vsel %vm2559, %v7272, -inf
        %v7726 = vrot.slane %v7725, 4
        %v7727 = vmax.f32 %v7725, %v7726
        %v7728 = vrot.slane %v7727, 2
        %v7729 = vmax.f32 %v7727, %v7728
        %v7730 = vrot.slane %v7729, 1
        %v7731 = vmax.f32 %v7729, %v7730
        %v7732 = vsel %vm2559, %v7336, -inf
        %v7733 = vrot.slane %v7732, 4
        %v7734 = vmax.f32 %v7732, %v7733
        %v7735 = vrot.slane %v7734, 2
        %v7736 = vmax.f32 %v7734, %v7735
        %v7737 = vrot.slane %v7736, 1
        %v7738 = vmax.f32 %v7736, %v7737
        %v7739 = vsel %vm2559, %v7273, -inf
        %v7740 = vrot.slane %v7739, 4
        %v7741 = vmax.f32 %v7739, %v7740
        %v7742 = vrot.slane %v7741, 2
        %v7743 = vmax.f32 %v7741, %v7742
        %v7744 = vrot.slane %v7743, 1
        %v7745 = vmax.f32 %v7743, %v7744
        %v7746 = vsel %vm2559, %v7337, -inf
        %v7747 = vrot.slane %v7746, 4
        %v7748 = vmax.f32 %v7746, %v7747
        %v7749 = vrot.slane %v7748, 2
        %v7750 = vmax.f32 %v7748, %v7749
        %v7751 = vrot.slane %v7750, 1
        %v7752 = vmax.f32 %v7750, %v7751
        %v7753 = vsel %vm2559, %v7274, -inf
        %v7754 = vrot.slane %v7753, 4
        %v7755 = vmax.f32 %v7753, %v7754
        %v7756 = vrot.slane %v7755, 2
        %v7757 = vmax.f32 %v7755, %v7756
        %v7758 = vrot.slane %v7757, 1
        %v7759 = vmax.f32 %v7757, %v7758
        %v7760 = vsel %vm2559, %v7338, -inf
        %v7761 = vrot.slane %v7760, 4
        %v7762 = vmax.f32 %v7760, %v7761
        %v7763 = vrot.slane %v7762, 2
        %v7764 = vmax.f32 %v7762, %v7763
        %v7765 = vrot.slane %v7764, 1
        %v7766 = vmax.f32 %v7764, %v7765
        %v7767 = vsel %vm2559, %v7275, -inf
        %v7768 = vrot.slane %v7767, 4
        %v7769 = vmax.f32 %v7767, %v7768
        %v7770 = vrot.slane %v7769, 2
        %v7771 = vmax.f32 %v7769, %v7770
        %v7772 = vrot.slane %v7771, 1
        %v7773 = vmax.f32 %v7771, %v7772
        %v7774 = vsel %vm2559, %v7339, -inf
        %v7775 = vrot.slane %v7774, 4
        %v7776 = vmax.f32 %v7774, %v7775
        %v7777 = vrot.slane %v7776, 2
        %v7778 = vmax.f32 %v7776, %v7777
        %v7779 = vrot.slane %v7778, 1
        %v7780 = vmax.f32 %v7778, %v7779
        %v7781 = vsel %vm2559, %v7276, -inf
        %v7782 = vrot.slane %v7781, 4
        %v7783 = vmax.f32 %v7781, %v7782
        %v7784 = vrot.slane %v7783, 2
        %v7785 = vmax.f32 %v7783, %v7784
        %v7786 = vrot.slane %v7785, 1
        %v7787 = vmax.f32 %v7785, %v7786
        %v7788 = vsel %vm2559, %v7340, -inf
        %v7789 = vrot.slane %v7788, 4
        %v7790 = vmax.f32 %v7788, %v7789
        %v7791 = vrot.slane %v7790, 2
        %v7792 = vmax.f32 %v7790, %v7791
        %v7793 = vrot.slane %v7792, 1
        %v7794 = vmax.f32 %v7792, %v7793
        %v7795 = vsel %vm2559, %v7277, -inf
        %v7796 = vrot.slane %v7795, 4
        %v7797 = vmax.f32 %v7795, %v7796
        %v7798 = vrot.slane %v7797, 2
        %v7799 = vmax.f32 %v7797, %v7798
        %v7800 = vrot.slane %v7799, 1
        %v7801 = vmax.f32 %v7799, %v7800
        %v7802 = vsel %vm2559, %v7341, -inf
        %v7803 = vrot.slane %v7802, 4
        %v7804 = vmax.f32 %v7802, %v7803
        %v7805 = vrot.slane %v7804, 2
        %v7806 = vmax.f32 %v7804, %v7805
        %v7807 = vrot.slane %v7806, 1
        %v7808 = vmax.f32 %v7806, %v7807
        %v7809 = vsel %vm2559, %v7278, -inf
        %v7810 = vrot.slane %v7809, 4
        %v7811 = vmax.f32 %v7809, %v7810
        %v7812 = vrot.slane %v7811, 2
        %v7813 = vmax.f32 %v7811, %v7812
        %v7814 = vrot.slane %v7813, 1
        %v7815 = vmax.f32 %v7813, %v7814
        %v7816 = vsel %vm2559, %v7342, -inf
        %v7817 = vrot.slane %v7816, 4
        %v7818 = vmax.f32 %v7816, %v7817
        %v7819 = vrot.slane %v7818, 2
        %v7820 = vmax.f32 %v7818, %v7819
        %v7821 = vrot.slane %v7820, 1
        %v7822 = vmax.f32 %v7820, %v7821
        %v7887 = vsel %vm4608, %v7388, %v7381
        %v7888 = vsel %vm4610, %v7395, %v7887
        %v7889 = vsel %vm4612, %v7402, %v7888
        %v7890 = vsel %vm4614, %v7409, %v7889
        %v7891 = vsel %vm4616, %v7416, %v7890
        %v7892 = vsel %vm4618, %v7423, %v7891
        %v7893 = vsel %vm4620, %v7437, %v7430
        %v7894 = vsel %vm4608, %v7444, %v7893
        %v7895 = vsel %vm4610, %v7451, %v7894
        %v7896 = vsel %vm4612, %v7458, %v7895
        %v7897 = vsel %vm4614, %v7465, %v7896
        %v7898 = vsel %vm4616, %v7472, %v7897
        %v7899 = vsel %vm4618, %v7479, %v7898
        %v7900 = vsel %vm4620, %v7493, %v7486
        %v7901 = vsel %vm4608, %v7500, %v7900
        %v7902 = vsel %vm4610, %v7507, %v7901
        %v7903 = vsel %vm4612, %v7514, %v7902
        %v7904 = vsel %vm4614, %v7521, %v7903
        %v7905 = vsel %vm4616, %v7528, %v7904
        %v7906 = vsel %vm4618, %v7535, %v7905
        %v7907 = vsel %vm4620, %v7549, %v7542
        %v7908 = vsel %vm4608, %v7556, %v7907
        %v7909 = vsel %vm4610, %v7563, %v7908
        %v7910 = vsel %vm4612, %v7570, %v7909
        %v7911 = vsel %vm4614, %v7577, %v7910
        %v7912 = vsel %vm4616, %v7584, %v7911
        %v7913 = vsel %vm4618, %v7591, %v7912
        %v7914 = vsel %vm4620, %v7605, %v7598
        %v7915 = vsel %vm4608, %v7612, %v7914
        %v7916 = vsel %vm4610, %v7619, %v7915
        %v7917 = vsel %vm4612, %v7626, %v7916
        %v7918 = vsel %vm4614, %v7633, %v7917
        %v7919 = vsel %vm4616, %v7640, %v7918
        %v7920 = vsel %vm4618, %v7647, %v7919
        %v7921 = vsel %vm4620, %v7661, %v7654
        %v7922 = vsel %vm4608, %v7668, %v7921
        %v7923 = vsel %vm4610, %v7675, %v7922
        %v7924 = vsel %vm4612, %v7682, %v7923
        %v7925 = vsel %vm4614, %v7689, %v7924
        %v7926 = vsel %vm4616, %v7696, %v7925
        %v7927 = vsel %vm4618, %v7703, %v7926
        %v7928 = vsel %vm4620, %v7717, %v7710
        %v7929 = vsel %vm4608, %v7724, %v7928
        %v7930 = vsel %vm4610, %v7731, %v7929
        %v7931 = vsel %vm4612, %v7738, %v7930
        %v7932 = vsel %vm4614, %v7745, %v7931
        %v7933 = vsel %vm4616, %v7752, %v7932
        %v7934 = vsel %vm4618, %v7759, %v7933
        %v7935 = vsel %vm4620, %v7773, %v7766
        %v7936 = vsel %vm4608, %v7780, %v7935
        %v7937 = vsel %vm4610, %v7787, %v7936
        %v7938 = vsel %vm4612, %v7794, %v7937
        %v7939 = vsel %vm4614, %v7801, %v7938
        %v7940 = vsel %vm4616, %v7808, %v7939
        %v7941 = vsel %vm4618, %v7815, %v7940
        %v7944 = vsel %vm4840, 0.0, %v7892
        %v7945 = vsel %vm4840, %v7822, 0.0
        %v7946 = vld [vmem:[%s21] sm:$0xff]
        %v7947 = vld [vmem:[%s21 + $0x8] sm:$0xff]
        %v7948 = vld [vmem:[%s21 + $0x10] sm:$0xff]
        %v7949 = vld [vmem:[%s21 + $0x18] sm:$0xff]
        %v7950 = vld [vmem:[%s21 + $0x20] sm:$0xff]
        %v7951 = vld [vmem:[%s21 + $0x28] sm:$0xff]
        %v7952 = vld [vmem:[%s21 + $0x30] sm:$0xff]
        %v7953 = vld [vmem:[%s21 + $0x38] sm:$0xff]
        %s7954 = scalar_lea.vmem %s21, 64
        %v7955 = vld [vmem:[%s7954] sm:$0xff]
        %v7956 = vld [vmem:[%s7954 + $0x8] sm:$0xff]
        %v7957 = vld [vmem:[%s7954 + $0x10] sm:$0xff]
        %v7958 = vld [vmem:[%s7954 + $0x18] sm:$0xff]
        %v7959 = vld [vmem:[%s7954 + $0x20] sm:$0xff]
        %v7960 = vld [vmem:[%s7954 + $0x28] sm:$0xff]
        %v7961 = vld [vmem:[%s7954 + $0x30] sm:$0xff]
        %v7962 = vld [vmem:[%s7954 + $0x38] sm:$0xff]
        %v7965 = vrot.slane %v7944, 1
        %v7966 = vrot.slane %v7899, 1
        %v7967 = vsel %vm4862, %v7965, %v7966
        %v7968 = vrot.slane %v7906, 1
        %v7969 = vsel %vm4862, %v7966, %v7968
        %v7970 = vrot.slane %v7913, 1
        %v7971 = vsel %vm4862, %v7968, %v7970
        %v7972 = vrot.slane %v7920, 1
        %v7973 = vsel %vm4862, %v7970, %v7972
        %v7974 = vrot.slane %v7927, 1
        %v7975 = vsel %vm4862, %v7972, %v7974
        %v7976 = vrot.slane %v7934, 1
        %v7977 = vsel %vm4862, %v7974, %v7976
        %v7978 = vrot.slane %v7941, 1
        %v7979 = vsel %vm4862, %v7976, %v7978
        %v7980 = vrot.slane %v7945, 1
        %v7981 = vsel %vm4862, %v7978, %v7980
        %v7982 = vsel %vm4928, %v7967, 0
        %v7984 = vsel %vm4928, %v7969, 0
        %v7986 = vsel %vm4928, %v7971, 0
        %v7988 = vsel %vm4928, %v7973, 0
        %v7990 = vsel %vm4928, %v7975, 0
        %v7992 = vsel %vm4928, %v7977, 0
        %v7994 = vsel %vm4928, %v7979, 0
        %v7996 = vsel %vm4928, %v7981, 0
        %7998 = vmatprep.subr.mxu0 0.0
        %7999 = vmatpush1.msra.mxu0 0.0
        %8000 = vmatprep.subr.mxu0 0.0
        %8001 = vmatpush1.msra.mxu0 0.0
        %8002 = vmatprep.subr.mxu0 0.0
        %8003 = vmatpush1.msra.mxu0 0.0
        %8004 = vmatprep.subr.mxu0 0.0
        %8005 = vmatpush1.msra.mxu0 0.0
        %8006 = vmatprep.subr.mxu0 0.0
        %8007 = vmatpush1.msra.mxu0 0.0
        %8008 = vmatprep.subr.mxu0 0.0
        %8009 = vmatpush1.msra.mxu0 0.0
        %8010 = vmatprep.subr.mxu0 0.0
        %8011 = vmatpush1.msra.mxu0 0.0
        %8012 = vmatprep.subr.mxu0 0.0
        %8013 = vmatpush1.msra.mxu0 0.0
        %8014 = vmatprep.subr.mxu0 0.0
        %8015 = vmatpush1.msra.mxu0 %v7962
        %8016 = vmatprep.subr.mxu0 0.0
        %8017 = vmatpush1.msra.mxu0 %v7961
        %8018 = vmatprep.subr.mxu0 0.0
        %8019 = vmatpush1.msra.mxu0 %v7960
        %8020 = vmatprep.subr.mxu0 0.0
        %8021 = vmatpush1.msra.mxu0 %v7959
        %8022 = vmatprep.subr.mxu0 0.0
        %8023 = vmatpush1.msra.mxu0 %v7958
        %8024 = vmatprep.subr.mxu0 0.0
        %8025 = vmatpush1.msra.mxu0 %v7957
        %8026 = vmatprep.subr.mxu0 0.0
        %8027 = vmatpush1.msra.mxu0 %v7956
        %8028 = vmatprep.subr.mxu0 0.0
        %8029 = vmatpush1.msra.mxu0 %v7955
        %8030 = vmatprep.subr.mxu0 0.0
        %8031 = vmatpush2.msra.mxu0 0.0
        %8032 = vmatprep.subr.mxu0 0.0
        %8033 = vmatpush2.msra.mxu0 0.0
        %8034 = vmatprep.subr.mxu0 0.0
        %8035 = vmatpush2.msra.mxu0 0.0
        %8036 = vmatprep.subr.mxu0 0.0
        %8037 = vmatpush2.msra.mxu0 0.0
        %8038 = vmatprep.subr.mxu0 0.0
        %8039 = vmatpush2.msra.mxu0 0.0
        %8040 = vmatprep.subr.mxu0 0.0
        %8041 = vmatpush2.msra.mxu0 0.0
        %8042 = vmatprep.subr.mxu0 0.0
        %8043 = vmatpush2.msra.mxu0 0.0
        %8044 = vmatprep.subr.mxu0 0.0
        %8045 = vmatpush2.msra.mxu0 0.0
        %8046 = vmatprep.subr.mxu0 0.0
        %8047 = vmatpush2.msra.mxu0 0.0
        %8048 = vmatprep.subr.mxu0 0.0
        %8049 = vmatpush2.msra.mxu0 0.0
        %8050 = vmatprep.subr.mxu0 0.0
        %8051 = vmatpush2.msra.mxu0 0.0
        %8052 = vmatprep.subr.mxu0 0.0
        %8053 = vmatpush2.msra.mxu0 0.0
        %8054 = vmatprep.subr.mxu0 0.0
        %8055 = vmatpush2.msra.mxu0 0.0
        %8056 = vmatprep.subr.mxu0 0.0
        %8057 = vmatpush2.msra.mxu0 0.0
        %8058 = vmatprep.subr.mxu0 0.0
        %8059 = vmatpush2.msra.mxu0 0.0
        %8060 = vmatprep.subr.mxu0 0.0
        %8061 = vmatpush2.msra.mxu0 0.0
        %8062 = vmatprep.mubr.f32.mxu0 0.0
        %8063 = vmatmul.mubr.f32.gmra.mxu0 %v7982
        %v8064 = vpop.f32.mrf.mxu0
        %v8065 = vadd.f32 0.0, %v8064
        %v8066 = vpop.f32.mrf.mxu0
        %8067 = vmatprep.mubr.f32.mxu0 0.0
        %8068 = vmatmul.mubr.f32.gmra.mxu0 %v7984
        %v8069 = vpop.f32.mrf.mxu0
        %v8070 = vadd.f32 0.0, %v8069
        %v8071 = vpop.f32.mrf.mxu0
        %8072 = vmatprep.mubr.f32.mxu0 0.0
        %8073 = vmatmul.mubr.f32.gmra.mxu0 %v7986
        %v8074 = vpop.f32.mrf.mxu0
        %v8075 = vadd.f32 0.0, %v8074
        %v8076 = vpop.f32.mrf.mxu0
        %8077 = vmatprep.mubr.f32.mxu0 0.0
        %8078 = vmatmul.mubr.f32.gmra.mxu0 %v7988
        %v8079 = vpop.f32.mrf.mxu0
        %v8080 = vadd.f32 0.0, %v8079
        %v8081 = vpop.f32.mrf.mxu0
        %8082 = vmatprep.mubr.f32.mxu0 0.0
        %8083 = vmatmul.mubr.f32.gmra.mxu0 %v7990
        %v8084 = vpop.f32.mrf.mxu0
        %v8085 = vadd.f32 0.0, %v8084
        %v8086 = vpop.f32.mrf.mxu0
        %8087 = vmatprep.mubr.f32.mxu0 0.0
        %8088 = vmatmul.mubr.f32.gmra.mxu0 %v7992
        %v8089 = vpop.f32.mrf.mxu0
        %v8090 = vadd.f32 0.0, %v8089
        %v8091 = vpop.f32.mrf.mxu0
        %8092 = vmatprep.mubr.f32.mxu0 0.0
        %8093 = vmatmul.mubr.f32.gmra.mxu0 %v7994
        %v8094 = vpop.f32.mrf.mxu0
        %v8095 = vadd.f32 0.0, %v8094
        %v8096 = vpop.f32.mrf.mxu0
        %8097 = vmatprep.mubr.f32.mxu0 0.0
        %8098 = vmatmul.mubr.f32.gmra.mxu0 %v7996
        %v8099 = vpop.f32.mrf.mxu0
        %v8100 = vadd.f32 0.0, %v8099
        %v8101 = vpop.f32.mrf.mxu0
        %8102 = vdwg.mxu0
        %v8103 = vsel %vm4928, %v7944, 0
        %v8105 = vsel %vm4928, %v7899, 0
        %v8107 = vsel %vm4928, %v7906, 0
        %v8109 = vsel %vm4928, %v7913, 0
        %v8111 = vsel %vm4928, %v7920, 0
        %v8113 = vsel %vm4928, %v7927, 0
        %v8115 = vsel %vm4928, %v7934, 0
        %v8117 = vsel %vm4928, %v7941, 0
        %8119 = vmatprep.subr.mxu0 0.0
        %8120 = vmatpush1.msra.mxu0 0.0
        %8121 = vmatprep.subr.mxu0 0.0
        %8122 = vmatpush1.msra.mxu0 0.0
        %8123 = vmatprep.subr.mxu0 0.0
        %8124 = vmatpush1.msra.mxu0 0.0
        %8125 = vmatprep.subr.mxu0 0.0
        %8126 = vmatpush1.msra.mxu0 0.0
        %8127 = vmatprep.subr.mxu0 0.0
        %8128 = vmatpush1.msra.mxu0 0.0
        %8129 = vmatprep.subr.mxu0 0.0
        %8130 = vmatpush1.msra.mxu0 0.0
        %8131 = vmatprep.subr.mxu0 0.0
        %8132 = vmatpush1.msra.mxu0 0.0
        %8133 = vmatprep.subr.mxu0 0.0
        %8134 = vmatpush1.msra.mxu0 0.0
        %8135 = vmatprep.subr.mxu0 0.0
        %8136 = vmatpush1.msra.mxu0 %v7953
        %8137 = vmatprep.subr.mxu0 0.0
        %8138 = vmatpush1.msra.mxu0 %v7952
        %8139 = vmatprep.subr.mxu0 0.0
        %8140 = vmatpush1.msra.mxu0 %v7951
        %8141 = vmatprep.subr.mxu0 0.0
        %8142 = vmatpush1.msra.mxu0 %v7950
        %8143 = vmatprep.subr.mxu0 0.0
        %8144 = vmatpush1.msra.mxu0 %v7949
        %8145 = vmatprep.subr.mxu0 0.0
        %8146 = vmatpush1.msra.mxu0 %v7948
        %8147 = vmatprep.subr.mxu0 0.0
        %8148 = vmatpush1.msra.mxu0 %v7947
        %8149 = vmatprep.subr.mxu0 0.0
        %8150 = vmatpush1.msra.mxu0 %v7946
        %8151 = vmatprep.subr.mxu0 0.0
        %8152 = vmatpush2.msra.mxu0 0.0
        %8153 = vmatprep.subr.mxu0 0.0
        %8154 = vmatpush2.msra.mxu0 0.0
        %8155 = vmatprep.subr.mxu0 0.0
        %8156 = vmatpush2.msra.mxu0 0.0
        %8157 = vmatprep.subr.mxu0 0.0
        %8158 = vmatpush2.msra.mxu0 0.0
        %8159 = vmatprep.subr.mxu0 0.0
        %8160 = vmatpush2.msra.mxu0 0.0
        %8161 = vmatprep.subr.mxu0 0.0
        %8162 = vmatpush2.msra.mxu0 0.0
        %8163 = vmatprep.subr.mxu0 0.0
        %8164 = vmatpush2.msra.mxu0 0.0
        %8165 = vmatprep.subr.mxu0 0.0
        %8166 = vmatpush2.msra.mxu0 0.0
        %8167 = vmatprep.subr.mxu0 0.0
        %8168 = vmatpush2.msra.mxu0 0.0
        %8169 = vmatprep.subr.mxu0 0.0
        %8170 = vmatpush2.msra.mxu0 0.0
        %8171 = vmatprep.subr.mxu0 0.0
        %8172 = vmatpush2.msra.mxu0 0.0
        %8173 = vmatprep.subr.mxu0 0.0
        %8174 = vmatpush2.msra.mxu0 0.0
        %8175 = vmatprep.subr.mxu0 0.0
        %8176 = vmatpush2.msra.mxu0 0.0
        %8177 = vmatprep.subr.mxu0 0.0
        %8178 = vmatpush2.msra.mxu0 0.0
        %8179 = vmatprep.subr.mxu0 0.0
        %8180 = vmatpush2.msra.mxu0 0.0
        %8181 = vmatprep.subr.mxu0 0.0
        %8182 = vmatpush2.msra.mxu0 0.0
        %8183 = vmatprep.mubr.f32.mxu0 0.0
        %8184 = vmatmul.mubr.f32.gmra.mxu0 %v8103
        %v8185 = vpop.f32.mrf.mxu0
        %v8186 = vadd.f32 %v8065, %v8185
        %v8187 = vpop.f32.mrf.mxu0
        %8188 = vmatprep.mubr.f32.mxu0 0.0
        %8189 = vmatmul.mubr.f32.gmra.mxu0 %v8105
        %v8190 = vpop.f32.mrf.mxu0
        %v8191 = vadd.f32 %v8070, %v8190
        %v8192 = vpop.f32.mrf.mxu0
        %8193 = vmatprep.mubr.f32.mxu0 0.0
        %8194 = vmatmul.mubr.f32.gmra.mxu0 %v8107
        %v8195 = vpop.f32.mrf.mxu0
        %v8196 = vadd.f32 %v8075, %v8195
        %v8197 = vpop.f32.mrf.mxu0
        %8198 = vmatprep.mubr.f32.mxu0 0.0
        %8199 = vmatmul.mubr.f32.gmra.mxu0 %v8109
        %v8200 = vpop.f32.mrf.mxu0
        %v8201 = vadd.f32 %v8080, %v8200
        %v8202 = vpop.f32.mrf.mxu0
        %8203 = vmatprep.mubr.f32.mxu0 0.0
        %8204 = vmatmul.mubr.f32.gmra.mxu0 %v8111
        %v8205 = vpop.f32.mrf.mxu0
        %v8206 = vadd.f32 %v8085, %v8205
        %v8207 = vpop.f32.mrf.mxu0
        %8208 = vmatprep.mubr.f32.mxu0 0.0
        %8209 = vmatmul.mubr.f32.gmra.mxu0 %v8113
        %v8210 = vpop.f32.mrf.mxu0
        %v8211 = vadd.f32 %v8090, %v8210
        %v8212 = vpop.f32.mrf.mxu0
        %8213 = vmatprep.mubr.f32.mxu0 0.0
        %8214 = vmatmul.mubr.f32.gmra.mxu0 %v8115
        %v8215 = vpop.f32.mrf.mxu0
        %v8216 = vadd.f32 %v8095, %v8215
        %v8217 = vpop.f32.mrf.mxu0
        %8218 = vmatprep.mubr.f32.mxu0 0.0
        %8219 = vmatmul.mubr.f32.gmra.mxu0 %v8117
        %v8220 = vpop.f32.mrf.mxu0
        %v8221 = vadd.f32 %v8100, %v8220
        %v8222 = vpop.f32.mrf.mxu0
        %8223 = vdwg.mxu0
        %s8224 = scalar_lea.vmem %s21, 128
        %v8225 = vld [vmem:[%s8224] sm:$0xff]
        %v8226 = vld [vmem:[%s8224 + $0x8] sm:$0xff]
        %v8227 = vld [vmem:[%s8224 + $0x10] sm:$0xff]
        %v8228 = vld [vmem:[%s8224 + $0x18] sm:$0xff]
        %v8229 = vld [vmem:[%s8224 + $0x20] sm:$0xff]
        %v8230 = vld [vmem:[%s8224 + $0x28] sm:$0xff]
        %v8231 = vld [vmem:[%s8224 + $0x30] sm:$0xff]
        %v8232 = vld [vmem:[%s8224 + $0x38] sm:$0xff]
        %v8233 = vrot.slane %v7944, 2
        %v8234 = vrot.slane %v7899, 2
        %v8235 = vsel %vm5516, %v8233, %v8234
        %v8236 = vrot.slane %v7906, 2
        %v8237 = vsel %vm5516, %v8234, %v8236
        %v8238 = vrot.slane %v7913, 2
        %v8239 = vsel %vm5516, %v8236, %v8238
        %v8240 = vrot.slane %v7920, 2
        %v8241 = vsel %vm5516, %v8238, %v8240
        %v8242 = vrot.slane %v7927, 2
        %v8243 = vsel %vm5516, %v8240, %v8242
        %v8244 = vrot.slane %v7934, 2
        %v8245 = vsel %vm5516, %v8242, %v8244
        %v8246 = vrot.slane %v7941, 2
        %v8247 = vsel %vm5516, %v8244, %v8246
        %v8248 = vrot.slane %v7945, 2
        %v8249 = vsel %vm5516, %v8246, %v8248
        %v8250 = vsel %vm4928, %v8235, 0
        %v8252 = vsel %vm4928, %v8237, 0
        %v8254 = vsel %vm4928, %v8239, 0
        %v8256 = vsel %vm4928, %v8241, 0
        %v8258 = vsel %vm4928, %v8243, 0
        %v8260 = vsel %vm4928, %v8245, 0
        %v8262 = vsel %vm4928, %v8247, 0
        %v8264 = vsel %vm4928, %v8249, 0
        %8266 = vmatprep.subr.mxu0 0.0
        %8267 = vmatpush1.msra.mxu0 0.0
        %8268 = vmatprep.subr.mxu0 0.0
        %8269 = vmatpush1.msra.mxu0 0.0
        %8270 = vmatprep.subr.mxu0 0.0
        %8271 = vmatpush1.msra.mxu0 0.0
        %8272 = vmatprep.subr.mxu0 0.0
        %8273 = vmatpush1.msra.mxu0 0.0
        %8274 = vmatprep.subr.mxu0 0.0
        %8275 = vmatpush1.msra.mxu0 0.0
        %8276 = vmatprep.subr.mxu0 0.0
        %8277 = vmatpush1.msra.mxu0 0.0
        %8278 = vmatprep.subr.mxu0 0.0
        %8279 = vmatpush1.msra.mxu0 0.0
        %8280 = vmatprep.subr.mxu0 0.0
        %8281 = vmatpush1.msra.mxu0 0.0
        %8282 = vmatprep.subr.mxu0 0.0
        %8283 = vmatpush1.msra.mxu0 %v8232
        %8284 = vmatprep.subr.mxu0 0.0
        %8285 = vmatpush1.msra.mxu0 %v8231
        %8286 = vmatprep.subr.mxu0 0.0
        %8287 = vmatpush1.msra.mxu0 %v8230
        %8288 = vmatprep.subr.mxu0 0.0
        %8289 = vmatpush1.msra.mxu0 %v8229
        %8290 = vmatprep.subr.mxu0 0.0
        %8291 = vmatpush1.msra.mxu0 %v8228
        %8292 = vmatprep.subr.mxu0 0.0
        %8293 = vmatpush1.msra.mxu0 %v8227
        %8294 = vmatprep.subr.mxu0 0.0
        %8295 = vmatpush1.msra.mxu0 %v8226
        %8296 = vmatprep.subr.mxu0 0.0
        %8297 = vmatpush1.msra.mxu0 %v8225
        %8298 = vmatprep.subr.mxu0 0.0
        %8299 = vmatpush2.msra.mxu0 0.0
        %8300 = vmatprep.subr.mxu0 0.0
        %8301 = vmatpush2.msra.mxu0 0.0
        %8302 = vmatprep.subr.mxu0 0.0
        %8303 = vmatpush2.msra.mxu0 0.0
        %8304 = vmatprep.subr.mxu0 0.0
        %8305 = vmatpush2.msra.mxu0 0.0
        %8306 = vmatprep.subr.mxu0 0.0
        %8307 = vmatpush2.msra.mxu0 0.0
        %8308 = vmatprep.subr.mxu0 0.0
        %8309 = vmatpush2.msra.mxu0 0.0
        %8310 = vmatprep.subr.mxu0 0.0
        %8311 = vmatpush2.msra.mxu0 0.0
        %8312 = vmatprep.subr.mxu0 0.0
        %8313 = vmatpush2.msra.mxu0 0.0
        %8314 = vmatprep.subr.mxu0 0.0
        %8315 = vmatpush2.msra.mxu0 0.0
        %8316 = vmatprep.subr.mxu0 0.0
        %8317 = vmatpush2.msra.mxu0 0.0
        %8318 = vmatprep.subr.mxu0 0.0
        %8319 = vmatpush2.msra.mxu0 0.0
        %8320 = vmatprep.subr.mxu0 0.0
        %8321 = vmatpush2.msra.mxu0 0.0
        %8322 = vmatprep.subr.mxu0 0.0
        %8323 = vmatpush2.msra.mxu0 0.0
        %8324 = vmatprep.subr.mxu0 0.0
        %8325 = vmatpush2.msra.mxu0 0.0
        %8326 = vmatprep.subr.mxu0 0.0
        %8327 = vmatpush2.msra.mxu0 0.0
        %8328 = vmatprep.subr.mxu0 0.0
        %8329 = vmatpush2.msra.mxu0 0.0
        %8330 = vmatprep.mubr.f32.mxu0 0.0
        %8331 = vmatmul.mubr.f32.gmra.mxu0 %v8250
        %v8332 = vpop.f32.mrf.mxu0
        %v8333 = vadd.f32 0.0, %v8332
        %v8334 = vpop.f32.mrf.mxu0
        %8335 = vmatprep.mubr.f32.mxu0 0.0
        %8336 = vmatmul.mubr.f32.gmra.mxu0 %v8252
        %v8337 = vpop.f32.mrf.mxu0
        %v8338 = vadd.f32 0.0, %v8337
        %v8339 = vpop.f32.mrf.mxu0
        %8340 = vmatprep.mubr.f32.mxu0 0.0
        %8341 = vmatmul.mubr.f32.gmra.mxu0 %v8254
        %v8342 = vpop.f32.mrf.mxu0
        %v8343 = vadd.f32 0.0, %v8342
        %v8344 = vpop.f32.mrf.mxu0
        %8345 = vmatprep.mubr.f32.mxu0 0.0
        %8346 = vmatmul.mubr.f32.gmra.mxu0 %v8256
        %v8347 = vpop.f32.mrf.mxu0
        %v8348 = vadd.f32 0.0, %v8347
        %v8349 = vpop.f32.mrf.mxu0
        %8350 = vmatprep.mubr.f32.mxu0 0.0
        %8351 = vmatmul.mubr.f32.gmra.mxu0 %v8258
        %v8352 = vpop.f32.mrf.mxu0
        %v8353 = vadd.f32 0.0, %v8352
        %v8354 = vpop.f32.mrf.mxu0
        %8355 = vmatprep.mubr.f32.mxu0 0.0
        %8356 = vmatmul.mubr.f32.gmra.mxu0 %v8260
        %v8357 = vpop.f32.mrf.mxu0
        %v8358 = vadd.f32 0.0, %v8357
        %v8359 = vpop.f32.mrf.mxu0
        %8360 = vmatprep.mubr.f32.mxu0 0.0
        %8361 = vmatmul.mubr.f32.gmra.mxu0 %v8262
        %v8362 = vpop.f32.mrf.mxu0
        %v8363 = vadd.f32 0.0, %v8362
        %v8364 = vpop.f32.mrf.mxu0
        %8365 = vmatprep.mubr.f32.mxu0 0.0
        %8366 = vmatmul.mubr.f32.gmra.mxu0 %v8264
        %v8367 = vpop.f32.mrf.mxu0
        %v8368 = vadd.f32 0.0, %v8367
        %v8369 = vpop.f32.mrf.mxu0
        %8370 = vdwg.mxu0
        %v8371 = vadd.f32 %v8186, %v8333
        %v8372 = vadd.f32 %v8191, %v8338
        %v8373 = vadd.f32 %v8196, %v8343
        %v8374 = vadd.f32 %v8201, %v8348
        %v8375 = vadd.f32 %v8206, %v8353
        %v8376 = vadd.f32 %v8211, %v8358
        %v8377 = vadd.f32 %v8216, %v8363
        %v8378 = vadd.f32 %v8221, %v8368
        %v8379 = vld [vmem:[%s23] sm:$0x1]
        %v8381 = vlaneseq
        %v8382 = vshrl.u32 %v8381, 7
        %v8383 = vsub.s32 0, %v8382
        %v8384 = vrot.slane %v8379, %v8383
        %v8386 = vmul.f32 %v8371, %v8384
        %v8387 = vmul.f32 %v8372, %v8384
        %v8388 = vmul.f32 %v8373, %v8384
        %v8389 = vmul.f32 %v8374, %v8384
        %v8390 = vmul.f32 %v8375, %v8384
        %v8391 = vmul.f32 %v8376, %v8384
        %v8392 = vmul.f32 %v8377, %v8384
        %v8393 = vmul.f32 %v8378, %v8384
        %v8394 = vld [vmem:[%s25] sm:$0x1]
        %v8396 = vlaneseq
        %v8397 = vshrl.u32 %v8396, 7
        %v8398 = vsub.s32 0, %v8397
        %v8399 = vrot.slane %v8394, %v8398
        %v8401 = vadd.f32 %v8386, %v8399
        %v8402 = vadd.f32 %v8387, %v8399
        %v8403 = vadd.f32 %v8388, %v8399
        %v8404 = vadd.f32 %v8389, %v8399
        %v8405 = vadd.f32 %v8390, %v8399
        %v8406 = vadd.f32 %v8391, %v8399
        %v8407 = vadd.f32 %v8392, %v8399
        %v8408 = vadd.f32 %v8393, %v8399
        %v8409 = vmax.f32 %v8401, 0.0
        %v8410 = vmax.f32 %v8402, 0.0
        %v8411 = vmax.f32 %v8403, 0.0
        %v8412 = vmax.f32 %v8404, 0.0
        %v8413 = vmax.f32 %v8405, 0.0
        %v8414 = vmax.f32 %v8406, 0.0
        %v8415 = vmax.f32 %v8407, 0.0
        %v8416 = vmax.f32 %v8408, 0.0
        %v8425 = vrot.slane %v8409, 7
        %v8426 = vrot.slane %v8410, 7
        %v8427 = vsel %vm4840, %v8425, %v8426
        %v8428 = vrot.slane %v8411, 7
        %v8429 = vsel %vm4840, %v8426, %v8428
        %v8430 = vrot.slane %v8412, 7
        %v8431 = vsel %vm4840, %v8428, %v8430
        %v8432 = vrot.slane %v8413, 7
        %v8433 = vsel %vm4840, %v8430, %v8432
        %v8434 = vrot.slane %v8414, 7
        %v8435 = vsel %vm4840, %v8432, %v8434
        %v8436 = vrot.slane %v8415, 7
        %v8437 = vsel %vm4840, %v8434, %v8436
        %v8438 = vrot.slane %v8416, 7
        %v8439 = vsel %vm4840, %v8436, %v8438
        %v8442 = vsel %vm4840, 0.0, %v8425
        %v8443 = vsel %vm4840, %v8438, 0.0
        %v8444 = vld [vmem:[%s27] sm:$0xff]
        %v8445 = vld [vmem:[%s27 + $0x8] sm:$0xff]
        %v8446 = vld [vmem:[%s27 + $0x10] sm:$0xff]
        %v8447 = vld [vmem:[%s27 + $0x18] sm:$0xff]
        %v8448 = vld [vmem:[%s27 + $0x20] sm:$0xff]
        %v8449 = vld [vmem:[%s27 + $0x28] sm:$0xff]
        %v8450 = vld [vmem:[%s27 + $0x30] sm:$0xff]
        %v8451 = vld [vmem:[%s27 + $0x38] sm:$0xff]
        %s8452 = scalar_lea.vmem %s27, 64
        %v8453 = vld [vmem:[%s8452] sm:$0xff]
        %v8454 = vld [vmem:[%s8452 + $0x8] sm:$0xff]
        %v8455 = vld [vmem:[%s8452 + $0x10] sm:$0xff]
        %v8456 = vld [vmem:[%s8452 + $0x18] sm:$0xff]
        %v8457 = vld [vmem:[%s8452 + $0x20] sm:$0xff]
        %v8458 = vld [vmem:[%s8452 + $0x28] sm:$0xff]
        %v8459 = vld [vmem:[%s8452 + $0x30] sm:$0xff]
        %v8460 = vld [vmem:[%s8452 + $0x38] sm:$0xff]
        %v8463 = vrot.slane %v8442, 1
        %v8464 = vrot.slane %v8427, 1
        %v8465 = vsel %vm4862, %v8463, %v8464
        %v8466 = vrot.slane %v8429, 1
        %v8467 = vsel %vm4862, %v8464, %v8466
        %v8468 = vrot.slane %v8431, 1
        %v8469 = vsel %vm4862, %v8466, %v8468
        %v8470 = vrot.slane %v8433, 1
        %v8471 = vsel %vm4862, %v8468, %v8470
        %v8472 = vrot.slane %v8435, 1
        %v8473 = vsel %vm4862, %v8470, %v8472
        %v8474 = vrot.slane %v8437, 1
        %v8475 = vsel %vm4862, %v8472, %v8474
        %v8476 = vrot.slane %v8439, 1
        %v8477 = vsel %vm4862, %v8474, %v8476
        %v8478 = vrot.slane %v8443, 1
        %v8479 = vsel %vm4862, %v8476, %v8478
        %v8480 = vsel %vm4928, %v8465, 0
        %v8482 = vsel %vm4928, %v8467, 0
        %v8484 = vsel %vm4928, %v8469, 0
        %v8486 = vsel %vm4928, %v8471, 0
        %v8488 = vsel %vm4928, %v8473, 0
        %v8490 = vsel %vm4928, %v8475, 0
        %v8492 = vsel %vm4928, %v8477, 0
        %v8494 = vsel %vm4928, %v8479, 0
        %8496 = vmatprep.subr.mxu0 0.0
        %8497 = vmatpush1.msra.mxu0 0.0
        %8498 = vmatprep.subr.mxu0 0.0
        %8499 = vmatpush1.msra.mxu0 0.0
        %8500 = vmatprep.subr.mxu0 0.0
        %8501 = vmatpush1.msra.mxu0 0.0
        %8502 = vmatprep.subr.mxu0 0.0
        %8503 = vmatpush1.msra.mxu0 0.0
        %8504 = vmatprep.subr.mxu0 0.0
        %8505 = vmatpush1.msra.mxu0 0.0
        %8506 = vmatprep.subr.mxu0 0.0
        %8507 = vmatpush1.msra.mxu0 0.0
        %8508 = vmatprep.subr.mxu0 0.0
        %8509 = vmatpush1.msra.mxu0 0.0
        %8510 = vmatprep.subr.mxu0 0.0
        %8511 = vmatpush1.msra.mxu0 0.0
        %8512 = vmatprep.subr.mxu0 0.0
        %8513 = vmatpush1.msra.mxu0 %v8460
        %8514 = vmatprep.subr.mxu0 0.0
        %8515 = vmatpush1.msra.mxu0 %v8459
        %8516 = vmatprep.subr.mxu0 0.0
        %8517 = vmatpush1.msra.mxu0 %v8458
        %8518 = vmatprep.subr.mxu0 0.0
        %8519 = vmatpush1.msra.mxu0 %v8457
        %8520 = vmatprep.subr.mxu0 0.0
        %8521 = vmatpush1.msra.mxu0 %v8456
        %8522 = vmatprep.subr.mxu0 0.0
        %8523 = vmatpush1.msra.mxu0 %v8455
        %8524 = vmatprep.subr.mxu0 0.0
        %8525 = vmatpush1.msra.mxu0 %v8454
        %8526 = vmatprep.subr.mxu0 0.0
        %8527 = vmatpush1.msra.mxu0 %v8453
        %8528 = vmatprep.subr.mxu0 0.0
        %8529 = vmatpush2.msra.mxu0 0.0
        %8530 = vmatprep.subr.mxu0 0.0
        %8531 = vmatpush2.msra.mxu0 0.0
        %8532 = vmatprep.subr.mxu0 0.0
        %8533 = vmatpush2.msra.mxu0 0.0
        %8534 = vmatprep.subr.mxu0 0.0
        %8535 = vmatpush2.msra.mxu0 0.0
        %8536 = vmatprep.subr.mxu0 0.0
        %8537 = vmatpush2.msra.mxu0 0.0
        %8538 = vmatprep.subr.mxu0 0.0
        %8539 = vmatpush2.msra.mxu0 0.0
        %8540 = vmatprep.subr.mxu0 0.0
        %8541 = vmatpush2.msra.mxu0 0.0
        %8542 = vmatprep.subr.mxu0 0.0
        %8543 = vmatpush2.msra.mxu0 0.0
        %8544 = vmatprep.subr.mxu0 0.0
        %8545 = vmatpush2.msra.mxu0 0.0
        %8546 = vmatprep.subr.mxu0 0.0
        %8547 = vmatpush2.msra.mxu0 0.0
        %8548 = vmatprep.subr.mxu0 0.0
        %8549 = vmatpush2.msra.mxu0 0.0
        %8550 = vmatprep.subr.mxu0 0.0
        %8551 = vmatpush2.msra.mxu0 0.0
        %8552 = vmatprep.subr.mxu0 0.0
        %8553 = vmatpush2.msra.mxu0 0.0
        %8554 = vmatprep.subr.mxu0 0.0
        %8555 = vmatpush2.msra.mxu0 0.0
        %8556 = vmatprep.subr.mxu0 0.0
        %8557 = vmatpush2.msra.mxu0 0.0
        %8558 = vmatprep.subr.mxu0 0.0
        %8559 = vmatpush2.msra.mxu0 0.0
        %8560 = vmatprep.mubr.f32.mxu0 0.0
        %8561 = vmatmul.mubr.f32.gmra.mxu0 %v8480
        %v8562 = vpop.f32.mrf.mxu0
        %v8563 = vadd.f32 0.0, %v8562
        %v8564 = vpop.f32.mrf.mxu0
        %8565 = vmatprep.mubr.f32.mxu0 0.0
        %8566 = vmatmul.mubr.f32.gmra.mxu0 %v8482
        %v8567 = vpop.f32.mrf.mxu0
        %v8568 = vadd.f32 0.0, %v8567
        %v8569 = vpop.f32.mrf.mxu0
        %8570 = vmatprep.mubr.f32.mxu0 0.0
        %8571 = vmatmul.mubr.f32.gmra.mxu0 %v8484
        %v8572 = vpop.f32.mrf.mxu0
        %v8573 = vadd.f32 0.0, %v8572
        %v8574 = vpop.f32.mrf.mxu0
        %8575 = vmatprep.mubr.f32.mxu0 0.0
        %8576 = vmatmul.mubr.f32.gmra.mxu0 %v8486
        %v8577 = vpop.f32.mrf.mxu0
        %v8578 = vadd.f32 0.0, %v8577
        %v8579 = vpop.f32.mrf.mxu0
        %8580 = vmatprep.mubr.f32.mxu0 0.0
        %8581 = vmatmul.mubr.f32.gmra.mxu0 %v8488
        %v8582 = vpop.f32.mrf.mxu0
        %v8583 = vadd.f32 0.0, %v8582
        %v8584 = vpop.f32.mrf.mxu0
        %8585 = vmatprep.mubr.f32.mxu0 0.0
        %8586 = vmatmul.mubr.f32.gmra.mxu0 %v8490
        %v8587 = vpop.f32.mrf.mxu0
        %v8588 = vadd.f32 0.0, %v8587
        %v8589 = vpop.f32.mrf.mxu0
        %8590 = vmatprep.mubr.f32.mxu0 0.0
        %8591 = vmatmul.mubr.f32.gmra.mxu0 %v8492
        %v8592 = vpop.f32.mrf.mxu0
        %v8593 = vadd.f32 0.0, %v8592
        %v8594 = vpop.f32.mrf.mxu0
        %8595 = vmatprep.mubr.f32.mxu0 0.0
        %8596 = vmatmul.mubr.f32.gmra.mxu0 %v8494
        %v8597 = vpop.f32.mrf.mxu0
        %v8598 = vadd.f32 0.0, %v8597
        %v8599 = vpop.f32.mrf.mxu0
        %8600 = vdwg.mxu0
        %v8601 = vsel %vm4928, %v8442, 0
        %v8603 = vsel %vm4928, %v8427, 0
        %v8605 = vsel %vm4928, %v8429, 0
        %v8607 = vsel %vm4928, %v8431, 0
        %v8609 = vsel %vm4928, %v8433, 0
        %v8611 = vsel %vm4928, %v8435, 0
        %v8613 = vsel %vm4928, %v8437, 0
        %v8615 = vsel %vm4928, %v8439, 0
        %8617 = vmatprep.subr.mxu0 0.0
        %8618 = vmatpush1.msra.mxu0 0.0
        %8619 = vmatprep.subr.mxu0 0.0
        %8620 = vmatpush1.msra.mxu0 0.0
        %8621 = vmatprep.subr.mxu0 0.0
        %8622 = vmatpush1.msra.mxu0 0.0
        %8623 = vmatprep.subr.mxu0 0.0
        %8624 = vmatpush1.msra.mxu0 0.0
        %8625 = vmatprep.subr.mxu0 0.0
        %8626 = vmatpush1.msra.mxu0 0.0
        %8627 = vmatprep.subr.mxu0 0.0
        %8628 = vmatpush1.msra.mxu0 0.0
        %8629 = vmatprep.subr.mxu0 0.0
        %8630 = vmatpush1.msra.mxu0 0.0
        %8631 = vmatprep.subr.mxu0 0.0
        %8632 = vmatpush1.msra.mxu0 0.0
        %8633 = vmatprep.subr.mxu0 0.0
        %8634 = vmatpush1.msra.mxu0 %v8451
        %8635 = vmatprep.subr.mxu0 0.0
        %8636 = vmatpush1.msra.mxu0 %v8450
        %8637 = vmatprep.subr.mxu0 0.0
        %8638 = vmatpush1.msra.mxu0 %v8449
        %8639 = vmatprep.subr.mxu0 0.0
        %8640 = vmatpush1.msra.mxu0 %v8448
        %8641 = vmatprep.subr.mxu0 0.0
        %8642 = vmatpush1.msra.mxu0 %v8447
        %8643 = vmatprep.subr.mxu0 0.0
        %8644 = vmatpush1.msra.mxu0 %v8446
        %8645 = vmatprep.subr.mxu0 0.0
        %8646 = vmatpush1.msra.mxu0 %v8445
        %8647 = vmatprep.subr.mxu0 0.0
        %8648 = vmatpush1.msra.mxu0 %v8444
        %8649 = vmatprep.subr.mxu0 0.0
        %8650 = vmatpush2.msra.mxu0 0.0
        %8651 = vmatprep.subr.mxu0 0.0
        %8652 = vmatpush2.msra.mxu0 0.0
        %8653 = vmatprep.subr.mxu0 0.0
        %8654 = vmatpush2.msra.mxu0 0.0
        %8655 = vmatprep.subr.mxu0 0.0
        %8656 = vmatpush2.msra.mxu0 0.0
        %8657 = vmatprep.subr.mxu0 0.0
        %8658 = vmatpush2.msra.mxu0 0.0
        %8659 = vmatprep.subr.mxu0 0.0
        %8660 = vmatpush2.msra.mxu0 0.0
        %8661 = vmatprep.subr.mxu0 0.0
        %8662 = vmatpush2.msra.mxu0 0.0
        %8663 = vmatprep.subr.mxu0 0.0
        %8664 = vmatpush2.msra.mxu0 0.0
        %8665 = vmatprep.subr.mxu0 0.0
        %8666 = vmatpush2.msra.mxu0 0.0
        %8667 = vmatprep.subr.mxu0 0.0
        %8668 = vmatpush2.msra.mxu0 0.0
        %8669 = vmatprep.subr.mxu0 0.0
        %8670 = vmatpush2.msra.mxu0 0.0
        %8671 = vmatprep.subr.mxu0 0.0
        %8672 = vmatpush2.msra.mxu0 0.0
        %8673 = vmatprep.subr.mxu0 0.0
        %8674 = vmatpush2.msra.mxu0 0.0
        %8675 = vmatprep.subr.mxu0 0.0
        %8676 = vmatpush2.msra.mxu0 0.0
        %8677 = vmatprep.subr.mxu0 0.0
        %8678 = vmatpush2.msra.mxu0 0.0
        %8679 = vmatprep.subr.mxu0 0.0
        %8680 = vmatpush2.msra.mxu0 0.0
        %8681 = vmatprep.mubr.f32.mxu0 0.0
        %8682 = vmatmul.mubr.f32.gmra.mxu0 %v8601
        %v8683 = vpop.f32.mrf.mxu0
        %v8684 = vadd.f32 %v8563, %v8683
        %v8685 = vpop.f32.mrf.mxu0
        %8686 = vmatprep.mubr.f32.mxu0 0.0
        %8687 = vmatmul.mubr.f32.gmra.mxu0 %v8603
        %v8688 = vpop.f32.mrf.mxu0
        %v8689 = vadd.f32 %v8568, %v8688
        %v8690 = vpop.f32.mrf.mxu0
        %8691 = vmatprep.mubr.f32.mxu0 0.0
        %8692 = vmatmul.mubr.f32.gmra.mxu0 %v8605
        %v8693 = vpop.f32.mrf.mxu0
        %v8694 = vadd.f32 %v8573, %v8693
        %v8695 = vpop.f32.mrf.mxu0
        %8696 = vmatprep.mubr.f32.mxu0 0.0
        %8697 = vmatmul.mubr.f32.gmra.mxu0 %v8607
        %v8698 = vpop.f32.mrf.mxu0
        %v8699 = vadd.f32 %v8578, %v8698
        %v8700 = vpop.f32.mrf.mxu0
        %8701 = vmatprep.mubr.f32.mxu0 0.0
        %8702 = vmatmul.mubr.f32.gmra.mxu0 %v8609
        %v8703 = vpop.f32.mrf.mxu0
        %v8704 = vadd.f32 %v8583, %v8703
        %v8705 = vpop.f32.mrf.mxu0
        %8706 = vmatprep.mubr.f32.mxu0 0.0
        %8707 = vmatmul.mubr.f32.gmra.mxu0 %v8611
        %v8708 = vpop.f32.mrf.mxu0
        %v8709 = vadd.f32 %v8588, %v8708
        %v8710 = vpop.f32.mrf.mxu0
        %8711 = vmatprep.mubr.f32.mxu0 0.0
        %8712 = vmatmul.mubr.f32.gmra.mxu0 %v8613
        %v8713 = vpop.f32.mrf.mxu0
        %v8714 = vadd.f32 %v8593, %v8713
        %v8715 = vpop.f32.mrf.mxu0
        %8716 = vmatprep.mubr.f32.mxu0 0.0
        %8717 = vmatmul.mubr.f32.gmra.mxu0 %v8615
        %v8718 = vpop.f32.mrf.mxu0
        %v8719 = vadd.f32 %v8598, %v8718
        %v8720 = vpop.f32.mrf.mxu0
        %8721 = vdwg.mxu0
        %s8722 = scalar_lea.vmem %s27, 128
        %v8723 = vld [vmem:[%s8722] sm:$0xff]
        %v8724 = vld [vmem:[%s8722 + $0x8] sm:$0xff]
        %v8725 = vld [vmem:[%s8722 + $0x10] sm:$0xff]
        %v8726 = vld [vmem:[%s8722 + $0x18] sm:$0xff]
        %v8727 = vld [vmem:[%s8722 + $0x20] sm:$0xff]
        %v8728 = vld [vmem:[%s8722 + $0x28] sm:$0xff]
        %v8729 = vld [vmem:[%s8722 + $0x30] sm:$0xff]
        %v8730 = vld [vmem:[%s8722 + $0x38] sm:$0xff]
        %v8731 = vrot.slane %v8442, 2
        %v8732 = vrot.slane %v8427, 2
        %v8733 = vsel %vm5516, %v8731, %v8732
        %v8734 = vrot.slane %v8429, 2
        %v8735 = vsel %vm5516, %v8732, %v8734
        %v8736 = vrot.slane %v8431, 2
        %v8737 = vsel %vm5516, %v8734, %v8736
        %v8738 = vrot.slane %v8433, 2
        %v8739 = vsel %vm5516, %v8736, %v8738
        %v8740 = vrot.slane %v8435, 2
        %v8741 = vsel %vm5516, %v8738, %v8740
        %v8742 = vrot.slane %v8437, 2
        %v8743 = vsel %vm5516, %v8740, %v8742
        %v8744 = vrot.slane %v8439, 2
        %v8745 = vsel %vm5516, %v8742, %v8744
        %v8746 = vrot.slane %v8443, 2
        %v8747 = vsel %vm5516, %v8744, %v8746
        %v8748 = vsel %vm4928, %v8733, 0
        %v8750 = vsel %vm4928, %v8735, 0
        %v8752 = vsel %vm4928, %v8737, 0
        %v8754 = vsel %vm4928, %v8739, 0
        %v8756 = vsel %vm4928, %v8741, 0
        %v8758 = vsel %vm4928, %v8743, 0
        %v8760 = vsel %vm4928, %v8745, 0
        %v8762 = vsel %vm4928, %v8747, 0
        %8764 = vmatprep.subr.mxu0 0.0
        %8765 = vmatpush1.msra.mxu0 0.0
        %8766 = vmatprep.subr.mxu0 0.0
        %8767 = vmatpush1.msra.mxu0 0.0
        %8768 = vmatprep.subr.mxu0 0.0
        %8769 = vmatpush1.msra.mxu0 0.0
        %8770 = vmatprep.subr.mxu0 0.0
        %8771 = vmatpush1.msra.mxu0 0.0
        %8772 = vmatprep.subr.mxu0 0.0
        %8773 = vmatpush1.msra.mxu0 0.0
        %8774 = vmatprep.subr.mxu0 0.0
        %8775 = vmatpush1.msra.mxu0 0.0
        %8776 = vmatprep.subr.mxu0 0.0
        %8777 = vmatpush1.msra.mxu0 0.0
        %8778 = vmatprep.subr.mxu0 0.0
        %8779 = vmatpush1.msra.mxu0 0.0
        %8780 = vmatprep.subr.mxu0 0.0
        %8781 = vmatpush1.msra.mxu0 %v8730
        %8782 = vmatprep.subr.mxu0 0.0
        %8783 = vmatpush1.msra.mxu0 %v8729
        %8784 = vmatprep.subr.mxu0 0.0
        %8785 = vmatpush1.msra.mxu0 %v8728
        %8786 = vmatprep.subr.mxu0 0.0
        %8787 = vmatpush1.msra.mxu0 %v8727
        %8788 = vmatprep.subr.mxu0 0.0
        %8789 = vmatpush1.msra.mxu0 %v8726
        %8790 = vmatprep.subr.mxu0 0.0
        %8791 = vmatpush1.msra.mxu0 %v8725
        %8792 = vmatprep.subr.mxu0 0.0
        %8793 = vmatpush1.msra.mxu0 %v8724
        %8794 = vmatprep.subr.mxu0 0.0
        %8795 = vmatpush1.msra.mxu0 %v8723
        %8796 = vmatprep.subr.mxu0 0.0
        %8797 = vmatpush2.msra.mxu0 0.0
        %8798 = vmatprep.subr.mxu0 0.0
        %8799 = vmatpush2.msra.mxu0 0.0
        %8800 = vmatprep.subr.mxu0 0.0
        %8801 = vmatpush2.msra.mxu0 0.0
        %8802 = vmatprep.subr.mxu0 0.0
        %8803 = vmatpush2.msra.mxu0 0.0
        %8804 = vmatprep.subr.mxu0 0.0
        %8805 = vmatpush2.msra.mxu0 0.0
        %8806 = vmatprep.subr.mxu0 0.0
        %8807 = vmatpush2.msra.mxu0 0.0
        %8808 = vmatprep.subr.mxu0 0.0
        %8809 = vmatpush2.msra.mxu0 0.0
        %8810 = vmatprep.subr.mxu0 0.0
        %8811 = vmatpush2.msra.mxu0 0.0
        %8812 = vmatprep.subr.mxu0 0.0
        %8813 = vmatpush2.msra.mxu0 0.0
        %8814 = vmatprep.subr.mxu0 0.0
        %8815 = vmatpush2.msra.mxu0 0.0
        %8816 = vmatprep.subr.mxu0 0.0
        %8817 = vmatpush2.msra.mxu0 0.0
        %8818 = vmatprep.subr.mxu0 0.0
        %8819 = vmatpush2.msra.mxu0 0.0
        %8820 = vmatprep.subr.mxu0 0.0
        %8821 = vmatpush2.msra.mxu0 0.0
        %8822 = vmatprep.subr.mxu0 0.0
        %8823 = vmatpush2.msra.mxu0 0.0
        %8824 = vmatprep.subr.mxu0 0.0
        %8825 = vmatpush2.msra.mxu0 0.0
        %8826 = vmatprep.subr.mxu0 0.0
        %8827 = vmatpush2.msra.mxu0 0.0
        %8828 = vmatprep.mubr.f32.mxu0 0.0
        %8829 = vmatmul.mubr.f32.gmra.mxu0 %v8748
        %v8830 = vpop.f32.mrf.mxu0
        %v8831 = vadd.f32 0.0, %v8830
        %v8832 = vpop.f32.mrf.mxu0
        %8833 = vmatprep.mubr.f32.mxu0 0.0
        %8834 = vmatmul.mubr.f32.gmra.mxu0 %v8750
        %v8835 = vpop.f32.mrf.mxu0
        %v8836 = vadd.f32 0.0, %v8835
        %v8837 = vpop.f32.mrf.mxu0
        %8838 = vmatprep.mubr.f32.mxu0 0.0
        %8839 = vmatmul.mubr.f32.gmra.mxu0 %v8752
        %v8840 = vpop.f32.mrf.mxu0
        %v8841 = vadd.f32 0.0, %v8840
        %v8842 = vpop.f32.mrf.mxu0
        %8843 = vmatprep.mubr.f32.mxu0 0.0
        %8844 = vmatmul.mubr.f32.gmra.mxu0 %v8754
        %v8845 = vpop.f32.mrf.mxu0
        %v8846 = vadd.f32 0.0, %v8845
        %v8847 = vpop.f32.mrf.mxu0
        %8848 = vmatprep.mubr.f32.mxu0 0.0
        %8849 = vmatmul.mubr.f32.gmra.mxu0 %v8756
        %v8850 = vpop.f32.mrf.mxu0
        %v8851 = vadd.f32 0.0, %v8850
        %v8852 = vpop.f32.mrf.mxu0
        %8853 = vmatprep.mubr.f32.mxu0 0.0
        %8854 = vmatmul.mubr.f32.gmra.mxu0 %v8758
        %v8855 = vpop.f32.mrf.mxu0
        %v8856 = vadd.f32 0.0, %v8855
        %v8857 = vpop.f32.mrf.mxu0
        %8858 = vmatprep.mubr.f32.mxu0 0.0
        %8859 = vmatmul.mubr.f32.gmra.mxu0 %v8760
        %v8860 = vpop.f32.mrf.mxu0
        %v8861 = vadd.f32 0.0, %v8860
        %v8862 = vpop.f32.mrf.mxu0
        %8863 = vmatprep.mubr.f32.mxu0 0.0
        %8864 = vmatmul.mubr.f32.gmra.mxu0 %v8762
        %v8865 = vpop.f32.mrf.mxu0
        %v8866 = vadd.f32 0.0, %v8865
        %v8867 = vpop.f32.mrf.mxu0
        %8868 = vdwg.mxu0
        %v8869 = vadd.f32 %v8684, %v8831
        %v8870 = vadd.f32 %v8689, %v8836
        %v8871 = vadd.f32 %v8694, %v8841
        %v8872 = vadd.f32 %v8699, %v8846
        %v8873 = vadd.f32 %v8704, %v8851
        %v8874 = vadd.f32 %v8709, %v8856
        %v8875 = vadd.f32 %v8714, %v8861
        %v8876 = vadd.f32 %v8719, %v8866
        %v8877 = vld [vmem:[%s29] sm:$0x1]
        %v8879 = vlaneseq
        %v8880 = vshrl.u32 %v8879, 7
        %v8881 = vsub.s32 0, %v8880
        %v8882 = vrot.slane %v8877, %v8881
        %v8884 = vmul.f32 %v8869, %v8882
        %v8885 = vmul.f32 %v8870, %v8882
        %v8886 = vmul.f32 %v8871, %v8882
        %v8887 = vmul.f32 %v8872, %v8882
        %v8888 = vmul.f32 %v8873, %v8882
        %v8889 = vmul.f32 %v8874, %v8882
        %v8890 = vmul.f32 %v8875, %v8882
        %v8891 = vmul.f32 %v8876, %v8882
        %v8892 = vld [vmem:[%s31] sm:$0x1]
        %v8894 = vlaneseq
        %v8895 = vshrl.u32 %v8894, 7
        %v8896 = vsub.s32 0, %v8895
        %v8897 = vrot.slane %v8892, %v8896
        %v8899 = vadd.f32 %v8884, %v8897
        %v8900 = vadd.f32 %v8885, %v8897
        %v8901 = vadd.f32 %v8886, %v8897
        %v8902 = vadd.f32 %v8887, %v8897
        %v8903 = vadd.f32 %v8888, %v8897
        %v8904 = vadd.f32 %v8889, %v8897
        %v8905 = vadd.f32 %v8890, %v8897
        %v8906 = vadd.f32 %v8891, %v8897
        %v8907 = vmax.f32 %v8899, 0.0
        %v8908 = vmax.f32 %v8900, 0.0
        %v8909 = vmax.f32 %v8901, 0.0
        %v8910 = vmax.f32 %v8902, 0.0
        %v8911 = vmax.f32 %v8903, 0.0
        %v8912 = vmax.f32 %v8904, 0.0
        %v8913 = vmax.f32 %v8905, 0.0
        %v8914 = vmax.f32 %v8906, 0.0
        %v8923 = vcombine.high %v8907, %v8907
        %v8924 = vcombine.high %v8908, %v8908
        %v8925 = vcombine.high %v8909, %v8909
        %v8926 = vcombine.high %v8910, %v8910
        %v8927 = vcombine.high %v8911, %v8911
        %v8928 = vcombine.high %v8912, %v8912
        %v8929 = vcombine.high %v8913, %v8913
        %v8930 = vcombine.high %v8914, %v8914
        %v8939 = vsel %vm2559, %v8907, -inf
        %v8940 = vrot.slane %v8939, 4
        %v8941 = vmax.f32 %v8939, %v8940
        %v8942 = vrot.slane %v8941, 2
        %v8943 = vmax.f32 %v8941, %v8942
        %v8944 = vrot.slane %v8943, 1
        %v8945 = vmax.f32 %v8943, %v8944
        %v8946 = vsel %vm2559, %v8923, -inf
        %v8947 = vrot.slane %v8946, 4
        %v8948 = vmax.f32 %v8946, %v8947
        %v8949 = vrot.slane %v8948, 2
        %v8950 = vmax.f32 %v8948, %v8949
        %v8951 = vrot.slane %v8950, 1
        %v8952 = vmax.f32 %v8950, %v8951
        %v8953 = vsel %vm2559, %v8908, -inf
        %v8954 = vrot.slane %v8953, 4
        %v8955 = vmax.f32 %v8953, %v8954
        %v8956 = vrot.slane %v8955, 2
        %v8957 = vmax.f32 %v8955, %v8956
        %v8958 = vrot.slane %v8957, 1
        %v8959 = vmax.f32 %v8957, %v8958
        %v8960 = vsel %vm2559, %v8924, -inf
        %v8961 = vrot.slane %v8960, 4
        %v8962 = vmax.f32 %v8960, %v8961
        %v8963 = vrot.slane %v8962, 2
        %v8964 = vmax.f32 %v8962, %v8963
        %v8965 = vrot.slane %v8964, 1
        %v8966 = vmax.f32 %v8964, %v8965
        %v8967 = vsel %vm2559, %v8909, -inf
        %v8968 = vrot.slane %v8967, 4
        %v8969 = vmax.f32 %v8967, %v8968
        %v8970 = vrot.slane %v8969, 2
        %v8971 = vmax.f32 %v8969, %v8970
        %v8972 = vrot.slane %v8971, 1
        %v8973 = vmax.f32 %v8971, %v8972
        %v8974 = vsel %vm2559, %v8925, -inf
        %v8975 = vrot.slane %v8974, 4
        %v8976 = vmax.f32 %v8974, %v8975
        %v8977 = vrot.slane %v8976, 2
        %v8978 = vmax.f32 %v8976, %v8977
        %v8979 = vrot.slane %v8978, 1
        %v8980 = vmax.f32 %v8978, %v8979
        %v8981 = vsel %vm2559, %v8910, -inf
        %v8982 = vrot.slane %v8981, 4
        %v8983 = vmax.f32 %v8981, %v8982
        %v8984 = vrot.slane %v8983, 2
        %v8985 = vmax.f32 %v8983, %v8984
        %v8986 = vrot.slane %v8985, 1
        %v8987 = vmax.f32 %v8985, %v8986
        %v8988 = vsel %vm2559, %v8926, -inf
        %v8989 = vrot.slane %v8988, 4
        %v8990 = vmax.f32 %v8988, %v8989
        %v8991 = vrot.slane %v8990, 2
        %v8992 = vmax.f32 %v8990, %v8991
        %v8993 = vrot.slane %v8992, 1
        %v8994 = vmax.f32 %v8992, %v8993
        %v8995 = vsel %vm2559, %v8911, -inf
        %v8996 = vrot.slane %v8995, 4
        %v8997 = vmax.f32 %v8995, %v8996
        %v8998 = vrot.slane %v8997, 2
        %v8999 = vmax.f32 %v8997, %v8998
        %v9000 = vrot.slane %v8999, 1
        %v9001 = vmax.f32 %v8999, %v9000
        %v9002 = vsel %vm2559, %v8927, -inf
        %v9003 = vrot.slane %v9002, 4
        %v9004 = vmax.f32 %v9002, %v9003
        %v9005 = vrot.slane %v9004, 2
        %v9006 = vmax.f32 %v9004, %v9005
        %v9007 = vrot.slane %v9006, 1
        %v9008 = vmax.f32 %v9006, %v9007
        %v9009 = vsel %vm2559, %v8912, -inf
        %v9010 = vrot.slane %v9009, 4
        %v9011 = vmax.f32 %v9009, %v9010
        %v9012 = vrot.slane %v9011, 2
        %v9013 = vmax.f32 %v9011, %v9012
        %v9014 = vrot.slane %v9013, 1
        %v9015 = vmax.f32 %v9013, %v9014
        %v9016 = vsel %vm2559, %v8928, -inf
        %v9017 = vrot.slane %v9016, 4
        %v9018 = vmax.f32 %v9016, %v9017
        %v9019 = vrot.slane %v9018, 2
        %v9020 = vmax.f32 %v9018, %v9019
        %v9021 = vrot.slane %v9020, 1
        %v9022 = vmax.f32 %v9020, %v9021
        %v9023 = vsel %vm2559, %v8913, -inf
        %v9024 = vrot.slane %v9023, 4
        %v9025 = vmax.f32 %v9023, %v9024
        %v9026 = vrot.slane %v9025, 2
        %v9027 = vmax.f32 %v9025, %v9026
        %v9028 = vrot.slane %v9027, 1
        %v9029 = vmax.f32 %v9027, %v9028
        %v9030 = vsel %vm2559, %v8929, -inf
        %v9031 = vrot.slane %v9030, 4
        %v9032 = vmax.f32 %v9030, %v9031
        %v9033 = vrot.slane %v9032, 2
        %v9034 = vmax.f32 %v9032, %v9033
        %v9035 = vrot.slane %v9034, 1
        %v9036 = vmax.f32 %v9034, %v9035
        %v9037 = vsel %vm2559, %v8914, -inf
        %v9038 = vrot.slane %v9037, 4
        %v9039 = vmax.f32 %v9037, %v9038
        %v9040 = vrot.slane %v9039, 2
        %v9041 = vmax.f32 %v9039, %v9040
        %v9042 = vrot.slane %v9041, 1
        %v9043 = vmax.f32 %v9041, %v9042
        %v9044 = vsel %vm2559, %v8930, -inf
        %v9045 = vrot.slane %v9044, 4
        %v9046 = vmax.f32 %v9044, %v9045
        %v9047 = vrot.slane %v9046, 2
        %v9048 = vmax.f32 %v9046, %v9047
        %v9049 = vrot.slane %v9048, 1
        %v9050 = vmax.f32 %v9048, %v9049
        %v9067 = vsel %vm4608, %v8952, %v8945
        %v9068 = vsel %vm4610, %v8959, %v9067
        %v9069 = vsel %vm4612, %v8966, %v9068
        %v9070 = vsel %vm4614, %v8973, %v9069
        %v9071 = vsel %vm4616, %v8980, %v9070
        %v9072 = vsel %vm4618, %v8987, %v9071
        %v9073 = vsel %vm4620, %v9001, %v8994
        %v9074 = vsel %vm4608, %v9008, %v9073
        %v9075 = vsel %vm4610, %v9015, %v9074
        %v9076 = vsel %vm4612, %v9022, %v9075
        %v9077 = vsel %vm4614, %v9029, %v9076
        %v9078 = vsel %vm4616, %v9036, %v9077
        %v9079 = vsel %vm4618, %v9043, %v9078
        %v9082 = vsel %vm4840, 0.0, %v9072
        %v9083 = vsel %vm4840, %v9050, 0.0
        %v9084 = vld [vmem:[%s33] sm:$0xff]
        %v9085 = vld [vmem:[%s33 + $0x8] sm:$0xff]
        %v9086 = vld [vmem:[%s33 + $0x10] sm:$0xff]
        %v9087 = vld [vmem:[%s33 + $0x18] sm:$0xff]
        %v9088 = vld [vmem:[%s33 + $0x20] sm:$0xff]
        %v9089 = vld [vmem:[%s33 + $0x28] sm:$0xff]
        %v9090 = vld [vmem:[%s33 + $0x30] sm:$0xff]
        %v9091 = vld [vmem:[%s33 + $0x38] sm:$0xff]
        %s9092 = scalar_lea.vmem %s33, 64
        %v9093 = vld [vmem:[%s9092] sm:$0xff]
        %v9094 = vld [vmem:[%s9092 + $0x8] sm:$0xff]
        %v9095 = vld [vmem:[%s9092 + $0x10] sm:$0xff]
        %v9096 = vld [vmem:[%s9092 + $0x18] sm:$0xff]
        %v9097 = vld [vmem:[%s9092 + $0x20] sm:$0xff]
        %v9098 = vld [vmem:[%s9092 + $0x28] sm:$0xff]
        %v9099 = vld [vmem:[%s9092 + $0x30] sm:$0xff]
        %v9100 = vld [vmem:[%s9092 + $0x38] sm:$0xff]
        %v9103 = vrot.slane %v9082, 1
        %v9104 = vrot.slane %v9079, 1
        %v9105 = vsel %vm4862, %v9103, %v9104
        %v9106 = vrot.slane %v9083, 1
        %v9107 = vsel %vm4862, %v9104, %v9106
        %v9108 = vsel %vm4928, %v9105, 0
        %v9110 = vsel %vm4928, %v9107, 0
        %9112 = vmatprep.subr.mxu0 0.0
        %9113 = vmatpush1.msra.mxu0 0.0
        %9114 = vmatprep.subr.mxu0 0.0
        %9115 = vmatpush1.msra.mxu0 0.0
        %9116 = vmatprep.subr.mxu0 0.0
        %9117 = vmatpush1.msra.mxu0 0.0
        %9118 = vmatprep.subr.mxu0 0.0
        %9119 = vmatpush1.msra.mxu0 0.0
        %9120 = vmatprep.subr.mxu0 0.0
        %9121 = vmatpush1.msra.mxu0 0.0
        %9122 = vmatprep.subr.mxu0 0.0
        %9123 = vmatpush1.msra.mxu0 0.0
        %9124 = vmatprep.subr.mxu0 0.0
        %9125 = vmatpush1.msra.mxu0 0.0
        %9126 = vmatprep.subr.mxu0 0.0
        %9127 = vmatpush1.msra.mxu0 0.0
        %9128 = vmatprep.subr.mxu0 0.0
        %9129 = vmatpush1.msra.mxu0 %v9100
        %9130 = vmatprep.subr.mxu0 0.0
        %9131 = vmatpush1.msra.mxu0 %v9099
        %9132 = vmatprep.subr.mxu0 0.0
        %9133 = vmatpush1.msra.mxu0 %v9098
        %9134 = vmatprep.subr.mxu0 0.0
        %9135 = vmatpush1.msra.mxu0 %v9097
        %9136 = vmatprep.subr.mxu0 0.0
        %9137 = vmatpush1.msra.mxu0 %v9096
        %9138 = vmatprep.subr.mxu0 0.0
        %9139 = vmatpush1.msra.mxu0 %v9095
        %9140 = vmatprep.subr.mxu0 0.0
        %9141 = vmatpush1.msra.mxu0 %v9094
        %9142 = vmatprep.subr.mxu0 0.0
        %9143 = vmatpush1.msra.mxu0 %v9093
        %9144 = vmatprep.subr.mxu0 0.0
        %9145 = vmatpush2.msra.mxu0 0.0
        %9146 = vmatprep.subr.mxu0 0.0
        %9147 = vmatpush2.msra.mxu0 0.0
        %9148 = vmatprep.subr.mxu0 0.0
        %9149 = vmatpush2.msra.mxu0 0.0
        %9150 = vmatprep.subr.mxu0 0.0
        %9151 = vmatpush2.msra.mxu0 0.0
        %9152 = vmatprep.subr.mxu0 0.0
        %9153 = vmatpush2.msra.mxu0 0.0
        %9154 = vmatprep.subr.mxu0 0.0
        %9155 = vmatpush2.msra.mxu0 0.0
        %9156 = vmatprep.subr.mxu0 0.0
        %9157 = vmatpush2.msra.mxu0 0.0
        %9158 = vmatprep.subr.mxu0 0.0
        %9159 = vmatpush2.msra.mxu0 0.0
        %9160 = vmatprep.subr.mxu0 0.0
        %9161 = vmatpush2.msra.mxu0 0.0
        %9162 = vmatprep.subr.mxu0 0.0
        %9163 = vmatpush2.msra.mxu0 0.0
        %9164 = vmatprep.subr.mxu0 0.0
        %9165 = vmatpush2.msra.mxu0 0.0
        %9166 = vmatprep.subr.mxu0 0.0
        %9167 = vmatpush2.msra.mxu0 0.0
        %9168 = vmatprep.subr.mxu0 0.0
        %9169 = vmatpush2.msra.mxu0 0.0
        %9170 = vmatprep.subr.mxu0 0.0
        %9171 = vmatpush2.msra.mxu0 0.0
        %9172 = vmatprep.subr.mxu0 0.0
        %9173 = vmatpush2.msra.mxu0 0.0
        %9174 = vmatprep.subr.mxu0 0.0
        %9175 = vmatpush2.msra.mxu0 0.0
        %9176 = vmatprep.mubr.f32.mxu0 0.0
        %9177 = vmatmul.mubr.f32.gmra.mxu0 %v9108
        %v9178 = vpop.f32.mrf.mxu0
        %v9179 = vadd.f32 0.0, %v9178
        %v9180 = vpop.f32.mrf.mxu0
        %9181 = vmatprep.mubr.f32.mxu0 0.0
        %9182 = vmatmul.mubr.f32.gmra.mxu0 %v9110
        %v9183 = vpop.f32.mrf.mxu0
        %v9184 = vadd.f32 0.0, %v9183
        %v9185 = vpop.f32.mrf.mxu0
        %9186 = vdwg.mxu0
        %v9187 = vsel %vm4928, %v9082, 0
        %v9189 = vsel %vm4928, %v9079, 0
        %9191 = vmatprep.subr.mxu0 0.0
        %9192 = vmatpush1.msra.mxu0 0.0
        %9193 = vmatprep.subr.mxu0 0.0
        %9194 = vmatpush1.msra.mxu0 0.0
        %9195 = vmatprep.subr.mxu0 0.0
        %9196 = vmatpush1.msra.mxu0 0.0
        %9197 = vmatprep.subr.mxu0 0.0
        %9198 = vmatpush1.msra.mxu0 0.0
        %9199 = vmatprep.subr.mxu0 0.0
        %9200 = vmatpush1.msra.mxu0 0.0
        %9201 = vmatprep.subr.mxu0 0.0
        %9202 = vmatpush1.msra.mxu0 0.0
        %9203 = vmatprep.subr.mxu0 0.0
        %9204 = vmatpush1.msra.mxu0 0.0
        %9205 = vmatprep.subr.mxu0 0.0
        %9206 = vmatpush1.msra.mxu0 0.0
        %9207 = vmatprep.subr.mxu0 0.0
        %9208 = vmatpush1.msra.mxu0 %v9091
        %9209 = vmatprep.subr.mxu0 0.0
        %9210 = vmatpush1.msra.mxu0 %v9090
        %9211 = vmatprep.subr.mxu0 0.0
        %9212 = vmatpush1.msra.mxu0 %v9089
        %9213 = vmatprep.subr.mxu0 0.0
        %9214 = vmatpush1.msra.mxu0 %v9088
        %9215 = vmatprep.subr.mxu0 0.0
        %9216 = vmatpush1.msra.mxu0 %v9087
        %9217 = vmatprep.subr.mxu0 0.0
        %9218 = vmatpush1.msra.mxu0 %v9086
        %9219 = vmatprep.subr.mxu0 0.0
        %9220 = vmatpush1.msra.mxu0 %v9085
        %9221 = vmatprep.subr.mxu0 0.0
        %9222 = vmatpush1.msra.mxu0 %v9084
        %9223 = vmatprep.subr.mxu0 0.0
        %9224 = vmatpush2.msra.mxu0 0.0
        %9225 = vmatprep.subr.mxu0 0.0
        %9226 = vmatpush2.msra.mxu0 0.0
        %9227 = vmatprep.subr.mxu0 0.0
        %9228 = vmatpush2.msra.mxu0 0.0
        %9229 = vmatprep.subr.mxu0 0.0
        %9230 = vmatpush2.msra.mxu0 0.0
        %9231 = vmatprep.subr.mxu0 0.0
        %9232 = vmatpush2.msra.mxu0 0.0
        %9233 = vmatprep.subr.mxu0 0.0
        %9234 = vmatpush2.msra.mxu0 0.0
        %9235 = vmatprep.subr.mxu0 0.0
        %9236 = vmatpush2.msra.mxu0 0.0
        %9237 = vmatprep.subr.mxu0 0.0
        %9238 = vmatpush2.msra.mxu0 0.0
        %9239 = vmatprep.subr.mxu0 0.0
        %9240 = vmatpush2.msra.mxu0 0.0
        %9241 = vmatprep.subr.mxu0 0.0
        %9242 = vmatpush2.msra.mxu0 0.0
        %9243 = vmatprep.subr.mxu0 0.0
        %9244 = vmatpush2.msra.mxu0 0.0
        %9245 = vmatprep.subr.mxu0 0.0
        %9246 = vmatpush2.msra.mxu0 0.0
        %9247 = vmatprep.subr.mxu0 0.0
        %9248 = vmatpush2.msra.mxu0 0.0
        %9249 = vmatprep.subr.mxu0 0.0
        %9250 = vmatpush2.msra.mxu0 0.0
        %9251 = vmatprep.subr.mxu0 0.0
        %9252 = vmatpush2.msra.mxu0 0.0
        %9253 = vmatprep.subr.mxu0 0.0
        %9254 = vmatpush2.msra.mxu0 0.0
        %9255 = vmatprep.mubr.f32.mxu0 0.0
        %9256 = vmatmul.mubr.f32.gmra.mxu0 %v9187
        %v9257 = vpop.f32.mrf.mxu0
        %v9258 = vadd.f32 %v9179, %v9257
        %v9259 = vpop.f32.mrf.mxu0
        %9260 = vmatprep.mubr.f32.mxu0 0.0
        %9261 = vmatmul.mubr.f32.gmra.mxu0 %v9189
        %v9262 = vpop.f32.mrf.mxu0
        %v9263 = vadd.f32 %v9184, %v9262
        %v9264 = vpop.f32.mrf.mxu0
        %9265 = vdwg.mxu0
        %s9266 = scalar_lea.vmem %s33, 128
        %v9267 = vld [vmem:[%s9266] sm:$0xff]
        %v9268 = vld [vmem:[%s9266 + $0x8] sm:$0xff]
        %v9269 = vld [vmem:[%s9266 + $0x10] sm:$0xff]
        %v9270 = vld [vmem:[%s9266 + $0x18] sm:$0xff]
        %v9271 = vld [vmem:[%s9266 + $0x20] sm:$0xff]
        %v9272 = vld [vmem:[%s9266 + $0x28] sm:$0xff]
        %v9273 = vld [vmem:[%s9266 + $0x30] sm:$0xff]
        %v9274 = vld [vmem:[%s9266 + $0x38] sm:$0xff]
        %v9275 = vrot.slane %v9082, 2
        %v9276 = vrot.slane %v9079, 2
        %v9277 = vsel %vm5516, %v9275, %v9276
        %v9278 = vrot.slane %v9083, 2
        %v9279 = vsel %vm5516, %v9276, %v9278
        %v9280 = vsel %vm4928, %v9277, 0
        %v9282 = vsel %vm4928, %v9279, 0
        %9284 = vmatprep.subr.mxu0 0.0
        %9285 = vmatpush1.msra.mxu0 0.0
        %9286 = vmatprep.subr.mxu0 0.0
        %9287 = vmatpush1.msra.mxu0 0.0
        %9288 = vmatprep.subr.mxu0 0.0
        %9289 = vmatpush1.msra.mxu0 0.0
        %9290 = vmatprep.subr.mxu0 0.0
        %9291 = vmatpush1.msra.mxu0 0.0
        %9292 = vmatprep.subr.mxu0 0.0
        %9293 = vmatpush1.msra.mxu0 0.0
        %9294 = vmatprep.subr.mxu0 0.0
        %9295 = vmatpush1.msra.mxu0 0.0
        %9296 = vmatprep.subr.mxu0 0.0
        %9297 = vmatpush1.msra.mxu0 0.0
        %9298 = vmatprep.subr.mxu0 0.0
        %9299 = vmatpush1.msra.mxu0 0.0
        %9300 = vmatprep.subr.mxu0 0.0
        %9301 = vmatpush1.msra.mxu0 %v9274
        %9302 = vmatprep.subr.mxu0 0.0
        %9303 = vmatpush1.msra.mxu0 %v9273
        %9304 = vmatprep.subr.mxu0 0.0
        %9305 = vmatpush1.msra.mxu0 %v9272
        %9306 = vmatprep.subr.mxu0 0.0
        %9307 = vmatpush1.msra.mxu0 %v9271
        %9308 = vmatprep.subr.mxu0 0.0
        %9309 = vmatpush1.msra.mxu0 %v9270
        %9310 = vmatprep.subr.mxu0 0.0
        %9311 = vmatpush1.msra.mxu0 %v9269
        %9312 = vmatprep.subr.mxu0 0.0
        %9313 = vmatpush1.msra.mxu0 %v9268
        %9314 = vmatprep.subr.mxu0 0.0
        %9315 = vmatpush1.msra.mxu0 %v9267
        %9316 = vmatprep.subr.mxu0 0.0
        %9317 = vmatpush2.msra.mxu0 0.0
        %9318 = vmatprep.subr.mxu0 0.0
        %9319 = vmatpush2.msra.mxu0 0.0
        %9320 = vmatprep.subr.mxu0 0.0
        %9321 = vmatpush2.msra.mxu0 0.0
        %9322 = vmatprep.subr.mxu0 0.0
        %9323 = vmatpush2.msra.mxu0 0.0
        %9324 = vmatprep.subr.mxu0 0.0
        %9325 = vmatpush2.msra.mxu0 0.0
        %9326 = vmatprep.subr.mxu0 0.0
        %9327 = vmatpush2.msra.mxu0 0.0
        %9328 = vmatprep.subr.mxu0 0.0
        %9329 = vmatpush2.msra.mxu0 0.0
        %9330 = vmatprep.subr.mxu0 0.0
        %9331 = vmatpush2.msra.mxu0 0.0
        %9332 = vmatprep.subr.mxu0 0.0
        %9333 = vmatpush2.msra.mxu0 0.0
        %9334 = vmatprep.subr.mxu0 0.0
        %9335 = vmatpush2.msra.mxu0 0.0
        %9336 = vmatprep.subr.mxu0 0.0
        %9337 = vmatpush2.msra.mxu0 0.0
        %9338 = vmatprep.subr.mxu0 0.0
        %9339 = vmatpush2.msra.mxu0 0.0
        %9340 = vmatprep.subr.mxu0 0.0
        %9341 = vmatpush2.msra.mxu0 0.0
        %9342 = vmatprep.subr.mxu0 0.0
        %9343 = vmatpush2.msra.mxu0 0.0
        %9344 = vmatprep.subr.mxu0 0.0
        %9345 = vmatpush2.msra.mxu0 0.0
        %9346 = vmatprep.subr.mxu0 0.0
        %9347 = vmatpush2.msra.mxu0 0.0
        %9348 = vmatprep.mubr.f32.mxu0 0.0
        %9349 = vmatmul.mubr.f32.gmra.mxu0 %v9280
        %v9350 = vpop.f32.mrf.mxu0
        %v9351 = vadd.f32 0.0, %v9350
        %v9352 = vpop.f32.mrf.mxu0
        %9353 = vmatprep.mubr.f32.mxu0 0.0
        %9354 = vmatmul.mubr.f32.gmra.mxu0 %v9282
        %v9355 = vpop.f32.mrf.mxu0
        %v9356 = vadd.f32 0.0, %v9355
        %v9357 = vpop.f32.mrf.mxu0
        %9358 = vdwg.mxu0
        %v9359 = vadd.f32 %v9258, %v9351
        %v9360 = vadd.f32 %v9263, %v9356
        %v9361 = vld [vmem:[%s35] sm:$0x1]
        %v9363 = vlaneseq
        %v9364 = vshrl.u32 %v9363, 7
        %v9365 = vsub.s32 0, %v9364
        %v9366 = vrot.slane %v9361, %v9365
        %v9368 = vmul.f32 %v9359, %v9366
        %v9369 = vmul.f32 %v9360, %v9366
        %v9370 = vld [vmem:[%s37] sm:$0x1]
        %v9372 = vlaneseq
        %v9373 = vshrl.u32 %v9372, 7
        %v9374 = vsub.s32 0, %v9373
        %v9375 = vrot.slane %v9370, %v9374
        %v9377 = vadd.f32 %v9368, %v9375
        %v9378 = vadd.f32 %v9369, %v9375
        %v9379 = vmax.f32 %v9377, 0.0
        %v9380 = vmax.f32 %v9378, 0.0
        %v9383 = vrot.slane %v9379, 7
        %v9384 = vrot.slane %v9380, 7
        %v9385 = vsel %vm4840, %v9383, %v9384
        %v9389 = vsel %vm4840, 0.0, %v9383
        %v9390 = vsel %vm4840, %v9384, 0.0
        %v9391 = vld [vmem:[%s39] sm:$0xff]
        %v9392 = vld [vmem:[%s39 + $0x8] sm:$0xff]
        %v9393 = vld [vmem:[%s39 + $0x10] sm:$0xff]
        %v9394 = vld [vmem:[%s39 + $0x18] sm:$0xff]
        %v9395 = vld [vmem:[%s39 + $0x20] sm:$0xff]
        %v9396 = vld [vmem:[%s39 + $0x28] sm:$0xff]
        %v9397 = vld [vmem:[%s39 + $0x30] sm:$0xff]
        %v9398 = vld [vmem:[%s39 + $0x38] sm:$0xff]
        %v9399 = vld [vmem:[%s39 + $0x40] sm:$0xff]
        %v9400 = vld [vmem:[%s39 + $0x48] sm:$0xff]
        %v9401 = vld [vmem:[%s39 + $0x50] sm:$0xff]
        %v9402 = vld [vmem:[%s39 + $0x58] sm:$0xff]
        %v9403 = vld [vmem:[%s39 + $0x60] sm:$0xff]
        %v9404 = vld [vmem:[%s39 + $0x68] sm:$0xff]
        %v9405 = vld [vmem:[%s39 + $0x70] sm:$0xff]
        %v9406 = vld [vmem:[%s39 + $0x78] sm:$0xff]
        %s9407 = scalar_lea.vmem %s39, 128
        %v9408 = vld [vmem:[%s9407] sm:$0xff]
        %v9409 = vld [vmem:[%s9407 + $0x8] sm:$0xff]
        %v9410 = vld [vmem:[%s9407 + $0x10] sm:$0xff]
        %v9411 = vld [vmem:[%s9407 + $0x18] sm:$0xff]
        %v9412 = vld [vmem:[%s9407 + $0x20] sm:$0xff]
        %v9413 = vld [vmem:[%s9407 + $0x28] sm:$0xff]
        %v9414 = vld [vmem:[%s9407 + $0x30] sm:$0xff]
        %v9415 = vld [vmem:[%s9407 + $0x38] sm:$0xff]
        %v9416 = vld [vmem:[%s9407 + $0x40] sm:$0xff]
        %v9417 = vld [vmem:[%s9407 + $0x48] sm:$0xff]
        %v9418 = vld [vmem:[%s9407 + $0x50] sm:$0xff]
        %v9419 = vld [vmem:[%s9407 + $0x58] sm:$0xff]
        %v9420 = vld [vmem:[%s9407 + $0x60] sm:$0xff]
        %v9421 = vld [vmem:[%s9407 + $0x68] sm:$0xff]
        %v9422 = vld [vmem:[%s9407 + $0x70] sm:$0xff]
        %v9423 = vld [vmem:[%s9407 + $0x78] sm:$0xff]
        %v9426 = vrot.slane %v9389, 1
        %v9427 = vrot.slane %v9385, 1
        %v9428 = vsel %vm4862, %v9426, %v9427
        %v9429 = vrot.slane %v9390, 1
        %v9430 = vsel %vm4862, %v9427, %v9429
        %9433 = vmatprep.subr.mxu0 0.0
        %9434 = vmatpush1.msra.mxu0 %v9423
        %9435 = vmatprep.subr.mxu0 0.0
        %9436 = vmatpush1.msra.mxu0 %v9422
        %9437 = vmatprep.subr.mxu0 0.0
        %9438 = vmatpush1.msra.mxu0 %v9421
        %9439 = vmatprep.subr.mxu0 0.0
        %9440 = vmatpush1.msra.mxu0 %v9420
        %9441 = vmatprep.subr.mxu0 0.0
        %9442 = vmatpush1.msra.mxu0 %v9419
        %9443 = vmatprep.subr.mxu0 0.0
        %9444 = vmatpush1.msra.mxu0 %v9418
        %9445 = vmatprep.subr.mxu0 0.0
        %9446 = vmatpush1.msra.mxu0 %v9417
        %9447 = vmatprep.subr.mxu0 0.0
        %9448 = vmatpush1.msra.mxu0 %v9416
        %9449 = vmatprep.subr.mxu0 0.0
        %9450 = vmatpush1.msra.mxu0 %v9415
        %9451 = vmatprep.subr.mxu0 0.0
        %9452 = vmatpush1.msra.mxu0 %v9414
        %9453 = vmatprep.subr.mxu0 0.0
        %9454 = vmatpush1.msra.mxu0 %v9413
        %9455 = vmatprep.subr.mxu0 0.0
        %9456 = vmatpush1.msra.mxu0 %v9412
        %9457 = vmatprep.subr.mxu0 0.0
        %9458 = vmatpush1.msra.mxu0 %v9411
        %9459 = vmatprep.subr.mxu0 0.0
        %9460 = vmatpush1.msra.mxu0 %v9410
        %9461 = vmatprep.subr.mxu0 0.0
        %9462 = vmatpush1.msra.mxu0 %v9409
        %9463 = vmatprep.subr.mxu0 0.0
        %9464 = vmatpush1.msra.mxu0 %v9408
        %9465 = vmatprep.subr.mxu0 0.0
        %9466 = vmatpush2.msra.mxu0 0.0
        %9467 = vmatprep.subr.mxu0 0.0
        %9468 = vmatpush2.msra.mxu0 0.0
        %9469 = vmatprep.subr.mxu0 0.0
        %9470 = vmatpush2.msra.mxu0 0.0
        %9471 = vmatprep.subr.mxu0 0.0
        %9472 = vmatpush2.msra.mxu0 0.0
        %9473 = vmatprep.subr.mxu0 0.0
        %9474 = vmatpush2.msra.mxu0 0.0
        %9475 = vmatprep.subr.mxu0 0.0
        %9476 = vmatpush2.msra.mxu0 0.0
        %9477 = vmatprep.subr.mxu0 0.0
        %9478 = vmatpush2.msra.mxu0 0.0
        %9479 = vmatprep.subr.mxu0 0.0
        %9480 = vmatpush2.msra.mxu0 0.0
        %9481 = vmatprep.subr.mxu0 0.0
        %9482 = vmatpush2.msra.mxu0 0.0
        %9483 = vmatprep.subr.mxu0 0.0
        %9484 = vmatpush2.msra.mxu0 0.0
        %9485 = vmatprep.subr.mxu0 0.0
        %9486 = vmatpush2.msra.mxu0 0.0
        %9487 = vmatprep.subr.mxu0 0.0
        %9488 = vmatpush2.msra.mxu0 0.0
        %9489 = vmatprep.subr.mxu0 0.0
        %9490 = vmatpush2.msra.mxu0 0.0
        %9491 = vmatprep.subr.mxu0 0.0
        %9492 = vmatpush2.msra.mxu0 0.0
        %9493 = vmatprep.subr.mxu0 0.0
        %9494 = vmatpush2.msra.mxu0 0.0
        %9495 = vmatprep.subr.mxu0 0.0
        %9496 = vmatpush2.msra.mxu0 0.0
        %9497 = vmatprep.mubr.f32.mxu0 0.0
        %9498 = vmatmul.mubr.f32.gmra.mxu0 %v9428
        %v9499 = vpop.f32.mrf.mxu0
        %v9500 = vadd.f32 0.0, %v9499
        %v9501 = vpop.f32.mrf.mxu0
        %9502 = vmatprep.mubr.f32.mxu0 0.0
        %9503 = vmatmul.mubr.f32.gmra.mxu0 %v9430
        %v9504 = vpop.f32.mrf.mxu0
        %v9505 = vadd.f32 0.0, %v9504
        %v9506 = vpop.f32.mrf.mxu0
        %9507 = vdwg.mxu0
        %9508 = vmatprep.subr.mxu0 0.0
        %9509 = vmatpush1.msra.mxu0 %v9406
        %9510 = vmatprep.subr.mxu0 0.0
        %9511 = vmatpush1.msra.mxu0 %v9405
        %9512 = vmatprep.subr.mxu0 0.0
        %9513 = vmatpush1.msra.mxu0 %v9404
        %9514 = vmatprep.subr.mxu0 0.0
        %9515 = vmatpush1.msra.mxu0 %v9403
        %9516 = vmatprep.subr.mxu0 0.0
        %9517 = vmatpush1.msra.mxu0 %v9402
        %9518 = vmatprep.subr.mxu0 0.0
        %9519 = vmatpush1.msra.mxu0 %v9401
        %9520 = vmatprep.subr.mxu0 0.0
        %9521 = vmatpush1.msra.mxu0 %v9400
        %9522 = vmatprep.subr.mxu0 0.0
        %9523 = vmatpush1.msra.mxu0 %v9399
        %9524 = vmatprep.subr.mxu0 0.0
        %9525 = vmatpush1.msra.mxu0 %v9398
        %9526 = vmatprep.subr.mxu0 0.0
        %9527 = vmatpush1.msra.mxu0 %v9397
        %9528 = vmatprep.subr.mxu0 0.0
        %9529 = vmatpush1.msra.mxu0 %v9396
        %9530 = vmatprep.subr.mxu0 0.0
        %9531 = vmatpush1.msra.mxu0 %v9395
        %9532 = vmatprep.subr.mxu0 0.0
        %9533 = vmatpush1.msra.mxu0 %v9394
        %9534 = vmatprep.subr.mxu0 0.0
        %9535 = vmatpush1.msra.mxu0 %v9393
        %9536 = vmatprep.subr.mxu0 0.0
        %9537 = vmatpush1.msra.mxu0 %v9392
        %9538 = vmatprep.subr.mxu0 0.0
        %9539 = vmatpush1.msra.mxu0 %v9391
        %9540 = vmatprep.subr.mxu0 0.0
        %9541 = vmatpush2.msra.mxu0 0.0
        %9542 = vmatprep.subr.mxu0 0.0
        %9543 = vmatpush2.msra.mxu0 0.0
        %9544 = vmatprep.subr.mxu0 0.0
        %9545 = vmatpush2.msra.mxu0 0.0
        %9546 = vmatprep.subr.mxu0 0.0
        %9547 = vmatpush2.msra.mxu0 0.0
        %9548 = vmatprep.subr.mxu0 0.0
        %9549 = vmatpush2.msra.mxu0 0.0
        %9550 = vmatprep.subr.mxu0 0.0
        %9551 = vmatpush2.msra.mxu0 0.0
        %9552 = vmatprep.subr.mxu0 0.0
        %9553 = vmatpush2.msra.mxu0 0.0
        %9554 = vmatprep.subr.mxu0 0.0
        %9555 = vmatpush2.msra.mxu0 0.0
        %9556 = vmatprep.subr.mxu0 0.0
        %9557 = vmatpush2.msra.mxu0 0.0
        %9558 = vmatprep.subr.mxu0 0.0
        %9559 = vmatpush2.msra.mxu0 0.0
        %9560 = vmatprep.subr.mxu0 0.0
        %9561 = vmatpush2.msra.mxu0 0.0
        %9562 = vmatprep.subr.mxu0 0.0
        %9563 = vmatpush2.msra.mxu0 0.0
        %9564 = vmatprep.subr.mxu0 0.0
        %9565 = vmatpush2.msra.mxu0 0.0
        %9566 = vmatprep.subr.mxu0 0.0
        %9567 = vmatpush2.msra.mxu0 0.0
        %9568 = vmatprep.subr.mxu0 0.0
        %9569 = vmatpush2.msra.mxu0 0.0
        %9570 = vmatprep.subr.mxu0 0.0
        %9571 = vmatpush2.msra.mxu0 0.0
        %9572 = vmatprep.mubr.f32.mxu0 0.0
        %9573 = vmatmul.mubr.f32.gmra.mxu0 %v9389
        %v9574 = vpop.f32.mrf.mxu0
        %v9575 = vadd.f32 %v9500, %v9574
        %v9576 = vpop.f32.mrf.mxu0
        %9577 = vmatprep.mubr.f32.mxu0 0.0
        %9578 = vmatmul.mubr.f32.gmra.mxu0 %v9385
        %v9579 = vpop.f32.mrf.mxu0
        %v9580 = vadd.f32 %v9505, %v9579
        %v9581 = vpop.f32.mrf.mxu0
        %9582 = vdwg.mxu0
        %s9583 = scalar_lea.vmem %s39, 256
        %v9584 = vld [vmem:[%s9583] sm:$0xff]
        %v9585 = vld [vmem:[%s9583 + $0x8] sm:$0xff]
        %v9586 = vld [vmem:[%s9583 + $0x10] sm:$0xff]
        %v9587 = vld [vmem:[%s9583 + $0x18] sm:$0xff]
        %v9588 = vld [vmem:[%s9583 + $0x20] sm:$0xff]
        %v9589 = vld [vmem:[%s9583 + $0x28] sm:$0xff]
        %v9590 = vld [vmem:[%s9583 + $0x30] sm:$0xff]
        %v9591 = vld [vmem:[%s9583 + $0x38] sm:$0xff]
        %v9592 = vld [vmem:[%s9583 + $0x40] sm:$0xff]
        %v9593 = vld [vmem:[%s9583 + $0x48] sm:$0xff]
        %v9594 = vld [vmem:[%s9583 + $0x50] sm:$0xff]
        %v9595 = vld [vmem:[%s9583 + $0x58] sm:$0xff]
        %v9596 = vld [vmem:[%s9583 + $0x60] sm:$0xff]
        %v9597 = vld [vmem:[%s9583 + $0x68] sm:$0xff]
        %v9598 = vld [vmem:[%s9583 + $0x70] sm:$0xff]
        %v9599 = vld [vmem:[%s9583 + $0x78] sm:$0xff]
        %v9600 = vrot.slane %v9389, 2
        %v9601 = vrot.slane %v9385, 2
        %v9602 = vsel %vm5516, %v9600, %v9601
        %v9603 = vrot.slane %v9390, 2
        %v9604 = vsel %vm5516, %v9601, %v9603
        %9607 = vmatprep.subr.mxu0 0.0
        %9608 = vmatpush1.msra.mxu0 %v9599
        %9609 = vmatprep.subr.mxu0 0.0
        %9610 = vmatpush1.msra.mxu0 %v9598
        %9611 = vmatprep.subr.mxu0 0.0
        %9612 = vmatpush1.msra.mxu0 %v9597
        %9613 = vmatprep.subr.mxu0 0.0
        %9614 = vmatpush1.msra.mxu0 %v9596
        %9615 = vmatprep.subr.mxu0 0.0
        %9616 = vmatpush1.msra.mxu0 %v9595
        %9617 = vmatprep.subr.mxu0 0.0
        %9618 = vmatpush1.msra.mxu0 %v9594
        %9619 = vmatprep.subr.mxu0 0.0
        %9620 = vmatpush1.msra.mxu0 %v9593
        %9621 = vmatprep.subr.mxu0 0.0
        %9622 = vmatpush1.msra.mxu0 %v9592
        %9623 = vmatprep.subr.mxu0 0.0
        %9624 = vmatpush1.msra.mxu0 %v9591
        %9625 = vmatprep.subr.mxu0 0.0
        %9626 = vmatpush1.msra.mxu0 %v9590
        %9627 = vmatprep.subr.mxu0 0.0
        %9628 = vmatpush1.msra.mxu0 %v9589
        %9629 = vmatprep.subr.mxu0 0.0
        %9630 = vmatpush1.msra.mxu0 %v9588
        %9631 = vmatprep.subr.mxu0 0.0
        %9632 = vmatpush1.msra.mxu0 %v9587
        %9633 = vmatprep.subr.mxu0 0.0
        %9634 = vmatpush1.msra.mxu0 %v9586
        %9635 = vmatprep.subr.mxu0 0.0
        %9636 = vmatpush1.msra.mxu0 %v9585
        %9637 = vmatprep.subr.mxu0 0.0
        %9638 = vmatpush1.msra.mxu0 %v9584
        %9639 = vmatprep.subr.mxu0 0.0
        %9640 = vmatpush2.msra.mxu0 0.0
        %9641 = vmatprep.subr.mxu0 0.0
        %9642 = vmatpush2.msra.mxu0 0.0
        %9643 = vmatprep.subr.mxu0 0.0
        %9644 = vmatpush2.msra.mxu0 0.0
        %9645 = vmatprep.subr.mxu0 0.0
        %9646 = vmatpush2.msra.mxu0 0.0
        %9647 = vmatprep.subr.mxu0 0.0
        %9648 = vmatpush2.msra.mxu0 0.0
        %9649 = vmatprep.subr.mxu0 0.0
        %9650 = vmatpush2.msra.mxu0 0.0
        %9651 = vmatprep.subr.mxu0 0.0
        %9652 = vmatpush2.msra.mxu0 0.0
        %9653 = vmatprep.subr.mxu0 0.0
        %9654 = vmatpush2.msra.mxu0 0.0
        %9655 = vmatprep.subr.mxu0 0.0
        %9656 = vmatpush2.msra.mxu0 0.0
        %9657 = vmatprep.subr.mxu0 0.0
        %9658 = vmatpush2.msra.mxu0 0.0
        %9659 = vmatprep.subr.mxu0 0.0
        %9660 = vmatpush2.msra.mxu0 0.0
        %9661 = vmatprep.subr.mxu0 0.0
        %9662 = vmatpush2.msra.mxu0 0.0
        %9663 = vmatprep.subr.mxu0 0.0
        %9664 = vmatpush2.msra.mxu0 0.0
        %9665 = vmatprep.subr.mxu0 0.0
        %9666 = vmatpush2.msra.mxu0 0.0
        %9667 = vmatprep.subr.mxu0 0.0
        %9668 = vmatpush2.msra.mxu0 0.0
        %9669 = vmatprep.subr.mxu0 0.0
        %9670 = vmatpush2.msra.mxu0 0.0
        %9671 = vmatprep.mubr.f32.mxu0 0.0
        %9672 = vmatmul.mubr.f32.gmra.mxu0 %v9602
        %v9673 = vpop.f32.mrf.mxu0
        %v9674 = vadd.f32 0.0, %v9673
        %v9675 = vpop.f32.mrf.mxu0
        %9676 = vmatprep.mubr.f32.mxu0 0.0
        %9677 = vmatmul.mubr.f32.gmra.mxu0 %v9604
        %v9678 = vpop.f32.mrf.mxu0
        %v9679 = vadd.f32 0.0, %v9678
        %v9680 = vpop.f32.mrf.mxu0
        %9681 = vdwg.mxu0
        %v9682 = vadd.f32 %v9575, %v9674
        %v9683 = vadd.f32 %v9580, %v9679
        %v9684 = vld [vmem:[%s41] sm:$0x1]
        %v9686 = vlaneseq
        %v9687 = vshrl.u32 %v9686, 7
        %v9688 = vsub.s32 0, %v9687
        %v9689 = vrot.slane %v9684, %v9688
        %v9691 = vmul.f32 %v9682, %v9689
        %v9692 = vmul.f32 %v9683, %v9689
        %v9693 = vld [vmem:[%s43] sm:$0x1]
        %v9695 = vlaneseq
        %v9696 = vshrl.u32 %v9695, 7
        %v9697 = vsub.s32 0, %v9696
        %v9698 = vrot.slane %v9693, %v9697
        %v9700 = vadd.f32 %v9691, %v9698
        %v9701 = vadd.f32 %v9692, %v9698
        %v9702 = vmax.f32 %v9700, 0.0
        %v9703 = vmax.f32 %v9701, 0.0
        %v9706 = vcombine.high %v9702, %v9702
        %v9707 = vcombine.high %v9703, %v9703
        %vm9710 = vcmask 1043456
        %v9711 = vsel %vm9710, %v9702, -inf
        %v9712 = vrot.slane %v9711, 4
        %v9713 = vmax.f32 %v9711, %v9712
        %v9714 = vrot.slane %v9713, 2
        %v9715 = vmax.f32 %v9713, %v9714
        %v9716 = vrot.slane %v9715, 1
        %v9717 = vmax.f32 %v9715, %v9716
        %v9718 = vsel %vm9710, %v9706, -inf
        %v9719 = vrot.slane %v9718, 4
        %v9720 = vmax.f32 %v9718, %v9719
        %v9721 = vrot.slane %v9720, 2
        %v9722 = vmax.f32 %v9720, %v9721
        %v9723 = vrot.slane %v9722, 1
        %v9724 = vmax.f32 %v9722, %v9723
        %v9725 = vsel %vm9710, %v9703, -inf
        %v9726 = vrot.slane %v9725, 4
        %v9727 = vmax.f32 %v9725, %v9726
        %v9728 = vrot.slane %v9727, 2
        %v9729 = vmax.f32 %v9727, %v9728
        %v9730 = vrot.slane %v9729, 1
        %v9731 = vmax.f32 %v9729, %v9730
        %v9732 = vsel %vm9710, %v9707, -inf
        %v9733 = vrot.slane %v9732, 4
        %v9734 = vmax.f32 %v9732, %v9733
        %v9735 = vrot.slane %v9734, 2
        %v9736 = vmax.f32 %v9734, %v9735
        %v9737 = vrot.slane %v9736, 1
        %v9738 = vmax.f32 %v9736, %v9737
        %v9743 = vsel %vm4608, %v9724, %v9717
        %v9744 = vsel %vm4610, %v9731, %v9743
        %v9745 = vsel %vm4612, %v9738, %v9744
        %v9747 = vsel %vm4840, 0.0, %v9745
        %vm9748 = vcmask 1044480
        %v9749 = vsel %vm9748, %v9747, 0.0
        %v9750 = vld [vmem:[%s45] sm:$0xff]
        %v9751 = vld [vmem:[%s45 + $0x8] sm:$0xff]
        %v9752 = vld [vmem:[%s45 + $0x10] sm:$0xff]
        %v9753 = vld [vmem:[%s45 + $0x18] sm:$0xff]
        %v9754 = vld [vmem:[%s45 + $0x20] sm:$0xff]
        %v9755 = vld [vmem:[%s45 + $0x28] sm:$0xff]
        %v9756 = vld [vmem:[%s45 + $0x30] sm:$0xff]
        %v9757 = vld [vmem:[%s45 + $0x38] sm:$0xff]
        %v9758 = vld [vmem:[%s45 + $0x40] sm:$0xff]
        %v9759 = vld [vmem:[%s45 + $0x48] sm:$0xff]
        %v9760 = vld [vmem:[%s45 + $0x50] sm:$0xff]
        %v9761 = vld [vmem:[%s45 + $0x58] sm:$0xff]
        %v9762 = vld [vmem:[%s45 + $0x60] sm:$0xff]
        %v9763 = vld [vmem:[%s45 + $0x68] sm:$0xff]
        %v9764 = vld [vmem:[%s45 + $0x70] sm:$0xff]
        %v9765 = vld [vmem:[%s45 + $0x78] sm:$0xff]
        %v9766 = vld [vmem:[%s45 + $0x80] sm:$0xff]
        %v9767 = vld [vmem:[%s45 + $0x88] sm:$0xff]
        %v9768 = vld [vmem:[%s45 + $0x90] sm:$0xff]
        %v9769 = vld [vmem:[%s45 + $0x98] sm:$0xff]
        %v9770 = vld [vmem:[%s45 + $0xa0] sm:$0xff]
        %v9771 = vld [vmem:[%s45 + $0xa8] sm:$0xff]
        %v9772 = vld [vmem:[%s45 + $0xb0] sm:$0xff]
        %v9773 = vld [vmem:[%s45 + $0xb8] sm:$0xff]
        %v9774 = vld [vmem:[%s45 + $0xc0] sm:$0xff]
        %v9775 = vld [vmem:[%s45 + $0xc8] sm:$0xff]
        %v9776 = vld [vmem:[%s45 + $0xd0] sm:$0xff]
        %v9777 = vld [vmem:[%s45 + $0xd8] sm:$0xff]
        %v9778 = vld [vmem:[%s45 + $0xe0] sm:$0xff]
        %v9779 = vld [vmem:[%s45 + $0xe8] sm:$0xff]
        %v9780 = vld [vmem:[%s45 + $0xf0] sm:$0xff]
        %v9781 = vld [vmem:[%s45 + $0xf8] sm:$0xff]
        %s9782 = scalar_lea.vmem %s45, 256
        %v9783 = vld [vmem:[%s9782] sm:$0xff]
        %v9784 = vld [vmem:[%s9782 + $0x8] sm:$0xff]
        %v9785 = vld [vmem:[%s9782 + $0x10] sm:$0xff]
        %v9786 = vld [vmem:[%s9782 + $0x18] sm:$0xff]
        %v9787 = vld [vmem:[%s9782 + $0x20] sm:$0xff]
        %v9788 = vld [vmem:[%s9782 + $0x28] sm:$0xff]
        %v9789 = vld [vmem:[%s9782 + $0x30] sm:$0xff]
        %v9790 = vld [vmem:[%s9782 + $0x38] sm:$0xff]
        %v9791 = vld [vmem:[%s9782 + $0x40] sm:$0xff]
        %v9792 = vld [vmem:[%s9782 + $0x48] sm:$0xff]
        %v9793 = vld [vmem:[%s9782 + $0x50] sm:$0xff]
        %v9794 = vld [vmem:[%s9782 + $0x58] sm:$0xff]
        %v9795 = vld [vmem:[%s9782 + $0x60] sm:$0xff]
        %v9796 = vld [vmem:[%s9782 + $0x68] sm:$0xff]
        %v9797 = vld [vmem:[%s9782 + $0x70] sm:$0xff]
        %v9798 = vld [vmem:[%s9782 + $0x78] sm:$0xff]
        %v9799 = vld [vmem:[%s9782 + $0x80] sm:$0xff]
        %v9800 = vld [vmem:[%s9782 + $0x88] sm:$0xff]
        %v9801 = vld [vmem:[%s9782 + $0x90] sm:$0xff]
        %v9802 = vld [vmem:[%s9782 + $0x98] sm:$0xff]
        %v9803 = vld [vmem:[%s9782 + $0xa0] sm:$0xff]
        %v9804 = vld [vmem:[%s9782 + $0xa8] sm:$0xff]
        %v9805 = vld [vmem:[%s9782 + $0xb0] sm:$0xff]
        %v9806 = vld [vmem:[%s9782 + $0xb8] sm:$0xff]
        %v9807 = vld [vmem:[%s9782 + $0xc0] sm:$0xff]
        %v9808 = vld [vmem:[%s9782 + $0xc8] sm:$0xff]
        %v9809 = vld [vmem:[%s9782 + $0xd0] sm:$0xff]
        %v9810 = vld [vmem:[%s9782 + $0xd8] sm:$0xff]
        %v9811 = vld [vmem:[%s9782 + $0xe0] sm:$0xff]
        %v9812 = vld [vmem:[%s9782 + $0xe8] sm:$0xff]
        %v9813 = vld [vmem:[%s9782 + $0xf0] sm:$0xff]
        %v9814 = vld [vmem:[%s9782 + $0xf8] sm:$0xff]
        %v9816 = vrot.slane %v9749, 1
        %9818 = vmatprep.subr.mxu0 %v9814
        %9819 = vmatpush1.msra.mxu0 %v9813
        %9820 = vmatprep.subr.mxu0 %v9812
        %9821 = vmatpush1.msra.mxu0 %v9811
        %9822 = vmatprep.subr.mxu0 %v9810
        %9823 = vmatpush1.msra.mxu0 %v9809
        %9824 = vmatprep.subr.mxu0 %v9808
        %9825 = vmatpush1.msra.mxu0 %v9807
        %9826 = vmatprep.subr.mxu0 %v9806
        %9827 = vmatpush1.msra.mxu0 %v9805
        %9828 = vmatprep.subr.mxu0 %v9804
        %9829 = vmatpush1.msra.mxu0 %v9803
        %9830 = vmatprep.subr.mxu0 %v9802
        %9831 = vmatpush1.msra.mxu0 %v9801
        %9832 = vmatprep.subr.mxu0 %v9800
        %9833 = vmatpush1.msra.mxu0 %v9799
        %9834 = vmatprep.subr.mxu0 %v9798
        %9835 = vmatpush1.msra.mxu0 %v9797
        %9836 = vmatprep.subr.mxu0 %v9796
        %9837 = vmatpush1.msra.mxu0 %v9795
        %9838 = vmatprep.subr.mxu0 %v9794
        %9839 = vmatpush1.msra.mxu0 %v9793
        %9840 = vmatprep.subr.mxu0 %v9792
        %9841 = vmatpush1.msra.mxu0 %v9791
        %9842 = vmatprep.subr.mxu0 %v9790
        %9843 = vmatpush1.msra.mxu0 %v9789
        %9844 = vmatprep.subr.mxu0 %v9788
        %9845 = vmatpush1.msra.mxu0 %v9787
        %9846 = vmatprep.subr.mxu0 %v9786
        %9847 = vmatpush1.msra.mxu0 %v9785
        %9848 = vmatprep.subr.mxu0 %v9784
        %9849 = vmatpush1.msra.mxu0 %v9783
        %9850 = vmatprep.subr.mxu0 0.0
        %9851 = vmatpush2.msra.mxu0 0.0
        %9852 = vmatprep.subr.mxu0 0.0
        %9853 = vmatpush2.msra.mxu0 0.0
        %9854 = vmatprep.subr.mxu0 0.0
        %9855 = vmatpush2.msra.mxu0 0.0
        %9856 = vmatprep.subr.mxu0 0.0
        %9857 = vmatpush2.msra.mxu0 0.0
        %9858 = vmatprep.subr.mxu0 0.0
        %9859 = vmatpush2.msra.mxu0 0.0
        %9860 = vmatprep.subr.mxu0 0.0
        %9861 = vmatpush2.msra.mxu0 0.0
        %9862 = vmatprep.subr.mxu0 0.0
        %9863 = vmatpush2.msra.mxu0 0.0
        %9864 = vmatprep.subr.mxu0 0.0
        %9865 = vmatpush2.msra.mxu0 0.0
        %9866 = vmatprep.subr.mxu0 0.0
        %9867 = vmatpush2.msra.mxu0 0.0
        %9868 = vmatprep.subr.mxu0 0.0
        %9869 = vmatpush2.msra.mxu0 0.0
        %9870 = vmatprep.subr.mxu0 0.0
        %9871 = vmatpush2.msra.mxu0 0.0
        %9872 = vmatprep.subr.mxu0 0.0
        %9873 = vmatpush2.msra.mxu0 0.0
        %9874 = vmatprep.subr.mxu0 0.0
        %9875 = vmatpush2.msra.mxu0 0.0
        %9876 = vmatprep.subr.mxu0 0.0
        %9877 = vmatpush2.msra.mxu0 0.0
        %9878 = vmatprep.subr.mxu0 0.0
        %9879 = vmatpush2.msra.mxu0 0.0
        %9880 = vmatprep.subr.mxu0 0.0
        %9881 = vmatpush2.msra.mxu0 0.0
        %9882 = vmatprep.mubr.f32.mxu0 0.0
        %9883 = vmatmul.mubr.f32.gmra.mxu0 %v9816
        %v9884 = vpop.f32.mrf.mxu0
        %v9885 = vadd.f32 0.0, %v9884
        %v9886 = vpop.f32.mrf.mxu0
        %v9887 = vadd.f32 0.0, %v9886
        %9888 = vdwg.mxu0
        %9889 = vmatprep.subr.mxu0 %v9781
        %9890 = vmatpush1.msra.mxu0 %v9780
        %9891 = vmatprep.subr.mxu0 %v9779
        %9892 = vmatpush1.msra.mxu0 %v9778
        %9893 = vmatprep.subr.mxu0 %v9777
        %9894 = vmatpush1.msra.mxu0 %v9776
        %9895 = vmatprep.subr.mxu0 %v9775
        %9896 = vmatpush1.msra.mxu0 %v9774
        %9897 = vmatprep.subr.mxu0 %v9773
        %9898 = vmatpush1.msra.mxu0 %v9772
        %9899 = vmatprep.subr.mxu0 %v9771
        %9900 = vmatpush1.msra.mxu0 %v9770
        %9901 = vmatprep.subr.mxu0 %v9769
        %9902 = vmatpush1.msra.mxu0 %v9768
        %9903 = vmatprep.subr.mxu0 %v9767
        %9904 = vmatpush1.msra.mxu0 %v9766
        %9905 = vmatprep.subr.mxu0 %v9765
        %9906 = vmatpush1.msra.mxu0 %v9764
        %9907 = vmatprep.subr.mxu0 %v9763
        %9908 = vmatpush1.msra.mxu0 %v9762
        %9909 = vmatprep.subr.mxu0 %v9761
        %9910 = vmatpush1.msra.mxu0 %v9760
        %9911 = vmatprep.subr.mxu0 %v9759
        %9912 = vmatpush1.msra.mxu0 %v9758
        %9913 = vmatprep.subr.mxu0 %v9757
        %9914 = vmatpush1.msra.mxu0 %v9756
        %9915 = vmatprep.subr.mxu0 %v9755
        %9916 = vmatpush1.msra.mxu0 %v9754
        %9917 = vmatprep.subr.mxu0 %v9753
        %9918 = vmatpush1.msra.mxu0 %v9752
        %9919 = vmatprep.subr.mxu0 %v9751
        %9920 = vmatpush1.msra.mxu0 %v9750
        %9921 = vmatprep.subr.mxu0 0.0
        %9922 = vmatpush2.msra.mxu0 0.0
        %9923 = vmatprep.subr.mxu0 0.0
        %9924 = vmatpush2.msra.mxu0 0.0
        %9925 = vmatprep.subr.mxu0 0.0
        %9926 = vmatpush2.msra.mxu0 0.0
        %9927 = vmatprep.subr.mxu0 0.0
        %9928 = vmatpush2.msra.mxu0 0.0
        %9929 = vmatprep.subr.mxu0 0.0
        %9930 = vmatpush2.msra.mxu0 0.0
        %9931 = vmatprep.subr.mxu0 0.0
        %9932 = vmatpush2.msra.mxu0 0.0
        %9933 = vmatprep.subr.mxu0 0.0
        %9934 = vmatpush2.msra.mxu0 0.0
        %9935 = vmatprep.subr.mxu0 0.0
        %9936 = vmatpush2.msra.mxu0 0.0
        %9937 = vmatprep.subr.mxu0 0.0
        %9938 = vmatpush2.msra.mxu0 0.0
        %9939 = vmatprep.subr.mxu0 0.0
        %9940 = vmatpush2.msra.mxu0 0.0
        %9941 = vmatprep.subr.mxu0 0.0
        %9942 = vmatpush2.msra.mxu0 0.0
        %9943 = vmatprep.subr.mxu0 0.0
        %9944 = vmatpush2.msra.mxu0 0.0
        %9945 = vmatprep.subr.mxu0 0.0
        %9946 = vmatpush2.msra.mxu0 0.0
        %9947 = vmatprep.subr.mxu0 0.0
        %9948 = vmatpush2.msra.mxu0 0.0
        %9949 = vmatprep.subr.mxu0 0.0
        %9950 = vmatpush2.msra.mxu0 0.0
        %9951 = vmatprep.subr.mxu0 0.0
        %9952 = vmatpush2.msra.mxu0 0.0
        %9953 = vmatprep.mubr.f32.mxu0 0.0
        %9954 = vmatmul.mubr.f32.gmra.mxu0 %v9749
        %v9955 = vpop.f32.mrf.mxu0
        %v9956 = vadd.f32 %v9885, %v9955
        %v9957 = vpop.f32.mrf.mxu0
        %v9958 = vadd.f32 %v9887, %v9957
        %9959 = vdwg.mxu0
        %s9960 = scalar_lea.vmem %s45, 512
        %v9961 = vld [vmem:[%s9960] sm:$0xff]
        %v9962 = vld [vmem:[%s9960 + $0x8] sm:$0xff]
        %v9963 = vld [vmem:[%s9960 + $0x10] sm:$0xff]
        %v9964 = vld [vmem:[%s9960 + $0x18] sm:$0xff]
        %v9965 = vld [vmem:[%s9960 + $0x20] sm:$0xff]
        %v9966 = vld [vmem:[%s9960 + $0x28] sm:$0xff]
        %v9967 = vld [vmem:[%s9960 + $0x30] sm:$0xff]
        %v9968 = vld [vmem:[%s9960 + $0x38] sm:$0xff]
        %v9969 = vld [vmem:[%s9960 + $0x40] sm:$0xff]
        %v9970 = vld [vmem:[%s9960 + $0x48] sm:$0xff]
        %v9971 = vld [vmem:[%s9960 + $0x50] sm:$0xff]
        %v9972 = vld [vmem:[%s9960 + $0x58] sm:$0xff]
        %v9973 = vld [vmem:[%s9960 + $0x60] sm:$0xff]
        %v9974 = vld [vmem:[%s9960 + $0x68] sm:$0xff]
        %v9975 = vld [vmem:[%s9960 + $0x70] sm:$0xff]
        %v9976 = vld [vmem:[%s9960 + $0x78] sm:$0xff]
        %v9977 = vld [vmem:[%s9960 + $0x80] sm:$0xff]
        %v9978 = vld [vmem:[%s9960 + $0x88] sm:$0xff]
        %v9979 = vld [vmem:[%s9960 + $0x90] sm:$0xff]
        %v9980 = vld [vmem:[%s9960 + $0x98] sm:$0xff]
        %v9981 = vld [vmem:[%s9960 + $0xa0] sm:$0xff]
        %v9982 = vld [vmem:[%s9960 + $0xa8] sm:$0xff]
        %v9983 = vld [vmem:[%s9960 + $0xb0] sm:$0xff]
        %v9984 = vld [vmem:[%s9960 + $0xb8] sm:$0xff]
        %v9985 = vld [vmem:[%s9960 + $0xc0] sm:$0xff]
        %v9986 = vld [vmem:[%s9960 + $0xc8] sm:$0xff]
        %v9987 = vld [vmem:[%s9960 + $0xd0] sm:$0xff]
        %v9988 = vld [vmem:[%s9960 + $0xd8] sm:$0xff]
        %v9989 = vld [vmem:[%s9960 + $0xe0] sm:$0xff]
        %v9990 = vld [vmem:[%s9960 + $0xe8] sm:$0xff]
        %v9991 = vld [vmem:[%s9960 + $0xf0] sm:$0xff]
        %v9992 = vld [vmem:[%s9960 + $0xf8] sm:$0xff]
        %v9993 = vrot.slane %v9749, 2
        %9995 = vmatprep.subr.mxu0 %v9992
        %9996 = vmatpush1.msra.mxu0 %v9991
        %9997 = vmatprep.subr.mxu0 %v9990
        %9998 = vmatpush1.msra.mxu0 %v9989
        %9999 = vmatprep.subr.mxu0 %v9988
        %10000 = vmatpush1.msra.mxu0 %v9987
        %10001 = vmatprep.subr.mxu0 %v9986
        %10002 = vmatpush1.msra.mxu0 %v9985
        %10003 = vmatprep.subr.mxu0 %v9984
        %10004 = vmatpush1.msra.mxu0 %v9983
        %10005 = vmatprep.subr.mxu0 %v9982
        %10006 = vmatpush1.msra.mxu0 %v9981
        %10007 = vmatprep.subr.mxu0 %v9980
        %10008 = vmatpush1.msra.mxu0 %v9979
        %10009 = vmatprep.subr.mxu0 %v9978
        %10010 = vmatpush1.msra.mxu0 %v9977
        %10011 = vmatprep.subr.mxu0 %v9976
        %10012 = vmatpush1.msra.mxu0 %v9975
        %10013 = vmatprep.subr.mxu0 %v9974
        %10014 = vmatpush1.msra.mxu0 %v9973
        %10015 = vmatprep.subr.mxu0 %v9972
        %10016 = vmatpush1.msra.mxu0 %v9971
        %10017 = vmatprep.subr.mxu0 %v9970
        %10018 = vmatpush1.msra.mxu0 %v9969
        %10019 = vmatprep.subr.mxu0 %v9968
        %10020 = vmatpush1.msra.mxu0 %v9967
        %10021 = vmatprep.subr.mxu0 %v9966
        %10022 = vmatpush1.msra.mxu0 %v9965
        %10023 = vmatprep.subr.mxu0 %v9964
        %10024 = vmatpush1.msra.mxu0 %v9963
        %10025 = vmatprep.subr.mxu0 %v9962
        %10026 = vmatpush1.msra.mxu0 %v9961
        %10027 = vmatprep.subr.mxu0 0.0
        %10028 = vmatpush2.msra.mxu0 0.0
        %10029 = vmatprep.subr.mxu0 0.0
        %10030 = vmatpush2.msra.mxu0 0.0
        %10031 = vmatprep.subr.mxu0 0.0
        %10032 = vmatpush2.msra.mxu0 0.0
        %10033 = vmatprep.subr.mxu0 0.0
        %10034 = vmatpush2.msra.mxu0 0.0
        %10035 = vmatprep.subr.mxu0 0.0
        %10036 = vmatpush2.msra.mxu0 0.0
        %10037 = vmatprep.subr.mxu0 0.0
        %10038 = vmatpush2.msra.mxu0 0.0
        %10039 = vmatprep.subr.mxu0 0.0
        %10040 = vmatpush2.msra.mxu0 0.0
        %10041 = vmatprep.subr.mxu0 0.0
        %10042 = vmatpush2.msra.mxu0 0.0
        %10043 = vmatprep.subr.mxu0 0.0
        %10044 = vmatpush2.msra.mxu0 0.0
        %10045 = vmatprep.subr.mxu0 0.0
        %10046 = vmatpush2.msra.mxu0 0.0
        %10047 = vmatprep.subr.mxu0 0.0
        %10048 = vmatpush2.msra.mxu0 0.0
        %10049 = vmatprep.subr.mxu0 0.0
        %10050 = vmatpush2.msra.mxu0 0.0
        %10051 = vmatprep.subr.mxu0 0.0
        %10052 = vmatpush2.msra.mxu0 0.0
        %10053 = vmatprep.subr.mxu0 0.0
        %10054 = vmatpush2.msra.mxu0 0.0
        %10055 = vmatprep.subr.mxu0 0.0
        %10056 = vmatpush2.msra.mxu0 0.0
        %10057 = vmatprep.subr.mxu0 0.0
        %10058 = vmatpush2.msra.mxu0 0.0
        %10059 = vmatprep.mubr.f32.mxu0 0.0
        %10060 = vmatmul.mubr.f32.gmra.mxu0 %v9993
        %v10061 = vpop.f32.mrf.mxu0
        %v10062 = vadd.f32 0.0, %v10061
        %v10063 = vpop.f32.mrf.mxu0
        %v10064 = vadd.f32 0.0, %v10063
        %10065 = vdwg.mxu0
        %v10066 = vadd.f32 %v9956, %v10062
        %v10067 = vadd.f32 %v9958, %v10064
        %v10068 = vld [vmem:[%s47] sm:$0x3]
        %v10070 = vlaneseq
        %v10071 = vshrl.u32 %v10070, 7
        %v10072 = vsub.s32 0, %v10071
        %v10073 = vrot.slane %v10068, %v10072
        %v10074 = vlaneseq
        %v10075 = vshrl.u32 %v10074, 7
        %v10076 = vsub.s32 1, %v10075
        %v10077 = vrot.slane %v10068, %v10076
        %v10080 = vmul.f32 %v10066, %v10073
        %v10081 = vmul.f32 %v10067, %v10077
        %v10082 = vld [vmem:[%s49] sm:$0x3]
        %v10084 = vlaneseq
        %v10085 = vshrl.u32 %v10084, 7
        %v10086 = vsub.s32 0, %v10085
        %v10087 = vrot.slane %v10082, %v10086
        %v10088 = vlaneseq
        %v10089 = vshrl.u32 %v10088, 7
        %v10090 = vsub.s32 1, %v10089
        %v10091 = vrot.slane %v10082, %v10090
        %v10094 = vadd.f32 %v10080, %v10087
        %v10095 = vadd.f32 %v10081, %v10091
        %v10096 = vmax.f32 %v10094, 0.0
        %v10097 = vmax.f32 %v10095, 0.0
        %v10100 = vrot.slane %v10096, 7
        %v10101 = vrot.slane %v10097, 7
        %v10104 = vsel %vm4840, 0.0, %v10100
        %v10105 = vsel %vm4840, 0.0, %v10101
        %v10106 = vsel %vm9748, %v10104, 0.0
        %v10107 = vsel %vm9748, %v10105, 0.0
        %v10108 = vld [vmem:[%s51] sm:$0xff]
        %v10109 = vld [vmem:[%s51 + $0x8] sm:$0xff]
        %v10110 = vld [vmem:[%s51 + $0x10] sm:$0xff]
        %v10111 = vld [vmem:[%s51 + $0x18] sm:$0xff]
        %v10112 = vld [vmem:[%s51 + $0x20] sm:$0xff]
        %v10113 = vld [vmem:[%s51 + $0x28] sm:$0xff]
        %v10114 = vld [vmem:[%s51 + $0x30] sm:$0xff]
        %v10115 = vld [vmem:[%s51 + $0x38] sm:$0xff]
        %v10116 = vld [vmem:[%s51 + $0x40] sm:$0xff]
        %v10117 = vld [vmem:[%s51 + $0x48] sm:$0xff]
        %v10118 = vld [vmem:[%s51 + $0x50] sm:$0xff]
        %v10119 = vld [vmem:[%s51 + $0x58] sm:$0xff]
        %v10120 = vld [vmem:[%s51 + $0x60] sm:$0xff]
        %v10121 = vld [vmem:[%s51 + $0x68] sm:$0xff]
        %v10122 = vld [vmem:[%s51 + $0x70] sm:$0xff]
        %v10123 = vld [vmem:[%s51 + $0x78] sm:$0xff]
        %v10124 = vld [vmem:[%s51 + $0x80] sm:$0xff]
        %v10125 = vld [vmem:[%s51 + $0x88] sm:$0xff]
        %v10126 = vld [vmem:[%s51 + $0x90] sm:$0xff]
        %v10127 = vld [vmem:[%s51 + $0x98] sm:$0xff]
        %v10128 = vld [vmem:[%s51 + $0xa0] sm:$0xff]
        %v10129 = vld [vmem:[%s51 + $0xa8] sm:$0xff]
        %v10130 = vld [vmem:[%s51 + $0xb0] sm:$0xff]
        %v10131 = vld [vmem:[%s51 + $0xb8] sm:$0xff]
        %v10132 = vld [vmem:[%s51 + $0xc0] sm:$0xff]
        %v10133 = vld [vmem:[%s51 + $0xc8] sm:$0xff]
        %v10134 = vld [vmem:[%s51 + $0xd0] sm:$0xff]
        %v10135 = vld [vmem:[%s51 + $0xd8] sm:$0xff]
        %v10136 = vld [vmem:[%s51 + $0xe0] sm:$0xff]
        %v10137 = vld [vmem:[%s51 + $0xe8] sm:$0xff]
        %v10138 = vld [vmem:[%s51 + $0xf0] sm:$0xff]
        %v10139 = vld [vmem:[%s51 + $0xf8] sm:$0xff]
        %v10140 = vld [vmem:[%s51 + $0x100] sm:$0xff]
        %v10141 = vld [vmem:[%s51 + $0x108] sm:$0xff]
        %v10142 = vld [vmem:[%s51 + $0x110] sm:$0xff]
        %v10143 = vld [vmem:[%s51 + $0x118] sm:$0xff]
        %v10144 = vld [vmem:[%s51 + $0x120] sm:$0xff]
        %v10145 = vld [vmem:[%s51 + $0x128] sm:$0xff]
        %v10146 = vld [vmem:[%s51 + $0x130] sm:$0xff]
        %v10147 = vld [vmem:[%s51 + $0x138] sm:$0xff]
        %v10148 = vld [vmem:[%s51 + $0x140] sm:$0xff]
        %v10149 = vld [vmem:[%s51 + $0x148] sm:$0xff]
        %v10150 = vld [vmem:[%s51 + $0x150] sm:$0xff]
        %v10151 = vld [vmem:[%s51 + $0x158] sm:$0xff]
        %v10152 = vld [vmem:[%s51 + $0x160] sm:$0xff]
        %v10153 = vld [vmem:[%s51 + $0x168] sm:$0xff]
        %v10154 = vld [vmem:[%s51 + $0x170] sm:$0xff]
        %v10155 = vld [vmem:[%s51 + $0x178] sm:$0xff]
        %v10156 = vld [vmem:[%s51 + $0x180] sm:$0xff]
        %v10157 = vld [vmem:[%s51 + $0x188] sm:$0xff]
        %v10158 = vld [vmem:[%s51 + $0x190] sm:$0xff]
        %v10159 = vld [vmem:[%s51 + $0x198] sm:$0xff]
        %v10160 = vld [vmem:[%s51 + $0x1a0] sm:$0xff]
        %v10161 = vld [vmem:[%s51 + $0x1a8] sm:$0xff]
        %v10162 = vld [vmem:[%s51 + $0x1b0] sm:$0xff]
        %v10163 = vld [vmem:[%s51 + $0x1b8] sm:$0xff]
        %v10164 = vld [vmem:[%s51 + $0x1c0] sm:$0xff]
        %v10165 = vld [vmem:[%s51 + $0x1c8] sm:$0xff]
        %v10166 = vld [vmem:[%s51 + $0x1d0] sm:$0xff]
        %v10167 = vld [vmem:[%s51 + $0x1d8] sm:$0xff]
        %v10168 = vld [vmem:[%s51 + $0x1e0] sm:$0xff]
        %v10169 = vld [vmem:[%s51 + $0x1e8] sm:$0xff]
        %v10170 = vld [vmem:[%s51 + $0x1f0] sm:$0xff]
        %v10171 = vld [vmem:[%s51 + $0x1f8] sm:$0xff]
        %s10172 = scalar_lea.vmem %s51, 512
        %v10173 = vld [vmem:[%s10172] sm:$0xff]
        %v10174 = vld [vmem:[%s10172 + $0x8] sm:$0xff]
        %v10175 = vld [vmem:[%s10172 + $0x10] sm:$0xff]
        %v10176 = vld [vmem:[%s10172 + $0x18] sm:$0xff]
        %v10177 = vld [vmem:[%s10172 + $0x20] sm:$0xff]
        %v10178 = vld [vmem:[%s10172 + $0x28] sm:$0xff]
        %v10179 = vld [vmem:[%s10172 + $0x30] sm:$0xff]
        %v10180 = vld [vmem:[%s10172 + $0x38] sm:$0xff]
        %v10181 = vld [vmem:[%s10172 + $0x40] sm:$0xff]
        %v10182 = vld [vmem:[%s10172 + $0x48] sm:$0xff]
        %v10183 = vld [vmem:[%s10172 + $0x50] sm:$0xff]
        %v10184 = vld [vmem:[%s10172 + $0x58] sm:$0xff]
        %v10185 = vld [vmem:[%s10172 + $0x60] sm:$0xff]
        %v10186 = vld [vmem:[%s10172 + $0x68] sm:$0xff]
        %v10187 = vld [vmem:[%s10172 + $0x70] sm:$0xff]
        %v10188 = vld [vmem:[%s10172 + $0x78] sm:$0xff]
        %v10189 = vld [vmem:[%s10172 + $0x80] sm:$0xff]
        %v10190 = vld [vmem:[%s10172 + $0x88] sm:$0xff]
        %v10191 = vld [vmem:[%s10172 + $0x90] sm:$0xff]
        %v10192 = vld [vmem:[%s10172 + $0x98] sm:$0xff]
        %v10193 = vld [vmem:[%s10172 + $0xa0] sm:$0xff]
        %v10194 = vld [vmem:[%s10172 + $0xa8] sm:$0xff]
        %v10195 = vld [vmem:[%s10172 + $0xb0] sm:$0xff]
        %v10196 = vld [vmem:[%s10172 + $0xb8] sm:$0xff]
        %v10197 = vld [vmem:[%s10172 + $0xc0] sm:$0xff]
        %v10198 = vld [vmem:[%s10172 + $0xc8] sm:$0xff]
        %v10199 = vld [vmem:[%s10172 + $0xd0] sm:$0xff]
        %v10200 = vld [vmem:[%s10172 + $0xd8] sm:$0xff]
        %v10201 = vld [vmem:[%s10172 + $0xe0] sm:$0xff]
        %v10202 = vld [vmem:[%s10172 + $0xe8] sm:$0xff]
        %v10203 = vld [vmem:[%s10172 + $0xf0] sm:$0xff]
        %v10204 = vld [vmem:[%s10172 + $0xf8] sm:$0xff]
        %v10205 = vld [vmem:[%s10172 + $0x100] sm:$0xff]
        %v10206 = vld [vmem:[%s10172 + $0x108] sm:$0xff]
        %v10207 = vld [vmem:[%s10172 + $0x110] sm:$0xff]
        %v10208 = vld [vmem:[%s10172 + $0x118] sm:$0xff]
        %v10209 = vld [vmem:[%s10172 + $0x120] sm:$0xff]
        %v10210 = vld [vmem:[%s10172 + $0x128] sm:$0xff]
        %v10211 = vld [vmem:[%s10172 + $0x130] sm:$0xff]
        %v10212 = vld [vmem:[%s10172 + $0x138] sm:$0xff]
        %v10213 = vld [vmem:[%s10172 + $0x140] sm:$0xff]
        %v10214 = vld [vmem:[%s10172 + $0x148] sm:$0xff]
        %v10215 = vld [vmem:[%s10172 + $0x150] sm:$0xff]
        %v10216 = vld [vmem:[%s10172 + $0x158] sm:$0xff]
        %v10217 = vld [vmem:[%s10172 + $0x160] sm:$0xff]
        %v10218 = vld [vmem:[%s10172 + $0x168] sm:$0xff]
        %v10219 = vld [vmem:[%s10172 + $0x170] sm:$0xff]
        %v10220 = vld [vmem:[%s10172 + $0x178] sm:$0xff]
        %v10221 = vld [vmem:[%s10172 + $0x180] sm:$0xff]
        %v10222 = vld [vmem:[%s10172 + $0x188] sm:$0xff]
        %v10223 = vld [vmem:[%s10172 + $0x190] sm:$0xff]
        %v10224 = vld [vmem:[%s10172 + $0x198] sm:$0xff]
        %v10225 = vld [vmem:[%s10172 + $0x1a0] sm:$0xff]
        %v10226 = vld [vmem:[%s10172 + $0x1a8] sm:$0xff]
        %v10227 = vld [vmem:[%s10172 + $0x1b0] sm:$0xff]
        %v10228 = vld [vmem:[%s10172 + $0x1b8] sm:$0xff]
        %v10229 = vld [vmem:[%s10172 + $0x1c0] sm:$0xff]
        %v10230 = vld [vmem:[%s10172 + $0x1c8] sm:$0xff]
        %v10231 = vld [vmem:[%s10172 + $0x1d0] sm:$0xff]
        %v10232 = vld [vmem:[%s10172 + $0x1d8] sm:$0xff]
        %v10233 = vld [vmem:[%s10172 + $0x1e0] sm:$0xff]
        %v10234 = vld [vmem:[%s10172 + $0x1e8] sm:$0xff]
        %v10235 = vld [vmem:[%s10172 + $0x1f0] sm:$0xff]
        %v10236 = vld [vmem:[%s10172 + $0x1f8] sm:$0xff]
        %v10239 = vrot.slane %v10106, 1
        %v10240 = vrot.slane %v10107, 1
        %10243 = vmatprep.subr.mxu0 %v10204
        %10244 = vmatpush1.msra.mxu0 %v10203
        %10245 = vmatprep.subr.mxu0 %v10202
        %10246 = vmatpush1.msra.mxu0 %v10201
        %10247 = vmatprep.subr.mxu0 %v10200
        %10248 = vmatpush1.msra.mxu0 %v10199
        %10249 = vmatprep.subr.mxu0 %v10198
        %10250 = vmatpush1.msra.mxu0 %v10197
        %10251 = vmatprep.subr.mxu0 %v10196
        %10252 = vmatpush1.msra.mxu0 %v10195
        %10253 = vmatprep.subr.mxu0 %v10194
        %10254 = vmatpush1.msra.mxu0 %v10193
        %10255 = vmatprep.subr.mxu0 %v10192
        %10256 = vmatpush1.msra.mxu0 %v10191
        %10257 = vmatprep.subr.mxu0 %v10190
        %10258 = vmatpush1.msra.mxu0 %v10189
        %10259 = vmatprep.subr.mxu0 %v10188
        %10260 = vmatpush1.msra.mxu0 %v10187
        %10261 = vmatprep.subr.mxu0 %v10186
        %10262 = vmatpush1.msra.mxu0 %v10185
        %10263 = vmatprep.subr.mxu0 %v10184
        %10264 = vmatpush1.msra.mxu0 %v10183
        %10265 = vmatprep.subr.mxu0 %v10182
        %10266 = vmatpush1.msra.mxu0 %v10181
        %10267 = vmatprep.subr.mxu0 %v10180
        %10268 = vmatpush1.msra.mxu0 %v10179
        %10269 = vmatprep.subr.mxu0 %v10178
        %10270 = vmatpush1.msra.mxu0 %v10177
        %10271 = vmatprep.subr.mxu0 %v10176
        %10272 = vmatpush1.msra.mxu0 %v10175
        %10273 = vmatprep.subr.mxu0 %v10174
        %10274 = vmatpush1.msra.mxu0 %v10173
        %10275 = vmatprep.subr.mxu0 %v10236
        %10276 = vmatpush2.msra.mxu0 %v10235
        %10277 = vmatprep.subr.mxu0 %v10234
        %10278 = vmatpush2.msra.mxu0 %v10233
        %10279 = vmatprep.subr.mxu0 %v10232
        %10280 = vmatpush2.msra.mxu0 %v10231
        %10281 = vmatprep.subr.mxu0 %v10230
        %10282 = vmatpush2.msra.mxu0 %v10229
        %10283 = vmatprep.subr.mxu0 %v10228
        %10284 = vmatpush2.msra.mxu0 %v10227
        %10285 = vmatprep.subr.mxu0 %v10226
        %10286 = vmatpush2.msra.mxu0 %v10225
        %10287 = vmatprep.subr.mxu0 %v10224
        %10288 = vmatpush2.msra.mxu0 %v10223
        %10289 = vmatprep.subr.mxu0 %v10222
        %10290 = vmatpush2.msra.mxu0 %v10221
        %10291 = vmatprep.subr.mxu0 %v10220
        %10292 = vmatpush2.msra.mxu0 %v10219
        %10293 = vmatprep.subr.mxu0 %v10218
        %10294 = vmatpush2.msra.mxu0 %v10217
        %10295 = vmatprep.subr.mxu0 %v10216
        %10296 = vmatpush2.msra.mxu0 %v10215
        %10297 = vmatprep.subr.mxu0 %v10214
        %10298 = vmatpush2.msra.mxu0 %v10213
        %10299 = vmatprep.subr.mxu0 %v10212
        %10300 = vmatpush2.msra.mxu0 %v10211
        %10301 = vmatprep.subr.mxu0 %v10210
        %10302 = vmatpush2.msra.mxu0 %v10209
        %10303 = vmatprep.subr.mxu0 %v10208
        %10304 = vmatpush2.msra.mxu0 %v10207
        %10305 = vmatprep.subr.mxu0 %v10206
        %10306 = vmatpush2.msra.mxu0 %v10205
        %10307 = vmatprep.mubr.f32.mxu0 %v10240
        %10308 = vmatmul.mubr.f32.gmra.mxu0 %v10239
        %v10309 = vpop.f32.mrf.mxu0
        %v10310 = vadd.f32 0.0, %v10309
        %v10311 = vpop.f32.mrf.mxu0
        %v10312 = vadd.f32 0.0, %v10311
        %10313 = vdwg.mxu0
        %10314 = vmatprep.subr.mxu0 %v10139
        %10315 = vmatpush1.msra.mxu0 %v10138
        %10316 = vmatprep.subr.mxu0 %v10137
        %10317 = vmatpush1.msra.mxu0 %v10136
        %10318 = vmatprep.subr.mxu0 %v10135
        %10319 = vmatpush1.msra.mxu0 %v10134
        %10320 = vmatprep.subr.mxu0 %v10133
        %10321 = vmatpush1.msra.mxu0 %v10132
        %10322 = vmatprep.subr.mxu0 %v10131
        %10323 = vmatpush1.msra.mxu0 %v10130
        %10324 = vmatprep.subr.mxu0 %v10129
        %10325 = vmatpush1.msra.mxu0 %v10128
        %10326 = vmatprep.subr.mxu0 %v10127
        %10327 = vmatpush1.msra.mxu0 %v10126
        %10328 = vmatprep.subr.mxu0 %v10125
        %10329 = vmatpush1.msra.mxu0 %v10124
        %10330 = vmatprep.subr.mxu0 %v10123
        %10331 = vmatpush1.msra.mxu0 %v10122
        %10332 = vmatprep.subr.mxu0 %v10121
        %10333 = vmatpush1.msra.mxu0 %v10120
        %10334 = vmatprep.subr.mxu0 %v10119
        %10335 = vmatpush1.msra.mxu0 %v10118
        %10336 = vmatprep.subr.mxu0 %v10117
        %10337 = vmatpush1.msra.mxu0 %v10116
        %10338 = vmatprep.subr.mxu0 %v10115
        %10339 = vmatpush1.msra.mxu0 %v10114
        %10340 = vmatprep.subr.mxu0 %v10113
        %10341 = vmatpush1.msra.mxu0 %v10112
        %10342 = vmatprep.subr.mxu0 %v10111
        %10343 = vmatpush1.msra.mxu0 %v10110
        %10344 = vmatprep.subr.mxu0 %v10109
        %10345 = vmatpush1.msra.mxu0 %v10108
        %10346 = vmatprep.subr.mxu0 %v10171
        %10347 = vmatpush2.msra.mxu0 %v10170
        %10348 = vmatprep.subr.mxu0 %v10169
        %10349 = vmatpush2.msra.mxu0 %v10168
        %10350 = vmatprep.subr.mxu0 %v10167
        %10351 = vmatpush2.msra.mxu0 %v10166
        %10352 = vmatprep.subr.mxu0 %v10165
        %10353 = vmatpush2.msra.mxu0 %v10164
        %10354 = vmatprep.subr.mxu0 %v10163
        %10355 = vmatpush2.msra.mxu0 %v10162
        %10356 = vmatprep.subr.mxu0 %v10161
        %10357 = vmatpush2.msra.mxu0 %v10160
        %10358 = vmatprep.subr.mxu0 %v10159
        %10359 = vmatpush2.msra.mxu0 %v10158
        %10360 = vmatprep.subr.mxu0 %v10157
        %10361 = vmatpush2.msra.mxu0 %v10156
        %10362 = vmatprep.subr.mxu0 %v10155
        %10363 = vmatpush2.msra.mxu0 %v10154
        %10364 = vmatprep.subr.mxu0 %v10153
        %10365 = vmatpush2.msra.mxu0 %v10152
        %10366 = vmatprep.subr.mxu0 %v10151
        %10367 = vmatpush2.msra.mxu0 %v10150
        %10368 = vmatprep.subr.mxu0 %v10149
        %10369 = vmatpush2.msra.mxu0 %v10148
        %10370 = vmatprep.subr.mxu0 %v10147
        %10371 = vmatpush2.msra.mxu0 %v10146
        %10372 = vmatprep.subr.mxu0 %v10145
        %10373 = vmatpush2.msra.mxu0 %v10144
        %10374 = vmatprep.subr.mxu0 %v10143
        %10375 = vmatpush2.msra.mxu0 %v10142
        %10376 = vmatprep.subr.mxu0 %v10141
        %10377 = vmatpush2.msra.mxu0 %v10140
        %10378 = vmatprep.mubr.f32.mxu0 %v10107
        %10379 = vmatmul.mubr.f32.gmra.mxu0 %v10106
        %v10380 = vpop.f32.mrf.mxu0
        %v10381 = vadd.f32 %v10310, %v10380
        %v10382 = vpop.f32.mrf.mxu0
        %v10383 = vadd.f32 %v10312, %v10382
        %10384 = vdwg.mxu0
        %s10385 = scalar_lea.vmem %s51, 1024
        %v10386 = vld [vmem:[%s10385] sm:$0xff]
        %v10387 = vld [vmem:[%s10385 + $0x8] sm:$0xff]
        %v10388 = vld [vmem:[%s10385 + $0x10] sm:$0xff]
        %v10389 = vld [vmem:[%s10385 + $0x18] sm:$0xff]
        %v10390 = vld [vmem:[%s10385 + $0x20] sm:$0xff]
        %v10391 = vld [vmem:[%s10385 + $0x28] sm:$0xff]
        %v10392 = vld [vmem:[%s10385 + $0x30] sm:$0xff]
        %v10393 = vld [vmem:[%s10385 + $0x38] sm:$0xff]
        %v10394 = vld [vmem:[%s10385 + $0x40] sm:$0xff]
        %v10395 = vld [vmem:[%s10385 + $0x48] sm:$0xff]
        %v10396 = vld [vmem:[%s10385 + $0x50] sm:$0xff]
        %v10397 = vld [vmem:[%s10385 + $0x58] sm:$0xff]
        %v10398 = vld [vmem:[%s10385 + $0x60] sm:$0xff]
        %v10399 = vld [vmem:[%s10385 + $0x68] sm:$0xff]
        %v10400 = vld [vmem:[%s10385 + $0x70] sm:$0xff]
        %v10401 = vld [vmem:[%s10385 + $0x78] sm:$0xff]
        %v10402 = vld [vmem:[%s10385 + $0x80] sm:$0xff]
        %v10403 = vld [vmem:[%s10385 + $0x88] sm:$0xff]
        %v10404 = vld [vmem:[%s10385 + $0x90] sm:$0xff]
        %v10405 = vld [vmem:[%s10385 + $0x98] sm:$0xff]
        %v10406 = vld [vmem:[%s10385 + $0xa0] sm:$0xff]
        %v10407 = vld [vmem:[%s10385 + $0xa8] sm:$0xff]
        %v10408 = vld [vmem:[%s10385 + $0xb0] sm:$0xff]
        %v10409 = vld [vmem:[%s10385 + $0xb8] sm:$0xff]
        %v10410 = vld [vmem:[%s10385 + $0xc0] sm:$0xff]
        %v10411 = vld [vmem:[%s10385 + $0xc8] sm:$0xff]
        %v10412 = vld [vmem:[%s10385 + $0xd0] sm:$0xff]
        %v10413 = vld [vmem:[%s10385 + $0xd8] sm:$0xff]
        %v10414 = vld [vmem:[%s10385 + $0xe0] sm:$0xff]
        %v10415 = vld [vmem:[%s10385 + $0xe8] sm:$0xff]
        %v10416 = vld [vmem:[%s10385 + $0xf0] sm:$0xff]
        %v10417 = vld [vmem:[%s10385 + $0xf8] sm:$0xff]
        %v10418 = vld [vmem:[%s10385 + $0x100] sm:$0xff]
        %v10419 = vld [vmem:[%s10385 + $0x108] sm:$0xff]
        %v10420 = vld [vmem:[%s10385 + $0x110] sm:$0xff]
        %v10421 = vld [vmem:[%s10385 + $0x118] sm:$0xff]
        %v10422 = vld [vmem:[%s10385 + $0x120] sm:$0xff]
        %v10423 = vld [vmem:[%s10385 + $0x128] sm:$0xff]
        %v10424 = vld [vmem:[%s10385 + $0x130] sm:$0xff]
        %v10425 = vld [vmem:[%s10385 + $0x138] sm:$0xff]
        %v10426 = vld [vmem:[%s10385 + $0x140] sm:$0xff]
        %v10427 = vld [vmem:[%s10385 + $0x148] sm:$0xff]
        %v10428 = vld [vmem:[%s10385 + $0x150] sm:$0xff]
        %v10429 = vld [vmem:[%s10385 + $0x158] sm:$0xff]
        %v10430 = vld [vmem:[%s10385 + $0x160] sm:$0xff]
        %v10431 = vld [vmem:[%s10385 + $0x168] sm:$0xff]
        %v10432 = vld [vmem:[%s10385 + $0x170] sm:$0xff]
        %v10433 = vld [vmem:[%s10385 + $0x178] sm:$0xff]
        %v10434 = vld [vmem:[%s10385 + $0x180] sm:$0xff]
        %v10435 = vld [vmem:[%s10385 + $0x188] sm:$0xff]
        %v10436 = vld [vmem:[%s10385 + $0x190] sm:$0xff]
        %v10437 = vld [vmem:[%s10385 + $0x198] sm:$0xff]
        %v10438 = vld [vmem:[%s10385 + $0x1a0] sm:$0xff]
        %v10439 = vld [vmem:[%s10385 + $0x1a8] sm:$0xff]
        %v10440 = vld [vmem:[%s10385 + $0x1b0] sm:$0xff]
        %v10441 = vld [vmem:[%s10385 + $0x1b8] sm:$0xff]
        %v10442 = vld [vmem:[%s10385 + $0x1c0] sm:$0xff]
        %v10443 = vld [vmem:[%s10385 + $0x1c8] sm:$0xff]
        %v10444 = vld [vmem:[%s10385 + $0x1d0] sm:$0xff]
        %v10445 = vld [vmem:[%s10385 + $0x1d8] sm:$0xff]
        %v10446 = vld [vmem:[%s10385 + $0x1e0] sm:$0xff]
        %v10447 = vld [vmem:[%s10385 + $0x1e8] sm:$0xff]
        %v10448 = vld [vmem:[%s10385 + $0x1f0] sm:$0xff]
        %v10449 = vld [vmem:[%s10385 + $0x1f8] sm:$0xff]
        %v10450 = vrot.slane %v10106, 2
        %v10451 = vrot.slane %v10107, 2
        %10454 = vmatprep.subr.mxu0 %v10417
        %10455 = vmatpush1.msra.mxu0 %v10416
        %10456 = vmatprep.subr.mxu0 %v10415
        %10457 = vmatpush1.msra.mxu0 %v10414
        %10458 = vmatprep.subr.mxu0 %v10413
        %10459 = vmatpush1.msra.mxu0 %v10412
        %10460 = vmatprep.subr.mxu0 %v10411
        %10461 = vmatpush1.msra.mxu0 %v10410
        %10462 = vmatprep.subr.mxu0 %v10409
        %10463 = vmatpush1.msra.mxu0 %v10408
        %10464 = vmatprep.subr.mxu0 %v10407
        %10465 = vmatpush1.msra.mxu0 %v10406
        %10466 = vmatprep.subr.mxu0 %v10405
        %10467 = vmatpush1.msra.mxu0 %v10404
        %10468 = vmatprep.subr.mxu0 %v10403
        %10469 = vmatpush1.msra.mxu0 %v10402
        %10470 = vmatprep.subr.mxu0 %v10401
        %10471 = vmatpush1.msra.mxu0 %v10400
        %10472 = vmatprep.subr.mxu0 %v10399
        %10473 = vmatpush1.msra.mxu0 %v10398
        %10474 = vmatprep.subr.mxu0 %v10397
        %10475 = vmatpush1.msra.mxu0 %v10396
        %10476 = vmatprep.subr.mxu0 %v10395
        %10477 = vmatpush1.msra.mxu0 %v10394
        %10478 = vmatprep.subr.mxu0 %v10393
        %10479 = vmatpush1.msra.mxu0 %v10392
        %10480 = vmatprep.subr.mxu0 %v10391
        %10481 = vmatpush1.msra.mxu0 %v10390
        %10482 = vmatprep.subr.mxu0 %v10389
        %10483 = vmatpush1.msra.mxu0 %v10388
        %10484 = vmatprep.subr.mxu0 %v10387
        %10485 = vmatpush1.msra.mxu0 %v10386
        %10486 = vmatprep.subr.mxu0 %v10449
        %10487 = vmatpush2.msra.mxu0 %v10448
        %10488 = vmatprep.subr.mxu0 %v10447
        %10489 = vmatpush2.msra.mxu0 %v10446
        %10490 = vmatprep.subr.mxu0 %v10445
        %10491 = vmatpush2.msra.mxu0 %v10444
        %10492 = vmatprep.subr.mxu0 %v10443
        %10493 = vmatpush2.msra.mxu0 %v10442
        %10494 = vmatprep.subr.mxu0 %v10441
        %10495 = vmatpush2.msra.mxu0 %v10440
        %10496 = vmatprep.subr.mxu0 %v10439
        %10497 = vmatpush2.msra.mxu0 %v10438
        %10498 = vmatprep.subr.mxu0 %v10437
        %10499 = vmatpush2.msra.mxu0 %v10436
        %10500 = vmatprep.subr.mxu0 %v10435
        %10501 = vmatpush2.msra.mxu0 %v10434
        %10502 = vmatprep.subr.mxu0 %v10433
        %10503 = vmatpush2.msra.mxu0 %v10432
        %10504 = vmatprep.subr.mxu0 %v10431
        %10505 = vmatpush2.msra.mxu0 %v10430
        %10506 = vmatprep.subr.mxu0 %v10429
        %10507 = vmatpush2.msra.mxu0 %v10428
        %10508 = vmatprep.subr.mxu0 %v10427
        %10509 = vmatpush2.msra.mxu0 %v10426
        %10510 = vmatprep.subr.mxu0 %v10425
        %10511 = vmatpush2.msra.mxu0 %v10424
        %10512 = vmatprep.subr.mxu0 %v10423
        %10513 = vmatpush2.msra.mxu0 %v10422
        %10514 = vmatprep.subr.mxu0 %v10421
        %10515 = vmatpush2.msra.mxu0 %v10420
        %10516 = vmatprep.subr.mxu0 %v10419
        %10517 = vmatpush2.msra.mxu0 %v10418
        %10518 = vmatprep.mubr.f32.mxu0 %v10451
        %10519 = vmatmul.mubr.f32.gmra.mxu0 %v10450
        %v10520 = vpop.f32.mrf.mxu0
        %v10521 = vadd.f32 0.0, %v10520
        %v10522 = vpop.f32.mrf.mxu0
        %v10523 = vadd.f32 0.0, %v10522
        %10524 = vdwg.mxu0
        %v10525 = vadd.f32 %v10381, %v10521
        %v10526 = vadd.f32 %v10383, %v10523
        %v10527 = vld [vmem:[%s53] sm:$0x3]
        %v10529 = vlaneseq
        %v10530 = vshrl.u32 %v10529, 7
        %v10531 = vsub.s32 0, %v10530
        %v10532 = vrot.slane %v10527, %v10531
        %v10533 = vlaneseq
        %v10534 = vshrl.u32 %v10533, 7
        %v10535 = vsub.s32 1, %v10534
        %v10536 = vrot.slane %v10527, %v10535
        %v10539 = vmul.f32 %v10525, %v10532
        %v10540 = vmul.f32 %v10526, %v10536
        %v10541 = vld [vmem:[%s55] sm:$0x3]
        %v10543 = vlaneseq
        %v10544 = vshrl.u32 %v10543, 7
        %v10545 = vsub.s32 0, %v10544
        %v10546 = vrot.slane %v10541, %v10545
        %v10547 = vlaneseq
        %v10548 = vshrl.u32 %v10547, 7
        %v10549 = vsub.s32 1, %v10548
        %v10550 = vrot.slane %v10541, %v10549
        %v10553 = vadd.f32 %v10539, %v10546
        %v10554 = vadd.f32 %v10540, %v10550
        %v10555 = vmax.f32 %v10553, 0.0
        %v10556 = vmax.f32 %v10554, 0.0
        %v10557 = vsel %vm9710, %v10555, 0.0
        %v10558 = vrot.slane %v10557, 4
        %v10559 = vadd.f32 %v10557, %v10558
        %v10560 = vrot.slane %v10559, 2
        %v10561 = vadd.f32 %v10559, %v10560
        %v10562 = vrot.slane %v10561, 1
        %v10563 = vadd.f32 %v10561, %v10562
        %v10564 = vsel %vm9710, %v10556, 0.0
        %v10565 = vrot.slane %v10564, 4
        %v10566 = vadd.f32 %v10564, %v10565
        %v10567 = vrot.slane %v10566, 2
        %v10568 = vadd.f32 %v10566, %v10567
        %v10569 = vrot.slane %v10568, 1
        %v10570 = vadd.f32 %v10568, %v10569
        %v10571 = vrcp.pop 4.0
        %v10572 = vmul.f32 %v10563, %v10571
        %v10573 = vmul.f32 %v10570, %v10571
        %v10574 = vld [vmem:[%s57] sm:$0xff]
        %v10575 = vld [vmem:[%s57 + $0x8] sm:$0xff]
        %v10576 = vld [vmem:[%s57 + $0x10] sm:$0xff]
        %v10577 = vld [vmem:[%s57 + $0x18] sm:$0xff]
        %v10578 = vld [vmem:[%s57 + $0x20] sm:$0xff]
        %v10579 = vld [vmem:[%s57 + $0x28] sm:$0xff]
        %v10580 = vld [vmem:[%s57 + $0x30] sm:$0xff]
        %v10581 = vld [vmem:[%s57 + $0x38] sm:$0xff]
        %v10582 = vld [vmem:[%s57 + $0x40] sm:$0xff]
        %v10583 = vld [vmem:[%s57 + $0x48] sm:$0xff]
        %v10584 = vld [vmem:[%s57 + $0x50] sm:$0xff]
        %v10585 = vld [vmem:[%s57 + $0x58] sm:$0xff]
        %v10586 = vld [vmem:[%s57 + $0x60] sm:$0xff]
        %v10587 = vld [vmem:[%s57 + $0x68] sm:$0xff]
        %v10588 = vld [vmem:[%s57 + $0x70] sm:$0xff]
        %v10589 = vld [vmem:[%s57 + $0x78] sm:$0xff]
        %v10590 = vld [vmem:[%s57 + $0x80] sm:$0xff]
        %v10591 = vld [vmem:[%s57 + $0x88] sm:$0xff]
        %v10592 = vld [vmem:[%s57 + $0x90] sm:$0xff]
        %v10593 = vld [vmem:[%s57 + $0x98] sm:$0xff]
        %v10594 = vld [vmem:[%s57 + $0xa0] sm:$0xff]
        %v10595 = vld [vmem:[%s57 + $0xa8] sm:$0xff]
        %v10596 = vld [vmem:[%s57 + $0xb0] sm:$0xff]
        %v10597 = vld [vmem:[%s57 + $0xb8] sm:$0xff]
        %v10598 = vld [vmem:[%s57 + $0xc0] sm:$0xff]
        %v10599 = vld [vmem:[%s57 + $0xc8] sm:$0xff]
        %v10600 = vld [vmem:[%s57 + $0xd0] sm:$0xff]
        %v10601 = vld [vmem:[%s57 + $0xd8] sm:$0xff]
        %v10602 = vld [vmem:[%s57 + $0xe0] sm:$0xff]
        %v10603 = vld [vmem:[%s57 + $0xe8] sm:$0xff]
        %v10604 = vld [vmem:[%s57 + $0xf0] sm:$0xff]
        %v10605 = vld [vmem:[%s57 + $0xf8] sm:$0xff]
        %v10606 = vld [vmem:[%s59] sm:$0x1]
        %10607 = vmatprep.subr.mxu0 0.0
        %10608 = vmatpush1.msra.mxu0 %v10589
        %10609 = vmatprep.subr.mxu0 0.0
        %10610 = vmatpush1.msra.mxu0 %v10588
        %10611 = vmatprep.subr.mxu0 0.0
        %10612 = vmatpush1.msra.mxu0 %v10587
        %10613 = vmatprep.subr.mxu0 0.0
        %10614 = vmatpush1.msra.mxu0 %v10586
        %10615 = vmatprep.subr.mxu0 0.0
        %10616 = vmatpush1.msra.mxu0 %v10585
        %10617 = vmatprep.subr.mxu0 0.0
        %10618 = vmatpush1.msra.mxu0 %v10584
        %10619 = vmatprep.subr.mxu0 0.0
        %10620 = vmatpush1.msra.mxu0 %v10583
        %10621 = vmatprep.subr.mxu0 0.0
        %10622 = vmatpush1.msra.mxu0 %v10582
        %10623 = vmatprep.subr.mxu0 0.0
        %10624 = vmatpush1.msra.mxu0 %v10581
        %10625 = vmatprep.subr.mxu0 0.0
        %10626 = vmatpush1.msra.mxu0 %v10580
        %10627 = vmatprep.subr.mxu0 0.0
        %10628 = vmatpush1.msra.mxu0 %v10579
        %10629 = vmatprep.subr.mxu0 0.0
        %10630 = vmatpush1.msra.mxu0 %v10578
        %10631 = vmatprep.subr.mxu0 0.0
        %10632 = vmatpush1.msra.mxu0 %v10577
        %10633 = vmatprep.subr.mxu0 0.0
        %10634 = vmatpush1.msra.mxu0 %v10576
        %10635 = vmatprep.subr.mxu0 0.0
        %10636 = vmatpush1.msra.mxu0 %v10575
        %10637 = vmatprep.subr.mxu0 0.0
        %10638 = vmatpush1.msra.mxu0 %v10574
        %10639 = vmatprep.subr.mxu0 0.0
        %10640 = vmatpush2.msra.mxu0 %v10605
        %10641 = vmatprep.subr.mxu0 0.0
        %10642 = vmatpush2.msra.mxu0 %v10604
        %10643 = vmatprep.subr.mxu0 0.0
        %10644 = vmatpush2.msra.mxu0 %v10603
        %10645 = vmatprep.subr.mxu0 0.0
        %10646 = vmatpush2.msra.mxu0 %v10602
        %10647 = vmatprep.subr.mxu0 0.0
        %10648 = vmatpush2.msra.mxu0 %v10601
        %10649 = vmatprep.subr.mxu0 0.0
        %10650 = vmatpush2.msra.mxu0 %v10600
        %10651 = vmatprep.subr.mxu0 0.0
        %10652 = vmatpush2.msra.mxu0 %v10599
        %10653 = vmatprep.subr.mxu0 0.0
        %10654 = vmatpush2.msra.mxu0 %v10598
        %10655 = vmatprep.subr.mxu0 0.0
        %10656 = vmatpush2.msra.mxu0 %v10597
        %10657 = vmatprep.subr.mxu0 0.0
        %10658 = vmatpush2.msra.mxu0 %v10596
        %10659 = vmatprep.subr.mxu0 0.0
        %10660 = vmatpush2.msra.mxu0 %v10595
        %10661 = vmatprep.subr.mxu0 0.0
        %10662 = vmatpush2.msra.mxu0 %v10594
        %10663 = vmatprep.subr.mxu0 0.0
        %10664 = vmatpush2.msra.mxu0 %v10593
        %10665 = vmatprep.subr.mxu0 0.0
        %10666 = vmatpush2.msra.mxu0 %v10592
        %10667 = vmatprep.subr.mxu0 0.0
        %10668 = vmatpush2.msra.mxu0 %v10591
        %10669 = vmatprep.subr.mxu0 0.0
        %10670 = vmatpush2.msra.mxu0 %v10590
        %10671 = vmatprep.mubr.f32.mxu0 %v10573
        %10672 = vmatmul.mubr.f32.gmra.mxu0 %v10572
        %v10673 = vpop.f32.mrf.mxu0
        %v10674 = vadd.f32 %v10606, %v10673
        %v10675 = vpop.f32.mrf.mxu0
        %10676 = vdwg.mxu0
        %vm10677 = vcmask 73728
        %10678 = vst.msk [vmem:[%s922] sm:$0x1] %vm10677, %v10674
        %s10679 = sand.u32 %s718, 1
        %s10680 = scalar_lea.sflag [#allocation3], %s10679
        %s10681 = sand.u32 %s718, 1
        %s10682 = scalar_lea.vmem [#allocation2], %s10681
        // Predicated region
        $region141: #{m5_forward.1} parent=139 // pred_check
          %p10683 = pneg %p728
        $region142: #{m5_forward.1} parent=139 // pred_check_branch
          %10685 = sbr.rel (%p10683) target = $region144
        $region143: #{m5_forward.1} parent=139 // pred_region
          %s10687 = ssub.s32 16, 16
          %10688 = vsyncadd %s10680, %s10687
          %s10689 = smul.addr %s75, 16
          %s10690 = scalar_lea.hbm %s61, %s10689
          %s10692 = sshll.u32 %s10682, 4
          %s10693 = int_to_ptr.vmem [resolvable:$true] %s10692
          %10695 = dma.vmem_to_hbm [thread:$0]  %s10693, 16, %s10690, %s10680
        $region144: #{m5_forward.1} parent=139 // pred_fallthru
          _
      $region140: #{m5_forward.1} parent=5 // pred_fallthru
        _
      %p10696 = scmp.le.s32.totalorder 2, %s70
      // Predicated region
      $region145: #{m5_forward.1} parent=5 // pred_check
        %p10697 = pneg %p10696
      $region146: #{m5_forward.1} parent=5 // pred_check_branch
        %10699 = sbr.rel (%p10697) target = $region148
      $region147: #{m5_forward.1} parent=5 // pred_region
        %s10700 = ssub.s32 %s70, 2
        // Predicated region
        $region149: #{m5_forward.1} parent=147 // pred_check
          %p10701 = pneg %p734
        $region150: #{m5_forward.1} parent=147 // pred_check_branch
          %10703 = sbr.rel (%p10701) target = $region152
        $region151: #{m5_forward.1} parent=147 // pred_region
          %s10704 = sand.u32 %s719, 1
          %s10705 = scalar_lea.sflag [#allocation3], %s10704
          %s10706 = sand.u32 %s719, 1
          %s10707 = scalar_lea.vmem [#allocation2], %s10706
          %10708 = dma.done %s10705, 16
        $region152: #{m5_forward.1} parent=147 // pred_fallthru
          _
      $region148: #{m5_forward.1} parent=5 // pred_fallthru
        _
    $region6: #{m5_forward.1} parent=1 // loop_footer
      %s74 = sadd.s32 1, %s70
    $region7: #{m5_forward.1} parent=1 // loop_footer_branch
      %69 = sbr.rel target = $region3
    $region8: #{m5_forward.1} parent=1 // loop_exit
      _
    %10709 = vsyncpa [#allocation3], 1
    %s10710 = scalar_lea.sflag [#allocation3], 1
    %10711 = vsyncpa %s10710, 1

</llo_original>
